<compile_context>
chip_gen: v7x
topology: tpu7x:2x2x1
jax: 0.10.0
libtpu: 0.0.40
codegen_flags: <defaults>
</compile_context>

<pallas_src>
import math

import jax
import jax.numpy as jnp
from jax import lax
from jax.experimental import pallas as pl
from jax.experimental.pallas import tpu as pltpu

# ----------------------------- model hyper-params -----------------------------
B = 2                 # batch
S = 8                 # number of events (sequence length)
D_MODEL = 128
N_HEAD = 4
HEAD_DIM = D_MODEL // N_HEAD
D_FF = 256
TEXT_DIM = 768
NUM_EVENT_TYPES = 10
USER_FEAT_DIM = 16
NUM_LAYERS = 3
LN_EPS = 1e-5
FUSE_IN_DIM = TEXT_DIM + NUM_EVENT_TYPES + 2      # 780
FUSE_PAD_DIM = 896                                # 780 zero-padded to 7*128
N_ROWS = B * S


# ------------------------------ fused Pallas kernel ----------------------------
def _fused_forward_kernel(
    fin_ref, pe_ref, mask_ref, fw_ref, fb_ref,
    wqkv_ref, bqkv_ref, wo_ref, bo_ref, g1_ref, be1_ref,
    w1_ref, b1_ref, w2_ref, b2_ref, g2_ref, be2_ref,
    user_ref, wu_ref, bu_ref, wc1_ref, bc1_ref, wc2_ref, bc2_ref,
    out_ref, ctx_ref):
  """Event fusion + 3 transformer layers + classifier head in one invocation."""

  # ---------------- event fusion + time-aware positional encoding -------------
  combined = jnp.dot(fin_ref[...], fw_ref[...],
                     preferred_element_type=jnp.float32) + fb_ref[...]
  x = combined + pe_ref[...]                      # (B*S, 128) f32, stays in vregs

  mask_bias = mask_ref[...]                       # (16, 16) additive 0 / -1e30
  inv_sqrt = 1.0 / math.sqrt(HEAD_DIM)

  # ---------------------- 3 encoder layers, fully unrolled --------------------
  for l in range(NUM_LAYERS):
    xb = x.astype(jnp.bfloat16)
    qkv = jnp.dot(xb, wqkv_ref[l],
                  preferred_element_type=jnp.float32) + bqkv_ref[l]   # (16, 384)
    q = qkv[:, 0:D_MODEL] * inv_sqrt              # scale folded into q once
    k = qkv[:, D_MODEL:2 * D_MODEL]
    v = qkv[:, 2 * D_MODEL:3 * D_MODEL]

    for h in range(N_HEAD):                       # static unroll (4 heads)
      c0 = h * HEAD_DIM
      qh = q[:, c0:c0 + HEAD_DIM].astype(jnp.bfloat16)       # (16, 32) bf16
      kh_t = k[:, c0:c0 + HEAD_DIM].T.astype(jnp.bfloat16)   # (32, 16) bf16
      vh = v[:, c0:c0 + HEAD_DIM].astype(jnp.bfloat16)       # (16, 32) bf16
      s = jnp.dot(qh, kh_t, preferred_element_type=jnp.float32) + mask_bias
      m = jnp.max(s, axis=-1, keepdims=True)
      e = jnp.exp(s - m)
      p = e * pl.reciprocal(jnp.sum(e, axis=-1, keepdims=True), approx=True)
      # lane sub-write of this head's context into the shared (16,128) buffer
      ctx_ref[:, c0:c0 + HEAD_DIM] = jnp.dot(
          p.astype(jnp.bfloat16), vh, preferred_element_type=jnp.float32)

    # one full-K output projection instead of 4 padded K=32 matmuls
    attn = jnp.dot(ctx_ref[...].astype(jnp.bfloat16), wo_ref[l],
                   preferred_element_type=jnp.float32) + bo_ref[l]

    # residual + LayerNorm 1 (post-norm)
    y = x + attn
    mu = jnp.mean(y, axis=-1, keepdims=True)
    var = jnp.mean((y - mu) ** 2, axis=-1, keepdims=True)
    y = (y - mu) * lax.rsqrt(var + LN_EPS) * g1_ref[l] + be1_ref[l]

    # feed-forward: Linear(128,256) -> ReLU -> Linear(256,128)
    h1 = jnp.maximum(
        jnp.dot(y.astype(jnp.bfloat16), w1_ref[l],
                preferred_element_type=jnp.float32) + b1_ref[l], 0.0)
    ff = jnp.dot(h1.astype(jnp.bfloat16), w2_ref[l],
                 preferred_element_type=jnp.float32) + b2_ref[l]

    # residual + LayerNorm 2
    z = y + ff
    mu2 = jnp.mean(z, axis=-1, keepdims=True)
    var2 = jnp.mean((z - mu2) ** 2, axis=-1, keepdims=True)
    x = (z - mu2) * lax.rsqrt(var2 + LN_EPS) * g2_ref[l] + be2_ref[l]

  # --------------------- user encoder + classifier head -----------------------
  # seq_feat = memory[-1, :, :] in (S, B, D) layout == last event of each batch.
  # (16,128) -> (2,8,128) is tile-aligned (S == 8 sublanes), then static index.
  seq_feat = x.reshape(B, S, D_MODEL)[:, S - 1, :]                     # (B, 128)
  user_enc = jnp.maximum(
      jnp.dot(user_ref[...].astype(jnp.bfloat16), wu_ref[...],
              preferred_element_type=jnp.float32) + bu_ref[...], 0.0)  # (B, 64)
  wc1 = wc1_ref[...]                                                   # (192, 64)
  hidden = jnp.maximum(
      jnp.dot(seq_feat.astype(jnp.bfloat16), wc1[:D_MODEL, :],
              preferred_element_type=jnp.float32)
      + jnp.dot(user_enc.astype(jnp.bfloat16), wc1[D_MODEL:, :],
                preferred_element_type=jnp.float32)
      + bc1_ref[...], 0.0)                                             # (B, 64)
  logit = jnp.dot(hidden.astype(jnp.bfloat16), wc2_ref[...],
                  preferred_element_type=jnp.float32) + bc2_ref[...]   # (B, 128)
  out_ref[...] = jax.nn.sigmoid(logit)            # lane-dense; col 0 = result


# ------------------------------ forward wrapper --------------------------------
def event_transformer_forward(params, text_cls, event_types, time_intervals,
                              user_features):
  n = N_ROWS
  # host-side packing of the per-event inputs into one lane-dense, K-padded matrix
  text_flat = text_cls.reshape(n, TEXT_DIM)
  onehot = jax.nn.one_hot(event_types.reshape(n), NUM_EVENT_TYPES,
                          dtype=jnp.float32)
  time_flat = time_intervals.reshape(n, 2)
  kpad = jnp.zeros((n, FUSE_PAD_DIM - FUSE_IN_DIM), jnp.float32)
  fused_in = jnp.concatenate([text_flat, onehot, time_flat, kpad],
                             axis=-1).astype(jnp.bfloat16)            # (16, 896)

  # time-aware positional encoding: pure function of inputs; fold pe_scale in
  pos = time_intervals[:, :, 1].reshape(n, 1)
  idx = jnp.arange(0, D_MODEL, 2, dtype=jnp.float32)
  div_term = jnp.exp(idx * (-math.log(10000.0) / D_MODEL))            # (64,)
  pe = pos * div_term[None, :]
  pe = jnp.concatenate([jnp.sin(pe), jnp.cos(pe)], axis=-1)           # (16, 128)
  pe = (params["pe_scale"] * pe).astype(jnp.float32)

  # block-diagonal batch mask as an additive bias, hoisted out of the kernel
  rb = jnp.arange(n, dtype=jnp.int32)[:, None] // S
  cb = jnp.arange(n, dtype=jnp.int32)[None, :] // S
  mask_bias = jnp.where(rb == cb, 0.0, -1e30).astype(jnp.float32)     # (16, 16)

  user = user_features.astype(jnp.float32)

  out = pl.pallas_call(
      _fused_forward_kernel,
      out_shape=jax.ShapeDtypeStruct((B, D_MODEL), jnp.float32),
      scratch_shapes=[pltpu.VMEM((N_ROWS, D_MODEL), jnp.float32)],    # ctx buffer
  )(fused_in, pe, mask_bias, params["fuse_w"], params["fuse_b"],
    params["wqkv"], params["bqkv"], params["wo"], params["bo"],
    params["ln1_g"], params["ln1_b"],
    params["ffn_w1"], params["ffn_b1"], params["ffn_w2"], params["ffn_b2"],
    params["ln2_g"], params["ln2_b"],
    user, params["user_w"], params["user_b"],
    params["cls_w1"], params["cls_b1"], params["cls_w2p"], params["cls_b2p"])
  return out[:, :1]                               # (B, 1) probability


# ------------------------------ parameter init ---------------------------------
def init_params(key):
  def dense(k, fan_in, fan_out):
    kw, kb = jax.random.split(k)
    lim = 1.0 / math.sqrt(fan_in)
    w = jax.random.uniform(kw, (fan_in, fan_out), jnp.float32, -lim, lim)
    b = jax.random.uniform(kb, (1, fan_out), jnp.float32, -lim, lim)
    return w, b

  keys = jax.random.split(key, 8 + NUM_LAYERS)
  p = {}

  # event fusion: text_proj / event_embed / time_encoder folded into one
  # block-structured weight, K-padded to 896 (zero rows beyond 780).
  text_w, text_b = dense(keys[0], TEXT_DIM, 64)
  event_embed = jax.random.normal(keys[1], (NUM_EVENT_TYPES, 32), jnp.float32)
  time_w, time_b = dense(keys[2], 2, 32)
  fuse_w = jnp.zeros((FUSE_PAD_DIM, D_MODEL), jnp.float32)
  fuse_w = fuse_w.at[:TEXT_DIM, 0:64].set(text_w)
  fuse_w = fuse_w.at[TEXT_DIM:TEXT_DIM + NUM_EVENT_TYPES, 64:96].set(event_embed)
  fuse_w = fuse_w.at[TEXT_DIM + NUM_EVENT_TYPES:FUSE_IN_DIM, 96:128].set(time_w)
  p["fuse_w"] = fuse_w.astype(jnp.bfloat16)
  p["fuse_b"] = jnp.concatenate(
      [text_b, jnp.zeros((1, 32), jnp.float32), time_b], axis=-1)
  p["pe_scale"] = jnp.ones((1, 1), jnp.float32)

  # head
  user_w, user_b = dense(keys[3], USER_FEAT_DIM, 64)
  p["user_w"] = user_w.astype(jnp.bfloat16)
  p["user_b"] = user_b
  cls_w1, cls_b1 = dense(keys[4], D_MODEL + 64, 64)
  p["cls_w1"] = cls_w1.astype(jnp.bfloat16)
  p["cls_b1"] = cls_b1
  cls_w2, cls_b2 = dense(keys[5], 64, 1)
  p["cls_w2p"] = (jnp.zeros((64, D_MODEL), jnp.float32)
                  .at[:, 0:1].set(cls_w2)).astype(jnp.bfloat16)
  p["cls_b2p"] = jnp.zeros((1, D_MODEL), jnp.float32).at[:, 0:1].set(cls_b2)

  # transformer encoder layers, stacked along a leading layer dim
  wqkv, bqkv, wo, bo, g1, be1, w1, b1, w2, b2, g2, be2 = ([] for _ in range(12))
  for li in range(NUM_LAYERS):
    lk = jax.random.split(keys[8 + li], 6)
    wq_, bq_ = dense(lk[0], D_MODEL, D_MODEL)
    wk_, bk_ = dense(lk[1], D_MODEL, D_MODEL)
    wv_, bv_ = dense(lk[2], D_MODEL, D_MODEL)
    wo_, bo_ = dense(lk[3], D_MODEL, D_MODEL)
    w1_, b1_ = dense(lk[4], D_MODEL, D_FF)
    w2_, b2_ = dense(lk[5], D_FF, D_MODEL)
    wqkv.append(jnp.concatenate([wq_, wk_, wv_], axis=1))
    bqkv.append(jnp.concatenate([bq_, bk_, bv_], axis=1))
    wo.append(wo_); bo.append(bo_)
    w1.append(w1_); b1.append(b1_)
    w2.append(w2_); b2.append(b2_)
    g1.append(jnp.ones((1, D_MODEL), jnp.float32))
    be1.append(jnp.zeros((1, D_MODEL), jnp.float32))
    g2.append(jnp.ones((1, D_MODEL), jnp.float32))
    be2.append(jnp.zeros((1, D_MODEL), jnp.float32))

  p["wqkv"] = jnp.stack(wqkv).astype(jnp.bfloat16)      # (L, 128, 384)
  p["bqkv"] = jnp.stack(bqkv)                           # (L, 1, 384)
  p["wo"] = jnp.stack(wo).astype(jnp.bfloat16)          # (L, 128, 128)
  p["bo"] = jnp.stack(bo)
  p["ln1_g"] = jnp.stack(g1)
  p["ln1_b"] = jnp.stack(be1)
  p["ffn_w1"] = jnp.stack(w1).astype(jnp.bfloat16)      # (L, 128, 256)
  p["ffn_b1"] = jnp.stack(b1)
  p["ffn_w2"] = jnp.stack(w2).astype(jnp.bfloat16)      # (L, 256, 128)
  p["ffn_b2"] = jnp.stack(b2)
  p["ln2_g"] = jnp.stack(g2)
  p["ln2_b"] = jnp.stack(be2)
  return p


# ----------------------------------- main ---------------------------------------
if __name__ == "__main__":
  key = jax.random.PRNGKey(0)
  kp, k1, k2, k3, k4 = jax.random.split(key, 5)

  params = init_params(kp)

  # precomputed BERT CLS features per event (stand-in for bert-base-chinese)
  text_cls = jax.random.normal(k1, (B, S, TEXT_DIM), jnp.float32)
  event_types = jax.random.randint(k2, (B, S), 0, NUM_EVENT_TYPES, jnp.int32)
  time_intervals = jax.random.uniform(k3, (B, S, 2), jnp.float32, 0.0, 10.0)
  user_features = jax.random.normal(k4, (B, USER_FEAT_DIM), jnp.float32)

  forward = jax.jit(event_transformer_forward)
  out = forward(params, text_cls, event_types, time_intervals, user_features)
  out = jax.block_until_ready(out)

  assert out.shape == (B, 1)
  assert bool(jnp.all(jnp.isfinite(out)))
  assert bool(jnp.all((out >= 0.0) & (out <= 1.0)))
  print("KERNEL_OK")
</pallas_src>

<mosaic_0001>
module attributes {stable_mosaic.version = 11 : i64} {
  func.func @_fused_forward_kernel(%arg0: memref<16x896xbf16, #tpu.memory_space<vmem>>, %arg1: memref<16x128xf32, #tpu.memory_space<vmem>>, %arg2: memref<16x16xf32, #tpu.memory_space<vmem>>, %arg3: memref<896x128xbf16, #tpu.memory_space<vmem>>, %arg4: memref<1x128xf32, #tpu.memory_space<vmem>>, %arg5: memref<3x128x384xbf16, #tpu.memory_space<vmem>>, %arg6: memref<3x1x384xf32, #tpu.memory_space<vmem>>, %arg7: memref<3x128x128xbf16, #tpu.memory_space<vmem>>, %arg8: memref<3x1x128xf32, #tpu.memory_space<vmem>>, %arg9: memref<3x1x128xf32, #tpu.memory_space<vmem>>, %arg10: memref<3x1x128xf32, #tpu.memory_space<vmem>>, %arg11: memref<3x128x256xbf16, #tpu.memory_space<vmem>>, %arg12: memref<3x1x256xf32, #tpu.memory_space<vmem>>, %arg13: memref<3x256x128xbf16, #tpu.memory_space<vmem>>, %arg14: memref<3x1x128xf32, #tpu.memory_space<vmem>>, %arg15: memref<3x1x128xf32, #tpu.memory_space<vmem>>, %arg16: memref<3x1x128xf32, #tpu.memory_space<vmem>>, %arg17: memref<2x16xf32, #tpu.memory_space<vmem>>, %arg18: memref<16x64xbf16, #tpu.memory_space<vmem>>, %arg19: memref<1x64xf32, #tpu.memory_space<vmem>>, %arg20: memref<192x64xbf16, #tpu.memory_space<vmem>>, %arg21: memref<1x64xf32, #tpu.memory_space<vmem>>, %arg22: memref<64x128xbf16, #tpu.memory_space<vmem>>, %arg23: memref<1x128xf32, #tpu.memory_space<vmem>>, %arg24: memref<2x128xf32, #tpu.memory_space<vmem>>, %arg25: memref<16x128xf32, #tpu.memory_space<vmem>>) attributes {dimension_semantics = [], scalar_prefetch = 0 : i64, scratch_operands = 1 : i64, tpu.core_type = #tpu.core_type<tc>} {
    %c0 = arith.constant 0 : index
    %c0_0 = arith.constant 0 : index
    %0 = vector.load %arg0[%c0, %c0_0] : memref<16x896xbf16, #tpu.memory_space<vmem>>, vector<16x896xbf16>
    %c0_1 = arith.constant 0 : index
    %c0_2 = arith.constant 0 : index
    %1 = vector.load %arg3[%c0_1, %c0_2] : memref<896x128xbf16, #tpu.memory_space<vmem>>, vector<896x128xbf16>
    %cst = arith.constant dense<0.000000e+00> : vector<16x128xf32>
    %2 = tpu.matmul %0, %1, %cst {dimension_numbers = #tpu.dot_dimension_numbers<[1], [0], [0], [1], [0, 0, 1, 1], [], []>} : vector<16x896xbf16>, vector<896x128xbf16>, vector<16x128xf32> -> vector<16x128xf32>
    %c0_3 = arith.constant 0 : index
    %c0_4 = arith.constant 0 : index
    %3 = vector.load %arg4[%c0_3, %c0_4] : memref<1x128xf32, #tpu.memory_space<vmem>>, vector<1x128xf32>
    %4 = vector.broadcast %3 : vector<1x128xf32> to vector<16x128xf32>
    %5 = arith.addf %2, %4 : vector<16x128xf32>
    %c0_5 = arith.constant 0 : index
    %c0_6 = arith.constant 0 : index
    %6 = vector.load %arg1[%c0_5, %c0_6] : memref<16x128xf32, #tpu.memory_space<vmem>>, vector<16x128xf32>
    %7 = arith.addf %5, %6 : vector<16x128xf32>
    %c0_7 = arith.constant 0 : index
    %c0_8 = arith.constant 0 : index
    %8 = vector.load %arg2[%c0_7, %c0_8] : memref<16x16xf32, #tpu.memory_space<vmem>>, vector<16x16xf32>
    %9 = arith.truncf %7 : vector<16x128xf32> to vector<16x128xbf16>
    %c0_9 = arith.constant 0 : index
    %c0_10 = arith.constant 0 : index
    %c0_11 = arith.constant 0 : index
    %10 = vector.load %arg5[%c0_9, %c0_10, %c0_11] : memref<3x128x384xbf16, #tpu.memory_space<vmem>>, vector<1x128x384xbf16>
    %11 = vector.shape_cast %10 : vector<1x128x384xbf16> to vector<128x384xbf16>
    %cst_12 = arith.constant dense<0.000000e+00> : vector<16x384xf32>
    %12 = tpu.matmul %9, %11, %cst_12 {dimension_numbers = #tpu.dot_dimension_numbers<[1], [0], [0], [1], [0, 0, 1, 1], [], []>} : vector<16x128xbf16>, vector<128x384xbf16>, vector<16x384xf32> -> vector<16x384xf32>
    %c0_13 = arith.constant 0 : index
    %c0_14 = arith.constant 0 : index
    %c0_15 = arith.constant 0 : index
    %13 = vector.load %arg6[%c0_13, %c0_14, %c0_15] : memref<3x1x384xf32, #tpu.memory_space<vmem>>, vector<1x1x384xf32>
    %14 = vector.shape_cast %13 : vector<1x1x384xf32> to vector<1x384xf32>
    %15 = vector.broadcast %14 : vector<1x384xf32> to vector<16x384xf32>
    %16 = arith.addf %12, %15 : vector<16x384xf32>
    %17 = vector.extract_strided_slice %16 {offsets = [0, 0], sizes = [16, 128], strides = [1, 1]} : vector<16x384xf32> to vector<16x128xf32>
    %cst_16 = arith.constant 0.176776692 : f32
    %18 = vector.broadcast %cst_16 : f32 to vector<16x128xf32>
    %19 = arith.mulf %17, %18 : vector<16x128xf32>
    %20 = vector.extract_strided_slice %16 {offsets = [0, 128], sizes = [16, 128], strides = [1, 1]} : vector<16x384xf32> to vector<16x128xf32>
    %21 = vector.extract_strided_slice %16 {offsets = [0, 256], sizes = [16, 128], strides = [1, 1]} : vector<16x384xf32> to vector<16x128xf32>
    %22 = vector.extract_strided_slice %19 {offsets = [0, 0], sizes = [16, 32], strides = [1, 1]} : vector<16x128xf32> to vector<16x32xf32>
    %23 = arith.truncf %22 : vector<16x32xf32> to vector<16x32xbf16>
    %24 = vector.extract_strided_slice %20 {offsets = [0, 0], sizes = [16, 32], strides = [1, 1]} : vector<16x128xf32> to vector<16x32xf32>
    %25 = tpu.transpose %24, [1, 0] : vector<16x32xf32> -> vector<32x16xf32>
    %26 = arith.truncf %25 : vector<32x16xf32> to vector<32x16xbf16>
    %27 = vector.extract_strided_slice %21 {offsets = [0, 0], sizes = [16, 32], strides = [1, 1]} : vector<16x128xf32> to vector<16x32xf32>
    %28 = arith.truncf %27 : vector<16x32xf32> to vector<16x32xbf16>
    %cst_17 = arith.constant dense<0.000000e+00> : vector<16x16xf32>
    %29 = tpu.matmul %23, %26, %cst_17 {dimension_numbers = #tpu.dot_dimension_numbers<[1], [0], [0], [1], [0, 0, 1, 1], [], []>} : vector<16x32xbf16>, vector<32x16xbf16>, vector<16x16xf32> -> vector<16x16xf32>
    %30 = arith.addf %29, %8 : vector<16x16xf32>
    %cst_18 = arith.constant dense<0xFF800000> : vector<16xf32>
    %31 = vector.multi_reduction <maximumf>, %30, %cst_18 [1] : vector<16x16xf32> to vector<16xf32>
    %32 = vector.shape_cast %31 : vector<16xf32> to vector<16x1xf32>
    %33 = vector.broadcast %32 : vector<16x1xf32> to vector<16x16xf32>
    %34 = arith.subf %30, %33 : vector<16x16xf32>
    %35 = math.exp %34 : vector<16x16xf32>
    %cst_19 = arith.constant dense<0.000000e+00> : vector<16xf32>
    %36 = vector.multi_reduction <add>, %35, %cst_19 [1] : vector<16x16xf32> to vector<16xf32>
    %37 = vector.shape_cast %36 : vector<16xf32> to vector<16x1xf32>
    %38 = tpu.reciprocal %37 {approx = true} : vector<16x1xf32> -> vector<16x1xf32>
    %39 = vector.broadcast %38 : vector<16x1xf32> to vector<16x16xf32>
    %40 = arith.mulf %35, %39 : vector<16x16xf32>
    %41 = arith.truncf %40 : vector<16x16xf32> to vector<16x16xbf16>
    %cst_20 = arith.constant dense<0.000000e+00> : vector<16x32xf32>
    %42 = tpu.matmul %41, %28, %cst_20 {dimension_numbers = #tpu.dot_dimension_numbers<[1], [0], [0], [1], [0, 0, 1, 1], [], []>} : vector<16x16xbf16>, vector<16x32xbf16>, vector<16x32xf32> -> vector<16x32xf32>
    %c0_21 = arith.constant 0 : index
    %c0_22 = arith.constant 0 : index
    %43 = vector.load %arg25[%c0_21, %c0_22] : memref<16x128xf32, #tpu.memory_space<vmem>>, vector<16x32xf32>
    tpu.vector_store %arg25[%c0_21, %c0_22], %42 {strides = array<i32>} : memref<16x128xf32, #tpu.memory_space<vmem>>, vector<16x32xf32>,
    %44 = vector.extract_strided_slice %19 {offsets = [0, 32], sizes = [16, 32], strides = [1, 1]} : vector<16x128xf32> to vector<16x32xf32>
    %45 = arith.truncf %44 : vector<16x32xf32> to vector<16x32xbf16>
    %46 = vector.extract_strided_slice %20 {offsets = [0, 32], sizes = [16, 32], strides = [1, 1]} : vector<16x128xf32> to vector<16x32xf32>
    %47 = tpu.transpose %46, [1, 0] : vector<16x32xf32> -> vector<32x16xf32>
    %48 = arith.truncf %47 : vector<32x16xf32> to vector<32x16xbf16>
    %49 = vector.extract_strided_slice %21 {offsets = [0, 32], sizes = [16, 32], strides = [1, 1]} : vector<16x128xf32> to vector<16x32xf32>
    %50 = arith.truncf %49 : vector<16x32xf32> to vector<16x32xbf16>
    %cst_23 = arith.constant dense<0.000000e+00> : vector<16x16xf32>
    %51 = tpu.matmul %45, %48, %cst_23 {dimension_numbers = #tpu.dot_dimension_numbers<[1], [0], [0], [1], [0, 0, 1, 1], [], []>} : vector<16x32xbf16>, vector<32x16xbf16>, vector<16x16xf32> -> vector<16x16xf32>
    %52 = arith.addf %51, %8 : vector<16x16xf32>
    %cst_24 = arith.constant dense<0xFF800000> : vector<16xf32>
    %53 = vector.multi_reduction <maximumf>, %52, %cst_24 [1] : vector<16x16xf32> to vector<16xf32>
    %54 = vector.shape_cast %53 : vector<16xf32> to vector<16x1xf32>
    %55 = vector.broadcast %54 : vector<16x1xf32> to vector<16x16xf32>
    %56 = arith.subf %52, %55 : vector<16x16xf32>
    %57 = math.exp %56 : vector<16x16xf32>
    %cst_25 = arith.constant dense<0.000000e+00> : vector<16xf32>
    %58 = vector.multi_reduction <add>, %57, %cst_25 [1] : vector<16x16xf32> to vector<16xf32>
    %59 = vector.shape_cast %58 : vector<16xf32> to vector<16x1xf32>
    %60 = tpu.reciprocal %59 {approx = true} : vector<16x1xf32> -> vector<16x1xf32>
    %61 = vector.broadcast %60 : vector<16x1xf32> to vector<16x16xf32>
    %62 = arith.mulf %57, %61 : vector<16x16xf32>
    %63 = arith.truncf %62 : vector<16x16xf32> to vector<16x16xbf16>
    %cst_26 = arith.constant dense<0.000000e+00> : vector<16x32xf32>
    %64 = tpu.matmul %63, %50, %cst_26 {dimension_numbers = #tpu.dot_dimension_numbers<[1], [0], [0], [1], [0, 0, 1, 1], [], []>} : vector<16x16xbf16>, vector<16x32xbf16>, vector<16x32xf32> -> vector<16x32xf32>
    %c0_27 = arith.constant 0 : index
    %c32 = arith.constant 32 : index
    %65 = vector.load %arg25[%c0_27, %c32] : memref<16x128xf32, #tpu.memory_space<vmem>>, vector<16x32xf32>
    tpu.vector_store %arg25[%c0_27, %c32], %64 {strides = array<i32>} : memref<16x128xf32, #tpu.memory_space<vmem>>, vector<16x32xf32>,
    %66 = vector.extract_strided_slice %19 {offsets = [0, 64], sizes = [16, 32], strides = [1, 1]} : vector<16x128xf32> to vector<16x32xf32>
    %67 = arith.truncf %66 : vector<16x32xf32> to vector<16x32xbf16>
    %68 = vector.extract_strided_slice %20 {offsets = [0, 64], sizes = [16, 32], strides = [1, 1]} : vector<16x128xf32> to vector<16x32xf32>
    %69 = tpu.transpose %68, [1, 0] : vector<16x32xf32> -> vector<32x16xf32>
    %70 = arith.truncf %69 : vector<32x16xf32> to vector<32x16xbf16>
    %71 = vector.extract_strided_slice %21 {offsets = [0, 64], sizes = [16, 32], strides = [1, 1]} : vector<16x128xf32> to vector<16x32xf32>
    %72 = arith.truncf %71 : vector<16x32xf32> to vector<16x32xbf16>
    %cst_28 = arith.constant dense<0.000000e+00> : vector<16x16xf32>
    %73 = tpu.matmul %67, %70, %cst_28 {dimension_numbers = #tpu.dot_dimension_numbers<[1], [0], [0], [1], [0, 0, 1, 1], [], []>} : vector<16x32xbf16>, vector<32x16xbf16>, vector<16x16xf32> -> vector<16x16xf32>
    %74 = arith.addf %73, %8 : vector<16x16xf32>
    %cst_29 = arith.constant dense<0xFF800000> : vector<16xf32>
    %75 = vector.multi_reduction <maximumf>, %74, %cst_29 [1] : vector<16x16xf32> to vector<16xf32>
    %76 = vector.shape_cast %75 : vector<16xf32> to vector<16x1xf32>
    %77 = vector.broadcast %76 : vector<16x1xf32> to vector<16x16xf32>
    %78 = arith.subf %74, %77 : vector<16x16xf32>
    %79 = math.exp %78 : vector<16x16xf32>
    %cst_30 = arith.constant dense<0.000000e+00> : vector<16xf32>
    %80 = vector.multi_reduction <add>, %79, %cst_30 [1] : vector<16x16xf32> to vector<16xf32>
    %81 = vector.shape_cast %80 : vector<16xf32> to vector<16x1xf32>
    %82 = tpu.reciprocal %81 {approx = true} : vector<16x1xf32> -> vector<16x1xf32>
    %83 = vector.broadcast %82 : vector<16x1xf32> to vector<16x16xf32>
    %84 = arith.mulf %79, %83 : vector<16x16xf32>
    %85 = arith.truncf %84 : vector<16x16xf32> to vector<16x16xbf16>
    %cst_31 = arith.constant dense<0.000000e+00> : vector<16x32xf32>
    %86 = tpu.matmul %85, %72, %cst_31 {dimension_numbers = #tpu.dot_dimension_numbers<[1], [0], [0], [1], [0, 0, 1, 1], [], []>} : vector<16x16xbf16>, vector<16x32xbf16>, vector<16x32xf32> -> vector<16x32xf32>
    %c0_32 = arith.constant 0 : index
    %c64 = arith.constant 64 : index
    %87 = vector.load %arg25[%c0_32, %c64] : memref<16x128xf32, #tpu.memory_space<vmem>>, vector<16x32xf32>
    tpu.vector_store %arg25[%c0_32, %c64], %86 {strides = array<i32>} : memref<16x128xf32, #tpu.memory_space<vmem>>, vector<16x32xf32>,
    %88 = vector.extract_strided_slice %19 {offsets = [0, 96], sizes = [16, 32], strides = [1, 1]} : vector<16x128xf32> to vector<16x32xf32>
    %89 = arith.truncf %88 : vector<16x32xf32> to vector<16x32xbf16>
    %90 = vector.extract_strided_slice %20 {offsets = [0, 96], sizes = [16, 32], strides = [1, 1]} : vector<16x128xf32> to vector<16x32xf32>
    %91 = tpu.transpose %90, [1, 0] : vector<16x32xf32> -> vector<32x16xf32>
    %92 = arith.truncf %91 : vector<32x16xf32> to vector<32x16xbf16>
    %93 = vector.extract_strided_slice %21 {offsets = [0, 96], sizes = [16, 32], strides = [1, 1]} : vector<16x128xf32> to vector<16x32xf32>
    %94 = arith.truncf %93 : vector<16x32xf32> to vector<16x32xbf16>
    %cst_33 = arith.constant dense<0.000000e+00> : vector<16x16xf32>
    %95 = tpu.matmul %89, %92, %cst_33 {dimension_numbers = #tpu.dot_dimension_numbers<[1], [0], [0], [1], [0, 0, 1, 1], [], []>} : vector<16x32xbf16>, vector<32x16xbf16>, vector<16x16xf32> -> vector<16x16xf32>
    %96 = arith.addf %95, %8 : vector<16x16xf32>
    %cst_34 = arith.constant dense<0xFF800000> : vector<16xf32>
    %97 = vector.multi_reduction <maximumf>, %96, %cst_34 [1] : vector<16x16xf32> to vector<16xf32>
    %98 = vector.shape_cast %97 : vector<16xf32> to vector<16x1xf32>
    %99 = vector.broadcast %98 : vector<16x1xf32> to vector<16x16xf32>
    %100 = arith.subf %96, %99 : vector<16x16xf32>
    %101 = math.exp %100 : vector<16x16xf32>
    %cst_35 = arith.constant dense<0.000000e+00> : vector<16xf32>
    %102 = vector.multi_reduction <add>, %101, %cst_35 [1] : vector<16x16xf32> to vector<16xf32>
    %103 = vector.shape_cast %102 : vector<16xf32> to vector<16x1xf32>
    %104 = tpu.reciprocal %103 {approx = true} : vector<16x1xf32> -> vector<16x1xf32>
    %105 = vector.broadcast %104 : vector<16x1xf32> to vector<16x16xf32>
    %106 = arith.mulf %101, %105 : vector<16x16xf32>
    %107 = arith.truncf %106 : vector<16x16xf32> to vector<16x16xbf16>
    %cst_36 = arith.constant dense<0.000000e+00> : vector<16x32xf32>
    %108 = tpu.matmul %107, %94, %cst_36 {dimension_numbers = #tpu.dot_dimension_numbers<[1], [0], [0], [1], [0, 0, 1, 1], [], []>} : vector<16x16xbf16>, vector<16x32xbf16>, vector<16x32xf32> -> vector<16x32xf32>
    %c0_37 = arith.constant 0 : index
    %c96 = arith.constant 96 : index
    %109 = vector.load %arg25[%c0_37, %c96] : memref<16x128xf32, #tpu.memory_space<vmem>>, vector<16x32xf32>
    tpu.vector_store %arg25[%c0_37, %c96], %108 {strides = array<i32>} : memref<16x128xf32, #tpu.memory_space<vmem>>, vector<16x32xf32>,
    %c0_38 = arith.constant 0 : index
    %c0_39 = arith.constant 0 : index
    %110 = vector.load %arg25[%c0_38, %c0_39] : memref<16x128xf32, #tpu.memory_space<vmem>>, vector<16x128xf32>
    %111 = arith.truncf %110 : vector<16x128xf32> to vector<16x128xbf16>
    %c0_40 = arith.constant 0 : index
    %c0_41 = arith.constant 0 : index
    %c0_42 = arith.constant 0 : index
    %112 = vector.load %arg7[%c0_40, %c0_41, %c0_42] : memref<3x128x128xbf16, #tpu.memory_space<vmem>>, vector<1x128x128xbf16>
    %113 = vector.shape_cast %112 : vector<1x128x128xbf16> to vector<128x128xbf16>
    %cst_43 = arith.constant dense<0.000000e+00> : vector<16x128xf32>
    %114 = tpu.matmul %111, %113, %cst_43 {dimension_numbers = #tpu.dot_dimension_numbers<[1], [0], [0], [1], [0, 0, 1, 1], [], []>} : vector<16x128xbf16>, vector<128x128xbf16>, vector<16x128xf32> -> vector<16x128xf32>
    %c0_44 = arith.constant 0 : index
    %c0_45 = arith.constant 0 : index
    %c0_46 = arith.constant 0 : index
    %115 = vector.load %arg8[%c0_44, %c0_45, %c0_46] : memref<3x1x128xf32, #tpu.memory_space<vmem>>, vector<1x1x128xf32>
    %116 = vector.shape_cast %115 : vector<1x1x128xf32> to vector<1x128xf32>
    %117 = vector.broadcast %116 : vector<1x128xf32> to vector<16x128xf32>
    %118 = arith.addf %114, %117 : vector<16x128xf32>
    %119 = arith.addf %7, %118 : vector<16x128xf32>
    %cst_47 = arith.constant dense<0.000000e+00> : vector<16xf32>
    %120 = vector.multi_reduction <add>, %119, %cst_47 [1] : vector<16x128xf32> to vector<16xf32>
    %121 = vector.shape_cast %120 : vector<16xf32> to vector<16x1xf32>
    %cst_48 = arith.constant 1.280000e+02 : f32
    %122 = vector.broadcast %cst_48 : f32 to vector<16x1xf32>
    %123 = arith.divf %121, %122 : vector<16x1xf32>
    %124 = vector.broadcast %123 : vector<16x1xf32> to vector<16x128xf32>
    %125 = arith.subf %119, %124 : vector<16x128xf32>
    %126 = arith.mulf %125, %125 : vector<16x128xf32>
    %cst_49 = arith.constant dense<0.000000e+00> : vector<16xf32>
    %127 = vector.multi_reduction <add>, %126, %cst_49 [1] : vector<16x128xf32> to vector<16xf32>
    %128 = vector.shape_cast %127 : vector<16xf32> to vector<16x1xf32>
    %cst_50 = arith.constant 1.280000e+02 : f32
    %129 = vector.broadcast %cst_50 : f32 to vector<16x1xf32>
    %130 = arith.divf %128, %129 : vector<16x1xf32>
    %131 = vector.broadcast %123 : vector<16x1xf32> to vector<16x128xf32>
    %132 = arith.subf %119, %131 : vector<16x128xf32>
    %cst_51 = arith.constant 9.99999974E-6 : f32
    %133 = vector.broadcast %cst_51 : f32 to vector<16x1xf32>
    %134 = arith.addf %130, %133 : vector<16x1xf32>
    %135 = math.rsqrt %134 : vector<16x1xf32>
    %136 = vector.broadcast %135 : vector<16x1xf32> to vector<16x128xf32>
    %137 = arith.mulf %132, %136 : vector<16x128xf32>
    %c0_52 = arith.constant 0 : index
    %c0_53 = arith.constant 0 : index
    %c0_54 = arith.constant 0 : index
    %138 = vector.load %arg9[%c0_52, %c0_53, %c0_54] : memref<3x1x128xf32, #tpu.memory_space<vmem>>, vector<1x1x128xf32>
    %139 = vector.shape_cast %138 : vector<1x1x128xf32> to vector<1x128xf32>
    %140 = vector.broadcast %139 : vector<1x128xf32> to vector<16x128xf32>
    %141 = arith.mulf %137, %140 : vector<16x128xf32>
    %c0_55 = arith.constant 0 : index
    %c0_56 = arith.constant 0 : index
    %c0_57 = arith.constant 0 : index
    %142 = vector.load %arg10[%c0_55, %c0_56, %c0_57] : memref<3x1x128xf32, #tpu.memory_space<vmem>>, vector<1x1x128xf32>
    %143 = vector.shape_cast %142 : vector<1x1x128xf32> to vector<1x128xf32>
    %144 = vector.broadcast %143 : vector<1x128xf32> to vector<16x128xf32>
    %145 = arith.addf %141, %144 : vector<16x128xf32>
    %146 = arith.truncf %145 : vector<16x128xf32> to vector<16x128xbf16>
    %c0_58 = arith.constant 0 : index
    %c0_59 = arith.constant 0 : index
    %c0_60 = arith.constant 0 : index
    %147 = vector.load %arg11[%c0_58, %c0_59, %c0_60] : memref<3x128x256xbf16, #tpu.memory_space<vmem>>, vector<1x128x256xbf16>
    %148 = vector.shape_cast %147 : vector<1x128x256xbf16> to vector<128x256xbf16>
    %cst_61 = arith.constant dense<0.000000e+00> : vector<16x256xf32>
    %149 = tpu.matmul %146, %148, %cst_61 {dimension_numbers = #tpu.dot_dimension_numbers<[1], [0], [0], [1], [0, 0, 1, 1], [], []>} : vector<16x128xbf16>, vector<128x256xbf16>, vector<16x256xf32> -> vector<16x256xf32>
    %c0_62 = arith.constant 0 : index
    %c0_63 = arith.constant 0 : index
    %c0_64 = arith.constant 0 : index
    %150 = vector.load %arg12[%c0_62, %c0_63, %c0_64] : memref<3x1x256xf32, #tpu.memory_space<vmem>>, vector<1x1x256xf32>
    %151 = vector.shape_cast %150 : vector<1x1x256xf32> to vector<1x256xf32>
    %152 = vector.broadcast %151 : vector<1x256xf32> to vector<16x256xf32>
    %153 = arith.addf %149, %152 : vector<16x256xf32>
    %cst_65 = arith.constant 0.000000e+00 : f32
    %154 = vector.broadcast %cst_65 : f32 to vector<16x256xf32>
    %155 = arith.maximumf %153, %154 : vector<16x256xf32>
    %156 = arith.truncf %155 : vector<16x256xf32> to vector<16x256xbf16>
    %c0_66 = arith.constant 0 : index
    %c0_67 = arith.constant 0 : index
    %c0_68 = arith.constant 0 : index
    %157 = vector.load %arg13[%c0_66, %c0_67, %c0_68] : memref<3x256x128xbf16, #tpu.memory_space<vmem>>, vector<1x256x128xbf16>
    %158 = vector.shape_cast %157 : vector<1x256x128xbf16> to vector<256x128xbf16>
    %cst_69 = arith.constant dense<0.000000e+00> : vector<16x128xf32>
    %159 = tpu.matmul %156, %158, %cst_69 {dimension_numbers = #tpu.dot_dimension_numbers<[1], [0], [0], [1], [0, 0, 1, 1], [], []>} : vector<16x256xbf16>, vector<256x128xbf16>, vector<16x128xf32> -> vector<16x128xf32>
    %c0_70 = arith.constant 0 : index
    %c0_71 = arith.constant 0 : index
    %c0_72 = arith.constant 0 : index
    %160 = vector.load %arg14[%c0_70, %c0_71, %c0_72] : memref<3x1x128xf32, #tpu.memory_space<vmem>>, vector<1x1x128xf32>
    %161 = vector.shape_cast %160 : vector<1x1x128xf32> to vector<1x128xf32>
    %162 = vector.broadcast %161 : vector<1x128xf32> to vector<16x128xf32>
    %163 = arith.addf %159, %162 : vector<16x128xf32>
    %164 = arith.addf %145, %163 : vector<16x128xf32>
    %cst_73 = arith.constant dense<0.000000e+00> : vector<16xf32>
    %165 = vector.multi_reduction <add>, %164, %cst_73 [1] : vector<16x128xf32> to vector<16xf32>
    %166 = vector.shape_cast %165 : vector<16xf32> to vector<16x1xf32>
    %cst_74 = arith.constant 1.280000e+02 : f32
    %167 = vector.broadcast %cst_74 : f32 to vector<16x1xf32>
    %168 = arith.divf %166, %167 : vector<16x1xf32>
    %169 = vector.broadcast %168 : vector<16x1xf32> to vector<16x128xf32>
    %170 = arith.subf %164, %169 : vector<16x128xf32>
    %171 = arith.mulf %170, %170 : vector<16x128xf32>
    %cst_75 = arith.constant dense<0.000000e+00> : vector<16xf32>
    %172 = vector.multi_reduction <add>, %171, %cst_75 [1] : vector<16x128xf32> to vector<16xf32>
    %173 = vector.shape_cast %172 : vector<16xf32> to vector<16x1xf32>
    %cst_76 = arith.constant 1.280000e+02 : f32
    %174 = vector.broadcast %cst_76 : f32 to vector<16x1xf32>
    %175 = arith.divf %173, %174 : vector<16x1xf32>
    %176 = vector.broadcast %168 : vector<16x1xf32> to vector<16x128xf32>
    %177 = arith.subf %164, %176 : vector<16x128xf32>
    %cst_77 = arith.constant 9.99999974E-6 : f32
    %178 = vector.broadcast %cst_77 : f32 to vector<16x1xf32>
    %179 = arith.addf %175, %178 : vector<16x1xf32>
    %180 = math.rsqrt %179 : vector<16x1xf32>
    %181 = vector.broadcast %180 : vector<16x1xf32> to vector<16x128xf32>
    %182 = arith.mulf %177, %181 : vector<16x128xf32>
    %c0_78 = arith.constant 0 : index
    %c0_79 = arith.constant 0 : index
    %c0_80 = arith.constant 0 : index
    %183 = vector.load %arg15[%c0_78, %c0_79, %c0_80] : memref<3x1x128xf32, #tpu.memory_space<vmem>>, vector<1x1x128xf32>
    %184 = vector.shape_cast %183 : vector<1x1x128xf32> to vector<1x128xf32>
    %185 = vector.broadcast %184 : vector<1x128xf32> to vector<16x128xf32>
    %186 = arith.mulf %182, %185 : vector<16x128xf32>
    %c0_81 = arith.constant 0 : index
    %c0_82 = arith.constant 0 : index
    %c0_83 = arith.constant 0 : index
    %187 = vector.load %arg16[%c0_81, %c0_82, %c0_83] : memref<3x1x128xf32, #tpu.memory_space<vmem>>, vector<1x1x128xf32>
    %188 = vector.shape_cast %187 : vector<1x1x128xf32> to vector<1x128xf32>
    %189 = vector.broadcast %188 : vector<1x128xf32> to vector<16x128xf32>
    %190 = arith.addf %186, %189 : vector<16x128xf32>
    %191 = arith.truncf %190 : vector<16x128xf32> to vector<16x128xbf16>
    %c1 = arith.constant 1 : index
    %c0_84 = arith.constant 0 : index
    %c0_85 = arith.constant 0 : index
    %192 = vector.load %arg5[%c1, %c0_84, %c0_85] : memref<3x128x384xbf16, #tpu.memory_space<vmem>>, vector<1x128x384xbf16>
    %193 = vector.shape_cast %192 : vector<1x128x384xbf16> to vector<128x384xbf16>
    %cst_86 = arith.constant dense<0.000000e+00> : vector<16x384xf32>
    %194 = tpu.matmul %191, %193, %cst_86 {dimension_numbers = #tpu.dot_dimension_numbers<[1], [0], [0], [1], [0, 0, 1, 1], [], []>} : vector<16x128xbf16>, vector<128x384xbf16>, vector<16x384xf32> -> vector<16x384xf32>
    %c1_87 = arith.constant 1 : index
    %c0_88 = arith.constant 0 : index
    %c0_89 = arith.constant 0 : index
    %195 = vector.load %arg6[%c1_87, %c0_88, %c0_89] : memref<3x1x384xf32, #tpu.memory_space<vmem>>, vector<1x1x384xf32>
    %196 = vector.shape_cast %195 : vector<1x1x384xf32> to vector<1x384xf32>
    %197 = vector.broadcast %196 : vector<1x384xf32> to vector<16x384xf32>
    %198 = arith.addf %194, %197 : vector<16x384xf32>
    %199 = vector.extract_strided_slice %198 {offsets = [0, 0], sizes = [16, 128], strides = [1, 1]} : vector<16x384xf32> to vector<16x128xf32>
    %cst_90 = arith.constant 0.176776692 : f32
    %200 = vector.broadcast %cst_90 : f32 to vector<16x128xf32>
    %201 = arith.mulf %199, %200 : vector<16x128xf32>
    %202 = vector.extract_strided_slice %198 {offsets = [0, 128], sizes = [16, 128], strides = [1, 1]} : vector<16x384xf32> to vector<16x128xf32>
    %203 = vector.extract_strided_slice %198 {offsets = [0, 256], sizes = [16, 128], strides = [1, 1]} : vector<16x384xf32> to vector<16x128xf32>
    %204 = vector.extract_strided_slice %201 {offsets = [0, 0], sizes = [16, 32], strides = [1, 1]} : vector<16x128xf32> to vector<16x32xf32>
    %205 = arith.truncf %204 : vector<16x32xf32> to vector<16x32xbf16>
    %206 = vector.extract_strided_slice %202 {offsets = [0, 0], sizes = [16, 32], strides = [1, 1]} : vector<16x128xf32> to vector<16x32xf32>
    %207 = tpu.transpose %206, [1, 0] : vector<16x32xf32> -> vector<32x16xf32>
    %208 = arith.truncf %207 : vector<32x16xf32> to vector<32x16xbf16>
    %209 = vector.extract_strided_slice %203 {offsets = [0, 0], sizes = [16, 32], strides = [1, 1]} : vector<16x128xf32> to vector<16x32xf32>
    %210 = arith.truncf %209 : vector<16x32xf32> to vector<16x32xbf16>
    %cst_91 = arith.constant dense<0.000000e+00> : vector<16x16xf32>
    %211 = tpu.matmul %205, %208, %cst_91 {dimension_numbers = #tpu.dot_dimension_numbers<[1], [0], [0], [1], [0, 0, 1, 1], [], []>} : vector<16x32xbf16>, vector<32x16xbf16>, vector<16x16xf32> -> vector<16x16xf32>
    %212 = arith.addf %211, %8 : vector<16x16xf32>
    %cst_92 = arith.constant dense<0xFF800000> : vector<16xf32>
    %213 = vector.multi_reduction <maximumf>, %212, %cst_92 [1] : vector<16x16xf32> to vector<16xf32>
    %214 = vector.shape_cast %213 : vector<16xf32> to vector<16x1xf32>
    %215 = vector.broadcast %214 : vector<16x1xf32> to vector<16x16xf32>
    %216 = arith.subf %212, %215 : vector<16x16xf32>
    %217 = math.exp %216 : vector<16x16xf32>
    %cst_93 = arith.constant dense<0.000000e+00> : vector<16xf32>
    %218 = vector.multi_reduction <add>, %217, %cst_93 [1] : vector<16x16xf32> to vector<16xf32>
    %219 = vector.shape_cast %218 : vector<16xf32> to vector<16x1xf32>
    %220 = tpu.reciprocal %219 {approx = true} : vector<16x1xf32> -> vector<16x1xf32>
    %221 = vector.broadcast %220 : vector<16x1xf32> to vector<16x16xf32>
    %222 = arith.mulf %217, %221 : vector<16x16xf32>
    %223 = arith.truncf %222 : vector<16x16xf32> to vector<16x16xbf16>
    %cst_94 = arith.constant dense<0.000000e+00> : vector<16x32xf32>
    %224 = tpu.matmul %223, %210, %cst_94 {dimension_numbers = #tpu.dot_dimension_numbers<[1], [0], [0], [1], [0, 0, 1, 1], [], []>} : vector<16x16xbf16>, vector<16x32xbf16>, vector<16x32xf32> -> vector<16x32xf32>
    %c0_95 = arith.constant 0 : index
    %c0_96 = arith.constant 0 : index
    %225 = vector.load %arg25[%c0_95, %c0_96] : memref<16x128xf32, #tpu.memory_space<vmem>>, vector<16x32xf32>
    tpu.vector_store %arg25[%c0_95, %c0_96], %224 {strides = array<i32>} : memref<16x128xf32, #tpu.memory_space<vmem>>, vector<16x32xf32>,
    %226 = vector.extract_strided_slice %201 {offsets = [0, 32], sizes = [16, 32], strides = [1, 1]} : vector<16x128xf32> to vector<16x32xf32>
    %227 = arith.truncf %226 : vector<16x32xf32> to vector<16x32xbf16>
    %228 = vector.extract_strided_slice %202 {offsets = [0, 32], sizes = [16, 32], strides = [1, 1]} : vector<16x128xf32> to vector<16x32xf32>
    %229 = tpu.transpose %228, [1, 0] : vector<16x32xf32> -> vector<32x16xf32>
    %230 = arith.truncf %229 : vector<32x16xf32> to vector<32x16xbf16>
    %231 = vector.extract_strided_slice %203 {offsets = [0, 32], sizes = [16, 32], strides = [1, 1]} : vector<16x128xf32> to vector<16x32xf32>
    %232 = arith.truncf %231 : vector<16x32xf32> to vector<16x32xbf16>
    %cst_97 = arith.constant dense<0.000000e+00> : vector<16x16xf32>
    %233 = tpu.matmul %227, %230, %cst_97 {dimension_numbers = #tpu.dot_dimension_numbers<[1], [0], [0], [1], [0, 0, 1, 1], [], []>} : vector<16x32xbf16>, vector<32x16xbf16>, vector<16x16xf32> -> vector<16x16xf32>
    %234 = arith.addf %233, %8 : vector<16x16xf32>
    %cst_98 = arith.constant dense<0xFF800000> : vector<16xf32>
    %235 = vector.multi_reduction <maximumf>, %234, %cst_98 [1] : vector<16x16xf32> to vector<16xf32>
    %236 = vector.shape_cast %235 : vector<16xf32> to vector<16x1xf32>
    %237 = vector.broadcast %236 : vector<16x1xf32> to vector<16x16xf32>
    %238 = arith.subf %234, %237 : vector<16x16xf32>
    %239 = math.exp %238 : vector<16x16xf32>
    %cst_99 = arith.constant dense<0.000000e+00> : vector<16xf32>
    %240 = vector.multi_reduction <add>, %239, %cst_99 [1] : vector<16x16xf32> to vector<16xf32>
    %241 = vector.shape_cast %240 : vector<16xf32> to vector<16x1xf32>
    %242 = tpu.reciprocal %241 {approx = true} : vector<16x1xf32> -> vector<16x1xf32>
    %243 = vector.broadcast %242 : vector<16x1xf32> to vector<16x16xf32>
    %244 = arith.mulf %239, %243 : vector<16x16xf32>
    %245 = arith.truncf %244 : vector<16x16xf32> to vector<16x16xbf16>
    %cst_100 = arith.constant dense<0.000000e+00> : vector<16x32xf32>
    %246 = tpu.matmul %245, %232, %cst_100 {dimension_numbers = #tpu.dot_dimension_numbers<[1], [0], [0], [1], [0, 0, 1, 1], [], []>} : vector<16x16xbf16>, vector<16x32xbf16>, vector<16x32xf32> -> vector<16x32xf32>
    %c0_101 = arith.constant 0 : index
    %c32_102 = arith.constant 32 : index
    %247 = vector.load %arg25[%c0_101, %c32_102] : memref<16x128xf32, #tpu.memory_space<vmem>>, vector<16x32xf32>
    tpu.vector_store %arg25[%c0_101, %c32_102], %246 {strides = array<i32>} : memref<16x128xf32, #tpu.memory_space<vmem>>, vector<16x32xf32>,
    %248 = vector.extract_strided_slice %201 {offsets = [0, 64], sizes = [16, 32], strides = [1, 1]} : vector<16x128xf32> to vector<16x32xf32>
    %249 = arith.truncf %248 : vector<16x32xf32> to vector<16x32xbf16>
    %250 = vector.extract_strided_slice %202 {offsets = [0, 64], sizes = [16, 32], strides = [1, 1]} : vector<16x128xf32> to vector<16x32xf32>
    %251 = tpu.transpose %250, [1, 0] : vector<16x32xf32> -> vector<32x16xf32>
    %252 = arith.truncf %251 : vector<32x16xf32> to vector<32x16xbf16>
    %253 = vector.extract_strided_slice %203 {offsets = [0, 64], sizes = [16, 32], strides = [1, 1]} : vector<16x128xf32> to vector<16x32xf32>
    %254 = arith.truncf %253 : vector<16x32xf32> to vector<16x32xbf16>
    %cst_103 = arith.constant dense<0.000000e+00> : vector<16x16xf32>
    %255 = tpu.matmul %249, %252, %cst_103 {dimension_numbers = #tpu.dot_dimension_numbers<[1], [0], [0], [1], [0, 0, 1, 1], [], []>} : vector<16x32xbf16>, vector<32x16xbf16>, vector<16x16xf32> -> vector<16x16xf32>
    %256 = arith.addf %255, %8 : vector<16x16xf32>
    %cst_104 = arith.constant dense<0xFF800000> : vector<16xf32>
    %257 = vector.multi_reduction <maximumf>, %256, %cst_104 [1] : vector<16x16xf32> to vector<16xf32>
    %258 = vector.shape_cast %257 : vector<16xf32> to vector<16x1xf32>
    %259 = vector.broadcast %258 : vector<16x1xf32> to vector<16x16xf32>
    %260 = arith.subf %256, %259 : vector<16x16xf32>
    %261 = math.exp %260 : vector<16x16xf32>
    %cst_105 = arith.constant dense<0.000000e+00> : vector<16xf32>
    %262 = vector.multi_reduction <add>, %261, %cst_105 [1] : vector<16x16xf32> to vector<16xf32>
    %263 = vector.shape_cast %262 : vector<16xf32> to vector<16x1xf32>
    %264 = tpu.reciprocal %263 {approx = true} : vector<16x1xf32> -> vector<16x1xf32>
    %265 = vector.broadcast %264 : vector<16x1xf32> to vector<16x16xf32>
    %266 = arith.mulf %261, %265 : vector<16x16xf32>
    %267 = arith.truncf %266 : vector<16x16xf32> to vector<16x16xbf16>
    %cst_106 = arith.constant dense<0.000000e+00> : vector<16x32xf32>
    %268 = tpu.matmul %267, %254, %cst_106 {dimension_numbers = #tpu.dot_dimension_numbers<[1], [0], [0], [1], [0, 0, 1, 1], [], []>} : vector<16x16xbf16>, vector<16x32xbf16>, vector<16x32xf32> -> vector<16x32xf32>
    %c0_107 = arith.constant 0 : index
    %c64_108 = arith.constant 64 : index
    %269 = vector.load %arg25[%c0_107, %c64_108] : memref<16x128xf32, #tpu.memory_space<vmem>>, vector<16x32xf32>
    tpu.vector_store %arg25[%c0_107, %c64_108], %268 {strides = array<i32>} : memref<16x128xf32, #tpu.memory_space<vmem>>, vector<16x32xf32>,
    %270 = vector.extract_strided_slice %201 {offsets = [0, 96], sizes = [16, 32], strides = [1, 1]} : vector<16x128xf32> to vector<16x32xf32>
    %271 = arith.truncf %270 : vector<16x32xf32> to vector<16x32xbf16>
    %272 = vector.extract_strided_slice %202 {offsets = [0, 96], sizes = [16, 32], strides = [1, 1]} : vector<16x128xf32> to vector<16x32xf32>
    %273 = tpu.transpose %272, [1, 0] : vector<16x32xf32> -> vector<32x16xf32>
    %274 = arith.truncf %273 : vector<32x16xf32> to vector<32x16xbf16>
    %275 = vector.extract_strided_slice %203 {offsets = [0, 96], sizes = [16, 32], strides = [1, 1]} : vector<16x128xf32> to vector<16x32xf32>
    %276 = arith.truncf %275 : vector<16x32xf32> to vector<16x32xbf16>
    %cst_109 = arith.constant dense<0.000000e+00> : vector<16x16xf32>
    %277 = tpu.matmul %271, %274, %cst_109 {dimension_numbers = #tpu.dot_dimension_numbers<[1], [0], [0], [1], [0, 0, 1, 1], [], []>} : vector<16x32xbf16>, vector<32x16xbf16>, vector<16x16xf32> -> vector<16x16xf32>
    %278 = arith.addf %277, %8 : vector<16x16xf32>
    %cst_110 = arith.constant dense<0xFF800000> : vector<16xf32>
    %279 = vector.multi_reduction <maximumf>, %278, %cst_110 [1] : vector<16x16xf32> to vector<16xf32>
    %280 = vector.shape_cast %279 : vector<16xf32> to vector<16x1xf32>
    %281 = vector.broadcast %280 : vector<16x1xf32> to vector<16x16xf32>
    %282 = arith.subf %278, %281 : vector<16x16xf32>
    %283 = math.exp %282 : vector<16x16xf32>
    %cst_111 = arith.constant dense<0.000000e+00> : vector<16xf32>
    %284 = vector.multi_reduction <add>, %283, %cst_111 [1] : vector<16x16xf32> to vector<16xf32>
    %285 = vector.shape_cast %284 : vector<16xf32> to vector<16x1xf32>
    %286 = tpu.reciprocal %285 {approx = true} : vector<16x1xf32> -> vector<16x1xf32>
    %287 = vector.broadcast %286 : vector<16x1xf32> to vector<16x16xf32>
    %288 = arith.mulf %283, %287 : vector<16x16xf32>
    %289 = arith.truncf %288 : vector<16x16xf32> to vector<16x16xbf16>
    %cst_112 = arith.constant dense<0.000000e+00> : vector<16x32xf32>
    %290 = tpu.matmul %289, %276, %cst_112 {dimension_numbers = #tpu.dot_dimension_numbers<[1], [0], [0], [1], [0, 0, 1, 1], [], []>} : vector<16x16xbf16>, vector<16x32xbf16>, vector<16x32xf32> -> vector<16x32xf32>
    %c0_113 = arith.constant 0 : index
    %c96_114 = arith.constant 96 : index
    %291 = vector.load %arg25[%c0_113, %c96_114] : memref<16x128xf32, #tpu.memory_space<vmem>>, vector<16x32xf32>
    tpu.vector_store %arg25[%c0_113, %c96_114], %290 {strides = array<i32>} : memref<16x128xf32, #tpu.memory_space<vmem>>, vector<16x32xf32>,
    %c0_115 = arith.constant 0 : index
    %c0_116 = arith.constant 0 : index
    %292 = vector.load %arg25[%c0_115, %c0_116] : memref<16x128xf32, #tpu.memory_space<vmem>>, vector<16x128xf32>
    %293 = arith.truncf %292 : vector<16x128xf32> to vector<16x128xbf16>
    %c1_117 = arith.constant 1 : index
    %c0_118 = arith.constant 0 : index
    %c0_119 = arith.constant 0 : index
    %294 = vector.load %arg7[%c1_117, %c0_118, %c0_119] : memref<3x128x128xbf16, #tpu.memory_space<vmem>>, vector<1x128x128xbf16>
    %295 = vector.shape_cast %294 : vector<1x128x128xbf16> to vector<128x128xbf16>
    %cst_120 = arith.constant dense<0.000000e+00> : vector<16x128xf32>
    %296 = tpu.matmul %293, %295, %cst_120 {dimension_numbers = #tpu.dot_dimension_numbers<[1], [0], [0], [1], [0, 0, 1, 1], [], []>} : vector<16x128xbf16>, vector<128x128xbf16>, vector<16x128xf32> -> vector<16x128xf32>
    %c1_121 = arith.constant 1 : index
    %c0_122 = arith.constant 0 : index
    %c0_123 = arith.constant 0 : index
    %297 = vector.load %arg8[%c1_121, %c0_122, %c0_123] : memref<3x1x128xf32, #tpu.memory_space<vmem>>, vector<1x1x128xf32>
    %298 = vector.shape_cast %297 : vector<1x1x128xf32> to vector<1x128xf32>
    %299 = vector.broadcast %298 : vector<1x128xf32> to vector<16x128xf32>
    %300 = arith.addf %296, %299 : vector<16x128xf32>
    %301 = arith.addf %190, %300 : vector<16x128xf32>
    %cst_124 = arith.constant dense<0.000000e+00> : vector<16xf32>
    %302 = vector.multi_reduction <add>, %301, %cst_124 [1] : vector<16x128xf32> to vector<16xf32>
    %303 = vector.shape_cast %302 : vector<16xf32> to vector<16x1xf32>
    %cst_125 = arith.constant 1.280000e+02 : f32
    %304 = vector.broadcast %cst_125 : f32 to vector<16x1xf32>
    %305 = arith.divf %303, %304 : vector<16x1xf32>
    %306 = vector.broadcast %305 : vector<16x1xf32> to vector<16x128xf32>
    %307 = arith.subf %301, %306 : vector<16x128xf32>
    %308 = arith.mulf %307, %307 : vector<16x128xf32>
    %cst_126 = arith.constant dense<0.000000e+00> : vector<16xf32>
    %309 = vector.multi_reduction <add>, %308, %cst_126 [1] : vector<16x128xf32> to vector<16xf32>
    %310 = vector.shape_cast %309 : vector<16xf32> to vector<16x1xf32>
    %cst_127 = arith.constant 1.280000e+02 : f32
    %311 = vector.broadcast %cst_127 : f32 to vector<16x1xf32>
    %312 = arith.divf %310, %311 : vector<16x1xf32>
    %313 = vector.broadcast %305 : vector<16x1xf32> to vector<16x128xf32>
    %314 = arith.subf %301, %313 : vector<16x128xf32>
    %cst_128 = arith.constant 9.99999974E-6 : f32
    %315 = vector.broadcast %cst_128 : f32 to vector<16x1xf32>
    %316 = arith.addf %312, %315 : vector<16x1xf32>
    %317 = math.rsqrt %316 : vector<16x1xf32>
    %318 = vector.broadcast %317 : vector<16x1xf32> to vector<16x128xf32>
    %319 = arith.mulf %314, %318 : vector<16x128xf32>
    %c1_129 = arith.constant 1 : index
    %c0_130 = arith.constant 0 : index
    %c0_131 = arith.constant 0 : index
    %320 = vector.load %arg9[%c1_129, %c0_130, %c0_131] : memref<3x1x128xf32, #tpu.memory_space<vmem>>, vector<1x1x128xf32>
    %321 = vector.shape_cast %320 : vector<1x1x128xf32> to vector<1x128xf32>
    %322 = vector.broadcast %321 : vector<1x128xf32> to vector<16x128xf32>
    %323 = arith.mulf %319, %322 : vector<16x128xf32>
    %c1_132 = arith.constant 1 : index
    %c0_133 = arith.constant 0 : index
    %c0_134 = arith.constant 0 : index
    %324 = vector.load %arg10[%c1_132, %c0_133, %c0_134] : memref<3x1x128xf32, #tpu.memory_space<vmem>>, vector<1x1x128xf32>
    %325 = vector.shape_cast %324 : vector<1x1x128xf32> to vector<1x128xf32>
    %326 = vector.broadcast %325 : vector<1x128xf32> to vector<16x128xf32>
    %327 = arith.addf %323, %326 : vector<16x128xf32>
    %328 = arith.truncf %327 : vector<16x128xf32> to vector<16x128xbf16>
    %c1_135 = arith.constant 1 : index
    %c0_136 = arith.constant 0 : index
    %c0_137 = arith.constant 0 : index
    %329 = vector.load %arg11[%c1_135, %c0_136, %c0_137] : memref<3x128x256xbf16, #tpu.memory_space<vmem>>, vector<1x128x256xbf16>
    %330 = vector.shape_cast %329 : vector<1x128x256xbf16> to vector<128x256xbf16>
    %cst_138 = arith.constant dense<0.000000e+00> : vector<16x256xf32>
    %331 = tpu.matmul %328, %330, %cst_138 {dimension_numbers = #tpu.dot_dimension_numbers<[1], [0], [0], [1], [0, 0, 1, 1], [], []>} : vector<16x128xbf16>, vector<128x256xbf16>, vector<16x256xf32> -> vector<16x256xf32>
    %c1_139 = arith.constant 1 : index
    %c0_140 = arith.constant 0 : index
    %c0_141 = arith.constant 0 : index
    %332 = vector.load %arg12[%c1_139, %c0_140, %c0_141] : memref<3x1x256xf32, #tpu.memory_space<vmem>>, vector<1x1x256xf32>
    %333 = vector.shape_cast %332 : vector<1x1x256xf32> to vector<1x256xf32>
    %334 = vector.broadcast %333 : vector<1x256xf32> to vector<16x256xf32>
    %335 = arith.addf %331, %334 : vector<16x256xf32>
    %cst_142 = arith.constant 0.000000e+00 : f32
    %336 = vector.broadcast %cst_142 : f32 to vector<16x256xf32>
    %337 = arith.maximumf %335, %336 : vector<16x256xf32>
    %338 = arith.truncf %337 : vector<16x256xf32> to vector<16x256xbf16>
    %c1_143 = arith.constant 1 : index
    %c0_144 = arith.constant 0 : index
    %c0_145 = arith.constant 0 : index
    %339 = vector.load %arg13[%c1_143, %c0_144, %c0_145] : memref<3x256x128xbf16, #tpu.memory_space<vmem>>, vector<1x256x128xbf16>
    %340 = vector.shape_cast %339 : vector<1x256x128xbf16> to vector<256x128xbf16>
    %cst_146 = arith.constant dense<0.000000e+00> : vector<16x128xf32>
    %341 = tpu.matmul %338, %340, %cst_146 {dimension_numbers = #tpu.dot_dimension_numbers<[1], [0], [0], [1], [0, 0, 1, 1], [], []>} : vector<16x256xbf16>, vector<256x128xbf16>, vector<16x128xf32> -> vector<16x128xf32>
    %c1_147 = arith.constant 1 : index
    %c0_148 = arith.constant 0 : index
    %c0_149 = arith.constant 0 : index
    %342 = vector.load %arg14[%c1_147, %c0_148, %c0_149] : memref<3x1x128xf32, #tpu.memory_space<vmem>>, vector<1x1x128xf32>
    %343 = vector.shape_cast %342 : vector<1x1x128xf32> to vector<1x128xf32>
    %344 = vector.broadcast %343 : vector<1x128xf32> to vector<16x128xf32>
    %345 = arith.addf %341, %344 : vector<16x128xf32>
    %346 = arith.addf %327, %345 : vector<16x128xf32>
    %cst_150 = arith.constant dense<0.000000e+00> : vector<16xf32>
    %347 = vector.multi_reduction <add>, %346, %cst_150 [1] : vector<16x128xf32> to vector<16xf32>
    %348 = vector.shape_cast %347 : vector<16xf32> to vector<16x1xf32>
    %cst_151 = arith.constant 1.280000e+02 : f32
    %349 = vector.broadcast %cst_151 : f32 to vector<16x1xf32>
    %350 = arith.divf %348, %349 : vector<16x1xf32>
    %351 = vector.broadcast %350 : vector<16x1xf32> to vector<16x128xf32>
    %352 = arith.subf %346, %351 : vector<16x128xf32>
    %353 = arith.mulf %352, %352 : vector<16x128xf32>
    %cst_152 = arith.constant dense<0.000000e+00> : vector<16xf32>
    %354 = vector.multi_reduction <add>, %353, %cst_152 [1] : vector<16x128xf32> to vector<16xf32>
    %355 = vector.shape_cast %354 : vector<16xf32> to vector<16x1xf32>
    %cst_153 = arith.constant 1.280000e+02 : f32
    %356 = vector.broadcast %cst_153 : f32 to vector<16x1xf32>
    %357 = arith.divf %355, %356 : vector<16x1xf32>
    %358 = vector.broadcast %350 : vector<16x1xf32> to vector<16x128xf32>
    %359 = arith.subf %346, %358 : vector<16x128xf32>
    %cst_154 = arith.constant 9.99999974E-6 : f32
    %360 = vector.broadcast %cst_154 : f32 to vector<16x1xf32>
    %361 = arith.addf %357, %360 : vector<16x1xf32>
    %362 = math.rsqrt %361 : vector<16x1xf32>
    %363 = vector.broadcast %362 : vector<16x1xf32> to vector<16x128xf32>
    %364 = arith.mulf %359, %363 : vector<16x128xf32>
    %c1_155 = arith.constant 1 : index
    %c0_156 = arith.constant 0 : index
    %c0_157 = arith.constant 0 : index
    %365 = vector.load %arg15[%c1_155, %c0_156, %c0_157] : memref<3x1x128xf32, #tpu.memory_space<vmem>>, vector<1x1x128xf32>
    %366 = vector.shape_cast %365 : vector<1x1x128xf32> to vector<1x128xf32>
    %367 = vector.broadcast %366 : vector<1x128xf32> to vector<16x128xf32>
    %368 = arith.mulf %364, %367 : vector<16x128xf32>
    %c1_158 = arith.constant 1 : index
    %c0_159 = arith.constant 0 : index
    %c0_160 = arith.constant 0 : index
    %369 = vector.load %arg16[%c1_158, %c0_159, %c0_160] : memref<3x1x128xf32, #tpu.memory_space<vmem>>, vector<1x1x128xf32>
    %370 = vector.shape_cast %369 : vector<1x1x128xf32> to vector<1x128xf32>
    %371 = vector.broadcast %370 : vector<1x128xf32> to vector<16x128xf32>
    %372 = arith.addf %368, %371 : vector<16x128xf32>
    %373 = arith.truncf %372 : vector<16x128xf32> to vector<16x128xbf16>
    %c2 = arith.constant 2 : index
    %c0_161 = arith.constant 0 : index
    %c0_162 = arith.constant 0 : index
    %374 = vector.load %arg5[%c2, %c0_161, %c0_162] : memref<3x128x384xbf16, #tpu.memory_space<vmem>>, vector<1x128x384xbf16>
    %375 = vector.shape_cast %374 : vector<1x128x384xbf16> to vector<128x384xbf16>
    %cst_163 = arith.constant dense<0.000000e+00> : vector<16x384xf32>
    %376 = tpu.matmul %373, %375, %cst_163 {dimension_numbers = #tpu.dot_dimension_numbers<[1], [0], [0], [1], [0, 0, 1, 1], [], []>} : vector<16x128xbf16>, vector<128x384xbf16>, vector<16x384xf32> -> vector<16x384xf32>
    %c2_164 = arith.constant 2 : index
    %c0_165 = arith.constant 0 : index
    %c0_166 = arith.constant 0 : index
    %377 = vector.load %arg6[%c2_164, %c0_165, %c0_166] : memref<3x1x384xf32, #tpu.memory_space<vmem>>, vector<1x1x384xf32>
    %378 = vector.shape_cast %377 : vector<1x1x384xf32> to vector<1x384xf32>
    %379 = vector.broadcast %378 : vector<1x384xf32> to vector<16x384xf32>
    %380 = arith.addf %376, %379 : vector<16x384xf32>
    %381 = vector.extract_strided_slice %380 {offsets = [0, 0], sizes = [16, 128], strides = [1, 1]} : vector<16x384xf32> to vector<16x128xf32>
    %cst_167 = arith.constant 0.176776692 : f32
    %382 = vector.broadcast %cst_167 : f32 to vector<16x128xf32>
    %383 = arith.mulf %381, %382 : vector<16x128xf32>
    %384 = vector.extract_strided_slice %380 {offsets = [0, 128], sizes = [16, 128], strides = [1, 1]} : vector<16x384xf32> to vector<16x128xf32>
    %385 = vector.extract_strided_slice %380 {offsets = [0, 256], sizes = [16, 128], strides = [1, 1]} : vector<16x384xf32> to vector<16x128xf32>
    %386 = vector.extract_strided_slice %383 {offsets = [0, 0], sizes = [16, 32], strides = [1, 1]} : vector<16x128xf32> to vector<16x32xf32>
    %387 = arith.truncf %386 : vector<16x32xf32> to vector<16x32xbf16>
    %388 = vector.extract_strided_slice %384 {offsets = [0, 0], sizes = [16, 32], strides = [1, 1]} : vector<16x128xf32> to vector<16x32xf32>
    %389 = tpu.transpose %388, [1, 0] : vector<16x32xf32> -> vector<32x16xf32>
    %390 = arith.truncf %389 : vector<32x16xf32> to vector<32x16xbf16>
    %391 = vector.extract_strided_slice %385 {offsets = [0, 0], sizes = [16, 32], strides = [1, 1]} : vector<16x128xf32> to vector<16x32xf32>
    %392 = arith.truncf %391 : vector<16x32xf32> to vector<16x32xbf16>
    %cst_168 = arith.constant dense<0.000000e+00> : vector<16x16xf32>
    %393 = tpu.matmul %387, %390, %cst_168 {dimension_numbers = #tpu.dot_dimension_numbers<[1], [0], [0], [1], [0, 0, 1, 1], [], []>} : vector<16x32xbf16>, vector<32x16xbf16>, vector<16x16xf32> -> vector<16x16xf32>
    %394 = arith.addf %393, %8 : vector<16x16xf32>
    %cst_169 = arith.constant dense<0xFF800000> : vector<16xf32>
    %395 = vector.multi_reduction <maximumf>, %394, %cst_169 [1] : vector<16x16xf32> to vector<16xf32>
    %396 = vector.shape_cast %395 : vector<16xf32> to vector<16x1xf32>
    %397 = vector.broadcast %396 : vector<16x1xf32> to vector<16x16xf32>
    %398 = arith.subf %394, %397 : vector<16x16xf32>
    %399 = math.exp %398 : vector<16x16xf32>
    %cst_170 = arith.constant dense<0.000000e+00> : vector<16xf32>
    %400 = vector.multi_reduction <add>, %399, %cst_170 [1] : vector<16x16xf32> to vector<16xf32>
    %401 = vector.shape_cast %400 : vector<16xf32> to vector<16x1xf32>
    %402 = tpu.reciprocal %401 {approx = true} : vector<16x1xf32> -> vector<16x1xf32>
    %403 = vector.broadcast %402 : vector<16x1xf32> to vector<16x16xf32>
    %404 = arith.mulf %399, %403 : vector<16x16xf32>
    %405 = arith.truncf %404 : vector<16x16xf32> to vector<16x16xbf16>
    %cst_171 = arith.constant dense<0.000000e+00> : vector<16x32xf32>
    %406 = tpu.matmul %405, %392, %cst_171 {dimension_numbers = #tpu.dot_dimension_numbers<[1], [0], [0], [1], [0, 0, 1, 1], [], []>} : vector<16x16xbf16>, vector<16x32xbf16>, vector<16x32xf32> -> vector<16x32xf32>
    %c0_172 = arith.constant 0 : index
    %c0_173 = arith.constant 0 : index
    %407 = vector.load %arg25[%c0_172, %c0_173] : memref<16x128xf32, #tpu.memory_space<vmem>>, vector<16x32xf32>
    tpu.vector_store %arg25[%c0_172, %c0_173], %406 {strides = array<i32>} : memref<16x128xf32, #tpu.memory_space<vmem>>, vector<16x32xf32>,
    %408 = vector.extract_strided_slice %383 {offsets = [0, 32], sizes = [16, 32], strides = [1, 1]} : vector<16x128xf32> to vector<16x32xf32>
    %409 = arith.truncf %408 : vector<16x32xf32> to vector<16x32xbf16>
    %410 = vector.extract_strided_slice %384 {offsets = [0, 32], sizes = [16, 32], strides = [1, 1]} : vector<16x128xf32> to vector<16x32xf32>
    %411 = tpu.transpose %410, [1, 0] : vector<16x32xf32> -> vector<32x16xf32>
    %412 = arith.truncf %411 : vector<32x16xf32> to vector<32x16xbf16>
    %413 = vector.extract_strided_slice %385 {offsets = [0, 32], sizes = [16, 32], strides = [1, 1]} : vector<16x128xf32> to vector<16x32xf32>
    %414 = arith.truncf %413 : vector<16x32xf32> to vector<16x32xbf16>
    %cst_174 = arith.constant dense<0.000000e+00> : vector<16x16xf32>
    %415 = tpu.matmul %409, %412, %cst_174 {dimension_numbers = #tpu.dot_dimension_numbers<[1], [0], [0], [1], [0, 0, 1, 1], [], []>} : vector<16x32xbf16>, vector<32x16xbf16>, vector<16x16xf32> -> vector<16x16xf32>
    %416 = arith.addf %415, %8 : vector<16x16xf32>
    %cst_175 = arith.constant dense<0xFF800000> : vector<16xf32>
    %417 = vector.multi_reduction <maximumf>, %416, %cst_175 [1] : vector<16x16xf32> to vector<16xf32>
    %418 = vector.shape_cast %417 : vector<16xf32> to vector<16x1xf32>
    %419 = vector.broadcast %418 : vector<16x1xf32> to vector<16x16xf32>
    %420 = arith.subf %416, %419 : vector<16x16xf32>
    %421 = math.exp %420 : vector<16x16xf32>
    %cst_176 = arith.constant dense<0.000000e+00> : vector<16xf32>
    %422 = vector.multi_reduction <add>, %421, %cst_176 [1] : vector<16x16xf32> to vector<16xf32>
    %423 = vector.shape_cast %422 : vector<16xf32> to vector<16x1xf32>
    %424 = tpu.reciprocal %423 {approx = true} : vector<16x1xf32> -> vector<16x1xf32>
    %425 = vector.broadcast %424 : vector<16x1xf32> to vector<16x16xf32>
    %426 = arith.mulf %421, %425 : vector<16x16xf32>
    %427 = arith.truncf %426 : vector<16x16xf32> to vector<16x16xbf16>
    %cst_177 = arith.constant dense<0.000000e+00> : vector<16x32xf32>
    %428 = tpu.matmul %427, %414, %cst_177 {dimension_numbers = #tpu.dot_dimension_numbers<[1], [0], [0], [1], [0, 0, 1, 1], [], []>} : vector<16x16xbf16>, vector<16x32xbf16>, vector<16x32xf32> -> vector<16x32xf32>
    %c0_178 = arith.constant 0 : index
    %c32_179 = arith.constant 32 : index
    %429 = vector.load %arg25[%c0_178, %c32_179] : memref<16x128xf32, #tpu.memory_space<vmem>>, vector<16x32xf32>
    tpu.vector_store %arg25[%c0_178, %c32_179], %428 {strides = array<i32>} : memref<16x128xf32, #tpu.memory_space<vmem>>, vector<16x32xf32>,
    %430 = vector.extract_strided_slice %383 {offsets = [0, 64], sizes = [16, 32], strides = [1, 1]} : vector<16x128xf32> to vector<16x32xf32>
    %431 = arith.truncf %430 : vector<16x32xf32> to vector<16x32xbf16>
    %432 = vector.extract_strided_slice %384 {offsets = [0, 64], sizes = [16, 32], strides = [1, 1]} : vector<16x128xf32> to vector<16x32xf32>
    %433 = tpu.transpose %432, [1, 0] : vector<16x32xf32> -> vector<32x16xf32>
    %434 = arith.truncf %433 : vector<32x16xf32> to vector<32x16xbf16>
    %435 = vector.extract_strided_slice %385 {offsets = [0, 64], sizes = [16, 32], strides = [1, 1]} : vector<16x128xf32> to vector<16x32xf32>
    %436 = arith.truncf %435 : vector<16x32xf32> to vector<16x32xbf16>
    %cst_180 = arith.constant dense<0.000000e+00> : vector<16x16xf32>
    %437 = tpu.matmul %431, %434, %cst_180 {dimension_numbers = #tpu.dot_dimension_numbers<[1], [0], [0], [1], [0, 0, 1, 1], [], []>} : vector<16x32xbf16>, vector<32x16xbf16>, vector<16x16xf32> -> vector<16x16xf32>
    %438 = arith.addf %437, %8 : vector<16x16xf32>
    %cst_181 = arith.constant dense<0xFF800000> : vector<16xf32>
    %439 = vector.multi_reduction <maximumf>, %438, %cst_181 [1] : vector<16x16xf32> to vector<16xf32>
    %440 = vector.shape_cast %439 : vector<16xf32> to vector<16x1xf32>
    %441 = vector.broadcast %440 : vector<16x1xf32> to vector<16x16xf32>
    %442 = arith.subf %438, %441 : vector<16x16xf32>
    %443 = math.exp %442 : vector<16x16xf32>
    %cst_182 = arith.constant dense<0.000000e+00> : vector<16xf32>
    %444 = vector.multi_reduction <add>, %443, %cst_182 [1] : vector<16x16xf32> to vector<16xf32>
    %445 = vector.shape_cast %444 : vector<16xf32> to vector<16x1xf32>
    %446 = tpu.reciprocal %445 {approx = true} : vector<16x1xf32> -> vector<16x1xf32>
    %447 = vector.broadcast %446 : vector<16x1xf32> to vector<16x16xf32>
    %448 = arith.mulf %443, %447 : vector<16x16xf32>
    %449 = arith.truncf %448 : vector<16x16xf32> to vector<16x16xbf16>
    %cst_183 = arith.constant dense<0.000000e+00> : vector<16x32xf32>
    %450 = tpu.matmul %449, %436, %cst_183 {dimension_numbers = #tpu.dot_dimension_numbers<[1], [0], [0], [1], [0, 0, 1, 1], [], []>} : vector<16x16xbf16>, vector<16x32xbf16>, vector<16x32xf32> -> vector<16x32xf32>
    %c0_184 = arith.constant 0 : index
    %c64_185 = arith.constant 64 : index
    %451 = vector.load %arg25[%c0_184, %c64_185] : memref<16x128xf32, #tpu.memory_space<vmem>>, vector<16x32xf32>
    tpu.vector_store %arg25[%c0_184, %c64_185], %450 {strides = array<i32>} : memref<16x128xf32, #tpu.memory_space<vmem>>, vector<16x32xf32>,
    %452 = vector.extract_strided_slice %383 {offsets = [0, 96], sizes = [16, 32], strides = [1, 1]} : vector<16x128xf32> to vector<16x32xf32>
    %453 = arith.truncf %452 : vector<16x32xf32> to vector<16x32xbf16>
    %454 = vector.extract_strided_slice %384 {offsets = [0, 96], sizes = [16, 32], strides = [1, 1]} : vector<16x128xf32> to vector<16x32xf32>
    %455 = tpu.transpose %454, [1, 0] : vector<16x32xf32> -> vector<32x16xf32>
    %456 = arith.truncf %455 : vector<32x16xf32> to vector<32x16xbf16>
    %457 = vector.extract_strided_slice %385 {offsets = [0, 96], sizes = [16, 32], strides = [1, 1]} : vector<16x128xf32> to vector<16x32xf32>
    %458 = arith.truncf %457 : vector<16x32xf32> to vector<16x32xbf16>
    %cst_186 = arith.constant dense<0.000000e+00> : vector<16x16xf32>
    %459 = tpu.matmul %453, %456, %cst_186 {dimension_numbers = #tpu.dot_dimension_numbers<[1], [0], [0], [1], [0, 0, 1, 1], [], []>} : vector<16x32xbf16>, vector<32x16xbf16>, vector<16x16xf32> -> vector<16x16xf32>
    %460 = arith.addf %459, %8 : vector<16x16xf32>
    %cst_187 = arith.constant dense<0xFF800000> : vector<16xf32>
    %461 = vector.multi_reduction <maximumf>, %460, %cst_187 [1] : vector<16x16xf32> to vector<16xf32>
    %462 = vector.shape_cast %461 : vector<16xf32> to vector<16x1xf32>
    %463 = vector.broadcast %462 : vector<16x1xf32> to vector<16x16xf32>
    %464 = arith.subf %460, %463 : vector<16x16xf32>
    %465 = math.exp %464 : vector<16x16xf32>
    %cst_188 = arith.constant dense<0.000000e+00> : vector<16xf32>
    %466 = vector.multi_reduction <add>, %465, %cst_188 [1] : vector<16x16xf32> to vector<16xf32>
    %467 = vector.shape_cast %466 : vector<16xf32> to vector<16x1xf32>
    %468 = tpu.reciprocal %467 {approx = true} : vector<16x1xf32> -> vector<16x1xf32>
    %469 = vector.broadcast %468 : vector<16x1xf32> to vector<16x16xf32>
    %470 = arith.mulf %465, %469 : vector<16x16xf32>
    %471 = arith.truncf %470 : vector<16x16xf32> to vector<16x16xbf16>
    %cst_189 = arith.constant dense<0.000000e+00> : vector<16x32xf32>
    %472 = tpu.matmul %471, %458, %cst_189 {dimension_numbers = #tpu.dot_dimension_numbers<[1], [0], [0], [1], [0, 0, 1, 1], [], []>} : vector<16x16xbf16>, vector<16x32xbf16>, vector<16x32xf32> -> vector<16x32xf32>
    %c0_190 = arith.constant 0 : index
    %c96_191 = arith.constant 96 : index
    %473 = vector.load %arg25[%c0_190, %c96_191] : memref<16x128xf32, #tpu.memory_space<vmem>>, vector<16x32xf32>
    tpu.vector_store %arg25[%c0_190, %c96_191], %472 {strides = array<i32>} : memref<16x128xf32, #tpu.memory_space<vmem>>, vector<16x32xf32>,
    %c0_192 = arith.constant 0 : index
    %c0_193 = arith.constant 0 : index
    %474 = vector.load %arg25[%c0_192, %c0_193] : memref<16x128xf32, #tpu.memory_space<vmem>>, vector<16x128xf32>
    %475 = arith.truncf %474 : vector<16x128xf32> to vector<16x128xbf16>
    %c2_194 = arith.constant 2 : index
    %c0_195 = arith.constant 0 : index
    %c0_196 = arith.constant 0 : index
    %476 = vector.load %arg7[%c2_194, %c0_195, %c0_196] : memref<3x128x128xbf16, #tpu.memory_space<vmem>>, vector<1x128x128xbf16>
    %477 = vector.shape_cast %476 : vector<1x128x128xbf16> to vector<128x128xbf16>
    %cst_197 = arith.constant dense<0.000000e+00> : vector<16x128xf32>
    %478 = tpu.matmul %475, %477, %cst_197 {dimension_numbers = #tpu.dot_dimension_numbers<[1], [0], [0], [1], [0, 0, 1, 1], [], []>} : vector<16x128xbf16>, vector<128x128xbf16>, vector<16x128xf32> -> vector<16x128xf32>
    %c2_198 = arith.constant 2 : index
    %c0_199 = arith.constant 0 : index
    %c0_200 = arith.constant 0 : index
    %479 = vector.load %arg8[%c2_198, %c0_199, %c0_200] : memref<3x1x128xf32, #tpu.memory_space<vmem>>, vector<1x1x128xf32>
    %480 = vector.shape_cast %479 : vector<1x1x128xf32> to vector<1x128xf32>
    %481 = vector.broadcast %480 : vector<1x128xf32> to vector<16x128xf32>
    %482 = arith.addf %478, %481 : vector<16x128xf32>
    %483 = arith.addf %372, %482 : vector<16x128xf32>
    %cst_201 = arith.constant dense<0.000000e+00> : vector<16xf32>
    %484 = vector.multi_reduction <add>, %483, %cst_201 [1] : vector<16x128xf32> to vector<16xf32>
    %485 = vector.shape_cast %484 : vector<16xf32> to vector<16x1xf32>
    %cst_202 = arith.constant 1.280000e+02 : f32
    %486 = vector.broadcast %cst_202 : f32 to vector<16x1xf32>
    %487 = arith.divf %485, %486 : vector<16x1xf32>
    %488 = vector.broadcast %487 : vector<16x1xf32> to vector<16x128xf32>
    %489 = arith.subf %483, %488 : vector<16x128xf32>
    %490 = arith.mulf %489, %489 : vector<16x128xf32>
    %cst_203 = arith.constant dense<0.000000e+00> : vector<16xf32>
    %491 = vector.multi_reduction <add>, %490, %cst_203 [1] : vector<16x128xf32> to vector<16xf32>
    %492 = vector.shape_cast %491 : vector<16xf32> to vector<16x1xf32>
    %cst_204 = arith.constant 1.280000e+02 : f32
    %493 = vector.broadcast %cst_204 : f32 to vector<16x1xf32>
    %494 = arith.divf %492, %493 : vector<16x1xf32>
    %495 = vector.broadcast %487 : vector<16x1xf32> to vector<16x128xf32>
    %496 = arith.subf %483, %495 : vector<16x128xf32>
    %cst_205 = arith.constant 9.99999974E-6 : f32
    %497 = vector.broadcast %cst_205 : f32 to vector<16x1xf32>
    %498 = arith.addf %494, %497 : vector<16x1xf32>
    %499 = math.rsqrt %498 : vector<16x1xf32>
    %500 = vector.broadcast %499 : vector<16x1xf32> to vector<16x128xf32>
    %501 = arith.mulf %496, %500 : vector<16x128xf32>
    %c2_206 = arith.constant 2 : index
    %c0_207 = arith.constant 0 : index
    %c0_208 = arith.constant 0 : index
    %502 = vector.load %arg9[%c2_206, %c0_207, %c0_208] : memref<3x1x128xf32, #tpu.memory_space<vmem>>, vector<1x1x128xf32>
    %503 = vector.shape_cast %502 : vector<1x1x128xf32> to vector<1x128xf32>
    %504 = vector.broadcast %503 : vector<1x128xf32> to vector<16x128xf32>
    %505 = arith.mulf %501, %504 : vector<16x128xf32>
    %c2_209 = arith.constant 2 : index
    %c0_210 = arith.constant 0 : index
    %c0_211 = arith.constant 0 : index
    %506 = vector.load %arg10[%c2_209, %c0_210, %c0_211] : memref<3x1x128xf32, #tpu.memory_space<vmem>>, vector<1x1x128xf32>
    %507 = vector.shape_cast %506 : vector<1x1x128xf32> to vector<1x128xf32>
    %508 = vector.broadcast %507 : vector<1x128xf32> to vector<16x128xf32>
    %509 = arith.addf %505, %508 : vector<16x128xf32>
    %510 = arith.truncf %509 : vector<16x128xf32> to vector<16x128xbf16>
    %c2_212 = arith.constant 2 : index
    %c0_213 = arith.constant 0 : index
    %c0_214 = arith.constant 0 : index
    %511 = vector.load %arg11[%c2_212, %c0_213, %c0_214] : memref<3x128x256xbf16, #tpu.memory_space<vmem>>, vector<1x128x256xbf16>
    %512 = vector.shape_cast %511 : vector<1x128x256xbf16> to vector<128x256xbf16>
    %cst_215 = arith.constant dense<0.000000e+00> : vector<16x256xf32>
    %513 = tpu.matmul %510, %512, %cst_215 {dimension_numbers = #tpu.dot_dimension_numbers<[1], [0], [0], [1], [0, 0, 1, 1], [], []>} : vector<16x128xbf16>, vector<128x256xbf16>, vector<16x256xf32> -> vector<16x256xf32>
    %c2_216 = arith.constant 2 : index
    %c0_217 = arith.constant 0 : index
    %c0_218 = arith.constant 0 : index
    %514 = vector.load %arg12[%c2_216, %c0_217, %c0_218] : memref<3x1x256xf32, #tpu.memory_space<vmem>>, vector<1x1x256xf32>
    %515 = vector.shape_cast %514 : vector<1x1x256xf32> to vector<1x256xf32>
    %516 = vector.broadcast %515 : vector<1x256xf32> to vector<16x256xf32>
    %517 = arith.addf %513, %516 : vector<16x256xf32>
    %cst_219 = arith.constant 0.000000e+00 : f32
    %518 = vector.broadcast %cst_219 : f32 to vector<16x256xf32>
    %519 = arith.maximumf %517, %518 : vector<16x256xf32>
    %520 = arith.truncf %519 : vector<16x256xf32> to vector<16x256xbf16>
    %c2_220 = arith.constant 2 : index
    %c0_221 = arith.constant 0 : index
    %c0_222 = arith.constant 0 : index
    %521 = vector.load %arg13[%c2_220, %c0_221, %c0_222] : memref<3x256x128xbf16, #tpu.memory_space<vmem>>, vector<1x256x128xbf16>
    %522 = vector.shape_cast %521 : vector<1x256x128xbf16> to vector<256x128xbf16>
    %cst_223 = arith.constant dense<0.000000e+00> : vector<16x128xf32>
    %523 = tpu.matmul %520, %522, %cst_223 {dimension_numbers = #tpu.dot_dimension_numbers<[1], [0], [0], [1], [0, 0, 1, 1], [], []>} : vector<16x256xbf16>, vector<256x128xbf16>, vector<16x128xf32> -> vector<16x128xf32>
    %c2_224 = arith.constant 2 : index
    %c0_225 = arith.constant 0 : index
    %c0_226 = arith.constant 0 : index
    %524 = vector.load %arg14[%c2_224, %c0_225, %c0_226] : memref<3x1x128xf32, #tpu.memory_space<vmem>>, vector<1x1x128xf32>
    %525 = vector.shape_cast %524 : vector<1x1x128xf32> to vector<1x128xf32>
    %526 = vector.broadcast %525 : vector<1x128xf32> to vector<16x128xf32>
    %527 = arith.addf %523, %526 : vector<16x128xf32>
    %528 = arith.addf %509, %527 : vector<16x128xf32>
    %cst_227 = arith.constant dense<0.000000e+00> : vector<16xf32>
    %529 = vector.multi_reduction <add>, %528, %cst_227 [1] : vector<16x128xf32> to vector<16xf32>
    %530 = vector.shape_cast %529 : vector<16xf32> to vector<16x1xf32>
    %cst_228 = arith.constant 1.280000e+02 : f32
    %531 = vector.broadcast %cst_228 : f32 to vector<16x1xf32>
    %532 = arith.divf %530, %531 : vector<16x1xf32>
    %533 = vector.broadcast %532 : vector<16x1xf32> to vector<16x128xf32>
    %534 = arith.subf %528, %533 : vector<16x128xf32>
    %535 = arith.mulf %534, %534 : vector<16x128xf32>
    %cst_229 = arith.constant dense<0.000000e+00> : vector<16xf32>
    %536 = vector.multi_reduction <add>, %535, %cst_229 [1] : vector<16x128xf32> to vector<16xf32>
    %537 = vector.shape_cast %536 : vector<16xf32> to vector<16x1xf32>
    %cst_230 = arith.constant 1.280000e+02 : f32
    %538 = vector.broadcast %cst_230 : f32 to vector<16x1xf32>
    %539 = arith.divf %537, %538 : vector<16x1xf32>
    %540 = vector.broadcast %532 : vector<16x1xf32> to vector<16x128xf32>
    %541 = arith.subf %528, %540 : vector<16x128xf32>
    %cst_231 = arith.constant 9.99999974E-6 : f32
    %542 = vector.broadcast %cst_231 : f32 to vector<16x1xf32>
    %543 = arith.addf %539, %542 : vector<16x1xf32>
    %544 = math.rsqrt %543 : vector<16x1xf32>
    %545 = vector.broadcast %544 : vector<16x1xf32> to vector<16x128xf32>
    %546 = arith.mulf %541, %545 : vector<16x128xf32>
    %c2_232 = arith.constant 2 : index
    %c0_233 = arith.constant 0 : index
    %c0_234 = arith.constant 0 : index
    %547 = vector.load %arg15[%c2_232, %c0_233, %c0_234] : memref<3x1x128xf32, #tpu.memory_space<vmem>>, vector<1x1x128xf32>
    %548 = vector.shape_cast %547 : vector<1x1x128xf32> to vector<1x128xf32>
    %549 = vector.broadcast %548 : vector<1x128xf32> to vector<16x128xf32>
    %550 = arith.mulf %546, %549 : vector<16x128xf32>
    %c2_235 = arith.constant 2 : index
    %c0_236 = arith.constant 0 : index
    %c0_237 = arith.constant 0 : index
    %551 = vector.load %arg16[%c2_235, %c0_236, %c0_237] : memref<3x1x128xf32, #tpu.memory_space<vmem>>, vector<1x1x128xf32>
    %552 = vector.shape_cast %551 : vector<1x1x128xf32> to vector<1x128xf32>
    %553 = vector.broadcast %552 : vector<1x128xf32> to vector<16x128xf32>
    %554 = arith.addf %550, %553 : vector<16x128xf32>
    %555 = vector.shape_cast %554 : vector<16x128xf32> to vector<2x8x128xf32>
    %556 = vector.extract_strided_slice %555 {offsets = [0, 7, 0], sizes = [2, 1, 128], strides = [1, 1, 1]} : vector<2x8x128xf32> to vector<2x1x128xf32>
    %557 = vector.shape_cast %556 : vector<2x1x128xf32> to vector<2x128xf32>
    %c0_238 = arith.constant 0 : index
    %c0_239 = arith.constant 0 : index
    %558 = vector.load %arg17[%c0_238, %c0_239] : memref<2x16xf32, #tpu.memory_space<vmem>>, vector<2x16xf32>
    %559 = arith.truncf %558 : vector<2x16xf32> to vector<2x16xbf16>
    %c0_240 = arith.constant 0 : index
    %c0_241 = arith.constant 0 : index
    %560 = vector.load %arg18[%c0_240, %c0_241] : memref<16x64xbf16, #tpu.memory_space<vmem>>, vector<16x64xbf16>
    %cst_242 = arith.constant dense<0.000000e+00> : vector<2x64xf32>
    %561 = tpu.matmul %559, %560, %cst_242 {dimension_numbers = #tpu.dot_dimension_numbers<[1], [0], [0], [1], [0, 0, 1, 1], [], []>} : vector<2x16xbf16>, vector<16x64xbf16>, vector<2x64xf32> -> vector<2x64xf32>
    %c0_243 = arith.constant 0 : index
    %c0_244 = arith.constant 0 : index
    %562 = vector.load %arg19[%c0_243, %c0_244] : memref<1x64xf32, #tpu.memory_space<vmem>>, vector<1x64xf32>
    %563 = vector.broadcast %562 : vector<1x64xf32> to vector<2x64xf32>
    %564 = arith.addf %561, %563 : vector<2x64xf32>
    %cst_245 = arith.constant 0.000000e+00 : f32
    %565 = vector.broadcast %cst_245 : f32 to vector<2x64xf32>
    %566 = arith.maximumf %564, %565 : vector<2x64xf32>
    %c0_246 = arith.constant 0 : index
    %c0_247 = arith.constant 0 : index
    %567 = vector.load %arg20[%c0_246, %c0_247] : memref<192x64xbf16, #tpu.memory_space<vmem>>, vector<192x64xbf16>
    %568 = arith.truncf %557 : vector<2x128xf32> to vector<2x128xbf16>
    %569 = vector.extract_strided_slice %567 {offsets = [0, 0], sizes = [128, 64], strides = [1, 1]} : vector<192x64xbf16> to vector<128x64xbf16>
    %cst_248 = arith.constant dense<0.000000e+00> : vector<2x64xf32>
    %570 = tpu.matmul %568, %569, %cst_248 {dimension_numbers = #tpu.dot_dimension_numbers<[1], [0], [0], [1], [0, 0, 1, 1], [], []>} : vector<2x128xbf16>, vector<128x64xbf16>, vector<2x64xf32> -> vector<2x64xf32>
    %571 = arith.truncf %566 : vector<2x64xf32> to vector<2x64xbf16>
    %572 = vector.extract_strided_slice %567 {offsets = [128, 0], sizes = [64, 64], strides = [1, 1]} : vector<192x64xbf16> to vector<64x64xbf16>
    %cst_249 = arith.constant dense<0.000000e+00> : vector<2x64xf32>
    %573 = tpu.matmul %571, %572, %cst_249 {dimension_numbers = #tpu.dot_dimension_numbers<[1], [0], [0], [1], [0, 0, 1, 1], [], []>} : vector<2x64xbf16>, vector<64x64xbf16>, vector<2x64xf32> -> vector<2x64xf32>
    %574 = arith.addf %570, %573 : vector<2x64xf32>
    %c0_250 = arith.constant 0 : index
    %c0_251 = arith.constant 0 : index
    %575 = vector.load %arg21[%c0_250, %c0_251] : memref<1x64xf32, #tpu.memory_space<vmem>>, vector<1x64xf32>
    %576 = vector.broadcast %575 : vector<1x64xf32> to vector<2x64xf32>
    %577 = arith.addf %574, %576 : vector<2x64xf32>
    %cst_252 = arith.constant 0.000000e+00 : f32
    %578 = vector.broadcast %cst_252 : f32 to vector<2x64xf32>
    %579 = arith.maximumf %577, %578 : vector<2x64xf32>
    %580 = arith.truncf %579 : vector<2x64xf32> to vector<2x64xbf16>
    %c0_253 = arith.constant 0 : index
    %c0_254 = arith.constant 0 : index
    %581 = vector.load %arg22[%c0_253, %c0_254] : memref<64x128xbf16, #tpu.memory_space<vmem>>, vector<64x128xbf16>
    %cst_255 = arith.constant dense<0.000000e+00> : vector<2x128xf32>
    %582 = tpu.matmul %580, %581, %cst_255 {dimension_numbers = #tpu.dot_dimension_numbers<[1], [0], [0], [1], [0, 0, 1, 1], [], []>} : vector<2x64xbf16>, vector<64x128xbf16>, vector<2x128xf32> -> vector<2x128xf32>
    %c0_256 = arith.constant 0 : index
    %c0_257 = arith.constant 0 : index
    %583 = vector.load %arg23[%c0_256, %c0_257] : memref<1x128xf32, #tpu.memory_space<vmem>>, vector<1x128xf32>
    %584 = vector.broadcast %583 : vector<1x128xf32> to vector<2x128xf32>
    %585 = arith.addf %582, %584 : vector<2x128xf32>
    %586 = arith.negf %585 : vector<2x128xf32>
    %587 = math.exp %586 : vector<2x128xf32>
    %cst_258 = arith.constant 1.000000e+00 : f32
    %588 = vector.broadcast %cst_258 : f32 to vector<2x128xf32>
    %589 = arith.addf %588, %587 : vector<2x128xf32>
    %590 = arith.divf %588, %589 : vector<2x128xf32>
    %c0_259 = arith.constant 0 : index
    %c0_260 = arith.constant 0 : index
    %591 = vector.load %arg24[%c0_259, %c0_260] : memref<2x128xf32, #tpu.memory_space<vmem>>, vector<2x128xf32>
    tpu.vector_store %arg24[%c0_259, %c0_260], %590 {strides = array<i32>} : memref<2x128xf32, #tpu.memory_space<vmem>>, vector<2x128xf32>,
    return
  }
}

</mosaic_0001>

<llo_original>
// kernel: eq.1
$region0: #{eq.1}
  %s0 = inlined_call_operand.hbm [shape: s32[2,8], index: 0, kind: input, shape index: {}]
  %s1 = inlined_call_operand.vmem [shape: s32[16], index: 1, kind: output, shape index: {}]
  $region1: #{eq.1} parent=0
    #allocation0 [shape = 'u8[1024]{0}', space=vmem, size = 0x400, scoped, tag = 'operand span for operand 0']
    #allocation1 [shape = 's32[1]{0}', space=sflag, size = 0x4, scoped, tag = 'scoped memory for eq.1']
    #allocation2 [shape = 'u8[4096]{0}', space=vmem, size = 0x1000, scoped, tag = 'scoped mem for output reshape']
    #allocation3 [shape = 'u8[4096]{0}', space=vmem, size = 0x1000, scoped, tag = 'scoped mem for input reshape']
    %2 = vsyncpa [#allocation1], 0
    %s4 = ssub.s32 32, 32
    %5 = vsyncadd [#allocation1], %s4
    %s7 = sshll.u32 [#allocation0], 4
    %s8 = int_to_ptr.vmem [resolvable:$true] %s7
    %10 = dma.hbm_to_vmem [thread:$0]  %s0, 32, %s8, [#allocation1]
    %11 = dma.done [#allocation1], 32
    %s13 = sshllo.u32 0, 2
    %v14 = vld [vmem:[#allocation0] sm:%s13]
    %15 = vst [vmem:[#allocation3] sm:%s13] %v14
    %v16 = vld [vmem:[#allocation3] sm:$0x1]
    %vm17 = vcmask 64512
    %18 = vst.msk [vmem:[#allocation2] sm:$0x1] %vm17, %v16
    %s19 = scalar_lea.vmem [#allocation3], 1
    %v20 = vld [vmem:[%s19] sm:$0x1]
    %21 = vrot.lane.b32.xlu0 %v20, 8
    %v22 = vpop.permute.xlu0 %21
    %vm23 = vcmask 130112
    %24 = vst.msk [vmem:[#allocation2] sm:$0x1] %vm23, %v22
    %s26 = sshllo.u32 0, 1
    %v28 = vld [vmem:[#allocation2] sm:%s26]
    %s29 = sshllo.u32 0, 1
    %30 = vst [vmem:[%s1] sm:%s29] %v28
    %31 = vsyncpa [#allocation1], 1

// kernel: mul.20
$region0: #{mul.20}
  %s0 = inlined_call_operand.vmem [shape: f32[2,8], index: 0, kind: input, shape index: {}]
  %s1 = inlined_call_operand.vmem [shape: f32[16], index: 1, kind: output, shape index: {}]
  $region1: #{mul.20} parent=0
    #allocation0 [shape = 'u8[4096]{0}', space=vmem, size = 0x1000, scoped, tag = 'scoped mem for output reshape']
    #allocation1 [shape = 'u8[4096]{0}', space=vmem, size = 0x1000, scoped, tag = 'scoped mem for input reshape']
    %s3 = sshllo.u32 0, 2
    %v4 = vld [vmem:[%s0] sm:%s3]
    %5 = vst [vmem:[#allocation1] sm:%s3] %v4
    %v6 = vld [vmem:[#allocation1] sm:$0x1]
    %vm7 = vcmask 64512
    %8 = vst.msk [vmem:[#allocation0] sm:$0x1] %vm7, %v6
    %s9 = scalar_lea.vmem [#allocation1], 1
    %v10 = vld [vmem:[%s9] sm:$0x1]
    %11 = vrot.lane.b32.xlu0 %v10, 8
    %v12 = vpop.permute.xlu0 %11
    %vm13 = vcmask 130112
    %14 = vst.msk [vmem:[#allocation0] sm:$0x1] %vm13, %v12
    %s16 = sshllo.u32 0, 1
    %v18 = vld [vmem:[#allocation0] sm:%s16]
    %s19 = sshllo.u32 0, 1
    %20 = vst [vmem:[%s1] sm:%s19] %v18

// kernel: event_transformer_forward.1
$region0: #{event_transformer_forward.1}
  #allocation0 [shape = 'u32[]', space=smem, size = 0x4, offset = 0x4, fixed_abs, tag = 'smem constant byte address 0x4 - core index']
  #allocation1 [shape = 'u32[144,128]{1,0:T(1,128)}', space=vmem, size = 0x12000, scoped, tag = 'internal scratch']
  #allocation2 [shape = 'f32[16,128]{1,0:T(8,128)}', space=vmem, size = 0x2000, scoped, tag = 'scratch operand']
  %s0 = inlined_call_operand.vmem [shape: bf16[16,896], index: 0, kind: input, shape index: {}]
  %s1 = inlined_call_operand.vmem [shape: f32[16,128], index: 1, kind: input, shape index: {}]
  %s2 = inlined_call_operand.vmem [shape: f32[16,16], index: 2, kind: input, shape index: {}]
  %s3 = inlined_call_operand.hbm [shape: bf16[896,128], index: 3, kind: input, shape index: {}]
  %s4 = inlined_call_operand.hbm [shape: f32[1,128], index: 4, kind: input, shape index: {}]
  %s5 = inlined_call_operand.vmem [shape: bf16[3,128,384], index: 5, kind: input, shape index: {}]
  %s6 = inlined_call_operand.hbm [shape: f32[3,1,384], index: 6, kind: input, shape index: {}]
  %s7 = inlined_call_operand.hbm [shape: bf16[3,128,128], index: 7, kind: input, shape index: {}]
  %s8 = inlined_call_operand.vmem [shape: f32[3,1,128], index: 8, kind: input, shape index: {}]
  %s9 = inlined_call_operand.hbm [shape: f32[3,1,128], index: 9, kind: input, shape index: {}]
  %s10 = inlined_call_operand.hbm [shape: f32[3,1,128], index: 10, kind: input, shape index: {}]
  %s11 = inlined_call_operand.hbm [shape: bf16[3,128,256], index: 11, kind: input, shape index: {}]
  %s12 = inlined_call_operand.hbm [shape: f32[3,1,256], index: 12, kind: input, shape index: {}]
  %s13 = inlined_call_operand.hbm [shape: bf16[3,256,128], index: 13, kind: input, shape index: {}]
  %s14 = inlined_call_operand.hbm [shape: f32[3,1,128], index: 14, kind: input, shape index: {}]
  %s15 = inlined_call_operand.hbm [shape: f32[3,1,128], index: 15, kind: input, shape index: {}]
  %s16 = inlined_call_operand.hbm [shape: f32[3,1,128], index: 16, kind: input, shape index: {}]
  %s17 = inlined_call_operand.vmem [shape: f32[2,16], index: 17, kind: input, shape index: {}]
  %s18 = inlined_call_operand.hbm [shape: bf16[16,64], index: 18, kind: input, shape index: {}]
  %s19 = inlined_call_operand.hbm [shape: f32[1,64], index: 19, kind: input, shape index: {}]
  %s20 = inlined_call_operand.vmem [shape: bf16[192,64], index: 20, kind: input, shape index: {}]
  %s21 = inlined_call_operand.hbm [shape: f32[1,64], index: 21, kind: input, shape index: {}]
  %s22 = inlined_call_operand.hbm [shape: bf16[64,128], index: 22, kind: input, shape index: {}]
  %s23 = inlined_call_operand.hbm [shape: f32[1,128], index: 23, kind: input, shape index: {}]
  %s24 = inlined_call_operand.vmem [shape: f32[2,128], index: 24, kind: output, shape index: {}]
  %s25 = sld [smem:[#allocation0]]
  $region174: #{event_transformer_forward.1} parent=0
    _
  %s27 = ssub.s32 1, %s25
  %s28 = scalar_select 0, %s27, %s25
  $region1: #{event_transformer_forward.1} parent=0
    #allocation3 [shape = 'u8[229376]{0}', space=vmem, size = 0x38000, scoped, tag = 'input window, operand 3, single buffered']
    #allocation4 [shape = 's32[1]{0}', space=sflag, size = 0x4, scoped, tag = 'scoped memory for event_transformer_forward.1']
    #allocation5 [shape = 'u8[512]{0}', space=vmem, size = 0x400, scoped, tag = 'input window, operand 4, single buffered']
    #allocation6 [shape = 's32[1]{0}', space=sflag, size = 0x4, scoped, tag = 'scoped memory for event_transformer_forward.1']
    #allocation7 [shape = 'u8[4608]{0}', space=vmem, size = 0x1400, scoped, tag = 'input window, operand 6, single buffered']
    #allocation8 [shape = 'u8[98304]{0}', space=vmem, size = 0x18000, scoped, tag = 'input window, operand 7, single buffered']
    #allocation9 [shape = 's32[1]{0}', space=sflag, size = 0x4, scoped, tag = 'scoped memory for event_transformer_forward.1']
    #allocation10 [shape = 'u8[1536]{0}', space=vmem, size = 0x800, scoped, tag = 'input window, operand 9, single buffered']
    #allocation11 [shape = 'u8[1536]{0}', space=vmem, size = 0x800, scoped, tag = 'input window, operand 10, single buffered']
    #allocation12 [shape = 's32[1]{0}', space=sflag, size = 0x4, scoped, tag = 'scoped memory for event_transformer_forward.1']
    #allocation13 [shape = 'u8[196608]{0}', space=vmem, size = 0x30000, scoped, tag = 'input window, operand 11, single buffered']
    #allocation14 [shape = 'u8[3072]{0}', space=vmem, size = 0xc00, scoped, tag = 'input window, operand 12, single buffered']
    #allocation15 [shape = 's32[1]{0}', space=sflag, size = 0x4, scoped, tag = 'scoped memory for event_transformer_forward.1']
    #allocation16 [shape = 'u8[196608]{0}', space=vmem, size = 0x30000, scoped, tag = 'input window, operand 13, single buffered']
    #allocation17 [shape = 'u8[1536]{0}', space=vmem, size = 0x800, scoped, tag = 'input window, operand 14, single buffered']
    #allocation18 [shape = 's32[1]{0}', space=sflag, size = 0x4, scoped, tag = 'scoped memory for event_transformer_forward.1']
    #allocation19 [shape = 'u8[1536]{0}', space=vmem, size = 0x800, scoped, tag = 'input window, operand 15, single buffered']
    #allocation20 [shape = 'u8[1536]{0}', space=vmem, size = 0x800, scoped, tag = 'input window, operand 16, single buffered']
    #allocation21 [shape = 's32[1]{0}', space=sflag, size = 0x4, scoped, tag = 'scoped memory for event_transformer_forward.1']
    #allocation22 [shape = 'u8[4096]{0}', space=vmem, size = 0x1000, scoped, tag = 'input window, operand 18, single buffered']
    #allocation23 [shape = 'u8[512]{0}', space=vmem, size = 0x400, scoped, tag = 'input window, operand 19, single buffered']
    #allocation24 [shape = 's32[1]{0}', space=sflag, size = 0x4, scoped, tag = 'scoped memory for event_transformer_forward.1']
    #allocation25 [shape = 'u8[512]{0}', space=vmem, size = 0x400, scoped, tag = 'input window, operand 21, single buffered']
    #allocation26 [shape = 'u8[16384]{0}', space=vmem, size = 0x4000, scoped, tag = 'input window, operand 22, single buffered']
    #allocation27 [shape = 's32[1]{0}', space=sflag, size = 0x4, scoped, tag = 'scoped memory for event_transformer_forward.1']
    #allocation28 [shape = 'u8[512]{0}', space=vmem, size = 0x400, scoped, tag = 'input window, operand 23, single buffered']
    %29 = vsyncpa [#allocation4], 0
    %30 = vsyncpa [#allocation6], 0
    %31 = vsyncpa [#allocation9], 0
    %32 = vsyncpa [#allocation12], 0
    %33 = vsyncpa [#allocation15], 0
    %34 = vsyncpa [#allocation18], 0
    %35 = vsyncpa [#allocation21], 0
    %36 = vsyncpa [#allocation24], 0
    %37 = vsyncpa [#allocation27], 0
    // Predicated region
    $region2: #{event_transformer_forward.1} parent=1 // pred_check
      _
    $region3: #{event_transformer_forward.1} parent=1 // pred_check_branch
      %39 = sbr.rel (0) target = $region5
    $region4: #{event_transformer_forward.1} parent=1 // pred_region
      _
    $region5: #{event_transformer_forward.1} parent=1 // pred_fallthru
      _
    // Predicated region
    $region6: #{event_transformer_forward.1} parent=1 // pred_check
      _
    $region7: #{event_transformer_forward.1} parent=1 // pred_check_branch
      %41 = sbr.rel (0) target = $region9
    $region8: #{event_transformer_forward.1} parent=1 // pred_region
      _
    $region9: #{event_transformer_forward.1} parent=1 // pred_fallthru
      _
    // Predicated region
    $region10: #{event_transformer_forward.1} parent=1 // pred_check
      _
    $region11: #{event_transformer_forward.1} parent=1 // pred_check_branch
      %43 = sbr.rel (0) target = $region13
    $region12: #{event_transformer_forward.1} parent=1 // pred_region
      _
    $region13: #{event_transformer_forward.1} parent=1 // pred_fallthru
      _
    // Predicated region
    $region14: #{event_transformer_forward.1} parent=1 // pred_check
      _
    $region15: #{event_transformer_forward.1} parent=1 // pred_check_branch
      %45 = sbr.rel (0) target = $region17
    $region16: #{event_transformer_forward.1} parent=1 // pred_region
      %s47 = ssub.s32 7168, 7168
      %48 = vsyncadd [#allocation4], %s47
      %s49 = sshll.u32 [#allocation3], 4
      %s50 = int_to_ptr.vmem [resolvable:$true] %s49
      %55 = dma.hbm_to_vmem [thread:$0]  %s3, 7168, %s50, [#allocation4], 64, 64, 4
    $region17: #{event_transformer_forward.1} parent=1 // pred_fallthru
      _
    // Predicated region
    $region18: #{event_transformer_forward.1} parent=1 // pred_check
      _
    $region19: #{event_transformer_forward.1} parent=1 // pred_check_branch
      %57 = sbr.rel (0) target = $region21
    $region20: #{event_transformer_forward.1} parent=1 // pred_region
      %s59 = ssub.s32 16, 16
      %60 = vsyncadd [#allocation6], %s59
      %s62 = sshll.u32 [#allocation5], 4
      %s63 = int_to_ptr.vmem [resolvable:$true] %s62
      %65 = dma.hbm_to_vmem [thread:$0]  %s4, 16, %s63, [#allocation6]
    $region21: #{event_transformer_forward.1} parent=1 // pred_fallthru
      _
    // Predicated region
    $region22: #{event_transformer_forward.1} parent=1 // pred_check
      _
    $region23: #{event_transformer_forward.1} parent=1 // pred_check_branch
      %67 = sbr.rel (0) target = $region25
    $region24: #{event_transformer_forward.1} parent=1 // pred_region
      _
    $region25: #{event_transformer_forward.1} parent=1 // pred_fallthru
      _
    // Predicated region
    $region26: #{event_transformer_forward.1} parent=1 // pred_check
      _
    $region27: #{event_transformer_forward.1} parent=1 // pred_check_branch
      %69 = sbr.rel (0) target = $region29
    $region28: #{event_transformer_forward.1} parent=1 // pred_region
      %s71 = ssub.s32 144, 144
      %72 = vsyncadd [#allocation6], %s71
      %s73 = sshll.u32 [#allocation7], 4
      %s74 = int_to_ptr.vmem [resolvable:$true] %s73
      %79 = dma.hbm_to_vmem [thread:$0]  %s6, 144, %s74, [#allocation6], 48, 48, 3
    $region29: #{event_transformer_forward.1} parent=1 // pred_fallthru
      _
    // Predicated region
    $region30: #{event_transformer_forward.1} parent=1 // pred_check
      _
    $region31: #{event_transformer_forward.1} parent=1 // pred_check_branch
      %81 = sbr.rel (0) target = $region33
    $region32: #{event_transformer_forward.1} parent=1 // pred_region
      %s83 = ssub.s32 3072, 3072
      %84 = vsyncadd [#allocation9], %s83
      %s85 = sshll.u32 [#allocation8], 4
      %s86 = int_to_ptr.vmem [resolvable:$true] %s85
      %91 = dma.hbm_to_vmem [thread:$0]  %s7, 3072, %s86, [#allocation9], 64, 64, 4
    $region33: #{event_transformer_forward.1} parent=1 // pred_fallthru
      _
    // Predicated region
    $region34: #{event_transformer_forward.1} parent=1 // pred_check
      _
    $region35: #{event_transformer_forward.1} parent=1 // pred_check_branch
      %93 = sbr.rel (0) target = $region37
    $region36: #{event_transformer_forward.1} parent=1 // pred_region
      _
    $region37: #{event_transformer_forward.1} parent=1 // pred_fallthru
      _
    // Predicated region
    $region38: #{event_transformer_forward.1} parent=1 // pred_check
      _
    $region39: #{event_transformer_forward.1} parent=1 // pred_check_branch
      %95 = sbr.rel (0) target = $region41
    $region40: #{event_transformer_forward.1} parent=1 // pred_region
      %s97 = ssub.s32 48, 48
      %98 = vsyncadd [#allocation9], %s97
      %s99 = sshll.u32 [#allocation10], 4
      %s100 = int_to_ptr.vmem [resolvable:$true] %s99
      %105 = dma.hbm_to_vmem [thread:$0]  %s9, 48, %s100, [#allocation9], 16, 16, 1
    $region41: #{event_transformer_forward.1} parent=1 // pred_fallthru
      _
    // Predicated region
    $region42: #{event_transformer_forward.1} parent=1 // pred_check
      _
    $region43: #{event_transformer_forward.1} parent=1 // pred_check_branch
      %107 = sbr.rel (0) target = $region45
    $region44: #{event_transformer_forward.1} parent=1 // pred_region
      %s109 = ssub.s32 48, 48
      %110 = vsyncadd [#allocation12], %s109
      %s111 = sshll.u32 [#allocation11], 4
      %s112 = int_to_ptr.vmem [resolvable:$true] %s111
      %117 = dma.hbm_to_vmem [thread:$0]  %s10, 48, %s112, [#allocation12], 16, 16, 1
    $region45: #{event_transformer_forward.1} parent=1 // pred_fallthru
      _
    // Predicated region
    $region46: #{event_transformer_forward.1} parent=1 // pred_check
      _
    $region47: #{event_transformer_forward.1} parent=1 // pred_check_branch
      %119 = sbr.rel (0) target = $region49
    $region48: #{event_transformer_forward.1} parent=1 // pred_region
      %s121 = ssub.s32 6144, 6144
      %122 = vsyncadd [#allocation12], %s121
      %s123 = sshll.u32 [#allocation13], 4
      %s124 = int_to_ptr.vmem [resolvable:$true] %s123
      %129 = dma.hbm_to_vmem [thread:$0]  %s11, 6144, %s124, [#allocation12], 128, 128, 8
    $region49: #{event_transformer_forward.1} parent=1 // pred_fallthru
      _
    // Predicated region
    $region50: #{event_transformer_forward.1} parent=1 // pred_check
      _
    $region51: #{event_transformer_forward.1} parent=1 // pred_check_branch
      %131 = sbr.rel (0) target = $region53
    $region52: #{event_transformer_forward.1} parent=1 // pred_region
      %s133 = ssub.s32 96, 96
      %134 = vsyncadd [#allocation15], %s133
      %s135 = sshll.u32 [#allocation14], 4
      %s136 = int_to_ptr.vmem [resolvable:$true] %s135
      %141 = dma.hbm_to_vmem [thread:$0]  %s12, 96, %s136, [#allocation15], 32, 32, 2
    $region53: #{event_transformer_forward.1} parent=1 // pred_fallthru
      _
    // Predicated region
    $region54: #{event_transformer_forward.1} parent=1 // pred_check
      _
    $region55: #{event_transformer_forward.1} parent=1 // pred_check_branch
      %143 = sbr.rel (0) target = $region57
    $region56: #{event_transformer_forward.1} parent=1 // pred_region
      %s145 = ssub.s32 6144, 6144
      %146 = vsyncadd [#allocation15], %s145
      %s147 = sshll.u32 [#allocation16], 4
      %s148 = int_to_ptr.vmem [resolvable:$true] %s147
      %153 = dma.hbm_to_vmem [thread:$0]  %s13, 6144, %s148, [#allocation15], 64, 64, 4
    $region57: #{event_transformer_forward.1} parent=1 // pred_fallthru
      _
    // Predicated region
    $region58: #{event_transformer_forward.1} parent=1 // pred_check
      _
    $region59: #{event_transformer_forward.1} parent=1 // pred_check_branch
      %155 = sbr.rel (0) target = $region61
    $region60: #{event_transformer_forward.1} parent=1 // pred_region
      %s157 = ssub.s32 48, 48
      %158 = vsyncadd [#allocation18], %s157
      %s159 = sshll.u32 [#allocation17], 4
      %s160 = int_to_ptr.vmem [resolvable:$true] %s159
      %165 = dma.hbm_to_vmem [thread:$0]  %s14, 48, %s160, [#allocation18], 16, 16, 1
    $region61: #{event_transformer_forward.1} parent=1 // pred_fallthru
      _
    // Predicated region
    $region62: #{event_transformer_forward.1} parent=1 // pred_check
      _
    $region63: #{event_transformer_forward.1} parent=1 // pred_check_branch
      %167 = sbr.rel (0) target = $region65
    $region64: #{event_transformer_forward.1} parent=1 // pred_region
      %s169 = ssub.s32 48, 48
      %170 = vsyncadd [#allocation18], %s169
      %s171 = sshll.u32 [#allocation19], 4
      %s172 = int_to_ptr.vmem [resolvable:$true] %s171
      %177 = dma.hbm_to_vmem [thread:$0]  %s15, 48, %s172, [#allocation18], 16, 16, 1
    $region65: #{event_transformer_forward.1} parent=1 // pred_fallthru
      _
    // Predicated region
    $region66: #{event_transformer_forward.1} parent=1 // pred_check
      _
    $region67: #{event_transformer_forward.1} parent=1 // pred_check_branch
      %179 = sbr.rel (0) target = $region69
    $region68: #{event_transformer_forward.1} parent=1 // pred_region
      %s181 = ssub.s32 48, 48
      %182 = vsyncadd [#allocation21], %s181
      %s183 = sshll.u32 [#allocation20], 4
      %s184 = int_to_ptr.vmem [resolvable:$true] %s183
      %189 = dma.hbm_to_vmem [thread:$0]  %s16, 48, %s184, [#allocation21], 16, 16, 1
    $region69: #{event_transformer_forward.1} parent=1 // pred_fallthru
      _
    // Predicated region
    $region70: #{event_transformer_forward.1} parent=1 // pred_check
      _
    $region71: #{event_transformer_forward.1} parent=1 // pred_check_branch
      %191 = sbr.rel (0) target = $region73
    $region72: #{event_transformer_forward.1} parent=1 // pred_region
      _
    $region73: #{event_transformer_forward.1} parent=1 // pred_fallthru
      _
    // Predicated region
    $region74: #{event_transformer_forward.1} parent=1 // pred_check
      _
    $region75: #{event_transformer_forward.1} parent=1 // pred_check_branch
      %193 = sbr.rel (0) target = $region77
    $region76: #{event_transformer_forward.1} parent=1 // pred_region
      %s195 = ssub.s32 128, 128
      %196 = vsyncadd [#allocation21], %s195
      %s197 = sshll.u32 [#allocation22], 4
      %s198 = int_to_ptr.vmem [resolvable:$true] %s197
      %203 = dma.hbm_to_vmem [thread:$0]  %s18, 128, %s198, [#allocation21], 64, 64, 4
    $region77: #{event_transformer_forward.1} parent=1 // pred_fallthru
      _
    // Predicated region
    $region78: #{event_transformer_forward.1} parent=1 // pred_check
      _
    $region79: #{event_transformer_forward.1} parent=1 // pred_check_branch
      %205 = sbr.rel (0) target = $region81
    $region80: #{event_transformer_forward.1} parent=1 // pred_region
      %s207 = ssub.s32 16, 16
      %208 = vsyncadd [#allocation24], %s207
      %s210 = sshll.u32 [#allocation23], 4
      %s211 = int_to_ptr.vmem [resolvable:$true] %s210
      %213 = dma.hbm_to_vmem [thread:$0]  %s19, 16, %s211, [#allocation24]
    $region81: #{event_transformer_forward.1} parent=1 // pred_fallthru
      _
    // Predicated region
    $region82: #{event_transformer_forward.1} parent=1 // pred_check
      _
    $region83: #{event_transformer_forward.1} parent=1 // pred_check_branch
      %215 = sbr.rel (0) target = $region85
    $region84: #{event_transformer_forward.1} parent=1 // pred_region
      _
    $region85: #{event_transformer_forward.1} parent=1 // pred_fallthru
      _
    // Predicated region
    $region86: #{event_transformer_forward.1} parent=1 // pred_check
      _
    $region87: #{event_transformer_forward.1} parent=1 // pred_check_branch
      %217 = sbr.rel (0) target = $region89
    $region88: #{event_transformer_forward.1} parent=1 // pred_region
      %s219 = ssub.s32 16, 16
      %220 = vsyncadd [#allocation24], %s219
      %s222 = sshll.u32 [#allocation25], 4
      %s223 = int_to_ptr.vmem [resolvable:$true] %s222
      %225 = dma.hbm_to_vmem [thread:$0]  %s21, 16, %s223, [#allocation24]
    $region89: #{event_transformer_forward.1} parent=1 // pred_fallthru
      _
    // Predicated region
    $region90: #{event_transformer_forward.1} parent=1 // pred_check
      _
    $region91: #{event_transformer_forward.1} parent=1 // pred_check_branch
      %227 = sbr.rel (0) target = $region93
    $region92: #{event_transformer_forward.1} parent=1 // pred_region
      %s229 = ssub.s32 512, 512
      %230 = vsyncadd [#allocation27], %s229
      %s231 = sshll.u32 [#allocation26], 4
      %s232 = int_to_ptr.vmem [resolvable:$true] %s231
      %237 = dma.hbm_to_vmem [thread:$0]  %s22, 512, %s232, [#allocation27], 64, 64, 4
    $region93: #{event_transformer_forward.1} parent=1 // pred_fallthru
      _
    // Predicated region
    $region94: #{event_transformer_forward.1} parent=1 // pred_check
      _
    $region95: #{event_transformer_forward.1} parent=1 // pred_check_branch
      %239 = sbr.rel (0) target = $region97
    $region96: #{event_transformer_forward.1} parent=1 // pred_region
      %s241 = ssub.s32 16, 16
      %242 = vsyncadd [#allocation27], %s241
      %s244 = sshll.u32 [#allocation28], 4
      %s245 = int_to_ptr.vmem [resolvable:$true] %s244
      %247 = dma.hbm_to_vmem [thread:$0]  %s23, 16, %s245, [#allocation27]
    $region97: #{event_transformer_forward.1} parent=1 // pred_fallthru
      _
    // Predicated region
    $region98: #{event_transformer_forward.1} parent=1 // pred_check
      _
    $region99: #{event_transformer_forward.1} parent=1 // pred_check_branch
      %249 = sbr.rel (0) target = $region101
    $region100: #{event_transformer_forward.1} parent=1 // pred_region
      %250 = dma.done [#allocation4], 7168
    $region101: #{event_transformer_forward.1} parent=1 // pred_fallthru
      _
    // Predicated region
    $region102: #{event_transformer_forward.1} parent=1 // pred_check
      _
    $region103: #{event_transformer_forward.1} parent=1 // pred_check_branch
      %252 = sbr.rel (0) target = $region105
    $region104: #{event_transformer_forward.1} parent=1 // pred_region
      %253 = dma.done [#allocation6], 16
    $region105: #{event_transformer_forward.1} parent=1 // pred_fallthru
      _
    // Predicated region
    $region106: #{event_transformer_forward.1} parent=1 // pred_check
      _
    $region107: #{event_transformer_forward.1} parent=1 // pred_check_branch
      %255 = sbr.rel (0) target = $region109
    $region108: #{event_transformer_forward.1} parent=1 // pred_region
      %256 = dma.done [#allocation6], 144
    $region109: #{event_transformer_forward.1} parent=1 // pred_fallthru
      _
    // Predicated region
    $region110: #{event_transformer_forward.1} parent=1 // pred_check
      _
    $region111: #{event_transformer_forward.1} parent=1 // pred_check_branch
      %258 = sbr.rel (0) target = $region113
    $region112: #{event_transformer_forward.1} parent=1 // pred_region
      %259 = dma.done [#allocation9], 3072
    $region113: #{event_transformer_forward.1} parent=1 // pred_fallthru
      _
    // Predicated region
    $region114: #{event_transformer_forward.1} parent=1 // pred_check
      _
    $region115: #{event_transformer_forward.1} parent=1 // pred_check_branch
      %261 = sbr.rel (0) target = $region117
    $region116: #{event_transformer_forward.1} parent=1 // pred_region
      %262 = dma.done [#allocation9], 48
    $region117: #{event_transformer_forward.1} parent=1 // pred_fallthru
      _
    // Predicated region
    $region118: #{event_transformer_forward.1} parent=1 // pred_check
      _
    $region119: #{event_transformer_forward.1} parent=1 // pred_check_branch
      %264 = sbr.rel (0) target = $region121
    $region120: #{event_transformer_forward.1} parent=1 // pred_region
      %265 = dma.done [#allocation12], 48
    $region121: #{event_transformer_forward.1} parent=1 // pred_fallthru
      _
    // Predicated region
    $region122: #{event_transformer_forward.1} parent=1 // pred_check
      _
    $region123: #{event_transformer_forward.1} parent=1 // pred_check_branch
      %267 = sbr.rel (0) target = $region125
    $region124: #{event_transformer_forward.1} parent=1 // pred_region
      %268 = dma.done [#allocation12], 6144
    $region125: #{event_transformer_forward.1} parent=1 // pred_fallthru
      _
    // Predicated region
    $region126: #{event_transformer_forward.1} parent=1 // pred_check
      _
    $region127: #{event_transformer_forward.1} parent=1 // pred_check_branch
      %270 = sbr.rel (0) target = $region129
    $region128: #{event_transformer_forward.1} parent=1 // pred_region
      %271 = dma.done [#allocation15], 96
    $region129: #{event_transformer_forward.1} parent=1 // pred_fallthru
      _
    // Predicated region
    $region130: #{event_transformer_forward.1} parent=1 // pred_check
      _
    $region131: #{event_transformer_forward.1} parent=1 // pred_check_branch
      %273 = sbr.rel (0) target = $region133
    $region132: #{event_transformer_forward.1} parent=1 // pred_region
      %274 = dma.done [#allocation15], 6144
    $region133: #{event_transformer_forward.1} parent=1 // pred_fallthru
      _
    // Predicated region
    $region134: #{event_transformer_forward.1} parent=1 // pred_check
      _
    $region135: #{event_transformer_forward.1} parent=1 // pred_check_branch
      %276 = sbr.rel (0) target = $region137
    $region136: #{event_transformer_forward.1} parent=1 // pred_region
      %277 = dma.done [#allocation18], 48
    $region137: #{event_transformer_forward.1} parent=1 // pred_fallthru
      _
    // Predicated region
    $region138: #{event_transformer_forward.1} parent=1 // pred_check
      _
    $region139: #{event_transformer_forward.1} parent=1 // pred_check_branch
      %279 = sbr.rel (0) target = $region141
    $region140: #{event_transformer_forward.1} parent=1 // pred_region
      %280 = dma.done [#allocation18], 48
    $region141: #{event_transformer_forward.1} parent=1 // pred_fallthru
      _
    // Predicated region
    $region142: #{event_transformer_forward.1} parent=1 // pred_check
      _
    $region143: #{event_transformer_forward.1} parent=1 // pred_check_branch
      %282 = sbr.rel (0) target = $region145
    $region144: #{event_transformer_forward.1} parent=1 // pred_region
      %283 = dma.done [#allocation21], 48
    $region145: #{event_transformer_forward.1} parent=1 // pred_fallthru
      _
    // Predicated region
    $region146: #{event_transformer_forward.1} parent=1 // pred_check
      _
    $region147: #{event_transformer_forward.1} parent=1 // pred_check_branch
      %285 = sbr.rel (0) target = $region149
    $region148: #{event_transformer_forward.1} parent=1 // pred_region
      %286 = dma.done [#allocation21], 128
    $region149: #{event_transformer_forward.1} parent=1 // pred_fallthru
      _
    // Predicated region
    $region150: #{event_transformer_forward.1} parent=1 // pred_check
      _
    $region151: #{event_transformer_forward.1} parent=1 // pred_check_branch
      %288 = sbr.rel (0) target = $region153
    $region152: #{event_transformer_forward.1} parent=1 // pred_region
      %289 = dma.done [#allocation24], 16
    $region153: #{event_transformer_forward.1} parent=1 // pred_fallthru
      _
    // Predicated region
    $region154: #{event_transformer_forward.1} parent=1 // pred_check
      _
    $region155: #{event_transformer_forward.1} parent=1 // pred_check_branch
      %291 = sbr.rel (0) target = $region157
    $region156: #{event_transformer_forward.1} parent=1 // pred_region
      %292 = dma.done [#allocation24], 16
    $region157: #{event_transformer_forward.1} parent=1 // pred_fallthru
      _
    // Predicated region
    $region158: #{event_transformer_forward.1} parent=1 // pred_check
      _
    $region159: #{event_transformer_forward.1} parent=1 // pred_check_branch
      %294 = sbr.rel (0) target = $region161
    $region160: #{event_transformer_forward.1} parent=1 // pred_region
      %295 = dma.done [#allocation27], 512
    $region161: #{event_transformer_forward.1} parent=1 // pred_fallthru
      _
    // Predicated region
    $region162: #{event_transformer_forward.1} parent=1 // pred_check
      _
    $region163: #{event_transformer_forward.1} parent=1 // pred_check_branch
      %297 = sbr.rel (0) target = $region165
    $region164: #{event_transformer_forward.1} parent=1 // pred_region
      %298 = dma.done [#allocation27], 16
    $region165: #{event_transformer_forward.1} parent=1 // pred_fallthru
      _
    %v300 = vld [vmem:[%s0] sm:$0xff]
    %v301 = vld [vmem:[%s0 + $0x8] sm:$0xff]
    %v302 = vld [vmem:[%s0 + $0x10] sm:$0xff]
    %v303 = vld [vmem:[%s0 + $0x18] sm:$0xf]
    %v304 = vld [vmem:[%s0 + $0x1c] sm:$0xff]
    %v305 = vld [vmem:[%s0 + $0x24] sm:$0xff]
    %v306 = vld [vmem:[%s0 + $0x2c] sm:$0xff]
    %v307 = vld [vmem:[%s0 + $0x34] sm:$0xf]
    %v308 = vld [vmem:[#allocation3] sm:$0xf]
    %v309 = vld [vmem:[#allocation3 + $0x4] sm:$0xf]
    %v310 = vld [vmem:[#allocation3 + $0x8] sm:$0xf]
    %v311 = vld [vmem:[#allocation3 + $0xc] sm:$0xf]
    %v312 = vld [vmem:[#allocation3 + $0x10] sm:$0xf]
    %v313 = vld [vmem:[#allocation3 + $0x14] sm:$0xf]
    %v314 = vld [vmem:[#allocation3 + $0x18] sm:$0xf]
    %v315 = vld [vmem:[#allocation3 + $0x1c] sm:$0xf]
    %v316 = vld [vmem:[#allocation3 + $0x20] sm:$0xf]
    %v317 = vld [vmem:[#allocation3 + $0x24] sm:$0xf]
    %v318 = vld [vmem:[#allocation3 + $0x28] sm:$0xf]
    %v319 = vld [vmem:[#allocation3 + $0x2c] sm:$0xf]
    %v320 = vld [vmem:[#allocation3 + $0x30] sm:$0xf]
    %v321 = vld [vmem:[#allocation3 + $0x34] sm:$0xf]
    %v322 = vld [vmem:[#allocation3 + $0x38] sm:$0xf]
    %v323 = vld [vmem:[#allocation3 + $0x3c] sm:$0xf]
    %v324 = vld [vmem:[#allocation3 + $0x40] sm:$0xf]
    %v325 = vld [vmem:[#allocation3 + $0x44] sm:$0xf]
    %v326 = vld [vmem:[#allocation3 + $0x48] sm:$0xf]
    %v327 = vld [vmem:[#allocation3 + $0x4c] sm:$0xf]
    %v328 = vld [vmem:[#allocation3 + $0x50] sm:$0xf]
    %v329 = vld [vmem:[#allocation3 + $0x54] sm:$0xf]
    %v330 = vld [vmem:[#allocation3 + $0x58] sm:$0xf]
    %v331 = vld [vmem:[#allocation3 + $0x5c] sm:$0xf]
    %v332 = vld [vmem:[#allocation3 + $0x60] sm:$0xf]
    %v333 = vld [vmem:[#allocation3 + $0x64] sm:$0xf]
    %v334 = vld [vmem:[#allocation3 + $0x68] sm:$0xf]
    %v335 = vld [vmem:[#allocation3 + $0x6c] sm:$0xf]
    %v336 = vld [vmem:[#allocation3 + $0x70] sm:$0xf]
    %v337 = vld [vmem:[#allocation3 + $0x74] sm:$0xf]
    %v338 = vld [vmem:[#allocation3 + $0x78] sm:$0xf]
    %v339 = vld [vmem:[#allocation3 + $0x7c] sm:$0xf]
    %v340 = vld [vmem:[#allocation3 + $0x80] sm:$0xf]
    %v341 = vld [vmem:[#allocation3 + $0x84] sm:$0xf]
    %v342 = vld [vmem:[#allocation3 + $0x88] sm:$0xf]
    %v343 = vld [vmem:[#allocation3 + $0x8c] sm:$0xf]
    %v344 = vld [vmem:[#allocation3 + $0x90] sm:$0xf]
    %v345 = vld [vmem:[#allocation3 + $0x94] sm:$0xf]
    %v346 = vld [vmem:[#allocation3 + $0x98] sm:$0xf]
    %v347 = vld [vmem:[#allocation3 + $0x9c] sm:$0xf]
    %v348 = vld [vmem:[#allocation3 + $0xa0] sm:$0xf]
    %v349 = vld [vmem:[#allocation3 + $0xa4] sm:$0xf]
    %v350 = vld [vmem:[#allocation3 + $0xa8] sm:$0xf]
    %v351 = vld [vmem:[#allocation3 + $0xac] sm:$0xf]
    %v352 = vld [vmem:[#allocation3 + $0xb0] sm:$0xf]
    %v353 = vld [vmem:[#allocation3 + $0xb4] sm:$0xf]
    %v354 = vld [vmem:[#allocation3 + $0xb8] sm:$0xf]
    %v355 = vld [vmem:[#allocation3 + $0xbc] sm:$0xf]
    %v356 = vld [vmem:[#allocation3 + $0xc0] sm:$0xf]
    %v357 = vld [vmem:[#allocation3 + $0xc4] sm:$0xf]
    %v358 = vld [vmem:[#allocation3 + $0xc8] sm:$0xf]
    %v359 = vld [vmem:[#allocation3 + $0xcc] sm:$0xf]
    %v360 = vld [vmem:[#allocation3 + $0xd0] sm:$0xf]
    %v361 = vld [vmem:[#allocation3 + $0xd4] sm:$0xf]
    %v362 = vld [vmem:[#allocation3 + $0xd8] sm:$0xf]
    %v363 = vld [vmem:[#allocation3 + $0xdc] sm:$0xf]
    %v364 = vld [vmem:[#allocation3 + $0xe0] sm:$0xf]
    %v365 = vld [vmem:[#allocation3 + $0xe4] sm:$0xf]
    %v366 = vld [vmem:[#allocation3 + $0xe8] sm:$0xf]
    %v367 = vld [vmem:[#allocation3 + $0xec] sm:$0xf]
    %v368 = vld [vmem:[#allocation3 + $0xf0] sm:$0xf]
    %v369 = vld [vmem:[#allocation3 + $0xf4] sm:$0xf]
    %v370 = vld [vmem:[#allocation3 + $0xf8] sm:$0xf]
    %v371 = vld [vmem:[#allocation3 + $0xfc] sm:$0xf]
    %v372 = vld [vmem:[#allocation3 + $0x100] sm:$0xf]
    %v373 = vld [vmem:[#allocation3 + $0x104] sm:$0xf]
    %v374 = vld [vmem:[#allocation3 + $0x108] sm:$0xf]
    %v375 = vld [vmem:[#allocation3 + $0x10c] sm:$0xf]
    %v376 = vld [vmem:[#allocation3 + $0x110] sm:$0xf]
    %v377 = vld [vmem:[#allocation3 + $0x114] sm:$0xf]
    %v378 = vld [vmem:[#allocation3 + $0x118] sm:$0xf]
    %v379 = vld [vmem:[#allocation3 + $0x11c] sm:$0xf]
    %v380 = vld [vmem:[#allocation3 + $0x120] sm:$0xf]
    %v381 = vld [vmem:[#allocation3 + $0x124] sm:$0xf]
    %v382 = vld [vmem:[#allocation3 + $0x128] sm:$0xf]
    %v383 = vld [vmem:[#allocation3 + $0x12c] sm:$0xf]
    %v384 = vld [vmem:[#allocation3 + $0x130] sm:$0xf]
    %v385 = vld [vmem:[#allocation3 + $0x134] sm:$0xf]
    %v386 = vld [vmem:[#allocation3 + $0x138] sm:$0xf]
    %v387 = vld [vmem:[#allocation3 + $0x13c] sm:$0xf]
    %v388 = vld [vmem:[#allocation3 + $0x140] sm:$0xf]
    %v389 = vld [vmem:[#allocation3 + $0x144] sm:$0xf]
    %v390 = vld [vmem:[#allocation3 + $0x148] sm:$0xf]
    %v391 = vld [vmem:[#allocation3 + $0x14c] sm:$0xf]
    %v392 = vld [vmem:[#allocation3 + $0x150] sm:$0xf]
    %v393 = vld [vmem:[#allocation3 + $0x154] sm:$0xf]
    %v394 = vld [vmem:[#allocation3 + $0x158] sm:$0xf]
    %v395 = vld [vmem:[#allocation3 + $0x15c] sm:$0xf]
    %v396 = vld [vmem:[#allocation3 + $0x160] sm:$0xf]
    %v397 = vld [vmem:[#allocation3 + $0x164] sm:$0xf]
    %v398 = vld [vmem:[#allocation3 + $0x168] sm:$0xf]
    %v399 = vld [vmem:[#allocation3 + $0x16c] sm:$0xf]
    %v400 = vld [vmem:[#allocation3 + $0x170] sm:$0xf]
    %v401 = vld [vmem:[#allocation3 + $0x174] sm:$0xf]
    %v402 = vld [vmem:[#allocation3 + $0x178] sm:$0xf]
    %v403 = vld [vmem:[#allocation3 + $0x17c] sm:$0xf]
    %v404 = vld [vmem:[#allocation3 + $0x180] sm:$0xf]
    %v405 = vld [vmem:[#allocation3 + $0x184] sm:$0xf]
    %v406 = vld [vmem:[#allocation3 + $0x188] sm:$0xf]
    %v407 = vld [vmem:[#allocation3 + $0x18c] sm:$0xf]
    %v408 = vld [vmem:[#allocation3 + $0x190] sm:$0xf]
    %v409 = vld [vmem:[#allocation3 + $0x194] sm:$0xf]
    %v410 = vld [vmem:[#allocation3 + $0x198] sm:$0xf]
    %v411 = vld [vmem:[#allocation3 + $0x19c] sm:$0xf]
    %v412 = vld [vmem:[#allocation3 + $0x1a0] sm:$0xf]
    %v413 = vld [vmem:[#allocation3 + $0x1a4] sm:$0xf]
    %v414 = vld [vmem:[#allocation3 + $0x1a8] sm:$0xf]
    %v415 = vld [vmem:[#allocation3 + $0x1ac] sm:$0xf]
    %v416 = vld [vmem:[#allocation3 + $0x1b0] sm:$0xf]
    %v417 = vld [vmem:[#allocation3 + $0x1b4] sm:$0xf]
    %v418 = vld [vmem:[#allocation3 + $0x1b8] sm:$0xf]
    %v419 = vld [vmem:[#allocation3 + $0x1bc] sm:$0xf]
    %v420 = vld [vmem:[#allocation5] sm:$0x1]
    %v422 = vlaneseq
    %v423 = vshrl.u32 %v422, 7
    %v424 = vsub.s32 0, %v423
    %v425 = vrot.slane %v420, %v424
    %v435 = vunpack.c.l.b16 %v300
    %v436 = vunpack.c.h.b16 %v300
    %v437 = vunpack.c.l.b16 %v301
    %v438 = vunpack.c.h.b16 %v301
    %v439 = vunpack.c.l.b16 %v302
    %v440 = vunpack.c.h.b16 %v302
    %v441 = vunpack.c.l.b16 %v303
    %v442 = vunpack.c.l.b16 %v304
    %v443 = vunpack.c.h.b16 %v304
    %v444 = vunpack.c.l.b16 %v305
    %v445 = vunpack.c.h.b16 %v305
    %v446 = vunpack.c.l.b16 %v306
    %v447 = vunpack.c.h.b16 %v306
    %v448 = vunpack.c.l.b16 %v307
    %v449 = vpack.c.b16 %v442, %v435
    %v450 = vpack.c.b16 %v443, %v436
    %v451 = vpack.c.b16 %v444, %v437
    %v452 = vpack.c.b16 %v445, %v438
    %v453 = vpack.c.b16 %v446, %v439
    %v454 = vpack.c.b16 %v447, %v440
    %v455 = vpack.c.b16 %v448, %v441
    %v575 = vunpack.c.l.b16 %v308
    %v576 = vunpack.c.l.b16 %v309
    %v577 = vunpack.c.l.b16 %v310
    %v578 = vunpack.c.l.b16 %v311
    %v579 = vunpack.c.l.b16 %v312
    %v580 = vunpack.c.l.b16 %v313
    %v581 = vunpack.c.l.b16 %v314
    %v582 = vunpack.c.l.b16 %v315
    %v583 = vunpack.c.l.b16 %v316
    %v584 = vunpack.c.l.b16 %v317
    %v585 = vunpack.c.l.b16 %v318
    %v586 = vunpack.c.l.b16 %v319
    %v587 = vunpack.c.l.b16 %v320
    %v588 = vunpack.c.l.b16 %v321
    %v589 = vunpack.c.l.b16 %v322
    %v590 = vunpack.c.l.b16 %v323
    %v591 = vunpack.c.l.b16 %v324
    %v592 = vunpack.c.l.b16 %v325
    %v593 = vunpack.c.l.b16 %v326
    %v594 = vunpack.c.l.b16 %v327
    %v595 = vunpack.c.l.b16 %v328
    %v596 = vunpack.c.l.b16 %v329
    %v597 = vunpack.c.l.b16 %v330
    %v598 = vunpack.c.l.b16 %v331
    %v599 = vunpack.c.l.b16 %v332
    %v600 = vunpack.c.l.b16 %v333
    %v601 = vunpack.c.l.b16 %v334
    %v602 = vunpack.c.l.b16 %v335
    %v603 = vunpack.c.l.b16 %v336
    %v604 = vunpack.c.l.b16 %v337
    %v605 = vunpack.c.l.b16 %v338
    %v606 = vunpack.c.l.b16 %v339
    %v607 = vunpack.c.l.b16 %v340
    %v608 = vunpack.c.l.b16 %v341
    %v609 = vunpack.c.l.b16 %v342
    %v610 = vunpack.c.l.b16 %v343
    %v611 = vunpack.c.l.b16 %v344
    %v612 = vunpack.c.l.b16 %v345
    %v613 = vunpack.c.l.b16 %v346
    %v614 = vunpack.c.l.b16 %v347
    %v615 = vunpack.c.l.b16 %v348
    %v616 = vunpack.c.l.b16 %v349
    %v617 = vunpack.c.l.b16 %v350
    %v618 = vunpack.c.l.b16 %v351
    %v619 = vunpack.c.l.b16 %v352
    %v620 = vunpack.c.l.b16 %v353
    %v621 = vunpack.c.l.b16 %v354
    %v622 = vunpack.c.l.b16 %v355
    %v623 = vunpack.c.l.b16 %v356
    %v624 = vunpack.c.l.b16 %v357
    %v625 = vunpack.c.l.b16 %v358
    %v626 = vunpack.c.l.b16 %v359
    %v627 = vunpack.c.l.b16 %v360
    %v628 = vunpack.c.l.b16 %v361
    %v629 = vunpack.c.l.b16 %v362
    %v630 = vunpack.c.l.b16 %v363
    %v631 = vunpack.c.l.b16 %v364
    %v632 = vunpack.c.l.b16 %v365
    %v633 = vunpack.c.l.b16 %v366
    %v634 = vunpack.c.l.b16 %v367
    %v635 = vunpack.c.l.b16 %v368
    %v636 = vunpack.c.l.b16 %v369
    %v637 = vunpack.c.l.b16 %v370
    %v638 = vunpack.c.l.b16 %v371
    %v639 = vunpack.c.l.b16 %v372
    %v640 = vunpack.c.l.b16 %v373
    %v641 = vunpack.c.l.b16 %v374
    %v642 = vunpack.c.l.b16 %v375
    %v643 = vunpack.c.l.b16 %v376
    %v644 = vunpack.c.l.b16 %v377
    %v645 = vunpack.c.l.b16 %v378
    %v646 = vunpack.c.l.b16 %v379
    %v647 = vunpack.c.l.b16 %v380
    %v648 = vunpack.c.l.b16 %v381
    %v649 = vunpack.c.l.b16 %v382
    %v650 = vunpack.c.l.b16 %v383
    %v651 = vunpack.c.l.b16 %v384
    %v652 = vunpack.c.l.b16 %v385
    %v653 = vunpack.c.l.b16 %v386
    %v654 = vunpack.c.l.b16 %v387
    %v655 = vunpack.c.l.b16 %v388
    %v656 = vunpack.c.l.b16 %v389
    %v657 = vunpack.c.l.b16 %v390
    %v658 = vunpack.c.l.b16 %v391
    %v659 = vunpack.c.l.b16 %v392
    %v660 = vunpack.c.l.b16 %v393
    %v661 = vunpack.c.l.b16 %v394
    %v662 = vunpack.c.l.b16 %v395
    %v663 = vunpack.c.l.b16 %v396
    %v664 = vunpack.c.l.b16 %v397
    %v665 = vunpack.c.l.b16 %v398
    %v666 = vunpack.c.l.b16 %v399
    %v667 = vunpack.c.l.b16 %v400
    %v668 = vunpack.c.l.b16 %v401
    %v669 = vunpack.c.l.b16 %v402
    %v670 = vunpack.c.l.b16 %v403
    %v671 = vunpack.c.l.b16 %v404
    %v672 = vunpack.c.l.b16 %v405
    %v673 = vunpack.c.l.b16 %v406
    %v674 = vunpack.c.l.b16 %v407
    %v675 = vunpack.c.l.b16 %v408
    %v676 = vunpack.c.l.b16 %v409
    %v677 = vunpack.c.l.b16 %v410
    %v678 = vunpack.c.l.b16 %v411
    %v679 = vunpack.c.l.b16 %v412
    %v680 = vunpack.c.l.b16 %v413
    %v681 = vunpack.c.l.b16 %v414
    %v682 = vunpack.c.l.b16 %v415
    %v683 = vunpack.c.l.b16 %v416
    %v684 = vunpack.c.l.b16 %v417
    %v685 = vunpack.c.l.b16 %v418
    %v686 = vunpack.c.l.b16 %v419
    %v687 = vpack.c.b16 %v576, %v575
    %v688 = vpack.c.b16 %v578, %v577
    %v689 = vpack.c.b16 %v580, %v579
    %v690 = vpack.c.b16 %v582, %v581
    %v691 = vpack.c.b16 %v584, %v583
    %v692 = vpack.c.b16 %v586, %v585
    %v693 = vpack.c.b16 %v588, %v587
    %v694 = vpack.c.b16 %v590, %v589
    %v695 = vpack.c.b16 %v592, %v591
    %v696 = vpack.c.b16 %v594, %v593
    %v697 = vpack.c.b16 %v596, %v595
    %v698 = vpack.c.b16 %v598, %v597
    %v699 = vpack.c.b16 %v600, %v599
    %v700 = vpack.c.b16 %v602, %v601
    %v701 = vpack.c.b16 %v604, %v603
    %v702 = vpack.c.b16 %v606, %v605
    %v703 = vpack.c.b16 %v608, %v607
    %v704 = vpack.c.b16 %v610, %v609
    %v705 = vpack.c.b16 %v612, %v611
    %v706 = vpack.c.b16 %v614, %v613
    %v707 = vpack.c.b16 %v616, %v615
    %v708 = vpack.c.b16 %v618, %v617
    %v709 = vpack.c.b16 %v620, %v619
    %v710 = vpack.c.b16 %v622, %v621
    %v711 = vpack.c.b16 %v624, %v623
    %v712 = vpack.c.b16 %v626, %v625
    %v713 = vpack.c.b16 %v628, %v627
    %v714 = vpack.c.b16 %v630, %v629
    %v715 = vpack.c.b16 %v632, %v631
    %v716 = vpack.c.b16 %v634, %v633
    %v717 = vpack.c.b16 %v636, %v635
    %v718 = vpack.c.b16 %v638, %v637
    %v719 = vpack.c.b16 %v640, %v639
    %v720 = vpack.c.b16 %v642, %v641
    %v721 = vpack.c.b16 %v644, %v643
    %v722 = vpack.c.b16 %v646, %v645
    %v723 = vpack.c.b16 %v648, %v647
    %v724 = vpack.c.b16 %v650, %v649
    %v725 = vpack.c.b16 %v652, %v651
    %v726 = vpack.c.b16 %v654, %v653
    %v727 = vpack.c.b16 %v656, %v655
    %v728 = vpack.c.b16 %v658, %v657
    %v729 = vpack.c.b16 %v660, %v659
    %v730 = vpack.c.b16 %v662, %v661
    %v731 = vpack.c.b16 %v664, %v663
    %v732 = vpack.c.b16 %v666, %v665
    %v733 = vpack.c.b16 %v668, %v667
    %v734 = vpack.c.b16 %v670, %v669
    %v735 = vpack.c.b16 %v672, %v671
    %v736 = vpack.c.b16 %v674, %v673
    %v737 = vpack.c.b16 %v676, %v675
    %v738 = vpack.c.b16 %v678, %v677
    %v739 = vpack.c.b16 %v680, %v679
    %v740 = vpack.c.b16 %v682, %v681
    %v741 = vpack.c.b16 %v684, %v683
    %v742 = vpack.c.b16 %v686, %v685
    %799 = vmatprep.subr.bf16.mxu0 0
    %800 = vmatpush1.bf16.msra.mxu0 %v687
    %801 = vmatprep.subr.bf16.mxu0 0
    %802 = vmatpush1.bf16.msra.mxu0 %v688
    %803 = vmatprep.subr.bf16.mxu0 0
    %804 = vmatpush1.bf16.msra.mxu0 %v689
    %805 = vmatprep.subr.bf16.mxu0 0
    %806 = vmatpush1.bf16.msra.mxu0 %v690
    %807 = vmatprep.subr.bf16.mxu0 0
    %808 = vmatpush1.bf16.msra.mxu0 %v691
    %809 = vmatprep.subr.bf16.mxu0 0
    %810 = vmatpush1.bf16.msra.mxu0 %v692
    %811 = vmatprep.subr.bf16.mxu0 0
    %812 = vmatpush1.bf16.msra.mxu0 %v693
    %813 = vmatprep.subr.bf16.mxu0 0
    %814 = vmatpush1.bf16.msra.mxu0 %v694
    %815 = vmatprep.subr.bf16.mxu0 0
    %816 = vmatpush1.bf16.msra.mxu0 %v695
    %817 = vmatprep.subr.bf16.mxu0 0
    %818 = vmatpush1.bf16.msra.mxu0 %v696
    %819 = vmatprep.subr.bf16.mxu0 0
    %820 = vmatpush1.bf16.msra.mxu0 %v697
    %821 = vmatprep.subr.bf16.mxu0 0
    %822 = vmatpush1.bf16.msra.mxu0 %v698
    %823 = vmatprep.subr.bf16.mxu0 0
    %824 = vmatpush1.bf16.msra.mxu0 %v699
    %825 = vmatprep.subr.bf16.mxu0 0
    %826 = vmatpush1.bf16.msra.mxu0 %v700
    %827 = vmatprep.subr.bf16.mxu0 0
    %828 = vmatpush1.bf16.msra.mxu0 %v701
    %829 = vmatprep.subr.bf16.mxu0 0
    %830 = vmatpush1.bf16.msra.mxu0 %v702
    %831 = vmatprep.mubr.bf16.mxu0 %v450
    %832 = vmatmul.mubr.bf16.gmra.mrb[0].mxu0 %v449
    %v833 = vpop.f32.mrb[0].mxu0
    %v834 = vadd.f32 %v425, %v833
    %v835 = vpop.f32.mrb[0].mxu0
    %v836 = vpop.f32.mrb[0].mxu0
    %v837 = vadd.f32 %v425, %v836
    %v838 = vpop.f32.mrb[0].mxu0
    %839 = vdwg.mxu0
    %840 = vmatprep.subr.bf16.mxu0 0
    %841 = vmatpush1.bf16.msra.mxu0 %v703
    %842 = vmatprep.subr.bf16.mxu0 0
    %843 = vmatpush1.bf16.msra.mxu0 %v704
    %844 = vmatprep.subr.bf16.mxu0 0
    %845 = vmatpush1.bf16.msra.mxu0 %v705
    %846 = vmatprep.subr.bf16.mxu0 0
    %847 = vmatpush1.bf16.msra.mxu0 %v706
    %848 = vmatprep.subr.bf16.mxu0 0
    %849 = vmatpush1.bf16.msra.mxu0 %v707
    %850 = vmatprep.subr.bf16.mxu0 0
    %851 = vmatpush1.bf16.msra.mxu0 %v708
    %852 = vmatprep.subr.bf16.mxu0 0
    %853 = vmatpush1.bf16.msra.mxu0 %v709
    %854 = vmatprep.subr.bf16.mxu0 0
    %855 = vmatpush1.bf16.msra.mxu0 %v710
    %856 = vmatprep.subr.bf16.mxu0 0
    %857 = vmatpush1.bf16.msra.mxu0 %v711
    %858 = vmatprep.subr.bf16.mxu0 0
    %859 = vmatpush1.bf16.msra.mxu0 %v712
    %860 = vmatprep.subr.bf16.mxu0 0
    %861 = vmatpush1.bf16.msra.mxu0 %v713
    %862 = vmatprep.subr.bf16.mxu0 0
    %863 = vmatpush1.bf16.msra.mxu0 %v714
    %864 = vmatprep.subr.bf16.mxu0 0
    %865 = vmatpush1.bf16.msra.mxu0 %v715
    %866 = vmatprep.subr.bf16.mxu0 0
    %867 = vmatpush1.bf16.msra.mxu0 %v716
    %868 = vmatprep.subr.bf16.mxu0 0
    %869 = vmatpush1.bf16.msra.mxu0 %v717
    %870 = vmatprep.subr.bf16.mxu0 0
    %871 = vmatpush1.bf16.msra.mxu0 %v718
    %872 = vmatprep.mubr.bf16.mxu0 %v452
    %873 = vmatmul.mubr.bf16.gmra.mrb[0].mxu0 %v451
    %v874 = vpop.f32.mrb[0].mxu0
    %v875 = vadd.f32 %v834, %v874
    %v876 = vpop.f32.mrb[0].mxu0
    %v877 = vpop.f32.mrb[0].mxu0
    %v878 = vadd.f32 %v837, %v877
    %v879 = vpop.f32.mrb[0].mxu0
    %880 = vdwg.mxu0
    %881 = vmatprep.subr.bf16.mxu0 0
    %882 = vmatpush1.bf16.msra.mxu0 %v719
    %883 = vmatprep.subr.bf16.mxu0 0
    %884 = vmatpush1.bf16.msra.mxu0 %v720
    %885 = vmatprep.subr.bf16.mxu0 0
    %886 = vmatpush1.bf16.msra.mxu0 %v721
    %887 = vmatprep.subr.bf16.mxu0 0
    %888 = vmatpush1.bf16.msra.mxu0 %v722
    %889 = vmatprep.subr.bf16.mxu0 0
    %890 = vmatpush1.bf16.msra.mxu0 %v723
    %891 = vmatprep.subr.bf16.mxu0 0
    %892 = vmatpush1.bf16.msra.mxu0 %v724
    %893 = vmatprep.subr.bf16.mxu0 0
    %894 = vmatpush1.bf16.msra.mxu0 %v725
    %895 = vmatprep.subr.bf16.mxu0 0
    %896 = vmatpush1.bf16.msra.mxu0 %v726
    %897 = vmatprep.subr.bf16.mxu0 0
    %898 = vmatpush1.bf16.msra.mxu0 %v727
    %899 = vmatprep.subr.bf16.mxu0 0
    %900 = vmatpush1.bf16.msra.mxu0 %v728
    %901 = vmatprep.subr.bf16.mxu0 0
    %902 = vmatpush1.bf16.msra.mxu0 %v729
    %903 = vmatprep.subr.bf16.mxu0 0
    %904 = vmatpush1.bf16.msra.mxu0 %v730
    %905 = vmatprep.subr.bf16.mxu0 0
    %906 = vmatpush1.bf16.msra.mxu0 %v731
    %907 = vmatprep.subr.bf16.mxu0 0
    %908 = vmatpush1.bf16.msra.mxu0 %v732
    %909 = vmatprep.subr.bf16.mxu0 0
    %910 = vmatpush1.bf16.msra.mxu0 %v733
    %911 = vmatprep.subr.bf16.mxu0 0
    %912 = vmatpush1.bf16.msra.mxu0 %v734
    %913 = vmatprep.mubr.bf16.mxu0 %v454
    %914 = vmatmul.mubr.bf16.gmra.mrb[0].mxu0 %v453
    %v915 = vpop.f32.mrb[0].mxu0
    %v916 = vadd.f32 %v875, %v915
    %v917 = vpop.f32.mrb[0].mxu0
    %v918 = vpop.f32.mrb[0].mxu0
    %v919 = vadd.f32 %v878, %v918
    %v920 = vpop.f32.mrb[0].mxu0
    %921 = vdwg.mxu0
    %922 = vmatprep.subr.bf16.mxu0 0
    %923 = vmatpush1.bf16.msra.mxu0 %v735
    %924 = vmatprep.subr.bf16.mxu0 0
    %925 = vmatpush1.bf16.msra.mxu0 %v736
    %926 = vmatprep.subr.bf16.mxu0 0
    %927 = vmatpush1.bf16.msra.mxu0 %v737
    %928 = vmatprep.subr.bf16.mxu0 0
    %929 = vmatpush1.bf16.msra.mxu0 %v738
    %930 = vmatprep.subr.bf16.mxu0 0
    %931 = vmatpush1.bf16.msra.mxu0 %v739
    %932 = vmatprep.subr.bf16.mxu0 0
    %933 = vmatpush1.bf16.msra.mxu0 %v740
    %934 = vmatprep.subr.bf16.mxu0 0
    %935 = vmatpush1.bf16.msra.mxu0 %v741
    %936 = vmatprep.subr.bf16.mxu0 0
    %937 = vmatpush1.bf16.msra.mxu0 %v742
    %938 = vmatprep.subr.bf16.mxu0 0
    %939 = vmatpush1.bf16.msra.mxu0 0
    %940 = vmatprep.subr.bf16.mxu0 0
    %941 = vmatpush1.bf16.msra.mxu0 0
    %942 = vmatprep.subr.bf16.mxu0 0
    %943 = vmatpush1.bf16.msra.mxu0 0
    %944 = vmatprep.subr.bf16.mxu0 0
    %945 = vmatpush1.bf16.msra.mxu0 0
    %946 = vmatprep.subr.bf16.mxu0 0
    %947 = vmatpush1.bf16.msra.mxu0 0
    %948 = vmatprep.subr.bf16.mxu0 0
    %949 = vmatpush1.bf16.msra.mxu0 0
    %950 = vmatprep.subr.bf16.mxu0 0
    %951 = vmatpush1.bf16.msra.mxu0 0
    %952 = vmatprep.subr.bf16.mxu0 0
    %953 = vmatpush1.bf16.msra.mxu0 0
    %954 = vmatprep.mubr.bf16.mxu0 0
    %955 = vmatmul.mubr.bf16.gmra.mrb[0].mxu0 %v455
    %v956 = vpop.f32.mrb[0].mxu0
    %v957 = vadd.f32 %v916, %v956
    %v958 = vpop.f32.mrb[0].mxu0
    %v959 = vpop.f32.mrb[0].mxu0
    %v960 = vadd.f32 %v919, %v959
    %v961 = vpop.f32.mrb[0].mxu0
    %962 = vdwg.mxu0
    %v963 = vld [vmem:[%s1] sm:$0xff]
    %v964 = vld [vmem:[%s1 + $0x8] sm:$0xff]
    %v965 = vadd.f32 %v957, %v963
    %v966 = vadd.f32 %v960, %v964
    %v967 = vld [vmem:[%s2] sm:$0xff]
    %v968 = vld [vmem:[%s2 + $0x8] sm:$0xff]
    %v969 = vpack.c.bf16 %v966, %v965
    %v970 = vld [vmem:[%s5] sm:$0xff]
    %v971 = vld [vmem:[%s5 + $0x8] sm:$0xf]
    %v972 = vld [vmem:[%s5 + $0xc] sm:$0xff]
    %v973 = vld [vmem:[%s5 + $0x14] sm:$0xf]
    %v974 = vld [vmem:[%s5 + $0x18] sm:$0xff]
    %v975 = vld [vmem:[%s5 + $0x20] sm:$0xf]
    %v976 = vld [vmem:[%s5 + $0x24] sm:$0xff]
    %v977 = vld [vmem:[%s5 + $0x2c] sm:$0xf]
    %v978 = vld [vmem:[%s5 + $0x30] sm:$0xff]
    %v979 = vld [vmem:[%s5 + $0x38] sm:$0xf]
    %v980 = vld [vmem:[%s5 + $0x3c] sm:$0xff]
    %v981 = vld [vmem:[%s5 + $0x44] sm:$0xf]
    %v982 = vld [vmem:[%s5 + $0x48] sm:$0xff]
    %v983 = vld [vmem:[%s5 + $0x50] sm:$0xf]
    %v984 = vld [vmem:[%s5 + $0x54] sm:$0xff]
    %v985 = vld [vmem:[%s5 + $0x5c] sm:$0xf]
    %v986 = vld [vmem:[%s5 + $0x60] sm:$0xff]
    %v987 = vld [vmem:[%s5 + $0x68] sm:$0xf]
    %v988 = vld [vmem:[%s5 + $0x6c] sm:$0xff]
    %v989 = vld [vmem:[%s5 + $0x74] sm:$0xf]
    %v990 = vld [vmem:[%s5 + $0x78] sm:$0xff]
    %v991 = vld [vmem:[%s5 + $0x80] sm:$0xf]
    %v992 = vld [vmem:[%s5 + $0x84] sm:$0xff]
    %v993 = vld [vmem:[%s5 + $0x8c] sm:$0xf]
    %v994 = vld [vmem:[%s5 + $0x90] sm:$0xff]
    %v995 = vld [vmem:[%s5 + $0x98] sm:$0xf]
    %v996 = vld [vmem:[%s5 + $0x9c] sm:$0xff]
    %v997 = vld [vmem:[%s5 + $0xa4] sm:$0xf]
    %v998 = vld [vmem:[%s5 + $0xa8] sm:$0xff]
    %v999 = vld [vmem:[%s5 + $0xb0] sm:$0xf]
    %v1000 = vld [vmem:[%s5 + $0xb4] sm:$0xff]
    %v1001 = vld [vmem:[%s5 + $0xbc] sm:$0xf]
    %v1002 = vld [vmem:[#allocation7] sm:$0x7]
    %v1004 = vlaneseq
    %v1005 = vshrl.u32 %v1004, 7
    %v1006 = vsub.s32 0, %v1005
    %v1007 = vrot.slane %v1002, %v1006
    %v1008 = vlaneseq
    %v1009 = vshrl.u32 %v1008, 7
    %v1010 = vsub.s32 1, %v1009
    %v1011 = vrot.slane %v1002, %v1010
    %v1012 = vlaneseq
    %v1013 = vshrl.u32 %v1012, 7
    %v1014 = vsub.s32 2, %v1013
    %v1015 = vrot.slane %v1002, %v1014
    %v1051 = vunpack.c.l.b16 %v970
    %v1052 = vunpack.c.h.b16 %v970
    %v1053 = vunpack.c.l.b16 %v971
    %v1054 = vunpack.c.l.b16 %v972
    %v1055 = vunpack.c.h.b16 %v972
    %v1056 = vunpack.c.l.b16 %v973
    %v1057 = vunpack.c.l.b16 %v974
    %v1058 = vunpack.c.h.b16 %v974
    %v1059 = vunpack.c.l.b16 %v975
    %v1060 = vunpack.c.l.b16 %v976
    %v1061 = vunpack.c.h.b16 %v976
    %v1062 = vunpack.c.l.b16 %v977
    %v1063 = vunpack.c.l.b16 %v978
    %v1064 = vunpack.c.h.b16 %v978
    %v1065 = vunpack.c.l.b16 %v979
    %v1066 = vunpack.c.l.b16 %v980
    %v1067 = vunpack.c.h.b16 %v980
    %v1068 = vunpack.c.l.b16 %v981
    %v1069 = vunpack.c.l.b16 %v982
    %v1070 = vunpack.c.h.b16 %v982
    %v1071 = vunpack.c.l.b16 %v983
    %v1072 = vunpack.c.l.b16 %v984
    %v1073 = vunpack.c.h.b16 %v984
    %v1074 = vunpack.c.l.b16 %v985
    %v1075 = vunpack.c.l.b16 %v986
    %v1076 = vunpack.c.h.b16 %v986
    %v1077 = vunpack.c.l.b16 %v987
    %v1078 = vunpack.c.l.b16 %v988
    %v1079 = vunpack.c.h.b16 %v988
    %v1080 = vunpack.c.l.b16 %v989
    %v1081 = vunpack.c.l.b16 %v990
    %v1082 = vunpack.c.h.b16 %v990
    %v1083 = vunpack.c.l.b16 %v991
    %v1084 = vunpack.c.l.b16 %v992
    %v1085 = vunpack.c.h.b16 %v992
    %v1086 = vunpack.c.l.b16 %v993
    %v1087 = vunpack.c.l.b16 %v994
    %v1088 = vunpack.c.h.b16 %v994
    %v1089 = vunpack.c.l.b16 %v995
    %v1090 = vunpack.c.l.b16 %v996
    %v1091 = vunpack.c.h.b16 %v996
    %v1092 = vunpack.c.l.b16 %v997
    %v1093 = vunpack.c.l.b16 %v998
    %v1094 = vunpack.c.h.b16 %v998
    %v1095 = vunpack.c.l.b16 %v999
    %v1096 = vunpack.c.l.b16 %v1000
    %v1097 = vunpack.c.h.b16 %v1000
    %v1098 = vunpack.c.l.b16 %v1001
    %v1099 = vpack.c.b16 %v1054, %v1051
    %v1100 = vpack.c.b16 %v1055, %v1052
    %v1101 = vpack.c.b16 %v1056, %v1053
    %v1102 = vpack.c.b16 %v1060, %v1057
    %v1103 = vpack.c.b16 %v1061, %v1058
    %v1104 = vpack.c.b16 %v1062, %v1059
    %v1105 = vpack.c.b16 %v1066, %v1063
    %v1106 = vpack.c.b16 %v1067, %v1064
    %v1107 = vpack.c.b16 %v1068, %v1065
    %v1108 = vpack.c.b16 %v1072, %v1069
    %v1109 = vpack.c.b16 %v1073, %v1070
    %v1110 = vpack.c.b16 %v1074, %v1071
    %v1111 = vpack.c.b16 %v1078, %v1075
    %v1112 = vpack.c.b16 %v1079, %v1076
    %v1113 = vpack.c.b16 %v1080, %v1077
    %v1114 = vpack.c.b16 %v1084, %v1081
    %v1115 = vpack.c.b16 %v1085, %v1082
    %v1116 = vpack.c.b16 %v1086, %v1083
    %v1117 = vpack.c.b16 %v1090, %v1087
    %v1118 = vpack.c.b16 %v1091, %v1088
    %v1119 = vpack.c.b16 %v1092, %v1089
    %v1120 = vpack.c.b16 %v1096, %v1093
    %v1121 = vpack.c.b16 %v1097, %v1094
    %v1122 = vpack.c.b16 %v1098, %v1095
    %1147 = vmatprep.subr.bf16.mxu0 %v1100
    %1148 = vmatpush1.bf16.msra.mxu0 %v1099
    %1149 = vmatprep.subr.bf16.mxu0 %v1103
    %1150 = vmatpush1.bf16.msra.mxu0 %v1102
    %1151 = vmatprep.subr.bf16.mxu0 %v1106
    %1152 = vmatpush1.bf16.msra.mxu0 %v1105
    %1153 = vmatprep.subr.bf16.mxu0 %v1109
    %1154 = vmatpush1.bf16.msra.mxu0 %v1108
    %1155 = vmatprep.subr.bf16.mxu0 %v1112
    %1156 = vmatpush1.bf16.msra.mxu0 %v1111
    %1157 = vmatprep.subr.bf16.mxu0 %v1115
    %1158 = vmatpush1.bf16.msra.mxu0 %v1114
    %1159 = vmatprep.subr.bf16.mxu0 %v1118
    %1160 = vmatpush1.bf16.msra.mxu0 %v1117
    %1161 = vmatprep.subr.bf16.mxu0 %v1121
    %1162 = vmatpush1.bf16.msra.mxu0 %v1120
    %1163 = vmatprep.subr.bf16.mxu0 0
    %1164 = vmatpush1.bf16.msra.mxu0 0
    %1165 = vmatprep.subr.bf16.mxu0 0
    %1166 = vmatpush1.bf16.msra.mxu0 0
    %1167 = vmatprep.subr.bf16.mxu0 0
    %1168 = vmatpush1.bf16.msra.mxu0 0
    %1169 = vmatprep.subr.bf16.mxu0 0
    %1170 = vmatpush1.bf16.msra.mxu0 0
    %1171 = vmatprep.subr.bf16.mxu0 0
    %1172 = vmatpush1.bf16.msra.mxu0 0
    %1173 = vmatprep.subr.bf16.mxu0 0
    %1174 = vmatpush1.bf16.msra.mxu0 0
    %1175 = vmatprep.subr.bf16.mxu0 0
    %1176 = vmatpush1.bf16.msra.mxu0 0
    %1177 = vmatprep.subr.bf16.mxu0 0
    %1178 = vmatpush1.bf16.msra.mxu0 0
    %1179 = vmatprep.mubr.bf16.mxu0 0
    %1180 = vmatmul.mubr.bf16.gmra.mrb[0].mxu0 %v969
    %v1181 = vpop.f32.mrb[0].mxu0
    %v1182 = vadd.f32 %v1007, %v1181
    %v1183 = vpop.f32.mrb[0].mxu0
    %v1184 = vadd.f32 %v1011, %v1183
    %v1185 = vpop.f32.mrb[0].mxu0
    %v1186 = vadd.f32 %v1007, %v1185
    %v1187 = vpop.f32.mrb[0].mxu0
    %v1188 = vadd.f32 %v1011, %v1187
    %1189 = vdwg.mxu0
    %1190 = vmatprep.subr.bf16.mxu0 0
    %1191 = vmatpush1.bf16.msra.mxu0 %v1101
    %1192 = vmatprep.subr.bf16.mxu0 0
    %1193 = vmatpush1.bf16.msra.mxu0 %v1104
    %1194 = vmatprep.subr.bf16.mxu0 0
    %1195 = vmatpush1.bf16.msra.mxu0 %v1107
    %1196 = vmatprep.subr.bf16.mxu0 0
    %1197 = vmatpush1.bf16.msra.mxu0 %v1110
    %1198 = vmatprep.subr.bf16.mxu0 0
    %1199 = vmatpush1.bf16.msra.mxu0 %v1113
    %1200 = vmatprep.subr.bf16.mxu0 0
    %1201 = vmatpush1.bf16.msra.mxu0 %v1116
    %1202 = vmatprep.subr.bf16.mxu0 0
    %1203 = vmatpush1.bf16.msra.mxu0 %v1119
    %1204 = vmatprep.subr.bf16.mxu0 0
    %1205 = vmatpush1.bf16.msra.mxu0 %v1122
    %1206 = vmatprep.subr.bf16.mxu0 0
    %1207 = vmatpush1.bf16.msra.mxu0 0
    %1208 = vmatprep.subr.bf16.mxu0 0
    %1209 = vmatpush1.bf16.msra.mxu0 0
    %1210 = vmatprep.subr.bf16.mxu0 0
    %1211 = vmatpush1.bf16.msra.mxu0 0
    %1212 = vmatprep.subr.bf16.mxu0 0
    %1213 = vmatpush1.bf16.msra.mxu0 0
    %1214 = vmatprep.subr.bf16.mxu0 0
    %1215 = vmatpush1.bf16.msra.mxu0 0
    %1216 = vmatprep.subr.bf16.mxu0 0
    %1217 = vmatpush1.bf16.msra.mxu0 0
    %1218 = vmatprep.subr.bf16.mxu0 0
    %1219 = vmatpush1.bf16.msra.mxu0 0
    %1220 = vmatprep.subr.bf16.mxu0 0
    %1221 = vmatpush1.bf16.msra.mxu0 0
    %1222 = vmatprep.mubr.bf16.mxu0 0
    %1223 = vmatmul.mubr.bf16.gmra.mrb[0].mxu0 %v969
    %v1224 = vpop.f32.mrb[0].mxu0
    %v1225 = vadd.f32 %v1015, %v1224
    %v1226 = vpop.f32.mrb[0].mxu0
    %v1227 = vpop.f32.mrb[0].mxu0
    %v1228 = vadd.f32 %v1015, %v1227
    %v1229 = vpop.f32.mrb[0].mxu0
    %1230 = vdwg.mxu0
    %v1231 = vmul.f32 %v1182, 0.17677669
    %v1232 = vmul.f32 %v1186, 0.17677669
    %v1233 = vpack.c.bf16 %v1232, %v1231
    %1234 = vxpose.xlu0.b32.start [1/16] %v1184, 128
    %1235 = vxpose.xlu0.b32.cont [2/16] %v1188, 128
    %1236 = vxpose.xlu0.b32.cont [3/16] 0.0, 128
    %1237 = vxpose.xlu0.b32.cont [4/16] 0.0, 128
    %1238 = vxpose.xlu0.b32.cont [5/16] 0.0, 128
    %1239 = vxpose.xlu0.b32.cont [6/16] 0.0, 128
    %1240 = vxpose.xlu0.b32.cont [7/16] 0.0, 128
    %1241 = vxpose.xlu0.b32.cont [8/16] 0.0, 128
    %1242 = vxpose.xlu0.b32.cont [9/16] 0.0, 128
    %1243 = vxpose.xlu0.b32.cont [10/16] 0.0, 128
    %1244 = vxpose.xlu0.b32.cont [11/16] 0.0, 128
    %1245 = vxpose.xlu0.b32.cont [12/16] 0.0, 128
    %1246 = vxpose.xlu0.b32.cont [13/16] 0.0, 128
    %1247 = vxpose.xlu0.b32.cont [14/16] 0.0, 128
    %1248 = vxpose.xlu0.b32.cont [15/16] 0.0, 128
    %1249 = vxpose.xlu0.b32.end [16/16] 0.0, 128
    %v1250 = vpop.trf.xlu0
    %v1251 = vpop.trf.xlu0
    %v1252 = vpop.trf.xlu0
    %v1253 = vpop.trf.xlu0
    %v1254 = vpop.trf.xlu0
    %v1255 = vpop.trf.xlu0
    %v1256 = vpop.trf.xlu0
    %v1257 = vpop.trf.xlu0
    %v1258 = vpop.trf.xlu0
    %v1259 = vpop.trf.xlu0
    %v1260 = vpop.trf.xlu0
    %v1261 = vpop.trf.xlu0
    %v1262 = vpop.trf.xlu0
    %v1263 = vpop.trf.xlu0
    %v1264 = vpop.trf.xlu0
    %v1265 = vpop.trf.xlu0
    %v1266 = vpack.c.bf16 %v1251, %v1250
    %v1267 = vpack.c.bf16 %v1253, %v1252
    %v1268 = vpack.c.bf16 %v1228, %v1225
    %vm1269 = vcmask 261120
    %v1271 = vsel %vm1269, %v1233, 0
    %1273 = vmatprep.subr.bf16.mxu0 0
    %1274 = vmatpush1.bf16.msra.mxu0 %v1266
    %1275 = vmatprep.subr.bf16.mxu0 0
    %1276 = vmatpush1.bf16.msra.mxu0 %v1267
    %1277 = vmatprep.subr.bf16.mxu0 0
    %1278 = vmatpush1.bf16.msra.mxu0 0
    %1279 = vmatprep.subr.bf16.mxu0 0
    %1280 = vmatpush1.bf16.msra.mxu0 0
    %1281 = vmatprep.subr.bf16.mxu0 0
    %1282 = vmatpush1.bf16.msra.mxu0 0
    %1283 = vmatprep.subr.bf16.mxu0 0
    %1284 = vmatpush1.bf16.msra.mxu0 0
    %1285 = vmatprep.subr.bf16.mxu0 0
    %1286 = vmatpush1.bf16.msra.mxu0 0
    %1287 = vmatprep.subr.bf16.mxu0 0
    %1288 = vmatpush1.bf16.msra.mxu0 0
    %1289 = vmatprep.subr.bf16.mxu0 0
    %1290 = vmatpush1.bf16.msra.mxu0 0
    %1291 = vmatprep.subr.bf16.mxu0 0
    %1292 = vmatpush1.bf16.msra.mxu0 0
    %1293 = vmatprep.subr.bf16.mxu0 0
    %1294 = vmatpush1.bf16.msra.mxu0 0
    %1295 = vmatprep.subr.bf16.mxu0 0
    %1296 = vmatpush1.bf16.msra.mxu0 0
    %1297 = vmatprep.subr.bf16.mxu0 0
    %1298 = vmatpush1.bf16.msra.mxu0 0
    %1299 = vmatprep.subr.bf16.mxu0 0
    %1300 = vmatpush1.bf16.msra.mxu0 0
    %1301 = vmatprep.subr.bf16.mxu0 0
    %1302 = vmatpush1.bf16.msra.mxu0 0
    %1303 = vmatprep.subr.bf16.mxu0 0
    %1304 = vmatpush1.bf16.msra.mxu0 0
    %1305 = vmatprep.mubr.bf16.mxu0 0
    %1306 = vmatmul.mubr.bf16.gmra.mrb[0].mxu0 %v1271
    %v1307 = vpop.f32.mrb[0].mxu0
    %v1308 = vadd.f32 %v967, %v1307
    %v1309 = vpop.f32.mrb[0].mxu0
    %v1310 = vpop.f32.mrb[0].mxu0
    %v1311 = vadd.f32 %v968, %v1310
    %v1312 = vpop.f32.mrb[0].mxu0
    %1313 = vdwg.mxu0
    %vm1314 = vcmask 130048
    %v1315 = vsel %vm1314, %v1308, -inf
    %1316 = vmax.xlane.f32.xlu0 %v1315
    %v1317 = vpop.xlane.xlu0 %1316
    %v1318 = vsel %vm1314, %v1311, -inf
    %1319 = vmax.xlane.f32.xlu0 %v1318
    %v1320 = vpop.xlane.xlu0 %1319
    %v1321 = vsub.f32 %v1308, %v1317
    %v1322 = vsub.f32 %v1311, %v1320
    %v1323 = vmul.f32 %v1321, 1.442695
    %v1324 = vpow.pop %v1323
    %v1325 = vmul.f32 %v1322, 1.442695
    %v1326 = vpow.pop %v1325
    %v1327 = vsel %vm1314, %v1324, 0.0
    %1328 = vadd.xlane.f32.xlu0 %v1327
    %v1329 = vpop.xlane.xlu0 %1328
    %v1330 = vsel %vm1314, %v1326, 0.0
    %1331 = vadd.xlane.f32.xlu0 %v1330
    %v1332 = vpop.xlane.xlu0 %1331
    %v1333 = vrcp.pop %v1329
    %v1334 = vrcp.pop %v1332
    %v1335 = vmul.f32 %v1324, %v1333
    %v1336 = vmul.f32 %v1326, %v1334
    %v1337 = vpack.c.bf16 %v1336, %v1335
    %v1339 = vsel %vm1314, %v1337, 0
    %1341 = vmatprep.subr.bf16.mxu0 0
    %1342 = vmatpush1.bf16.msra.mxu0 %v1268
    %1343 = vmatprep.subr.bf16.mxu0 0
    %1344 = vmatpush1.bf16.msra.mxu0 0
    %1345 = vmatprep.subr.bf16.mxu0 0
    %1346 = vmatpush1.bf16.msra.mxu0 0
    %1347 = vmatprep.subr.bf16.mxu0 0
    %1348 = vmatpush1.bf16.msra.mxu0 0
    %1349 = vmatprep.subr.bf16.mxu0 0
    %1350 = vmatpush1.bf16.msra.mxu0 0
    %1351 = vmatprep.subr.bf16.mxu0 0
    %1352 = vmatpush1.bf16.msra.mxu0 0
    %1353 = vmatprep.subr.bf16.mxu0 0
    %1354 = vmatpush1.bf16.msra.mxu0 0
    %1355 = vmatprep.subr.bf16.mxu0 0
    %1356 = vmatpush1.bf16.msra.mxu0 0
    %1357 = vmatprep.subr.bf16.mxu0 0
    %1358 = vmatpush1.bf16.msra.mxu0 0
    %1359 = vmatprep.subr.bf16.mxu0 0
    %1360 = vmatpush1.bf16.msra.mxu0 0
    %1361 = vmatprep.subr.bf16.mxu0 0
    %1362 = vmatpush1.bf16.msra.mxu0 0
    %1363 = vmatprep.subr.bf16.mxu0 0
    %1364 = vmatpush1.bf16.msra.mxu0 0
    %1365 = vmatprep.subr.bf16.mxu0 0
    %1366 = vmatpush1.bf16.msra.mxu0 0
    %1367 = vmatprep.subr.bf16.mxu0 0
    %1368 = vmatpush1.bf16.msra.mxu0 0
    %1369 = vmatprep.subr.bf16.mxu0 0
    %1370 = vmatpush1.bf16.msra.mxu0 0
    %1371 = vmatprep.subr.bf16.mxu0 0
    %1372 = vmatpush1.bf16.msra.mxu0 0
    %1373 = vmatprep.mubr.bf16.mxu0 0
    %1374 = vmatmul.mubr.bf16.gmra.mrb[0].mxu0 %v1339
    %v1375 = vpop.f32.mrb[0].mxu0
    %v1376 = vadd.f32 0.0, %v1375
    %v1377 = vpop.f32.mrb[0].mxu0
    %v1378 = vpop.f32.mrb[0].mxu0
    %v1379 = vadd.f32 0.0, %v1378
    %v1380 = vpop.f32.mrb[0].mxu0
    %1381 = vdwg.mxu0
    %1382 = vst.msk [vmem:[#allocation2] sm:$0xff] %vm1269, %v1376
    %1383 = vst.msk [vmem:[#allocation2 + $0x8] sm:$0xff] %vm1269, %v1379
    %1386 = vrot.lane.b32.xlu0 %v1184, 96
    %v1387 = vpop.permute.xlu0 %1386
    %1388 = vrot.lane.b32.xlu0 %v1188, 96
    %v1389 = vpop.permute.xlu0 %1388
    %1392 = vxpose.xlu0.b32.start [1/16] %v1387, 128
    %1393 = vxpose.xlu0.b32.cont [2/16] %v1389, 128
    %1394 = vxpose.xlu0.b32.cont [3/16] 0.0, 128
    %1395 = vxpose.xlu0.b32.cont [4/16] 0.0, 128
    %1396 = vxpose.xlu0.b32.cont [5/16] 0.0, 128
    %1397 = vxpose.xlu0.b32.cont [6/16] 0.0, 128
    %1398 = vxpose.xlu0.b32.cont [7/16] 0.0, 128
    %1399 = vxpose.xlu0.b32.cont [8/16] 0.0, 128
    %1400 = vxpose.xlu0.b32.cont [9/16] 0.0, 128
    %1401 = vxpose.xlu0.b32.cont [10/16] 0.0, 128
    %1402 = vxpose.xlu0.b32.cont [11/16] 0.0, 128
    %1403 = vxpose.xlu0.b32.cont [12/16] 0.0, 128
    %1404 = vxpose.xlu0.b32.cont [13/16] 0.0, 128
    %1405 = vxpose.xlu0.b32.cont [14/16] 0.0, 128
    %1406 = vxpose.xlu0.b32.cont [15/16] 0.0, 128
    %1407 = vxpose.xlu0.b32.end [16/16] 0.0, 128
    %v1408 = vpop.trf.xlu0
    %v1409 = vpop.trf.xlu0
    %v1410 = vpop.trf.xlu0
    %v1411 = vpop.trf.xlu0
    %v1412 = vpop.trf.xlu0
    %v1413 = vpop.trf.xlu0
    %v1414 = vpop.trf.xlu0
    %v1415 = vpop.trf.xlu0
    %v1416 = vpop.trf.xlu0
    %v1417 = vpop.trf.xlu0
    %v1418 = vpop.trf.xlu0
    %v1419 = vpop.trf.xlu0
    %v1420 = vpop.trf.xlu0
    %v1421 = vpop.trf.xlu0
    %v1422 = vpop.trf.xlu0
    %v1423 = vpop.trf.xlu0
    %v1424 = vpack.c.bf16 %v1409, %v1408
    %v1425 = vpack.c.bf16 %v1411, %v1410
    %1427 = vrot.lane.b32.xlu0 %v1233, 96
    %v1428 = vpop.permute.xlu0 %1427
    %v1430 = vsel %vm1269, %v1428, 0
    %1432 = vmatprep.subr.bf16.mxu0 0
    %1433 = vmatpush1.bf16.msra.mxu0 %v1424
    %1434 = vmatprep.subr.bf16.mxu0 0
    %1435 = vmatpush1.bf16.msra.mxu0 %v1425
    %1436 = vmatprep.subr.bf16.mxu0 0
    %1437 = vmatpush1.bf16.msra.mxu0 0
    %1438 = vmatprep.subr.bf16.mxu0 0
    %1439 = vmatpush1.bf16.msra.mxu0 0
    %1440 = vmatprep.subr.bf16.mxu0 0
    %1441 = vmatpush1.bf16.msra.mxu0 0
    %1442 = vmatprep.subr.bf16.mxu0 0
    %1443 = vmatpush1.bf16.msra.mxu0 0
    %1444 = vmatprep.subr.bf16.mxu0 0
    %1445 = vmatpush1.bf16.msra.mxu0 0
    %1446 = vmatprep.subr.bf16.mxu0 0
    %1447 = vmatpush1.bf16.msra.mxu0 0
    %1448 = vmatprep.subr.bf16.mxu0 0
    %1449 = vmatpush1.bf16.msra.mxu0 0
    %1450 = vmatprep.subr.bf16.mxu0 0
    %1451 = vmatpush1.bf16.msra.mxu0 0
    %1452 = vmatprep.subr.bf16.mxu0 0
    %1453 = vmatpush1.bf16.msra.mxu0 0
    %1454 = vmatprep.subr.bf16.mxu0 0
    %1455 = vmatpush1.bf16.msra.mxu0 0
    %1456 = vmatprep.subr.bf16.mxu0 0
    %1457 = vmatpush1.bf16.msra.mxu0 0
    %1458 = vmatprep.subr.bf16.mxu0 0
    %1459 = vmatpush1.bf16.msra.mxu0 0
    %1460 = vmatprep.subr.bf16.mxu0 0
    %1461 = vmatpush1.bf16.msra.mxu0 0
    %1462 = vmatprep.subr.bf16.mxu0 0
    %1463 = vmatpush1.bf16.msra.mxu0 0
    %1464 = vmatprep.mubr.bf16.mxu0 0
    %1465 = vmatmul.mubr.bf16.gmra.mrb[0].mxu0 %v1430
    %v1466 = vpop.f32.mrb[0].mxu0
    %v1467 = vadd.f32 %v967, %v1466
    %v1468 = vpop.f32.mrb[0].mxu0
    %v1469 = vpop.f32.mrb[0].mxu0
    %v1470 = vadd.f32 %v968, %v1469
    %v1471 = vpop.f32.mrb[0].mxu0
    %1472 = vdwg.mxu0
    %v1473 = vsel %vm1314, %v1467, -inf
    %1474 = vmax.xlane.f32.xlu0 %v1473
    %v1475 = vpop.xlane.xlu0 %1474
    %v1476 = vsel %vm1314, %v1470, -inf
    %1477 = vmax.xlane.f32.xlu0 %v1476
    %v1478 = vpop.xlane.xlu0 %1477
    %v1479 = vsub.f32 %v1467, %v1475
    %v1480 = vsub.f32 %v1470, %v1478
    %v1481 = vmul.f32 %v1479, 1.442695
    %v1482 = vpow.pop %v1481
    %v1483 = vmul.f32 %v1480, 1.442695
    %v1484 = vpow.pop %v1483
    %v1485 = vsel %vm1314, %v1482, 0.0
    %1486 = vadd.xlane.f32.xlu0 %v1485
    %v1487 = vpop.xlane.xlu0 %1486
    %v1488 = vsel %vm1314, %v1484, 0.0
    %1489 = vadd.xlane.f32.xlu0 %v1488
    %v1490 = vpop.xlane.xlu0 %1489
    %v1491 = vrcp.pop %v1487
    %v1492 = vrcp.pop %v1490
    %v1493 = vmul.f32 %v1482, %v1491
    %v1494 = vmul.f32 %v1484, %v1492
    %v1495 = vpack.c.bf16 %v1494, %v1493
    %1497 = vrot.lane.b32.xlu0 %v1268, 96
    %v1498 = vpop.permute.xlu0 %1497
    %v1501 = vsel %vm1314, %v1495, 0
    %1503 = vmatprep.subr.bf16.mxu0 0
    %1504 = vmatpush1.bf16.msra.mxu0 %v1498
    %1505 = vmatprep.subr.bf16.mxu0 0
    %1506 = vmatpush1.bf16.msra.mxu0 0
    %1507 = vmatprep.subr.bf16.mxu0 0
    %1508 = vmatpush1.bf16.msra.mxu0 0
    %1509 = vmatprep.subr.bf16.mxu0 0
    %1510 = vmatpush1.bf16.msra.mxu0 0
    %1511 = vmatprep.subr.bf16.mxu0 0
    %1512 = vmatpush1.bf16.msra.mxu0 0
    %1513 = vmatprep.subr.bf16.mxu0 0
    %1514 = vmatpush1.bf16.msra.mxu0 0
    %1515 = vmatprep.subr.bf16.mxu0 0
    %1516 = vmatpush1.bf16.msra.mxu0 0
    %1517 = vmatprep.subr.bf16.mxu0 0
    %1518 = vmatpush1.bf16.msra.mxu0 0
    %1519 = vmatprep.subr.bf16.mxu0 0
    %1520 = vmatpush1.bf16.msra.mxu0 0
    %1521 = vmatprep.subr.bf16.mxu0 0
    %1522 = vmatpush1.bf16.msra.mxu0 0
    %1523 = vmatprep.subr.bf16.mxu0 0
    %1524 = vmatpush1.bf16.msra.mxu0 0
    %1525 = vmatprep.subr.bf16.mxu0 0
    %1526 = vmatpush1.bf16.msra.mxu0 0
    %1527 = vmatprep.subr.bf16.mxu0 0
    %1528 = vmatpush1.bf16.msra.mxu0 0
    %1529 = vmatprep.subr.bf16.mxu0 0
    %1530 = vmatpush1.bf16.msra.mxu0 0
    %1531 = vmatprep.subr.bf16.mxu0 0
    %1532 = vmatpush1.bf16.msra.mxu0 0
    %1533 = vmatprep.subr.bf16.mxu0 0
    %1534 = vmatpush1.bf16.msra.mxu0 0
    %1535 = vmatprep.mubr.bf16.mxu0 0
    %1536 = vmatmul.mubr.bf16.gmra.mrb[0].mxu0 %v1501
    %v1537 = vpop.f32.mrb[0].mxu0
    %v1538 = vadd.f32 0.0, %v1537
    %v1539 = vpop.f32.mrb[0].mxu0
    %v1540 = vpop.f32.mrb[0].mxu0
    %v1541 = vadd.f32 0.0, %v1540
    %v1542 = vpop.f32.mrb[0].mxu0
    %1543 = vdwg.mxu0
    %1546 = vrot.lane.b32.xlu0 %v1538, 32
    %v1547 = vpop.permute.xlu0 %1546
    %1548 = vrot.lane.b32.xlu0 %v1541, 32
    %v1549 = vpop.permute.xlu0 %1548
    %vm1552 = vcmask 523520
    %1553 = vst.msk [vmem:[#allocation2] sm:$0xff] %vm1552, %v1547
    %1554 = vst.msk [vmem:[#allocation2 + $0x8] sm:$0xff] %vm1552, %v1549
    %1555 = vrot.lane.b32.xlu0 %v1184, 64
    %v1556 = vpop.permute.xlu0 %1555
    %1557 = vrot.lane.b32.xlu0 %v1188, 64
    %v1558 = vpop.permute.xlu0 %1557
    %1561 = vxpose.xlu0.b32.start [1/16] %v1556, 128
    %1562 = vxpose.xlu0.b32.cont [2/16] %v1558, 128
    %1563 = vxpose.xlu0.b32.cont [3/16] 0.0, 128
    %1564 = vxpose.xlu0.b32.cont [4/16] 0.0, 128
    %1565 = vxpose.xlu0.b32.cont [5/16] 0.0, 128
    %1566 = vxpose.xlu0.b32.cont [6/16] 0.0, 128
    %1567 = vxpose.xlu0.b32.cont [7/16] 0.0, 128
    %1568 = vxpose.xlu0.b32.cont [8/16] 0.0, 128
    %1569 = vxpose.xlu0.b32.cont [9/16] 0.0, 128
    %1570 = vxpose.xlu0.b32.cont [10/16] 0.0, 128
    %1571 = vxpose.xlu0.b32.cont [11/16] 0.0, 128
    %1572 = vxpose.xlu0.b32.cont [12/16] 0.0, 128
    %1573 = vxpose.xlu0.b32.cont [13/16] 0.0, 128
    %1574 = vxpose.xlu0.b32.cont [14/16] 0.0, 128
    %1575 = vxpose.xlu0.b32.cont [15/16] 0.0, 128
    %1576 = vxpose.xlu0.b32.end [16/16] 0.0, 128
    %v1577 = vpop.trf.xlu0
    %v1578 = vpop.trf.xlu0
    %v1579 = vpop.trf.xlu0
    %v1580 = vpop.trf.xlu0
    %v1581 = vpop.trf.xlu0
    %v1582 = vpop.trf.xlu0
    %v1583 = vpop.trf.xlu0
    %v1584 = vpop.trf.xlu0
    %v1585 = vpop.trf.xlu0
    %v1586 = vpop.trf.xlu0
    %v1587 = vpop.trf.xlu0
    %v1588 = vpop.trf.xlu0
    %v1589 = vpop.trf.xlu0
    %v1590 = vpop.trf.xlu0
    %v1591 = vpop.trf.xlu0
    %v1592 = vpop.trf.xlu0
    %v1593 = vpack.c.bf16 %v1578, %v1577
    %v1594 = vpack.c.bf16 %v1580, %v1579
    %1595 = vrot.lane.b32.xlu0 %v1233, 64
    %v1596 = vpop.permute.xlu0 %1595
    %v1598 = vsel %vm1269, %v1596, 0
    %1600 = vmatprep.subr.bf16.mxu0 0
    %1601 = vmatpush1.bf16.msra.mxu0 %v1593
    %1602 = vmatprep.subr.bf16.mxu0 0
    %1603 = vmatpush1.bf16.msra.mxu0 %v1594
    %1604 = vmatprep.subr.bf16.mxu0 0
    %1605 = vmatpush1.bf16.msra.mxu0 0
    %1606 = vmatprep.subr.bf16.mxu0 0
    %1607 = vmatpush1.bf16.msra.mxu0 0
    %1608 = vmatprep.subr.bf16.mxu0 0
    %1609 = vmatpush1.bf16.msra.mxu0 0
    %1610 = vmatprep.subr.bf16.mxu0 0
    %1611 = vmatpush1.bf16.msra.mxu0 0
    %1612 = vmatprep.subr.bf16.mxu0 0
    %1613 = vmatpush1.bf16.msra.mxu0 0
    %1614 = vmatprep.subr.bf16.mxu0 0
    %1615 = vmatpush1.bf16.msra.mxu0 0
    %1616 = vmatprep.subr.bf16.mxu0 0
    %1617 = vmatpush1.bf16.msra.mxu0 0
    %1618 = vmatprep.subr.bf16.mxu0 0
    %1619 = vmatpush1.bf16.msra.mxu0 0
    %1620 = vmatprep.subr.bf16.mxu0 0
    %1621 = vmatpush1.bf16.msra.mxu0 0
    %1622 = vmatprep.subr.bf16.mxu0 0
    %1623 = vmatpush1.bf16.msra.mxu0 0
    %1624 = vmatprep.subr.bf16.mxu0 0
    %1625 = vmatpush1.bf16.msra.mxu0 0
    %1626 = vmatprep.subr.bf16.mxu0 0
    %1627 = vmatpush1.bf16.msra.mxu0 0
    %1628 = vmatprep.subr.bf16.mxu0 0
    %1629 = vmatpush1.bf16.msra.mxu0 0
    %1630 = vmatprep.subr.bf16.mxu0 0
    %1631 = vmatpush1.bf16.msra.mxu0 0
    %1632 = vmatprep.mubr.bf16.mxu0 0
    %1633 = vmatmul.mubr.bf16.gmra.mrb[0].mxu0 %v1598
    %v1634 = vpop.f32.mrb[0].mxu0
    %v1635 = vadd.f32 %v967, %v1634
    %v1636 = vpop.f32.mrb[0].mxu0
    %v1637 = vpop.f32.mrb[0].mxu0
    %v1638 = vadd.f32 %v968, %v1637
    %v1639 = vpop.f32.mrb[0].mxu0
    %1640 = vdwg.mxu0
    %v1641 = vsel %vm1314, %v1635, -inf
    %1642 = vmax.xlane.f32.xlu0 %v1641
    %v1643 = vpop.xlane.xlu0 %1642
    %v1644 = vsel %vm1314, %v1638, -inf
    %1645 = vmax.xlane.f32.xlu0 %v1644
    %v1646 = vpop.xlane.xlu0 %1645
    %v1647 = vsub.f32 %v1635, %v1643
    %v1648 = vsub.f32 %v1638, %v1646
    %v1649 = vmul.f32 %v1647, 1.442695
    %v1650 = vpow.pop %v1649
    %v1651 = vmul.f32 %v1648, 1.442695
    %v1652 = vpow.pop %v1651
    %v1653 = vsel %vm1314, %v1650, 0.0
    %1654 = vadd.xlane.f32.xlu0 %v1653
    %v1655 = vpop.xlane.xlu0 %1654
    %v1656 = vsel %vm1314, %v1652, 0.0
    %1657 = vadd.xlane.f32.xlu0 %v1656
    %v1658 = vpop.xlane.xlu0 %1657
    %v1659 = vrcp.pop %v1655
    %v1660 = vrcp.pop %v1658
    %v1661 = vmul.f32 %v1650, %v1659
    %v1662 = vmul.f32 %v1652, %v1660
    %v1663 = vpack.c.bf16 %v1662, %v1661
    %1664 = vrot.lane.b32.xlu0 %v1268, 64
    %v1665 = vpop.permute.xlu0 %1664
    %v1668 = vsel %vm1314, %v1663, 0
    %1670 = vmatprep.subr.bf16.mxu0 0
    %1671 = vmatpush1.bf16.msra.mxu0 %v1665
    %1672 = vmatprep.subr.bf16.mxu0 0
    %1673 = vmatpush1.bf16.msra.mxu0 0
    %1674 = vmatprep.subr.bf16.mxu0 0
    %1675 = vmatpush1.bf16.msra.mxu0 0
    %1676 = vmatprep.subr.bf16.mxu0 0
    %1677 = vmatpush1.bf16.msra.mxu0 0
    %1678 = vmatprep.subr.bf16.mxu0 0
    %1679 = vmatpush1.bf16.msra.mxu0 0
    %1680 = vmatprep.subr.bf16.mxu0 0
    %1681 = vmatpush1.bf16.msra.mxu0 0
    %1682 = vmatprep.subr.bf16.mxu0 0
    %1683 = vmatpush1.bf16.msra.mxu0 0
    %1684 = vmatprep.subr.bf16.mxu0 0
    %1685 = vmatpush1.bf16.msra.mxu0 0
    %1686 = vmatprep.subr.bf16.mxu0 0
    %1687 = vmatpush1.bf16.msra.mxu0 0
    %1688 = vmatprep.subr.bf16.mxu0 0
    %1689 = vmatpush1.bf16.msra.mxu0 0
    %1690 = vmatprep.subr.bf16.mxu0 0
    %1691 = vmatpush1.bf16.msra.mxu0 0
    %1692 = vmatprep.subr.bf16.mxu0 0
    %1693 = vmatpush1.bf16.msra.mxu0 0
    %1694 = vmatprep.subr.bf16.mxu0 0
    %1695 = vmatpush1.bf16.msra.mxu0 0
    %1696 = vmatprep.subr.bf16.mxu0 0
    %1697 = vmatpush1.bf16.msra.mxu0 0
    %1698 = vmatprep.subr.bf16.mxu0 0
    %1699 = vmatpush1.bf16.msra.mxu0 0
    %1700 = vmatprep.subr.bf16.mxu0 0
    %1701 = vmatpush1.bf16.msra.mxu0 0
    %1702 = vmatprep.mubr.bf16.mxu0 0
    %1703 = vmatmul.mubr.bf16.gmra.mrb[0].mxu0 %v1668
    %v1704 = vpop.f32.mrb[0].mxu0
    %v1705 = vadd.f32 0.0, %v1704
    %v1706 = vpop.f32.mrb[0].mxu0
    %v1707 = vpop.f32.mrb[0].mxu0
    %v1708 = vadd.f32 0.0, %v1707
    %v1709 = vpop.f32.mrb[0].mxu0
    %1710 = vdwg.mxu0
    %1713 = vrot.lane.b32.xlu0 %v1705, 64
    %v1714 = vpop.permute.xlu0 %1713
    %1715 = vrot.lane.b32.xlu0 %v1708, 64
    %v1716 = vpop.permute.xlu0 %1715
    %vm1719 = vcmask 785920
    %1720 = vst.msk [vmem:[#allocation2] sm:$0xff] %vm1719, %v1714
    %1721 = vst.msk [vmem:[#allocation2 + $0x8] sm:$0xff] %vm1719, %v1716
    %1722 = vrot.lane.b32.xlu0 %v1184, 32
    %v1723 = vpop.permute.xlu0 %1722
    %1724 = vrot.lane.b32.xlu0 %v1188, 32
    %v1725 = vpop.permute.xlu0 %1724
    %1728 = vxpose.xlu0.b32.start [1/16] %v1723, 128
    %1729 = vxpose.xlu0.b32.cont [2/16] %v1725, 128
    %1730 = vxpose.xlu0.b32.cont [3/16] 0.0, 128
    %1731 = vxpose.xlu0.b32.cont [4/16] 0.0, 128
    %1732 = vxpose.xlu0.b32.cont [5/16] 0.0, 128
    %1733 = vxpose.xlu0.b32.cont [6/16] 0.0, 128
    %1734 = vxpose.xlu0.b32.cont [7/16] 0.0, 128
    %1735 = vxpose.xlu0.b32.cont [8/16] 0.0, 128
    %1736 = vxpose.xlu0.b32.cont [9/16] 0.0, 128
    %1737 = vxpose.xlu0.b32.cont [10/16] 0.0, 128
    %1738 = vxpose.xlu0.b32.cont [11/16] 0.0, 128
    %1739 = vxpose.xlu0.b32.cont [12/16] 0.0, 128
    %1740 = vxpose.xlu0.b32.cont [13/16] 0.0, 128
    %1741 = vxpose.xlu0.b32.cont [14/16] 0.0, 128
    %1742 = vxpose.xlu0.b32.cont [15/16] 0.0, 128
    %1743 = vxpose.xlu0.b32.end [16/16] 0.0, 128
    %v1744 = vpop.trf.xlu0
    %v1745 = vpop.trf.xlu0
    %v1746 = vpop.trf.xlu0
    %v1747 = vpop.trf.xlu0
    %v1748 = vpop.trf.xlu0
    %v1749 = vpop.trf.xlu0
    %v1750 = vpop.trf.xlu0
    %v1751 = vpop.trf.xlu0
    %v1752 = vpop.trf.xlu0
    %v1753 = vpop.trf.xlu0
    %v1754 = vpop.trf.xlu0
    %v1755 = vpop.trf.xlu0
    %v1756 = vpop.trf.xlu0
    %v1757 = vpop.trf.xlu0
    %v1758 = vpop.trf.xlu0
    %v1759 = vpop.trf.xlu0
    %v1760 = vpack.c.bf16 %v1745, %v1744
    %v1761 = vpack.c.bf16 %v1747, %v1746
    %1762 = vrot.lane.b32.xlu0 %v1233, 32
    %v1763 = vpop.permute.xlu0 %1762
    %v1765 = vsel %vm1269, %v1763, 0
    %1767 = vmatprep.subr.bf16.mxu0 0
    %1768 = vmatpush1.bf16.msra.mxu0 %v1760
    %1769 = vmatprep.subr.bf16.mxu0 0
    %1770 = vmatpush1.bf16.msra.mxu0 %v1761
    %1771 = vmatprep.subr.bf16.mxu0 0
    %1772 = vmatpush1.bf16.msra.mxu0 0
    %1773 = vmatprep.subr.bf16.mxu0 0
    %1774 = vmatpush1.bf16.msra.mxu0 0
    %1775 = vmatprep.subr.bf16.mxu0 0
    %1776 = vmatpush1.bf16.msra.mxu0 0
    %1777 = vmatprep.subr.bf16.mxu0 0
    %1778 = vmatpush1.bf16.msra.mxu0 0
    %1779 = vmatprep.subr.bf16.mxu0 0
    %1780 = vmatpush1.bf16.msra.mxu0 0
    %1781 = vmatprep.subr.bf16.mxu0 0
    %1782 = vmatpush1.bf16.msra.mxu0 0
    %1783 = vmatprep.subr.bf16.mxu0 0
    %1784 = vmatpush1.bf16.msra.mxu0 0
    %1785 = vmatprep.subr.bf16.mxu0 0
    %1786 = vmatpush1.bf16.msra.mxu0 0
    %1787 = vmatprep.subr.bf16.mxu0 0
    %1788 = vmatpush1.bf16.msra.mxu0 0
    %1789 = vmatprep.subr.bf16.mxu0 0
    %1790 = vmatpush1.bf16.msra.mxu0 0
    %1791 = vmatprep.subr.bf16.mxu0 0
    %1792 = vmatpush1.bf16.msra.mxu0 0
    %1793 = vmatprep.subr.bf16.mxu0 0
    %1794 = vmatpush1.bf16.msra.mxu0 0
    %1795 = vmatprep.subr.bf16.mxu0 0
    %1796 = vmatpush1.bf16.msra.mxu0 0
    %1797 = vmatprep.subr.bf16.mxu0 0
    %1798 = vmatpush1.bf16.msra.mxu0 0
    %1799 = vmatprep.mubr.bf16.mxu0 0
    %1800 = vmatmul.mubr.bf16.gmra.mrb[0].mxu0 %v1765
    %v1801 = vpop.f32.mrb[0].mxu0
    %v1802 = vadd.f32 %v967, %v1801
    %v1803 = vpop.f32.mrb[0].mxu0
    %v1804 = vpop.f32.mrb[0].mxu0
    %v1805 = vadd.f32 %v968, %v1804
    %v1806 = vpop.f32.mrb[0].mxu0
    %1807 = vdwg.mxu0
    %v1808 = vsel %vm1314, %v1802, -inf
    %1809 = vmax.xlane.f32.xlu0 %v1808
    %v1810 = vpop.xlane.xlu0 %1809
    %v1811 = vsel %vm1314, %v1805, -inf
    %1812 = vmax.xlane.f32.xlu0 %v1811
    %v1813 = vpop.xlane.xlu0 %1812
    %v1814 = vsub.f32 %v1802, %v1810
    %v1815 = vsub.f32 %v1805, %v1813
    %v1816 = vmul.f32 %v1814, 1.442695
    %v1817 = vpow.pop %v1816
    %v1818 = vmul.f32 %v1815, 1.442695
    %v1819 = vpow.pop %v1818
    %v1820 = vsel %vm1314, %v1817, 0.0
    %1821 = vadd.xlane.f32.xlu0 %v1820
    %v1822 = vpop.xlane.xlu0 %1821
    %v1823 = vsel %vm1314, %v1819, 0.0
    %1824 = vadd.xlane.f32.xlu0 %v1823
    %v1825 = vpop.xlane.xlu0 %1824
    %v1826 = vrcp.pop %v1822
    %v1827 = vrcp.pop %v1825
    %v1828 = vmul.f32 %v1817, %v1826
    %v1829 = vmul.f32 %v1819, %v1827
    %v1830 = vpack.c.bf16 %v1829, %v1828
    %1831 = vrot.lane.b32.xlu0 %v1268, 32
    %v1832 = vpop.permute.xlu0 %1831
    %v1835 = vsel %vm1314, %v1830, 0
    %1837 = vmatprep.subr.bf16.mxu0 0
    %1838 = vmatpush1.bf16.msra.mxu0 %v1832
    %1839 = vmatprep.subr.bf16.mxu0 0
    %1840 = vmatpush1.bf16.msra.mxu0 0
    %1841 = vmatprep.subr.bf16.mxu0 0
    %1842 = vmatpush1.bf16.msra.mxu0 0
    %1843 = vmatprep.subr.bf16.mxu0 0
    %1844 = vmatpush1.bf16.msra.mxu0 0
    %1845 = vmatprep.subr.bf16.mxu0 0
    %1846 = vmatpush1.bf16.msra.mxu0 0
    %1847 = vmatprep.subr.bf16.mxu0 0
    %1848 = vmatpush1.bf16.msra.mxu0 0
    %1849 = vmatprep.subr.bf16.mxu0 0
    %1850 = vmatpush1.bf16.msra.mxu0 0
    %1851 = vmatprep.subr.bf16.mxu0 0
    %1852 = vmatpush1.bf16.msra.mxu0 0
    %1853 = vmatprep.subr.bf16.mxu0 0
    %1854 = vmatpush1.bf16.msra.mxu0 0
    %1855 = vmatprep.subr.bf16.mxu0 0
    %1856 = vmatpush1.bf16.msra.mxu0 0
    %1857 = vmatprep.subr.bf16.mxu0 0
    %1858 = vmatpush1.bf16.msra.mxu0 0
    %1859 = vmatprep.subr.bf16.mxu0 0
    %1860 = vmatpush1.bf16.msra.mxu0 0
    %1861 = vmatprep.subr.bf16.mxu0 0
    %1862 = vmatpush1.bf16.msra.mxu0 0
    %1863 = vmatprep.subr.bf16.mxu0 0
    %1864 = vmatpush1.bf16.msra.mxu0 0
    %1865 = vmatprep.subr.bf16.mxu0 0
    %1866 = vmatpush1.bf16.msra.mxu0 0
    %1867 = vmatprep.subr.bf16.mxu0 0
    %1868 = vmatpush1.bf16.msra.mxu0 0
    %1869 = vmatprep.mubr.bf16.mxu0 0
    %1870 = vmatmul.mubr.bf16.gmra.mrb[0].mxu0 %v1835
    %v1871 = vpop.f32.mrb[0].mxu0
    %v1872 = vadd.f32 0.0, %v1871
    %v1873 = vpop.f32.mrb[0].mxu0
    %v1874 = vpop.f32.mrb[0].mxu0
    %v1875 = vadd.f32 0.0, %v1874
    %v1876 = vpop.f32.mrb[0].mxu0
    %1877 = vdwg.mxu0
    %1880 = vrot.lane.b32.xlu0 %v1872, 96
    %v1881 = vpop.permute.xlu0 %1880
    %1882 = vrot.lane.b32.xlu0 %v1875, 96
    %v1883 = vpop.permute.xlu0 %1882
    %vm1886 = vcmask 1048320
    %1887 = vst.msk [vmem:[#allocation2] sm:$0xff] %vm1886, %v1881
    %1888 = vst.msk [vmem:[#allocation2 + $0x8] sm:$0xff] %vm1886, %v1883
    %v1889 = vld [vmem:[#allocation2] sm:$0xff]
    %v1890 = vld [vmem:[#allocation2 + $0x8] sm:$0xff]
    %v1891 = vpack.c.bf16 %v1890, %v1889
    %v1892 = vld [vmem:[#allocation8] sm:$0xf]
    %v1893 = vld [vmem:[#allocation8 + $0x4] sm:$0xf]
    %v1894 = vld [vmem:[#allocation8 + $0x8] sm:$0xf]
    %v1895 = vld [vmem:[#allocation8 + $0xc] sm:$0xf]
    %v1896 = vld [vmem:[#allocation8 + $0x10] sm:$0xf]
    %v1897 = vld [vmem:[#allocation8 + $0x14] sm:$0xf]
    %v1898 = vld [vmem:[#allocation8 + $0x18] sm:$0xf]
    %v1899 = vld [vmem:[#allocation8 + $0x1c] sm:$0xf]
    %v1900 = vld [vmem:[#allocation8 + $0x20] sm:$0xf]
    %v1901 = vld [vmem:[#allocation8 + $0x24] sm:$0xf]
    %v1902 = vld [vmem:[#allocation8 + $0x28] sm:$0xf]
    %v1903 = vld [vmem:[#allocation8 + $0x2c] sm:$0xf]
    %v1904 = vld [vmem:[#allocation8 + $0x30] sm:$0xf]
    %v1905 = vld [vmem:[#allocation8 + $0x34] sm:$0xf]
    %v1906 = vld [vmem:[#allocation8 + $0x38] sm:$0xf]
    %v1907 = vld [vmem:[#allocation8 + $0x3c] sm:$0xf]
    %v1908 = vld [vmem:[%s8] sm:$0x1]
    %v1910 = vlaneseq
    %v1911 = vshrl.u32 %v1910, 7
    %v1912 = vsub.s32 0, %v1911
    %v1913 = vrot.slane %v1908, %v1912
    %v1931 = vunpack.c.l.b16 %v1892
    %v1932 = vunpack.c.l.b16 %v1893
    %v1933 = vunpack.c.l.b16 %v1894
    %v1934 = vunpack.c.l.b16 %v1895
    %v1935 = vunpack.c.l.b16 %v1896
    %v1936 = vunpack.c.l.b16 %v1897
    %v1937 = vunpack.c.l.b16 %v1898
    %v1938 = vunpack.c.l.b16 %v1899
    %v1939 = vunpack.c.l.b16 %v1900
    %v1940 = vunpack.c.l.b16 %v1901
    %v1941 = vunpack.c.l.b16 %v1902
    %v1942 = vunpack.c.l.b16 %v1903
    %v1943 = vunpack.c.l.b16 %v1904
    %v1944 = vunpack.c.l.b16 %v1905
    %v1945 = vunpack.c.l.b16 %v1906
    %v1946 = vunpack.c.l.b16 %v1907
    %v1947 = vpack.c.b16 %v1932, %v1931
    %v1948 = vpack.c.b16 %v1934, %v1933
    %v1949 = vpack.c.b16 %v1936, %v1935
    %v1950 = vpack.c.b16 %v1938, %v1937
    %v1951 = vpack.c.b16 %v1940, %v1939
    %v1952 = vpack.c.b16 %v1942, %v1941
    %v1953 = vpack.c.b16 %v1944, %v1943
    %v1954 = vpack.c.b16 %v1946, %v1945
    %1963 = vmatprep.subr.bf16.mxu0 0
    %1964 = vmatpush1.bf16.msra.mxu0 %v1947
    %1965 = vmatprep.subr.bf16.mxu0 0
    %1966 = vmatpush1.bf16.msra.mxu0 %v1948
    %1967 = vmatprep.subr.bf16.mxu0 0
    %1968 = vmatpush1.bf16.msra.mxu0 %v1949
    %1969 = vmatprep.subr.bf16.mxu0 0
    %1970 = vmatpush1.bf16.msra.mxu0 %v1950
    %1971 = vmatprep.subr.bf16.mxu0 0
    %1972 = vmatpush1.bf16.msra.mxu0 %v1951
    %1973 = vmatprep.subr.bf16.mxu0 0
    %1974 = vmatpush1.bf16.msra.mxu0 %v1952
    %1975 = vmatprep.subr.bf16.mxu0 0
    %1976 = vmatpush1.bf16.msra.mxu0 %v1953
    %1977 = vmatprep.subr.bf16.mxu0 0
    %1978 = vmatpush1.bf16.msra.mxu0 %v1954
    %1979 = vmatprep.subr.bf16.mxu0 0
    %1980 = vmatpush1.bf16.msra.mxu0 0
    %1981 = vmatprep.subr.bf16.mxu0 0
    %1982 = vmatpush1.bf16.msra.mxu0 0
    %1983 = vmatprep.subr.bf16.mxu0 0
    %1984 = vmatpush1.bf16.msra.mxu0 0
    %1985 = vmatprep.subr.bf16.mxu0 0
    %1986 = vmatpush1.bf16.msra.mxu0 0
    %1987 = vmatprep.subr.bf16.mxu0 0
    %1988 = vmatpush1.bf16.msra.mxu0 0
    %1989 = vmatprep.subr.bf16.mxu0 0
    %1990 = vmatpush1.bf16.msra.mxu0 0
    %1991 = vmatprep.subr.bf16.mxu0 0
    %1992 = vmatpush1.bf16.msra.mxu0 0
    %1993 = vmatprep.subr.bf16.mxu0 0
    %1994 = vmatpush1.bf16.msra.mxu0 0
    %1995 = vmatprep.mubr.bf16.mxu0 0
    %1996 = vmatmul.mubr.bf16.gmra.mrb[0].mxu0 %v1891
    %v1997 = vpop.f32.mrb[0].mxu0
    %v1998 = vadd.f32 %v1913, %v1997
    %v1999 = vpop.f32.mrb[0].mxu0
    %v2000 = vpop.f32.mrb[0].mxu0
    %v2001 = vadd.f32 %v1913, %v2000
    %v2002 = vpop.f32.mrb[0].mxu0
    %2003 = vdwg.mxu0
    %v2004 = vadd.f32 %v965, %v1998
    %v2005 = vadd.f32 %v966, %v2001
    %2006 = vadd.xlane.f32.xlu0 %v2004
    %v2007 = vpop.xlane.xlu0 %2006
    %2008 = vadd.xlane.f32.xlu0 %v2005
    %v2009 = vpop.xlane.xlu0 %2008
    %v2010 = vrcp.pop 128.0
    %v2011 = vmul.f32 %v2007, %v2010
    %v2012 = vmul.f32 %v2009, %v2010
    %v2013 = vsub.f32 %v2004, %v2011
    %v2014 = vsub.f32 %v2005, %v2012
    %v2015 = vmul.f32 %v2013, %v2013
    %v2016 = vmul.f32 %v2014, %v2014
    %2017 = vadd.xlane.f32.xlu0 %v2015
    %v2018 = vpop.xlane.xlu0 %2017
    %2019 = vadd.xlane.f32.xlu0 %v2016
    %v2020 = vpop.xlane.xlu0 %2019
    %v2021 = vmul.f32 %v2018, %v2010
    %v2022 = vmul.f32 %v2020, %v2010
    %v2023 = vadd.f32 %v2021, 1e-05
    %v2024 = vadd.f32 %v2022, 1e-05
    %v2025 = vrsqrt.pop %v2023
    %v2026 = vrsqrt.pop %v2024
    %v2027 = vmul.f32 %v2013, %v2025
    %v2028 = vmul.f32 %v2014, %v2026
    %v2029 = vld [vmem:[#allocation10] sm:$0x1]
    %v2031 = vlaneseq
    %v2032 = vshrl.u32 %v2031, 7
    %v2033 = vsub.s32 0, %v2032
    %v2034 = vrot.slane %v2029, %v2033
    %v2036 = vmul.f32 %v2027, %v2034
    %v2037 = vmul.f32 %v2028, %v2034
    %v2038 = vld [vmem:[#allocation11] sm:$0x1]
    %v2040 = vlaneseq
    %v2041 = vshrl.u32 %v2040, 7
    %v2042 = vsub.s32 0, %v2041
    %v2043 = vrot.slane %v2038, %v2042
    %v2045 = vadd.f32 %v2036, %v2043
    %v2046 = vadd.f32 %v2037, %v2043
    %v2047 = vpack.c.bf16 %v2046, %v2045
    %v2048 = vld [vmem:[#allocation13] sm:$0xff]
    %v2049 = vld [vmem:[#allocation13 + $0x8] sm:$0xff]
    %v2050 = vld [vmem:[#allocation13 + $0x10] sm:$0xff]
    %v2051 = vld [vmem:[#allocation13 + $0x18] sm:$0xff]
    %v2052 = vld [vmem:[#allocation13 + $0x20] sm:$0xff]
    %v2053 = vld [vmem:[#allocation13 + $0x28] sm:$0xff]
    %v2054 = vld [vmem:[#allocation13 + $0x30] sm:$0xff]
    %v2055 = vld [vmem:[#allocation13 + $0x38] sm:$0xff]
    %v2056 = vld [vmem:[#allocation13 + $0x40] sm:$0xff]
    %v2057 = vld [vmem:[#allocation13 + $0x48] sm:$0xff]
    %v2058 = vld [vmem:[#allocation13 + $0x50] sm:$0xff]
    %v2059 = vld [vmem:[#allocation13 + $0x58] sm:$0xff]
    %v2060 = vld [vmem:[#allocation13 + $0x60] sm:$0xff]
    %v2061 = vld [vmem:[#allocation13 + $0x68] sm:$0xff]
    %v2062 = vld [vmem:[#allocation13 + $0x70] sm:$0xff]
    %v2063 = vld [vmem:[#allocation13 + $0x78] sm:$0xff]
    %v2064 = vld [vmem:[#allocation14] sm:$0x3]
    %v2066 = vlaneseq
    %v2067 = vshrl.u32 %v2066, 7
    %v2068 = vsub.s32 0, %v2067
    %v2069 = vrot.slane %v2064, %v2068
    %v2070 = vlaneseq
    %v2071 = vshrl.u32 %v2070, 7
    %v2072 = vsub.s32 1, %v2071
    %v2073 = vrot.slane %v2064, %v2072
    %v2092 = vunpack.c.l.b16 %v2048
    %v2093 = vunpack.c.h.b16 %v2048
    %v2094 = vunpack.c.l.b16 %v2049
    %v2095 = vunpack.c.h.b16 %v2049
    %v2096 = vunpack.c.l.b16 %v2050
    %v2097 = vunpack.c.h.b16 %v2050
    %v2098 = vunpack.c.l.b16 %v2051
    %v2099 = vunpack.c.h.b16 %v2051
    %v2100 = vunpack.c.l.b16 %v2052
    %v2101 = vunpack.c.h.b16 %v2052
    %v2102 = vunpack.c.l.b16 %v2053
    %v2103 = vunpack.c.h.b16 %v2053
    %v2104 = vunpack.c.l.b16 %v2054
    %v2105 = vunpack.c.h.b16 %v2054
    %v2106 = vunpack.c.l.b16 %v2055
    %v2107 = vunpack.c.h.b16 %v2055
    %v2108 = vunpack.c.l.b16 %v2056
    %v2109 = vunpack.c.h.b16 %v2056
    %v2110 = vunpack.c.l.b16 %v2057
    %v2111 = vunpack.c.h.b16 %v2057
    %v2112 = vunpack.c.l.b16 %v2058
    %v2113 = vunpack.c.h.b16 %v2058
    %v2114 = vunpack.c.l.b16 %v2059
    %v2115 = vunpack.c.h.b16 %v2059
    %v2116 = vunpack.c.l.b16 %v2060
    %v2117 = vunpack.c.h.b16 %v2060
    %v2118 = vunpack.c.l.b16 %v2061
    %v2119 = vunpack.c.h.b16 %v2061
    %v2120 = vunpack.c.l.b16 %v2062
    %v2121 = vunpack.c.h.b16 %v2062
    %v2122 = vunpack.c.l.b16 %v2063
    %v2123 = vunpack.c.h.b16 %v2063
    %v2124 = vpack.c.b16 %v2094, %v2092
    %v2125 = vpack.c.b16 %v2095, %v2093
    %v2126 = vpack.c.b16 %v2098, %v2096
    %v2127 = vpack.c.b16 %v2099, %v2097
    %v2128 = vpack.c.b16 %v2102, %v2100
    %v2129 = vpack.c.b16 %v2103, %v2101
    %v2130 = vpack.c.b16 %v2106, %v2104
    %v2131 = vpack.c.b16 %v2107, %v2105
    %v2132 = vpack.c.b16 %v2110, %v2108
    %v2133 = vpack.c.b16 %v2111, %v2109
    %v2134 = vpack.c.b16 %v2114, %v2112
    %v2135 = vpack.c.b16 %v2115, %v2113
    %v2136 = vpack.c.b16 %v2118, %v2116
    %v2137 = vpack.c.b16 %v2119, %v2117
    %v2138 = vpack.c.b16 %v2122, %v2120
    %v2139 = vpack.c.b16 %v2123, %v2121
    %2156 = vmatprep.subr.bf16.mxu0 %v2125
    %2157 = vmatpush1.bf16.msra.mxu0 %v2124
    %2158 = vmatprep.subr.bf16.mxu0 %v2127
    %2159 = vmatpush1.bf16.msra.mxu0 %v2126
    %2160 = vmatprep.subr.bf16.mxu0 %v2129
    %2161 = vmatpush1.bf16.msra.mxu0 %v2128
    %2162 = vmatprep.subr.bf16.mxu0 %v2131
    %2163 = vmatpush1.bf16.msra.mxu0 %v2130
    %2164 = vmatprep.subr.bf16.mxu0 %v2133
    %2165 = vmatpush1.bf16.msra.mxu0 %v2132
    %2166 = vmatprep.subr.bf16.mxu0 %v2135
    %2167 = vmatpush1.bf16.msra.mxu0 %v2134
    %2168 = vmatprep.subr.bf16.mxu0 %v2137
    %2169 = vmatpush1.bf16.msra.mxu0 %v2136
    %2170 = vmatprep.subr.bf16.mxu0 %v2139
    %2171 = vmatpush1.bf16.msra.mxu0 %v2138
    %2172 = vmatprep.subr.bf16.mxu0 0
    %2173 = vmatpush1.bf16.msra.mxu0 0
    %2174 = vmatprep.subr.bf16.mxu0 0
    %2175 = vmatpush1.bf16.msra.mxu0 0
    %2176 = vmatprep.subr.bf16.mxu0 0
    %2177 = vmatpush1.bf16.msra.mxu0 0
    %2178 = vmatprep.subr.bf16.mxu0 0
    %2179 = vmatpush1.bf16.msra.mxu0 0
    %2180 = vmatprep.subr.bf16.mxu0 0
    %2181 = vmatpush1.bf16.msra.mxu0 0
    %2182 = vmatprep.subr.bf16.mxu0 0
    %2183 = vmatpush1.bf16.msra.mxu0 0
    %2184 = vmatprep.subr.bf16.mxu0 0
    %2185 = vmatpush1.bf16.msra.mxu0 0
    %2186 = vmatprep.subr.bf16.mxu0 0
    %2187 = vmatpush1.bf16.msra.mxu0 0
    %2188 = vmatprep.mubr.bf16.mxu0 0
    %2189 = vmatmul.mubr.bf16.gmra.mrb[0].mxu0 %v2047
    %v2190 = vpop.f32.mrb[0].mxu0
    %v2191 = vadd.f32 %v2069, %v2190
    %v2192 = vpop.f32.mrb[0].mxu0
    %v2193 = vadd.f32 %v2073, %v2192
    %v2194 = vpop.f32.mrb[0].mxu0
    %v2195 = vadd.f32 %v2069, %v2194
    %v2196 = vpop.f32.mrb[0].mxu0
    %v2197 = vadd.f32 %v2073, %v2196
    %2198 = vdwg.mxu0
    %v2199 = vmax.f32 %v2191, 0.0
    %v2200 = vmax.f32 %v2193, 0.0
    %v2201 = vmax.f32 %v2195, 0.0
    %v2202 = vmax.f32 %v2197, 0.0
    %v2203 = vpack.c.bf16 %v2201, %v2199
    %v2204 = vpack.c.bf16 %v2202, %v2200
    %v2205 = vld [vmem:[#allocation16] sm:$0xf]
    %v2206 = vld [vmem:[#allocation16 + $0x4] sm:$0xf]
    %v2207 = vld [vmem:[#allocation16 + $0x8] sm:$0xf]
    %v2208 = vld [vmem:[#allocation16 + $0xc] sm:$0xf]
    %v2209 = vld [vmem:[#allocation16 + $0x10] sm:$0xf]
    %v2210 = vld [vmem:[#allocation16 + $0x14] sm:$0xf]
    %v2211 = vld [vmem:[#allocation16 + $0x18] sm:$0xf]
    %v2212 = vld [vmem:[#allocation16 + $0x1c] sm:$0xf]
    %v2213 = vld [vmem:[#allocation16 + $0x20] sm:$0xf]
    %v2214 = vld [vmem:[#allocation16 + $0x24] sm:$0xf]
    %v2215 = vld [vmem:[#allocation16 + $0x28] sm:$0xf]
    %v2216 = vld [vmem:[#allocation16 + $0x2c] sm:$0xf]
    %v2217 = vld [vmem:[#allocation16 + $0x30] sm:$0xf]
    %v2218 = vld [vmem:[#allocation16 + $0x34] sm:$0xf]
    %v2219 = vld [vmem:[#allocation16 + $0x38] sm:$0xf]
    %v2220 = vld [vmem:[#allocation16 + $0x3c] sm:$0xf]
    %v2221 = vld [vmem:[#allocation16 + $0x40] sm:$0xf]
    %v2222 = vld [vmem:[#allocation16 + $0x44] sm:$0xf]
    %v2223 = vld [vmem:[#allocation16 + $0x48] sm:$0xf]
    %v2224 = vld [vmem:[#allocation16 + $0x4c] sm:$0xf]
    %v2225 = vld [vmem:[#allocation16 + $0x50] sm:$0xf]
    %v2226 = vld [vmem:[#allocation16 + $0x54] sm:$0xf]
    %v2227 = vld [vmem:[#allocation16 + $0x58] sm:$0xf]
    %v2228 = vld [vmem:[#allocation16 + $0x5c] sm:$0xf]
    %v2229 = vld [vmem:[#allocation16 + $0x60] sm:$0xf]
    %v2230 = vld [vmem:[#allocation16 + $0x64] sm:$0xf]
    %v2231 = vld [vmem:[#allocation16 + $0x68] sm:$0xf]
    %v2232 = vld [vmem:[#allocation16 + $0x6c] sm:$0xf]
    %v2233 = vld [vmem:[#allocation16 + $0x70] sm:$0xf]
    %v2234 = vld [vmem:[#allocation16 + $0x74] sm:$0xf]
    %v2235 = vld [vmem:[#allocation16 + $0x78] sm:$0xf]
    %v2236 = vld [vmem:[#allocation16 + $0x7c] sm:$0xf]
    %v2237 = vld [vmem:[#allocation17] sm:$0x1]
    %v2239 = vlaneseq
    %v2240 = vshrl.u32 %v2239, 7
    %v2241 = vsub.s32 0, %v2240
    %v2242 = vrot.slane %v2237, %v2241
    %v2276 = vunpack.c.l.b16 %v2205
    %v2277 = vunpack.c.l.b16 %v2206
    %v2278 = vunpack.c.l.b16 %v2207
    %v2279 = vunpack.c.l.b16 %v2208
    %v2280 = vunpack.c.l.b16 %v2209
    %v2281 = vunpack.c.l.b16 %v2210
    %v2282 = vunpack.c.l.b16 %v2211
    %v2283 = vunpack.c.l.b16 %v2212
    %v2284 = vunpack.c.l.b16 %v2213
    %v2285 = vunpack.c.l.b16 %v2214
    %v2286 = vunpack.c.l.b16 %v2215
    %v2287 = vunpack.c.l.b16 %v2216
    %v2288 = vunpack.c.l.b16 %v2217
    %v2289 = vunpack.c.l.b16 %v2218
    %v2290 = vunpack.c.l.b16 %v2219
    %v2291 = vunpack.c.l.b16 %v2220
    %v2292 = vunpack.c.l.b16 %v2221
    %v2293 = vunpack.c.l.b16 %v2222
    %v2294 = vunpack.c.l.b16 %v2223
    %v2295 = vunpack.c.l.b16 %v2224
    %v2296 = vunpack.c.l.b16 %v2225
    %v2297 = vunpack.c.l.b16 %v2226
    %v2298 = vunpack.c.l.b16 %v2227
    %v2299 = vunpack.c.l.b16 %v2228
    %v2300 = vunpack.c.l.b16 %v2229
    %v2301 = vunpack.c.l.b16 %v2230
    %v2302 = vunpack.c.l.b16 %v2231
    %v2303 = vunpack.c.l.b16 %v2232
    %v2304 = vunpack.c.l.b16 %v2233
    %v2305 = vunpack.c.l.b16 %v2234
    %v2306 = vunpack.c.l.b16 %v2235
    %v2307 = vunpack.c.l.b16 %v2236
    %v2308 = vpack.c.b16 %v2277, %v2276
    %v2309 = vpack.c.b16 %v2279, %v2278
    %v2310 = vpack.c.b16 %v2281, %v2280
    %v2311 = vpack.c.b16 %v2283, %v2282
    %v2312 = vpack.c.b16 %v2285, %v2284
    %v2313 = vpack.c.b16 %v2287, %v2286
    %v2314 = vpack.c.b16 %v2289, %v2288
    %v2315 = vpack.c.b16 %v2291, %v2290
    %v2316 = vpack.c.b16 %v2293, %v2292
    %v2317 = vpack.c.b16 %v2295, %v2294
    %v2318 = vpack.c.b16 %v2297, %v2296
    %v2319 = vpack.c.b16 %v2299, %v2298
    %v2320 = vpack.c.b16 %v2301, %v2300
    %v2321 = vpack.c.b16 %v2303, %v2302
    %v2322 = vpack.c.b16 %v2305, %v2304
    %v2323 = vpack.c.b16 %v2307, %v2306
    %2340 = vmatprep.subr.bf16.mxu0 0
    %2341 = vmatpush1.bf16.msra.mxu0 %v2308
    %2342 = vmatprep.subr.bf16.mxu0 0
    %2343 = vmatpush1.bf16.msra.mxu0 %v2309
    %2344 = vmatprep.subr.bf16.mxu0 0
    %2345 = vmatpush1.bf16.msra.mxu0 %v2310
    %2346 = vmatprep.subr.bf16.mxu0 0
    %2347 = vmatpush1.bf16.msra.mxu0 %v2311
    %2348 = vmatprep.subr.bf16.mxu0 0
    %2349 = vmatpush1.bf16.msra.mxu0 %v2312
    %2350 = vmatprep.subr.bf16.mxu0 0
    %2351 = vmatpush1.bf16.msra.mxu0 %v2313
    %2352 = vmatprep.subr.bf16.mxu0 0
    %2353 = vmatpush1.bf16.msra.mxu0 %v2314
    %2354 = vmatprep.subr.bf16.mxu0 0
    %2355 = vmatpush1.bf16.msra.mxu0 %v2315
    %2356 = vmatprep.subr.bf16.mxu0 0
    %2357 = vmatpush1.bf16.msra.mxu0 %v2316
    %2358 = vmatprep.subr.bf16.mxu0 0
    %2359 = vmatpush1.bf16.msra.mxu0 %v2317
    %2360 = vmatprep.subr.bf16.mxu0 0
    %2361 = vmatpush1.bf16.msra.mxu0 %v2318
    %2362 = vmatprep.subr.bf16.mxu0 0
    %2363 = vmatpush1.bf16.msra.mxu0 %v2319
    %2364 = vmatprep.subr.bf16.mxu0 0
    %2365 = vmatpush1.bf16.msra.mxu0 %v2320
    %2366 = vmatprep.subr.bf16.mxu0 0
    %2367 = vmatpush1.bf16.msra.mxu0 %v2321
    %2368 = vmatprep.subr.bf16.mxu0 0
    %2369 = vmatpush1.bf16.msra.mxu0 %v2322
    %2370 = vmatprep.subr.bf16.mxu0 0
    %2371 = vmatpush1.bf16.msra.mxu0 %v2323
    %2372 = vmatprep.mubr.bf16.mxu0 %v2204
    %2373 = vmatmul.mubr.bf16.gmra.mrb[0].mxu0 %v2203
    %v2374 = vpop.f32.mrb[0].mxu0
    %v2375 = vadd.f32 %v2242, %v2374
    %v2376 = vpop.f32.mrb[0].mxu0
    %v2377 = vpop.f32.mrb[0].mxu0
    %v2378 = vadd.f32 %v2242, %v2377
    %v2379 = vpop.f32.mrb[0].mxu0
    %2380 = vdwg.mxu0
    %v2381 = vadd.f32 %v2045, %v2375
    %v2382 = vadd.f32 %v2046, %v2378
    %2383 = vadd.xlane.f32.xlu0 %v2381
    %v2384 = vpop.xlane.xlu0 %2383
    %2385 = vadd.xlane.f32.xlu0 %v2382
    %v2386 = vpop.xlane.xlu0 %2385
    %v2387 = vmul.f32 %v2384, %v2010
    %v2388 = vmul.f32 %v2386, %v2010
    %v2389 = vsub.f32 %v2381, %v2387
    %v2390 = vsub.f32 %v2382, %v2388
    %v2391 = vmul.f32 %v2389, %v2389
    %v2392 = vmul.f32 %v2390, %v2390
    %2393 = vadd.xlane.f32.xlu0 %v2391
    %v2394 = vpop.xlane.xlu0 %2393
    %2395 = vadd.xlane.f32.xlu0 %v2392
    %v2396 = vpop.xlane.xlu0 %2395
    %v2397 = vmul.f32 %v2394, %v2010
    %v2398 = vmul.f32 %v2396, %v2010
    %v2399 = vadd.f32 %v2397, 1e-05
    %v2400 = vadd.f32 %v2398, 1e-05
    %v2401 = vrsqrt.pop %v2399
    %v2402 = vrsqrt.pop %v2400
    %v2403 = vmul.f32 %v2389, %v2401
    %v2404 = vmul.f32 %v2390, %v2402
    %v2405 = vld [vmem:[#allocation19] sm:$0x1]
    %v2407 = vlaneseq
    %v2408 = vshrl.u32 %v2407, 7
    %v2409 = vsub.s32 0, %v2408
    %v2410 = vrot.slane %v2405, %v2409
    %v2412 = vmul.f32 %v2403, %v2410
    %v2413 = vmul.f32 %v2404, %v2410
    %v2414 = vld [vmem:[#allocation20] sm:$0x1]
    %v2416 = vlaneseq
    %v2417 = vshrl.u32 %v2416, 7
    %v2418 = vsub.s32 0, %v2417
    %v2419 = vrot.slane %v2414, %v2418
    %v2421 = vadd.f32 %v2412, %v2419
    %v2422 = vadd.f32 %v2413, %v2419
    %v2423 = vpack.c.bf16 %v2422, %v2421
    %s2424 = scalar_lea.vmem %s5, 192
    %v2425 = vld [vmem:[%s2424] sm:$0xff]
    %v2426 = vld [vmem:[%s2424 + $0x8] sm:$0xf]
    %v2427 = vld [vmem:[%s2424 + $0xc] sm:$0xff]
    %v2428 = vld [vmem:[%s2424 + $0x14] sm:$0xf]
    %v2429 = vld [vmem:[%s2424 + $0x18] sm:$0xff]
    %v2430 = vld [vmem:[%s2424 + $0x20] sm:$0xf]
    %v2431 = vld [vmem:[%s2424 + $0x24] sm:$0xff]
    %v2432 = vld [vmem:[%s2424 + $0x2c] sm:$0xf]
    %v2433 = vld [vmem:[%s2424 + $0x30] sm:$0xff]
    %v2434 = vld [vmem:[%s2424 + $0x38] sm:$0xf]
    %v2435 = vld [vmem:[%s2424 + $0x3c] sm:$0xff]
    %v2436 = vld [vmem:[%s2424 + $0x44] sm:$0xf]
    %v2437 = vld [vmem:[%s2424 + $0x48] sm:$0xff]
    %v2438 = vld [vmem:[%s2424 + $0x50] sm:$0xf]
    %v2439 = vld [vmem:[%s2424 + $0x54] sm:$0xff]
    %v2440 = vld [vmem:[%s2424 + $0x5c] sm:$0xf]
    %v2441 = vld [vmem:[%s2424 + $0x60] sm:$0xff]
    %v2442 = vld [vmem:[%s2424 + $0x68] sm:$0xf]
    %v2443 = vld [vmem:[%s2424 + $0x6c] sm:$0xff]
    %v2444 = vld [vmem:[%s2424 + $0x74] sm:$0xf]
    %v2445 = vld [vmem:[%s2424 + $0x78] sm:$0xff]
    %v2446 = vld [vmem:[%s2424 + $0x80] sm:$0xf]
    %v2447 = vld [vmem:[%s2424 + $0x84] sm:$0xff]
    %v2448 = vld [vmem:[%s2424 + $0x8c] sm:$0xf]
    %v2449 = vld [vmem:[%s2424 + $0x90] sm:$0xff]
    %v2450 = vld [vmem:[%s2424 + $0x98] sm:$0xf]
    %v2451 = vld [vmem:[%s2424 + $0x9c] sm:$0xff]
    %v2452 = vld [vmem:[%s2424 + $0xa4] sm:$0xf]
    %v2453 = vld [vmem:[%s2424 + $0xa8] sm:$0xff]
    %v2454 = vld [vmem:[%s2424 + $0xb0] sm:$0xf]
    %v2455 = vld [vmem:[%s2424 + $0xb4] sm:$0xff]
    %v2456 = vld [vmem:[%s2424 + $0xbc] sm:$0xf]
    %s2457 = scalar_lea.vmem [#allocation7], 3
    %v2458 = vld [vmem:[%s2457] sm:$0x7]
    %v2460 = vlaneseq
    %v2461 = vshrl.u32 %v2460, 7
    %v2462 = vsub.s32 0, %v2461
    %v2463 = vrot.slane %v2458, %v2462
    %v2464 = vlaneseq
    %v2465 = vshrl.u32 %v2464, 7
    %v2466 = vsub.s32 1, %v2465
    %v2467 = vrot.slane %v2458, %v2466
    %v2468 = vlaneseq
    %v2469 = vshrl.u32 %v2468, 7
    %v2470 = vsub.s32 2, %v2469
    %v2471 = vrot.slane %v2458, %v2470
    %v2507 = vunpack.c.l.b16 %v2425
    %v2508 = vunpack.c.h.b16 %v2425
    %v2509 = vunpack.c.l.b16 %v2426
    %v2510 = vunpack.c.l.b16 %v2427
    %v2511 = vunpack.c.h.b16 %v2427
    %v2512 = vunpack.c.l.b16 %v2428
    %v2513 = vunpack.c.l.b16 %v2429
    %v2514 = vunpack.c.h.b16 %v2429
    %v2515 = vunpack.c.l.b16 %v2430
    %v2516 = vunpack.c.l.b16 %v2431
    %v2517 = vunpack.c.h.b16 %v2431
    %v2518 = vunpack.c.l.b16 %v2432
    %v2519 = vunpack.c.l.b16 %v2433
    %v2520 = vunpack.c.h.b16 %v2433
    %v2521 = vunpack.c.l.b16 %v2434
    %v2522 = vunpack.c.l.b16 %v2435
    %v2523 = vunpack.c.h.b16 %v2435
    %v2524 = vunpack.c.l.b16 %v2436
    %v2525 = vunpack.c.l.b16 %v2437
    %v2526 = vunpack.c.h.b16 %v2437
    %v2527 = vunpack.c.l.b16 %v2438
    %v2528 = vunpack.c.l.b16 %v2439
    %v2529 = vunpack.c.h.b16 %v2439
    %v2530 = vunpack.c.l.b16 %v2440
    %v2531 = vunpack.c.l.b16 %v2441
    %v2532 = vunpack.c.h.b16 %v2441
    %v2533 = vunpack.c.l.b16 %v2442
    %v2534 = vunpack.c.l.b16 %v2443
    %v2535 = vunpack.c.h.b16 %v2443
    %v2536 = vunpack.c.l.b16 %v2444
    %v2537 = vunpack.c.l.b16 %v2445
    %v2538 = vunpack.c.h.b16 %v2445
    %v2539 = vunpack.c.l.b16 %v2446
    %v2540 = vunpack.c.l.b16 %v2447
    %v2541 = vunpack.c.h.b16 %v2447
    %v2542 = vunpack.c.l.b16 %v2448
    %v2543 = vunpack.c.l.b16 %v2449
    %v2544 = vunpack.c.h.b16 %v2449
    %v2545 = vunpack.c.l.b16 %v2450
    %v2546 = vunpack.c.l.b16 %v2451
    %v2547 = vunpack.c.h.b16 %v2451
    %v2548 = vunpack.c.l.b16 %v2452
    %v2549 = vunpack.c.l.b16 %v2453
    %v2550 = vunpack.c.h.b16 %v2453
    %v2551 = vunpack.c.l.b16 %v2454
    %v2552 = vunpack.c.l.b16 %v2455
    %v2553 = vunpack.c.h.b16 %v2455
    %v2554 = vunpack.c.l.b16 %v2456
    %v2555 = vpack.c.b16 %v2510, %v2507
    %v2556 = vpack.c.b16 %v2511, %v2508
    %v2557 = vpack.c.b16 %v2512, %v2509
    %v2558 = vpack.c.b16 %v2516, %v2513
    %v2559 = vpack.c.b16 %v2517, %v2514
    %v2560 = vpack.c.b16 %v2518, %v2515
    %v2561 = vpack.c.b16 %v2522, %v2519
    %v2562 = vpack.c.b16 %v2523, %v2520
    %v2563 = vpack.c.b16 %v2524, %v2521
    %v2564 = vpack.c.b16 %v2528, %v2525
    %v2565 = vpack.c.b16 %v2529, %v2526
    %v2566 = vpack.c.b16 %v2530, %v2527
    %v2567 = vpack.c.b16 %v2534, %v2531
    %v2568 = vpack.c.b16 %v2535, %v2532
    %v2569 = vpack.c.b16 %v2536, %v2533
    %v2570 = vpack.c.b16 %v2540, %v2537
    %v2571 = vpack.c.b16 %v2541, %v2538
    %v2572 = vpack.c.b16 %v2542, %v2539
    %v2573 = vpack.c.b16 %v2546, %v2543
    %v2574 = vpack.c.b16 %v2547, %v2544
    %v2575 = vpack.c.b16 %v2548, %v2545
    %v2576 = vpack.c.b16 %v2552, %v2549
    %v2577 = vpack.c.b16 %v2553, %v2550
    %v2578 = vpack.c.b16 %v2554, %v2551
    %2603 = vmatprep.subr.bf16.mxu0 %v2556
    %2604 = vmatpush1.bf16.msra.mxu0 %v2555
    %2605 = vmatprep.subr.bf16.mxu0 %v2559
    %2606 = vmatpush1.bf16.msra.mxu0 %v2558
    %2607 = vmatprep.subr.bf16.mxu0 %v2562
    %2608 = vmatpush1.bf16.msra.mxu0 %v2561
    %2609 = vmatprep.subr.bf16.mxu0 %v2565
    %2610 = vmatpush1.bf16.msra.mxu0 %v2564
    %2611 = vmatprep.subr.bf16.mxu0 %v2568
    %2612 = vmatpush1.bf16.msra.mxu0 %v2567
    %2613 = vmatprep.subr.bf16.mxu0 %v2571
    %2614 = vmatpush1.bf16.msra.mxu0 %v2570
    %2615 = vmatprep.subr.bf16.mxu0 %v2574
    %2616 = vmatpush1.bf16.msra.mxu0 %v2573
    %2617 = vmatprep.subr.bf16.mxu0 %v2577
    %2618 = vmatpush1.bf16.msra.mxu0 %v2576
    %2619 = vmatprep.subr.bf16.mxu0 0
    %2620 = vmatpush1.bf16.msra.mxu0 0
    %2621 = vmatprep.subr.bf16.mxu0 0
    %2622 = vmatpush1.bf16.msra.mxu0 0
    %2623 = vmatprep.subr.bf16.mxu0 0
    %2624 = vmatpush1.bf16.msra.mxu0 0
    %2625 = vmatprep.subr.bf16.mxu0 0
    %2626 = vmatpush1.bf16.msra.mxu0 0
    %2627 = vmatprep.subr.bf16.mxu0 0
    %2628 = vmatpush1.bf16.msra.mxu0 0
    %2629 = vmatprep.subr.bf16.mxu0 0
    %2630 = vmatpush1.bf16.msra.mxu0 0
    %2631 = vmatprep.subr.bf16.mxu0 0
    %2632 = vmatpush1.bf16.msra.mxu0 0
    %2633 = vmatprep.subr.bf16.mxu0 0
    %2634 = vmatpush1.bf16.msra.mxu0 0
    %2635 = vmatprep.mubr.bf16.mxu0 0
    %2636 = vmatmul.mubr.bf16.gmra.mrb[0].mxu0 %v2423
    %v2637 = vpop.f32.mrb[0].mxu0
    %v2638 = vadd.f32 %v2463, %v2637
    %v2639 = vpop.f32.mrb[0].mxu0
    %v2640 = vadd.f32 %v2467, %v2639
    %v2641 = vpop.f32.mrb[0].mxu0
    %v2642 = vadd.f32 %v2463, %v2641
    %v2643 = vpop.f32.mrb[0].mxu0
    %v2644 = vadd.f32 %v2467, %v2643
    %2645 = vdwg.mxu0
    %2646 = vmatprep.subr.bf16.mxu0 0
    %2647 = vmatpush1.bf16.msra.mxu0 %v2557
    %2648 = vmatprep.subr.bf16.mxu0 0
    %2649 = vmatpush1.bf16.msra.mxu0 %v2560
    %2650 = vmatprep.subr.bf16.mxu0 0
    %2651 = vmatpush1.bf16.msra.mxu0 %v2563
    %2652 = vmatprep.subr.bf16.mxu0 0
    %2653 = vmatpush1.bf16.msra.mxu0 %v2566
    %2654 = vmatprep.subr.bf16.mxu0 0
    %2655 = vmatpush1.bf16.msra.mxu0 %v2569
    %2656 = vmatprep.subr.bf16.mxu0 0
    %2657 = vmatpush1.bf16.msra.mxu0 %v2572
    %2658 = vmatprep.subr.bf16.mxu0 0
    %2659 = vmatpush1.bf16.msra.mxu0 %v2575
    %2660 = vmatprep.subr.bf16.mxu0 0
    %2661 = vmatpush1.bf16.msra.mxu0 %v2578
    %2662 = vmatprep.subr.bf16.mxu0 0
    %2663 = vmatpush1.bf16.msra.mxu0 0
    %2664 = vmatprep.subr.bf16.mxu0 0
    %2665 = vmatpush1.bf16.msra.mxu0 0
    %2666 = vmatprep.subr.bf16.mxu0 0
    %2667 = vmatpush1.bf16.msra.mxu0 0
    %2668 = vmatprep.subr.bf16.mxu0 0
    %2669 = vmatpush1.bf16.msra.mxu0 0
    %2670 = vmatprep.subr.bf16.mxu0 0
    %2671 = vmatpush1.bf16.msra.mxu0 0
    %2672 = vmatprep.subr.bf16.mxu0 0
    %2673 = vmatpush1.bf16.msra.mxu0 0
    %2674 = vmatprep.subr.bf16.mxu0 0
    %2675 = vmatpush1.bf16.msra.mxu0 0
    %2676 = vmatprep.subr.bf16.mxu0 0
    %2677 = vmatpush1.bf16.msra.mxu0 0
    %2678 = vmatprep.mubr.bf16.mxu0 0
    %2679 = vmatmul.mubr.bf16.gmra.mrb[0].mxu0 %v2423
    %v2680 = vpop.f32.mrb[0].mxu0
    %v2681 = vadd.f32 %v2471, %v2680
    %v2682 = vpop.f32.mrb[0].mxu0
    %v2683 = vpop.f32.mrb[0].mxu0
    %v2684 = vadd.f32 %v2471, %v2683
    %v2685 = vpop.f32.mrb[0].mxu0
    %2686 = vdwg.mxu0
    %v2687 = vmul.f32 %v2638, 0.17677669
    %v2688 = vmul.f32 %v2642, 0.17677669
    %v2689 = vpack.c.bf16 %v2688, %v2687
    %2690 = vxpose.xlu0.b32.start [1/16] %v2640, 128
    %2691 = vxpose.xlu0.b32.cont [2/16] %v2644, 128
    %2692 = vxpose.xlu0.b32.cont [3/16] 0.0, 128
    %2693 = vxpose.xlu0.b32.cont [4/16] 0.0, 128
    %2694 = vxpose.xlu0.b32.cont [5/16] 0.0, 128
    %2695 = vxpose.xlu0.b32.cont [6/16] 0.0, 128
    %2696 = vxpose.xlu0.b32.cont [7/16] 0.0, 128
    %2697 = vxpose.xlu0.b32.cont [8/16] 0.0, 128
    %2698 = vxpose.xlu0.b32.cont [9/16] 0.0, 128
    %2699 = vxpose.xlu0.b32.cont [10/16] 0.0, 128
    %2700 = vxpose.xlu0.b32.cont [11/16] 0.0, 128
    %2701 = vxpose.xlu0.b32.cont [12/16] 0.0, 128
    %2702 = vxpose.xlu0.b32.cont [13/16] 0.0, 128
    %2703 = vxpose.xlu0.b32.cont [14/16] 0.0, 128
    %2704 = vxpose.xlu0.b32.cont [15/16] 0.0, 128
    %2705 = vxpose.xlu0.b32.end [16/16] 0.0, 128
    %v2706 = vpop.trf.xlu0
    %v2707 = vpop.trf.xlu0
    %v2708 = vpop.trf.xlu0
    %v2709 = vpop.trf.xlu0
    %v2710 = vpop.trf.xlu0
    %v2711 = vpop.trf.xlu0
    %v2712 = vpop.trf.xlu0
    %v2713 = vpop.trf.xlu0
    %v2714 = vpop.trf.xlu0
    %v2715 = vpop.trf.xlu0
    %v2716 = vpop.trf.xlu0
    %v2717 = vpop.trf.xlu0
    %v2718 = vpop.trf.xlu0
    %v2719 = vpop.trf.xlu0
    %v2720 = vpop.trf.xlu0
    %v2721 = vpop.trf.xlu0
    %v2722 = vpack.c.bf16 %v2707, %v2706
    %v2723 = vpack.c.bf16 %v2709, %v2708
    %v2724 = vpack.c.bf16 %v2684, %v2681
    %v2726 = vsel %vm1269, %v2689, 0
    %2728 = vmatprep.subr.bf16.mxu0 0
    %2729 = vmatpush1.bf16.msra.mxu0 %v2722
    %2730 = vmatprep.subr.bf16.mxu0 0
    %2731 = vmatpush1.bf16.msra.mxu0 %v2723
    %2732 = vmatprep.subr.bf16.mxu0 0
    %2733 = vmatpush1.bf16.msra.mxu0 0
    %2734 = vmatprep.subr.bf16.mxu0 0
    %2735 = vmatpush1.bf16.msra.mxu0 0
    %2736 = vmatprep.subr.bf16.mxu0 0
    %2737 = vmatpush1.bf16.msra.mxu0 0
    %2738 = vmatprep.subr.bf16.mxu0 0
    %2739 = vmatpush1.bf16.msra.mxu0 0
    %2740 = vmatprep.subr.bf16.mxu0 0
    %2741 = vmatpush1.bf16.msra.mxu0 0
    %2742 = vmatprep.subr.bf16.mxu0 0
    %2743 = vmatpush1.bf16.msra.mxu0 0
    %2744 = vmatprep.subr.bf16.mxu0 0
    %2745 = vmatpush1.bf16.msra.mxu0 0
    %2746 = vmatprep.subr.bf16.mxu0 0
    %2747 = vmatpush1.bf16.msra.mxu0 0
    %2748 = vmatprep.subr.bf16.mxu0 0
    %2749 = vmatpush1.bf16.msra.mxu0 0
    %2750 = vmatprep.subr.bf16.mxu0 0
    %2751 = vmatpush1.bf16.msra.mxu0 0
    %2752 = vmatprep.subr.bf16.mxu0 0
    %2753 = vmatpush1.bf16.msra.mxu0 0
    %2754 = vmatprep.subr.bf16.mxu0 0
    %2755 = vmatpush1.bf16.msra.mxu0 0
    %2756 = vmatprep.subr.bf16.mxu0 0
    %2757 = vmatpush1.bf16.msra.mxu0 0
    %2758 = vmatprep.subr.bf16.mxu0 0
    %2759 = vmatpush1.bf16.msra.mxu0 0
    %2760 = vmatprep.mubr.bf16.mxu0 0
    %2761 = vmatmul.mubr.bf16.gmra.mrb[0].mxu0 %v2726
    %v2762 = vpop.f32.mrb[0].mxu0
    %v2763 = vadd.f32 %v967, %v2762
    %v2764 = vpop.f32.mrb[0].mxu0
    %v2765 = vpop.f32.mrb[0].mxu0
    %v2766 = vadd.f32 %v968, %v2765
    %v2767 = vpop.f32.mrb[0].mxu0
    %2768 = vdwg.mxu0
    %v2769 = vsel %vm1314, %v2763, -inf
    %2770 = vmax.xlane.f32.xlu0 %v2769
    %v2771 = vpop.xlane.xlu0 %2770
    %v2772 = vsel %vm1314, %v2766, -inf
    %2773 = vmax.xlane.f32.xlu0 %v2772
    %v2774 = vpop.xlane.xlu0 %2773
    %v2775 = vsub.f32 %v2763, %v2771
    %v2776 = vsub.f32 %v2766, %v2774
    %v2777 = vmul.f32 %v2775, 1.442695
    %v2778 = vpow.pop %v2777
    %v2779 = vmul.f32 %v2776, 1.442695
    %v2780 = vpow.pop %v2779
    %v2781 = vsel %vm1314, %v2778, 0.0
    %2782 = vadd.xlane.f32.xlu0 %v2781
    %v2783 = vpop.xlane.xlu0 %2782
    %v2784 = vsel %vm1314, %v2780, 0.0
    %2785 = vadd.xlane.f32.xlu0 %v2784
    %v2786 = vpop.xlane.xlu0 %2785
    %v2787 = vrcp.pop %v2783
    %v2788 = vrcp.pop %v2786
    %v2789 = vmul.f32 %v2778, %v2787
    %v2790 = vmul.f32 %v2780, %v2788
    %v2791 = vpack.c.bf16 %v2790, %v2789
    %v2793 = vsel %vm1314, %v2791, 0
    %2795 = vmatprep.subr.bf16.mxu0 0
    %2796 = vmatpush1.bf16.msra.mxu0 %v2724
    %2797 = vmatprep.subr.bf16.mxu0 0
    %2798 = vmatpush1.bf16.msra.mxu0 0
    %2799 = vmatprep.subr.bf16.mxu0 0
    %2800 = vmatpush1.bf16.msra.mxu0 0
    %2801 = vmatprep.subr.bf16.mxu0 0
    %2802 = vmatpush1.bf16.msra.mxu0 0
    %2803 = vmatprep.subr.bf16.mxu0 0
    %2804 = vmatpush1.bf16.msra.mxu0 0
    %2805 = vmatprep.subr.bf16.mxu0 0
    %2806 = vmatpush1.bf16.msra.mxu0 0
    %2807 = vmatprep.subr.bf16.mxu0 0
    %2808 = vmatpush1.bf16.msra.mxu0 0
    %2809 = vmatprep.subr.bf16.mxu0 0
    %2810 = vmatpush1.bf16.msra.mxu0 0
    %2811 = vmatprep.subr.bf16.mxu0 0
    %2812 = vmatpush1.bf16.msra.mxu0 0
    %2813 = vmatprep.subr.bf16.mxu0 0
    %2814 = vmatpush1.bf16.msra.mxu0 0
    %2815 = vmatprep.subr.bf16.mxu0 0
    %2816 = vmatpush1.bf16.msra.mxu0 0
    %2817 = vmatprep.subr.bf16.mxu0 0
    %2818 = vmatpush1.bf16.msra.mxu0 0
    %2819 = vmatprep.subr.bf16.mxu0 0
    %2820 = vmatpush1.bf16.msra.mxu0 0
    %2821 = vmatprep.subr.bf16.mxu0 0
    %2822 = vmatpush1.bf16.msra.mxu0 0
    %2823 = vmatprep.subr.bf16.mxu0 0
    %2824 = vmatpush1.bf16.msra.mxu0 0
    %2825 = vmatprep.subr.bf16.mxu0 0
    %2826 = vmatpush1.bf16.msra.mxu0 0
    %2827 = vmatprep.mubr.bf16.mxu0 0
    %2828 = vmatmul.mubr.bf16.gmra.mrb[0].mxu0 %v2793
    %v2829 = vpop.f32.mrb[0].mxu0
    %v2830 = vadd.f32 0.0, %v2829
    %v2831 = vpop.f32.mrb[0].mxu0
    %v2832 = vpop.f32.mrb[0].mxu0
    %v2833 = vadd.f32 0.0, %v2832
    %v2834 = vpop.f32.mrb[0].mxu0
    %2835 = vdwg.mxu0
    %2836 = vst.msk [vmem:[#allocation2] sm:$0xff] %vm1269, %v2830
    %2837 = vst.msk [vmem:[#allocation2 + $0x8] sm:$0xff] %vm1269, %v2833
    %2840 = vrot.lane.b32.xlu0 %v2640, 96
    %v2841 = vpop.permute.xlu0 %2840
    %2842 = vrot.lane.b32.xlu0 %v2644, 96
    %v2843 = vpop.permute.xlu0 %2842
    %2846 = vxpose.xlu0.b32.start [1/16] %v2841, 128
    %2847 = vxpose.xlu0.b32.cont [2/16] %v2843, 128
    %2848 = vxpose.xlu0.b32.cont [3/16] 0.0, 128
    %2849 = vxpose.xlu0.b32.cont [4/16] 0.0, 128
    %2850 = vxpose.xlu0.b32.cont [5/16] 0.0, 128
    %2851 = vxpose.xlu0.b32.cont [6/16] 0.0, 128
    %2852 = vxpose.xlu0.b32.cont [7/16] 0.0, 128
    %2853 = vxpose.xlu0.b32.cont [8/16] 0.0, 128
    %2854 = vxpose.xlu0.b32.cont [9/16] 0.0, 128
    %2855 = vxpose.xlu0.b32.cont [10/16] 0.0, 128
    %2856 = vxpose.xlu0.b32.cont [11/16] 0.0, 128
    %2857 = vxpose.xlu0.b32.cont [12/16] 0.0, 128
    %2858 = vxpose.xlu0.b32.cont [13/16] 0.0, 128
    %2859 = vxpose.xlu0.b32.cont [14/16] 0.0, 128
    %2860 = vxpose.xlu0.b32.cont [15/16] 0.0, 128
    %2861 = vxpose.xlu0.b32.end [16/16] 0.0, 128
    %v2862 = vpop.trf.xlu0
    %v2863 = vpop.trf.xlu0
    %v2864 = vpop.trf.xlu0
    %v2865 = vpop.trf.xlu0
    %v2866 = vpop.trf.xlu0
    %v2867 = vpop.trf.xlu0
    %v2868 = vpop.trf.xlu0
    %v2869 = vpop.trf.xlu0
    %v2870 = vpop.trf.xlu0
    %v2871 = vpop.trf.xlu0
    %v2872 = vpop.trf.xlu0
    %v2873 = vpop.trf.xlu0
    %v2874 = vpop.trf.xlu0
    %v2875 = vpop.trf.xlu0
    %v2876 = vpop.trf.xlu0
    %v2877 = vpop.trf.xlu0
    %v2878 = vpack.c.bf16 %v2863, %v2862
    %v2879 = vpack.c.bf16 %v2865, %v2864
    %2881 = vrot.lane.b32.xlu0 %v2689, 96
    %v2882 = vpop.permute.xlu0 %2881
    %v2884 = vsel %vm1269, %v2882, 0
    %2886 = vmatprep.subr.bf16.mxu0 0
    %2887 = vmatpush1.bf16.msra.mxu0 %v2878
    %2888 = vmatprep.subr.bf16.mxu0 0
    %2889 = vmatpush1.bf16.msra.mxu0 %v2879
    %2890 = vmatprep.subr.bf16.mxu0 0
    %2891 = vmatpush1.bf16.msra.mxu0 0
    %2892 = vmatprep.subr.bf16.mxu0 0
    %2893 = vmatpush1.bf16.msra.mxu0 0
    %2894 = vmatprep.subr.bf16.mxu0 0
    %2895 = vmatpush1.bf16.msra.mxu0 0
    %2896 = vmatprep.subr.bf16.mxu0 0
    %2897 = vmatpush1.bf16.msra.mxu0 0
    %2898 = vmatprep.subr.bf16.mxu0 0
    %2899 = vmatpush1.bf16.msra.mxu0 0
    %2900 = vmatprep.subr.bf16.mxu0 0
    %2901 = vmatpush1.bf16.msra.mxu0 0
    %2902 = vmatprep.subr.bf16.mxu0 0
    %2903 = vmatpush1.bf16.msra.mxu0 0
    %2904 = vmatprep.subr.bf16.mxu0 0
    %2905 = vmatpush1.bf16.msra.mxu0 0
    %2906 = vmatprep.subr.bf16.mxu0 0
    %2907 = vmatpush1.bf16.msra.mxu0 0
    %2908 = vmatprep.subr.bf16.mxu0 0
    %2909 = vmatpush1.bf16.msra.mxu0 0
    %2910 = vmatprep.subr.bf16.mxu0 0
    %2911 = vmatpush1.bf16.msra.mxu0 0
    %2912 = vmatprep.subr.bf16.mxu0 0
    %2913 = vmatpush1.bf16.msra.mxu0 0
    %2914 = vmatprep.subr.bf16.mxu0 0
    %2915 = vmatpush1.bf16.msra.mxu0 0
    %2916 = vmatprep.subr.bf16.mxu0 0
    %2917 = vmatpush1.bf16.msra.mxu0 0
    %2918 = vmatprep.mubr.bf16.mxu0 0
    %2919 = vmatmul.mubr.bf16.gmra.mrb[0].mxu0 %v2884
    %v2920 = vpop.f32.mrb[0].mxu0
    %v2921 = vadd.f32 %v967, %v2920
    %v2922 = vpop.f32.mrb[0].mxu0
    %v2923 = vpop.f32.mrb[0].mxu0
    %v2924 = vadd.f32 %v968, %v2923
    %v2925 = vpop.f32.mrb[0].mxu0
    %2926 = vdwg.mxu0
    %v2927 = vsel %vm1314, %v2921, -inf
    %2928 = vmax.xlane.f32.xlu0 %v2927
    %v2929 = vpop.xlane.xlu0 %2928
    %v2930 = vsel %vm1314, %v2924, -inf
    %2931 = vmax.xlane.f32.xlu0 %v2930
    %v2932 = vpop.xlane.xlu0 %2931
    %v2933 = vsub.f32 %v2921, %v2929
    %v2934 = vsub.f32 %v2924, %v2932
    %v2935 = vmul.f32 %v2933, 1.442695
    %v2936 = vpow.pop %v2935
    %v2937 = vmul.f32 %v2934, 1.442695
    %v2938 = vpow.pop %v2937
    %v2939 = vsel %vm1314, %v2936, 0.0
    %2940 = vadd.xlane.f32.xlu0 %v2939
    %v2941 = vpop.xlane.xlu0 %2940
    %v2942 = vsel %vm1314, %v2938, 0.0
    %2943 = vadd.xlane.f32.xlu0 %v2942
    %v2944 = vpop.xlane.xlu0 %2943
    %v2945 = vrcp.pop %v2941
    %v2946 = vrcp.pop %v2944
    %v2947 = vmul.f32 %v2936, %v2945
    %v2948 = vmul.f32 %v2938, %v2946
    %v2949 = vpack.c.bf16 %v2948, %v2947
    %2951 = vrot.lane.b32.xlu0 %v2724, 96
    %v2952 = vpop.permute.xlu0 %2951
    %v2955 = vsel %vm1314, %v2949, 0
    %2957 = vmatprep.subr.bf16.mxu0 0
    %2958 = vmatpush1.bf16.msra.mxu0 %v2952
    %2959 = vmatprep.subr.bf16.mxu0 0
    %2960 = vmatpush1.bf16.msra.mxu0 0
    %2961 = vmatprep.subr.bf16.mxu0 0
    %2962 = vmatpush1.bf16.msra.mxu0 0
    %2963 = vmatprep.subr.bf16.mxu0 0
    %2964 = vmatpush1.bf16.msra.mxu0 0
    %2965 = vmatprep.subr.bf16.mxu0 0
    %2966 = vmatpush1.bf16.msra.mxu0 0
    %2967 = vmatprep.subr.bf16.mxu0 0
    %2968 = vmatpush1.bf16.msra.mxu0 0
    %2969 = vmatprep.subr.bf16.mxu0 0
    %2970 = vmatpush1.bf16.msra.mxu0 0
    %2971 = vmatprep.subr.bf16.mxu0 0
    %2972 = vmatpush1.bf16.msra.mxu0 0
    %2973 = vmatprep.subr.bf16.mxu0 0
    %2974 = vmatpush1.bf16.msra.mxu0 0
    %2975 = vmatprep.subr.bf16.mxu0 0
    %2976 = vmatpush1.bf16.msra.mxu0 0
    %2977 = vmatprep.subr.bf16.mxu0 0
    %2978 = vmatpush1.bf16.msra.mxu0 0
    %2979 = vmatprep.subr.bf16.mxu0 0
    %2980 = vmatpush1.bf16.msra.mxu0 0
    %2981 = vmatprep.subr.bf16.mxu0 0
    %2982 = vmatpush1.bf16.msra.mxu0 0
    %2983 = vmatprep.subr.bf16.mxu0 0
    %2984 = vmatpush1.bf16.msra.mxu0 0
    %2985 = vmatprep.subr.bf16.mxu0 0
    %2986 = vmatpush1.bf16.msra.mxu0 0
    %2987 = vmatprep.subr.bf16.mxu0 0
    %2988 = vmatpush1.bf16.msra.mxu0 0
    %2989 = vmatprep.mubr.bf16.mxu0 0
    %2990 = vmatmul.mubr.bf16.gmra.mrb[0].mxu0 %v2955
    %v2991 = vpop.f32.mrb[0].mxu0
    %v2992 = vadd.f32 0.0, %v2991
    %v2993 = vpop.f32.mrb[0].mxu0
    %v2994 = vpop.f32.mrb[0].mxu0
    %v2995 = vadd.f32 0.0, %v2994
    %v2996 = vpop.f32.mrb[0].mxu0
    %2997 = vdwg.mxu0
    %3000 = vrot.lane.b32.xlu0 %v2992, 32
    %v3001 = vpop.permute.xlu0 %3000
    %3002 = vrot.lane.b32.xlu0 %v2995, 32
    %v3003 = vpop.permute.xlu0 %3002
    %3006 = vst.msk [vmem:[#allocation2] sm:$0xff] %vm1552, %v3001
    %3007 = vst.msk [vmem:[#allocation2 + $0x8] sm:$0xff] %vm1552, %v3003
    %3008 = vrot.lane.b32.xlu0 %v2640, 64
    %v3009 = vpop.permute.xlu0 %3008
    %3010 = vrot.lane.b32.xlu0 %v2644, 64
    %v3011 = vpop.permute.xlu0 %3010
    %3014 = vxpose.xlu0.b32.start [1/16] %v3009, 128
    %3015 = vxpose.xlu0.b32.cont [2/16] %v3011, 128
    %3016 = vxpose.xlu0.b32.cont [3/16] 0.0, 128
    %3017 = vxpose.xlu0.b32.cont [4/16] 0.0, 128
    %3018 = vxpose.xlu0.b32.cont [5/16] 0.0, 128
    %3019 = vxpose.xlu0.b32.cont [6/16] 0.0, 128
    %3020 = vxpose.xlu0.b32.cont [7/16] 0.0, 128
    %3021 = vxpose.xlu0.b32.cont [8/16] 0.0, 128
    %3022 = vxpose.xlu0.b32.cont [9/16] 0.0, 128
    %3023 = vxpose.xlu0.b32.cont [10/16] 0.0, 128
    %3024 = vxpose.xlu0.b32.cont [11/16] 0.0, 128
    %3025 = vxpose.xlu0.b32.cont [12/16] 0.0, 128
    %3026 = vxpose.xlu0.b32.cont [13/16] 0.0, 128
    %3027 = vxpose.xlu0.b32.cont [14/16] 0.0, 128
    %3028 = vxpose.xlu0.b32.cont [15/16] 0.0, 128
    %3029 = vxpose.xlu0.b32.end [16/16] 0.0, 128
    %v3030 = vpop.trf.xlu0
    %v3031 = vpop.trf.xlu0
    %v3032 = vpop.trf.xlu0
    %v3033 = vpop.trf.xlu0
    %v3034 = vpop.trf.xlu0
    %v3035 = vpop.trf.xlu0
    %v3036 = vpop.trf.xlu0
    %v3037 = vpop.trf.xlu0
    %v3038 = vpop.trf.xlu0
    %v3039 = vpop.trf.xlu0
    %v3040 = vpop.trf.xlu0
    %v3041 = vpop.trf.xlu0
    %v3042 = vpop.trf.xlu0
    %v3043 = vpop.trf.xlu0
    %v3044 = vpop.trf.xlu0
    %v3045 = vpop.trf.xlu0
    %v3046 = vpack.c.bf16 %v3031, %v3030
    %v3047 = vpack.c.bf16 %v3033, %v3032
    %3048 = vrot.lane.b32.xlu0 %v2689, 64
    %v3049 = vpop.permute.xlu0 %3048
    %v3051 = vsel %vm1269, %v3049, 0
    %3053 = vmatprep.subr.bf16.mxu0 0
    %3054 = vmatpush1.bf16.msra.mxu0 %v3046
    %3055 = vmatprep.subr.bf16.mxu0 0
    %3056 = vmatpush1.bf16.msra.mxu0 %v3047
    %3057 = vmatprep.subr.bf16.mxu0 0
    %3058 = vmatpush1.bf16.msra.mxu0 0
    %3059 = vmatprep.subr.bf16.mxu0 0
    %3060 = vmatpush1.bf16.msra.mxu0 0
    %3061 = vmatprep.subr.bf16.mxu0 0
    %3062 = vmatpush1.bf16.msra.mxu0 0
    %3063 = vmatprep.subr.bf16.mxu0 0
    %3064 = vmatpush1.bf16.msra.mxu0 0
    %3065 = vmatprep.subr.bf16.mxu0 0
    %3066 = vmatpush1.bf16.msra.mxu0 0
    %3067 = vmatprep.subr.bf16.mxu0 0
    %3068 = vmatpush1.bf16.msra.mxu0 0
    %3069 = vmatprep.subr.bf16.mxu0 0
    %3070 = vmatpush1.bf16.msra.mxu0 0
    %3071 = vmatprep.subr.bf16.mxu0 0
    %3072 = vmatpush1.bf16.msra.mxu0 0
    %3073 = vmatprep.subr.bf16.mxu0 0
    %3074 = vmatpush1.bf16.msra.mxu0 0
    %3075 = vmatprep.subr.bf16.mxu0 0
    %3076 = vmatpush1.bf16.msra.mxu0 0
    %3077 = vmatprep.subr.bf16.mxu0 0
    %3078 = vmatpush1.bf16.msra.mxu0 0
    %3079 = vmatprep.subr.bf16.mxu0 0
    %3080 = vmatpush1.bf16.msra.mxu0 0
    %3081 = vmatprep.subr.bf16.mxu0 0
    %3082 = vmatpush1.bf16.msra.mxu0 0
    %3083 = vmatprep.subr.bf16.mxu0 0
    %3084 = vmatpush1.bf16.msra.mxu0 0
    %3085 = vmatprep.mubr.bf16.mxu0 0
    %3086 = vmatmul.mubr.bf16.gmra.mrb[0].mxu0 %v3051
    %v3087 = vpop.f32.mrb[0].mxu0
    %v3088 = vadd.f32 %v967, %v3087
    %v3089 = vpop.f32.mrb[0].mxu0
    %v3090 = vpop.f32.mrb[0].mxu0
    %v3091 = vadd.f32 %v968, %v3090
    %v3092 = vpop.f32.mrb[0].mxu0
    %3093 = vdwg.mxu0
    %v3094 = vsel %vm1314, %v3088, -inf
    %3095 = vmax.xlane.f32.xlu0 %v3094
    %v3096 = vpop.xlane.xlu0 %3095
    %v3097 = vsel %vm1314, %v3091, -inf
    %3098 = vmax.xlane.f32.xlu0 %v3097
    %v3099 = vpop.xlane.xlu0 %3098
    %v3100 = vsub.f32 %v3088, %v3096
    %v3101 = vsub.f32 %v3091, %v3099
    %v3102 = vmul.f32 %v3100, 1.442695
    %v3103 = vpow.pop %v3102
    %v3104 = vmul.f32 %v3101, 1.442695
    %v3105 = vpow.pop %v3104
    %v3106 = vsel %vm1314, %v3103, 0.0
    %3107 = vadd.xlane.f32.xlu0 %v3106
    %v3108 = vpop.xlane.xlu0 %3107
    %v3109 = vsel %vm1314, %v3105, 0.0
    %3110 = vadd.xlane.f32.xlu0 %v3109
    %v3111 = vpop.xlane.xlu0 %3110
    %v3112 = vrcp.pop %v3108
    %v3113 = vrcp.pop %v3111
    %v3114 = vmul.f32 %v3103, %v3112
    %v3115 = vmul.f32 %v3105, %v3113
    %v3116 = vpack.c.bf16 %v3115, %v3114
    %3117 = vrot.lane.b32.xlu0 %v2724, 64
    %v3118 = vpop.permute.xlu0 %3117
    %v3121 = vsel %vm1314, %v3116, 0
    %3123 = vmatprep.subr.bf16.mxu0 0
    %3124 = vmatpush1.bf16.msra.mxu0 %v3118
    %3125 = vmatprep.subr.bf16.mxu0 0
    %3126 = vmatpush1.bf16.msra.mxu0 0
    %3127 = vmatprep.subr.bf16.mxu0 0
    %3128 = vmatpush1.bf16.msra.mxu0 0
    %3129 = vmatprep.subr.bf16.mxu0 0
    %3130 = vmatpush1.bf16.msra.mxu0 0
    %3131 = vmatprep.subr.bf16.mxu0 0
    %3132 = vmatpush1.bf16.msra.mxu0 0
    %3133 = vmatprep.subr.bf16.mxu0 0
    %3134 = vmatpush1.bf16.msra.mxu0 0
    %3135 = vmatprep.subr.bf16.mxu0 0
    %3136 = vmatpush1.bf16.msra.mxu0 0
    %3137 = vmatprep.subr.bf16.mxu0 0
    %3138 = vmatpush1.bf16.msra.mxu0 0
    %3139 = vmatprep.subr.bf16.mxu0 0
    %3140 = vmatpush1.bf16.msra.mxu0 0
    %3141 = vmatprep.subr.bf16.mxu0 0
    %3142 = vmatpush1.bf16.msra.mxu0 0
    %3143 = vmatprep.subr.bf16.mxu0 0
    %3144 = vmatpush1.bf16.msra.mxu0 0
    %3145 = vmatprep.subr.bf16.mxu0 0
    %3146 = vmatpush1.bf16.msra.mxu0 0
    %3147 = vmatprep.subr.bf16.mxu0 0
    %3148 = vmatpush1.bf16.msra.mxu0 0
    %3149 = vmatprep.subr.bf16.mxu0 0
    %3150 = vmatpush1.bf16.msra.mxu0 0
    %3151 = vmatprep.subr.bf16.mxu0 0
    %3152 = vmatpush1.bf16.msra.mxu0 0
    %3153 = vmatprep.subr.bf16.mxu0 0
    %3154 = vmatpush1.bf16.msra.mxu0 0
    %3155 = vmatprep.mubr.bf16.mxu0 0
    %3156 = vmatmul.mubr.bf16.gmra.mrb[0].mxu0 %v3121
    %v3157 = vpop.f32.mrb[0].mxu0
    %v3158 = vadd.f32 0.0, %v3157
    %v3159 = vpop.f32.mrb[0].mxu0
    %v3160 = vpop.f32.mrb[0].mxu0
    %v3161 = vadd.f32 0.0, %v3160
    %v3162 = vpop.f32.mrb[0].mxu0
    %3163 = vdwg.mxu0
    %3166 = vrot.lane.b32.xlu0 %v3158, 64
    %v3167 = vpop.permute.xlu0 %3166
    %3168 = vrot.lane.b32.xlu0 %v3161, 64
    %v3169 = vpop.permute.xlu0 %3168
    %3172 = vst.msk [vmem:[#allocation2] sm:$0xff] %vm1719, %v3167
    %3173 = vst.msk [vmem:[#allocation2 + $0x8] sm:$0xff] %vm1719, %v3169
    %3174 = vrot.lane.b32.xlu0 %v2640, 32
    %v3175 = vpop.permute.xlu0 %3174
    %3176 = vrot.lane.b32.xlu0 %v2644, 32
    %v3177 = vpop.permute.xlu0 %3176
    %3180 = vxpose.xlu0.b32.start [1/16] %v3175, 128
    %3181 = vxpose.xlu0.b32.cont [2/16] %v3177, 128
    %3182 = vxpose.xlu0.b32.cont [3/16] 0.0, 128
    %3183 = vxpose.xlu0.b32.cont [4/16] 0.0, 128
    %3184 = vxpose.xlu0.b32.cont [5/16] 0.0, 128
    %3185 = vxpose.xlu0.b32.cont [6/16] 0.0, 128
    %3186 = vxpose.xlu0.b32.cont [7/16] 0.0, 128
    %3187 = vxpose.xlu0.b32.cont [8/16] 0.0, 128
    %3188 = vxpose.xlu0.b32.cont [9/16] 0.0, 128
    %3189 = vxpose.xlu0.b32.cont [10/16] 0.0, 128
    %3190 = vxpose.xlu0.b32.cont [11/16] 0.0, 128
    %3191 = vxpose.xlu0.b32.cont [12/16] 0.0, 128
    %3192 = vxpose.xlu0.b32.cont [13/16] 0.0, 128
    %3193 = vxpose.xlu0.b32.cont [14/16] 0.0, 128
    %3194 = vxpose.xlu0.b32.cont [15/16] 0.0, 128
    %3195 = vxpose.xlu0.b32.end [16/16] 0.0, 128
    %v3196 = vpop.trf.xlu0
    %v3197 = vpop.trf.xlu0
    %v3198 = vpop.trf.xlu0
    %v3199 = vpop.trf.xlu0
    %v3200 = vpop.trf.xlu0
    %v3201 = vpop.trf.xlu0
    %v3202 = vpop.trf.xlu0
    %v3203 = vpop.trf.xlu0
    %v3204 = vpop.trf.xlu0
    %v3205 = vpop.trf.xlu0
    %v3206 = vpop.trf.xlu0
    %v3207 = vpop.trf.xlu0
    %v3208 = vpop.trf.xlu0
    %v3209 = vpop.trf.xlu0
    %v3210 = vpop.trf.xlu0
    %v3211 = vpop.trf.xlu0
    %v3212 = vpack.c.bf16 %v3197, %v3196
    %v3213 = vpack.c.bf16 %v3199, %v3198
    %3214 = vrot.lane.b32.xlu0 %v2689, 32
    %v3215 = vpop.permute.xlu0 %3214
    %v3217 = vsel %vm1269, %v3215, 0
    %3219 = vmatprep.subr.bf16.mxu0 0
    %3220 = vmatpush1.bf16.msra.mxu0 %v3212
    %3221 = vmatprep.subr.bf16.mxu0 0
    %3222 = vmatpush1.bf16.msra.mxu0 %v3213
    %3223 = vmatprep.subr.bf16.mxu0 0
    %3224 = vmatpush1.bf16.msra.mxu0 0
    %3225 = vmatprep.subr.bf16.mxu0 0
    %3226 = vmatpush1.bf16.msra.mxu0 0
    %3227 = vmatprep.subr.bf16.mxu0 0
    %3228 = vmatpush1.bf16.msra.mxu0 0
    %3229 = vmatprep.subr.bf16.mxu0 0
    %3230 = vmatpush1.bf16.msra.mxu0 0
    %3231 = vmatprep.subr.bf16.mxu0 0
    %3232 = vmatpush1.bf16.msra.mxu0 0
    %3233 = vmatprep.subr.bf16.mxu0 0
    %3234 = vmatpush1.bf16.msra.mxu0 0
    %3235 = vmatprep.subr.bf16.mxu0 0
    %3236 = vmatpush1.bf16.msra.mxu0 0
    %3237 = vmatprep.subr.bf16.mxu0 0
    %3238 = vmatpush1.bf16.msra.mxu0 0
    %3239 = vmatprep.subr.bf16.mxu0 0
    %3240 = vmatpush1.bf16.msra.mxu0 0
    %3241 = vmatprep.subr.bf16.mxu0 0
    %3242 = vmatpush1.bf16.msra.mxu0 0
    %3243 = vmatprep.subr.bf16.mxu0 0
    %3244 = vmatpush1.bf16.msra.mxu0 0
    %3245 = vmatprep.subr.bf16.mxu0 0
    %3246 = vmatpush1.bf16.msra.mxu0 0
    %3247 = vmatprep.subr.bf16.mxu0 0
    %3248 = vmatpush1.bf16.msra.mxu0 0
    %3249 = vmatprep.subr.bf16.mxu0 0
    %3250 = vmatpush1.bf16.msra.mxu0 0
    %3251 = vmatprep.mubr.bf16.mxu0 0
    %3252 = vmatmul.mubr.bf16.gmra.mrb[0].mxu0 %v3217
    %v3253 = vpop.f32.mrb[0].mxu0
    %v3254 = vadd.f32 %v967, %v3253
    %v3255 = vpop.f32.mrb[0].mxu0
    %v3256 = vpop.f32.mrb[0].mxu0
    %v3257 = vadd.f32 %v968, %v3256
    %v3258 = vpop.f32.mrb[0].mxu0
    %3259 = vdwg.mxu0
    %v3260 = vsel %vm1314, %v3254, -inf
    %3261 = vmax.xlane.f32.xlu0 %v3260
    %v3262 = vpop.xlane.xlu0 %3261
    %v3263 = vsel %vm1314, %v3257, -inf
    %3264 = vmax.xlane.f32.xlu0 %v3263
    %v3265 = vpop.xlane.xlu0 %3264
    %v3266 = vsub.f32 %v3254, %v3262
    %v3267 = vsub.f32 %v3257, %v3265
    %v3268 = vmul.f32 %v3266, 1.442695
    %v3269 = vpow.pop %v3268
    %v3270 = vmul.f32 %v3267, 1.442695
    %v3271 = vpow.pop %v3270
    %v3272 = vsel %vm1314, %v3269, 0.0
    %3273 = vadd.xlane.f32.xlu0 %v3272
    %v3274 = vpop.xlane.xlu0 %3273
    %v3275 = vsel %vm1314, %v3271, 0.0
    %3276 = vadd.xlane.f32.xlu0 %v3275
    %v3277 = vpop.xlane.xlu0 %3276
    %v3278 = vrcp.pop %v3274
    %v3279 = vrcp.pop %v3277
    %v3280 = vmul.f32 %v3269, %v3278
    %v3281 = vmul.f32 %v3271, %v3279
    %v3282 = vpack.c.bf16 %v3281, %v3280
    %3283 = vrot.lane.b32.xlu0 %v2724, 32
    %v3284 = vpop.permute.xlu0 %3283
    %v3287 = vsel %vm1314, %v3282, 0
    %3289 = vmatprep.subr.bf16.mxu0 0
    %3290 = vmatpush1.bf16.msra.mxu0 %v3284
    %3291 = vmatprep.subr.bf16.mxu0 0
    %3292 = vmatpush1.bf16.msra.mxu0 0
    %3293 = vmatprep.subr.bf16.mxu0 0
    %3294 = vmatpush1.bf16.msra.mxu0 0
    %3295 = vmatprep.subr.bf16.mxu0 0
    %3296 = vmatpush1.bf16.msra.mxu0 0
    %3297 = vmatprep.subr.bf16.mxu0 0
    %3298 = vmatpush1.bf16.msra.mxu0 0
    %3299 = vmatprep.subr.bf16.mxu0 0
    %3300 = vmatpush1.bf16.msra.mxu0 0
    %3301 = vmatprep.subr.bf16.mxu0 0
    %3302 = vmatpush1.bf16.msra.mxu0 0
    %3303 = vmatprep.subr.bf16.mxu0 0
    %3304 = vmatpush1.bf16.msra.mxu0 0
    %3305 = vmatprep.subr.bf16.mxu0 0
    %3306 = vmatpush1.bf16.msra.mxu0 0
    %3307 = vmatprep.subr.bf16.mxu0 0
    %3308 = vmatpush1.bf16.msra.mxu0 0
    %3309 = vmatprep.subr.bf16.mxu0 0
    %3310 = vmatpush1.bf16.msra.mxu0 0
    %3311 = vmatprep.subr.bf16.mxu0 0
    %3312 = vmatpush1.bf16.msra.mxu0 0
    %3313 = vmatprep.subr.bf16.mxu0 0
    %3314 = vmatpush1.bf16.msra.mxu0 0
    %3315 = vmatprep.subr.bf16.mxu0 0
    %3316 = vmatpush1.bf16.msra.mxu0 0
    %3317 = vmatprep.subr.bf16.mxu0 0
    %3318 = vmatpush1.bf16.msra.mxu0 0
    %3319 = vmatprep.subr.bf16.mxu0 0
    %3320 = vmatpush1.bf16.msra.mxu0 0
    %3321 = vmatprep.mubr.bf16.mxu0 0
    %3322 = vmatmul.mubr.bf16.gmra.mrb[0].mxu0 %v3287
    %v3323 = vpop.f32.mrb[0].mxu0
    %v3324 = vadd.f32 0.0, %v3323
    %v3325 = vpop.f32.mrb[0].mxu0
    %v3326 = vpop.f32.mrb[0].mxu0
    %v3327 = vadd.f32 0.0, %v3326
    %v3328 = vpop.f32.mrb[0].mxu0
    %3329 = vdwg.mxu0
    %3332 = vrot.lane.b32.xlu0 %v3324, 96
    %v3333 = vpop.permute.xlu0 %3332
    %3334 = vrot.lane.b32.xlu0 %v3327, 96
    %v3335 = vpop.permute.xlu0 %3334
    %3338 = vst.msk [vmem:[#allocation2] sm:$0xff] %vm1886, %v3333
    %3339 = vst.msk [vmem:[#allocation2 + $0x8] sm:$0xff] %vm1886, %v3335
    %v3340 = vld [vmem:[#allocation2] sm:$0xff]
    %v3341 = vld [vmem:[#allocation2 + $0x8] sm:$0xff]
    %v3342 = vpack.c.bf16 %v3341, %v3340
    %s3343 = scalar_lea.vmem [#allocation8], 64
    %v3344 = vld [vmem:[%s3343] sm:$0xf]
    %v3345 = vld [vmem:[%s3343 + $0x4] sm:$0xf]
    %v3346 = vld [vmem:[%s3343 + $0x8] sm:$0xf]
    %v3347 = vld [vmem:[%s3343 + $0xc] sm:$0xf]
    %v3348 = vld [vmem:[%s3343 + $0x10] sm:$0xf]
    %v3349 = vld [vmem:[%s3343 + $0x14] sm:$0xf]
    %v3350 = vld [vmem:[%s3343 + $0x18] sm:$0xf]
    %v3351 = vld [vmem:[%s3343 + $0x1c] sm:$0xf]
    %v3352 = vld [vmem:[%s3343 + $0x20] sm:$0xf]
    %v3353 = vld [vmem:[%s3343 + $0x24] sm:$0xf]
    %v3354 = vld [vmem:[%s3343 + $0x28] sm:$0xf]
    %v3355 = vld [vmem:[%s3343 + $0x2c] sm:$0xf]
    %v3356 = vld [vmem:[%s3343 + $0x30] sm:$0xf]
    %v3357 = vld [vmem:[%s3343 + $0x34] sm:$0xf]
    %v3358 = vld [vmem:[%s3343 + $0x38] sm:$0xf]
    %v3359 = vld [vmem:[%s3343 + $0x3c] sm:$0xf]
    %s3360 = scalar_lea.vmem %s8, 1
    %v3361 = vld [vmem:[%s3360] sm:$0x1]
    %v3363 = vlaneseq
    %v3364 = vshrl.u32 %v3363, 7
    %v3365 = vsub.s32 0, %v3364
    %v3366 = vrot.slane %v3361, %v3365
    %v3384 = vunpack.c.l.b16 %v3344
    %v3385 = vunpack.c.l.b16 %v3345
    %v3386 = vunpack.c.l.b16 %v3346
    %v3387 = vunpack.c.l.b16 %v3347
    %v3388 = vunpack.c.l.b16 %v3348
    %v3389 = vunpack.c.l.b16 %v3349
    %v3390 = vunpack.c.l.b16 %v3350
    %v3391 = vunpack.c.l.b16 %v3351
    %v3392 = vunpack.c.l.b16 %v3352
    %v3393 = vunpack.c.l.b16 %v3353
    %v3394 = vunpack.c.l.b16 %v3354
    %v3395 = vunpack.c.l.b16 %v3355
    %v3396 = vunpack.c.l.b16 %v3356
    %v3397 = vunpack.c.l.b16 %v3357
    %v3398 = vunpack.c.l.b16 %v3358
    %v3399 = vunpack.c.l.b16 %v3359
    %v3400 = vpack.c.b16 %v3385, %v3384
    %v3401 = vpack.c.b16 %v3387, %v3386
    %v3402 = vpack.c.b16 %v3389, %v3388
    %v3403 = vpack.c.b16 %v3391, %v3390
    %v3404 = vpack.c.b16 %v3393, %v3392
    %v3405 = vpack.c.b16 %v3395, %v3394
    %v3406 = vpack.c.b16 %v3397, %v3396
    %v3407 = vpack.c.b16 %v3399, %v3398
    %3416 = vmatprep.subr.bf16.mxu0 0
    %3417 = vmatpush1.bf16.msra.mxu0 %v3400
    %3418 = vmatprep.subr.bf16.mxu0 0
    %3419 = vmatpush1.bf16.msra.mxu0 %v3401
    %3420 = vmatprep.subr.bf16.mxu0 0
    %3421 = vmatpush1.bf16.msra.mxu0 %v3402
    %3422 = vmatprep.subr.bf16.mxu0 0
    %3423 = vmatpush1.bf16.msra.mxu0 %v3403
    %3424 = vmatprep.subr.bf16.mxu0 0
    %3425 = vmatpush1.bf16.msra.mxu0 %v3404
    %3426 = vmatprep.subr.bf16.mxu0 0
    %3427 = vmatpush1.bf16.msra.mxu0 %v3405
    %3428 = vmatprep.subr.bf16.mxu0 0
    %3429 = vmatpush1.bf16.msra.mxu0 %v3406
    %3430 = vmatprep.subr.bf16.mxu0 0
    %3431 = vmatpush1.bf16.msra.mxu0 %v3407
    %3432 = vmatprep.subr.bf16.mxu0 0
    %3433 = vmatpush1.bf16.msra.mxu0 0
    %3434 = vmatprep.subr.bf16.mxu0 0
    %3435 = vmatpush1.bf16.msra.mxu0 0
    %3436 = vmatprep.subr.bf16.mxu0 0
    %3437 = vmatpush1.bf16.msra.mxu0 0
    %3438 = vmatprep.subr.bf16.mxu0 0
    %3439 = vmatpush1.bf16.msra.mxu0 0
    %3440 = vmatprep.subr.bf16.mxu0 0
    %3441 = vmatpush1.bf16.msra.mxu0 0
    %3442 = vmatprep.subr.bf16.mxu0 0
    %3443 = vmatpush1.bf16.msra.mxu0 0
    %3444 = vmatprep.subr.bf16.mxu0 0
    %3445 = vmatpush1.bf16.msra.mxu0 0
    %3446 = vmatprep.subr.bf16.mxu0 0
    %3447 = vmatpush1.bf16.msra.mxu0 0
    %3448 = vmatprep.mubr.bf16.mxu0 0
    %3449 = vmatmul.mubr.bf16.gmra.mrb[0].mxu0 %v3342
    %v3450 = vpop.f32.mrb[0].mxu0
    %v3451 = vadd.f32 %v3366, %v3450
    %v3452 = vpop.f32.mrb[0].mxu0
    %v3453 = vpop.f32.mrb[0].mxu0
    %v3454 = vadd.f32 %v3366, %v3453
    %v3455 = vpop.f32.mrb[0].mxu0
    %3456 = vdwg.mxu0
    %v3457 = vadd.f32 %v2421, %v3451
    %v3458 = vadd.f32 %v2422, %v3454
    %3459 = vadd.xlane.f32.xlu0 %v3457
    %v3460 = vpop.xlane.xlu0 %3459
    %3461 = vadd.xlane.f32.xlu0 %v3458
    %v3462 = vpop.xlane.xlu0 %3461
    %v3463 = vmul.f32 %v3460, %v2010
    %v3464 = vmul.f32 %v3462, %v2010
    %v3465 = vsub.f32 %v3457, %v3463
    %v3466 = vsub.f32 %v3458, %v3464
    %v3467 = vmul.f32 %v3465, %v3465
    %v3468 = vmul.f32 %v3466, %v3466
    %3469 = vadd.xlane.f32.xlu0 %v3467
    %v3470 = vpop.xlane.xlu0 %3469
    %3471 = vadd.xlane.f32.xlu0 %v3468
    %v3472 = vpop.xlane.xlu0 %3471
    %v3473 = vmul.f32 %v3470, %v2010
    %v3474 = vmul.f32 %v3472, %v2010
    %v3475 = vadd.f32 %v3473, 1e-05
    %v3476 = vadd.f32 %v3474, 1e-05
    %v3477 = vrsqrt.pop %v3475
    %v3478 = vrsqrt.pop %v3476
    %v3479 = vmul.f32 %v3465, %v3477
    %v3480 = vmul.f32 %v3466, %v3478
    %s3481 = scalar_lea.vmem [#allocation10], 1
    %v3482 = vld [vmem:[%s3481] sm:$0x1]
    %v3484 = vlaneseq
    %v3485 = vshrl.u32 %v3484, 7
    %v3486 = vsub.s32 0, %v3485
    %v3487 = vrot.slane %v3482, %v3486
    %v3489 = vmul.f32 %v3479, %v3487
    %v3490 = vmul.f32 %v3480, %v3487
    %s3491 = scalar_lea.vmem [#allocation11], 1
    %v3492 = vld [vmem:[%s3491] sm:$0x1]
    %v3494 = vlaneseq
    %v3495 = vshrl.u32 %v3494, 7
    %v3496 = vsub.s32 0, %v3495
    %v3497 = vrot.slane %v3492, %v3496
    %v3499 = vadd.f32 %v3489, %v3497
    %v3500 = vadd.f32 %v3490, %v3497
    %v3501 = vpack.c.bf16 %v3500, %v3499
    %s3502 = scalar_lea.vmem [#allocation13], 128
    %v3503 = vld [vmem:[%s3502] sm:$0xff]
    %v3504 = vld [vmem:[%s3502 + $0x8] sm:$0xff]
    %v3505 = vld [vmem:[%s3502 + $0x10] sm:$0xff]
    %v3506 = vld [vmem:[%s3502 + $0x18] sm:$0xff]
    %v3507 = vld [vmem:[%s3502 + $0x20] sm:$0xff]
    %v3508 = vld [vmem:[%s3502 + $0x28] sm:$0xff]
    %v3509 = vld [vmem:[%s3502 + $0x30] sm:$0xff]
    %v3510 = vld [vmem:[%s3502 + $0x38] sm:$0xff]
    %v3511 = vld [vmem:[%s3502 + $0x40] sm:$0xff]
    %v3512 = vld [vmem:[%s3502 + $0x48] sm:$0xff]
    %v3513 = vld [vmem:[%s3502 + $0x50] sm:$0xff]
    %v3514 = vld [vmem:[%s3502 + $0x58] sm:$0xff]
    %v3515 = vld [vmem:[%s3502 + $0x60] sm:$0xff]
    %v3516 = vld [vmem:[%s3502 + $0x68] sm:$0xff]
    %v3517 = vld [vmem:[%s3502 + $0x70] sm:$0xff]
    %v3518 = vld [vmem:[%s3502 + $0x78] sm:$0xff]
    %s3519 = scalar_lea.vmem [#allocation14], 2
    %v3520 = vld [vmem:[%s3519] sm:$0x3]
    %v3522 = vlaneseq
    %v3523 = vshrl.u32 %v3522, 7
    %v3524 = vsub.s32 0, %v3523
    %v3525 = vrot.slane %v3520, %v3524
    %v3526 = vlaneseq
    %v3527 = vshrl.u32 %v3526, 7
    %v3528 = vsub.s32 1, %v3527
    %v3529 = vrot.slane %v3520, %v3528
    %v3548 = vunpack.c.l.b16 %v3503
    %v3549 = vunpack.c.h.b16 %v3503
    %v3550 = vunpack.c.l.b16 %v3504
    %v3551 = vunpack.c.h.b16 %v3504
    %v3552 = vunpack.c.l.b16 %v3505
    %v3553 = vunpack.c.h.b16 %v3505
    %v3554 = vunpack.c.l.b16 %v3506
    %v3555 = vunpack.c.h.b16 %v3506
    %v3556 = vunpack.c.l.b16 %v3507
    %v3557 = vunpack.c.h.b16 %v3507
    %v3558 = vunpack.c.l.b16 %v3508
    %v3559 = vunpack.c.h.b16 %v3508
    %v3560 = vunpack.c.l.b16 %v3509
    %v3561 = vunpack.c.h.b16 %v3509
    %v3562 = vunpack.c.l.b16 %v3510
    %v3563 = vunpack.c.h.b16 %v3510
    %v3564 = vunpack.c.l.b16 %v3511
    %v3565 = vunpack.c.h.b16 %v3511
    %v3566 = vunpack.c.l.b16 %v3512
    %v3567 = vunpack.c.h.b16 %v3512
    %v3568 = vunpack.c.l.b16 %v3513
    %v3569 = vunpack.c.h.b16 %v3513
    %v3570 = vunpack.c.l.b16 %v3514
    %v3571 = vunpack.c.h.b16 %v3514
    %v3572 = vunpack.c.l.b16 %v3515
    %v3573 = vunpack.c.h.b16 %v3515
    %v3574 = vunpack.c.l.b16 %v3516
    %v3575 = vunpack.c.h.b16 %v3516
    %v3576 = vunpack.c.l.b16 %v3517
    %v3577 = vunpack.c.h.b16 %v3517
    %v3578 = vunpack.c.l.b16 %v3518
    %v3579 = vunpack.c.h.b16 %v3518
    %v3580 = vpack.c.b16 %v3550, %v3548
    %v3581 = vpack.c.b16 %v3551, %v3549
    %v3582 = vpack.c.b16 %v3554, %v3552
    %v3583 = vpack.c.b16 %v3555, %v3553
    %v3584 = vpack.c.b16 %v3558, %v3556
    %v3585 = vpack.c.b16 %v3559, %v3557
    %v3586 = vpack.c.b16 %v3562, %v3560
    %v3587 = vpack.c.b16 %v3563, %v3561
    %v3588 = vpack.c.b16 %v3566, %v3564
    %v3589 = vpack.c.b16 %v3567, %v3565
    %v3590 = vpack.c.b16 %v3570, %v3568
    %v3591 = vpack.c.b16 %v3571, %v3569
    %v3592 = vpack.c.b16 %v3574, %v3572
    %v3593 = vpack.c.b16 %v3575, %v3573
    %v3594 = vpack.c.b16 %v3578, %v3576
    %v3595 = vpack.c.b16 %v3579, %v3577
    %3612 = vmatprep.subr.bf16.mxu0 %v3581
    %3613 = vmatpush1.bf16.msra.mxu0 %v3580
    %3614 = vmatprep.subr.bf16.mxu0 %v3583
    %3615 = vmatpush1.bf16.msra.mxu0 %v3582
    %3616 = vmatprep.subr.bf16.mxu0 %v3585
    %3617 = vmatpush1.bf16.msra.mxu0 %v3584
    %3618 = vmatprep.subr.bf16.mxu0 %v3587
    %3619 = vmatpush1.bf16.msra.mxu0 %v3586
    %3620 = vmatprep.subr.bf16.mxu0 %v3589
    %3621 = vmatpush1.bf16.msra.mxu0 %v3588
    %3622 = vmatprep.subr.bf16.mxu0 %v3591
    %3623 = vmatpush1.bf16.msra.mxu0 %v3590
    %3624 = vmatprep.subr.bf16.mxu0 %v3593
    %3625 = vmatpush1.bf16.msra.mxu0 %v3592
    %3626 = vmatprep.subr.bf16.mxu0 %v3595
    %3627 = vmatpush1.bf16.msra.mxu0 %v3594
    %3628 = vmatprep.subr.bf16.mxu0 0
    %3629 = vmatpush1.bf16.msra.mxu0 0
    %3630 = vmatprep.subr.bf16.mxu0 0
    %3631 = vmatpush1.bf16.msra.mxu0 0
    %3632 = vmatprep.subr.bf16.mxu0 0
    %3633 = vmatpush1.bf16.msra.mxu0 0
    %3634 = vmatprep.subr.bf16.mxu0 0
    %3635 = vmatpush1.bf16.msra.mxu0 0
    %3636 = vmatprep.subr.bf16.mxu0 0
    %3637 = vmatpush1.bf16.msra.mxu0 0
    %3638 = vmatprep.subr.bf16.mxu0 0
    %3639 = vmatpush1.bf16.msra.mxu0 0
    %3640 = vmatprep.subr.bf16.mxu0 0
    %3641 = vmatpush1.bf16.msra.mxu0 0
    %3642 = vmatprep.subr.bf16.mxu0 0
    %3643 = vmatpush1.bf16.msra.mxu0 0
    %3644 = vmatprep.mubr.bf16.mxu0 0
    %3645 = vmatmul.mubr.bf16.gmra.mrb[0].mxu0 %v3501
    %v3646 = vpop.f32.mrb[0].mxu0
    %v3647 = vadd.f32 %v3525, %v3646
    %v3648 = vpop.f32.mrb[0].mxu0
    %v3649 = vadd.f32 %v3529, %v3648
    %v3650 = vpop.f32.mrb[0].mxu0
    %v3651 = vadd.f32 %v3525, %v3650
    %v3652 = vpop.f32.mrb[0].mxu0
    %v3653 = vadd.f32 %v3529, %v3652
    %3654 = vdwg.mxu0
    %v3655 = vmax.f32 %v3647, 0.0
    %v3656 = vmax.f32 %v3649, 0.0
    %v3657 = vmax.f32 %v3651, 0.0
    %v3658 = vmax.f32 %v3653, 0.0
    %v3659 = vpack.c.bf16 %v3657, %v3655
    %v3660 = vpack.c.bf16 %v3658, %v3656
    %s3661 = scalar_lea.vmem [#allocation16], 128
    %v3662 = vld [vmem:[%s3661] sm:$0xf]
    %v3663 = vld [vmem:[%s3661 + $0x4] sm:$0xf]
    %v3664 = vld [vmem:[%s3661 + $0x8] sm:$0xf]
    %v3665 = vld [vmem:[%s3661 + $0xc] sm:$0xf]
    %v3666 = vld [vmem:[%s3661 + $0x10] sm:$0xf]
    %v3667 = vld [vmem:[%s3661 + $0x14] sm:$0xf]
    %v3668 = vld [vmem:[%s3661 + $0x18] sm:$0xf]
    %v3669 = vld [vmem:[%s3661 + $0x1c] sm:$0xf]
    %v3670 = vld [vmem:[%s3661 + $0x20] sm:$0xf]
    %v3671 = vld [vmem:[%s3661 + $0x24] sm:$0xf]
    %v3672 = vld [vmem:[%s3661 + $0x28] sm:$0xf]
    %v3673 = vld [vmem:[%s3661 + $0x2c] sm:$0xf]
    %v3674 = vld [vmem:[%s3661 + $0x30] sm:$0xf]
    %v3675 = vld [vmem:[%s3661 + $0x34] sm:$0xf]
    %v3676 = vld [vmem:[%s3661 + $0x38] sm:$0xf]
    %v3677 = vld [vmem:[%s3661 + $0x3c] sm:$0xf]
    %v3678 = vld [vmem:[%s3661 + $0x40] sm:$0xf]
    %v3679 = vld [vmem:[%s3661 + $0x44] sm:$0xf]
    %v3680 = vld [vmem:[%s3661 + $0x48] sm:$0xf]
    %v3681 = vld [vmem:[%s3661 + $0x4c] sm:$0xf]
    %v3682 = vld [vmem:[%s3661 + $0x50] sm:$0xf]
    %v3683 = vld [vmem:[%s3661 + $0x54] sm:$0xf]
    %v3684 = vld [vmem:[%s3661 + $0x58] sm:$0xf]
    %v3685 = vld [vmem:[%s3661 + $0x5c] sm:$0xf]
    %v3686 = vld [vmem:[%s3661 + $0x60] sm:$0xf]
    %v3687 = vld [vmem:[%s3661 + $0x64] sm:$0xf]
    %v3688 = vld [vmem:[%s3661 + $0x68] sm:$0xf]
    %v3689 = vld [vmem:[%s3661 + $0x6c] sm:$0xf]
    %v3690 = vld [vmem:[%s3661 + $0x70] sm:$0xf]
    %v3691 = vld [vmem:[%s3661 + $0x74] sm:$0xf]
    %v3692 = vld [vmem:[%s3661 + $0x78] sm:$0xf]
    %v3693 = vld [vmem:[%s3661 + $0x7c] sm:$0xf]
    %s3694 = scalar_lea.vmem [#allocation17], 1
    %v3695 = vld [vmem:[%s3694] sm:$0x1]
    %v3697 = vlaneseq
    %v3698 = vshrl.u32 %v3697, 7
    %v3699 = vsub.s32 0, %v3698
    %v3700 = vrot.slane %v3695, %v3699
    %v3734 = vunpack.c.l.b16 %v3662
    %v3735 = vunpack.c.l.b16 %v3663
    %v3736 = vunpack.c.l.b16 %v3664
    %v3737 = vunpack.c.l.b16 %v3665
    %v3738 = vunpack.c.l.b16 %v3666
    %v3739 = vunpack.c.l.b16 %v3667
    %v3740 = vunpack.c.l.b16 %v3668
    %v3741 = vunpack.c.l.b16 %v3669
    %v3742 = vunpack.c.l.b16 %v3670
    %v3743 = vunpack.c.l.b16 %v3671
    %v3744 = vunpack.c.l.b16 %v3672
    %v3745 = vunpack.c.l.b16 %v3673
    %v3746 = vunpack.c.l.b16 %v3674
    %v3747 = vunpack.c.l.b16 %v3675
    %v3748 = vunpack.c.l.b16 %v3676
    %v3749 = vunpack.c.l.b16 %v3677
    %v3750 = vunpack.c.l.b16 %v3678
    %v3751 = vunpack.c.l.b16 %v3679
    %v3752 = vunpack.c.l.b16 %v3680
    %v3753 = vunpack.c.l.b16 %v3681
    %v3754 = vunpack.c.l.b16 %v3682
    %v3755 = vunpack.c.l.b16 %v3683
    %v3756 = vunpack.c.l.b16 %v3684
    %v3757 = vunpack.c.l.b16 %v3685
    %v3758 = vunpack.c.l.b16 %v3686
    %v3759 = vunpack.c.l.b16 %v3687
    %v3760 = vunpack.c.l.b16 %v3688
    %v3761 = vunpack.c.l.b16 %v3689
    %v3762 = vunpack.c.l.b16 %v3690
    %v3763 = vunpack.c.l.b16 %v3691
    %v3764 = vunpack.c.l.b16 %v3692
    %v3765 = vunpack.c.l.b16 %v3693
    %v3766 = vpack.c.b16 %v3735, %v3734
    %v3767 = vpack.c.b16 %v3737, %v3736
    %v3768 = vpack.c.b16 %v3739, %v3738
    %v3769 = vpack.c.b16 %v3741, %v3740
    %v3770 = vpack.c.b16 %v3743, %v3742
    %v3771 = vpack.c.b16 %v3745, %v3744
    %v3772 = vpack.c.b16 %v3747, %v3746
    %v3773 = vpack.c.b16 %v3749, %v3748
    %v3774 = vpack.c.b16 %v3751, %v3750
    %v3775 = vpack.c.b16 %v3753, %v3752
    %v3776 = vpack.c.b16 %v3755, %v3754
    %v3777 = vpack.c.b16 %v3757, %v3756
    %v3778 = vpack.c.b16 %v3759, %v3758
    %v3779 = vpack.c.b16 %v3761, %v3760
    %v3780 = vpack.c.b16 %v3763, %v3762
    %v3781 = vpack.c.b16 %v3765, %v3764
    %3798 = vmatprep.subr.bf16.mxu0 0
    %3799 = vmatpush1.bf16.msra.mxu0 %v3766
    %3800 = vmatprep.subr.bf16.mxu0 0
    %3801 = vmatpush1.bf16.msra.mxu0 %v3767
    %3802 = vmatprep.subr.bf16.mxu0 0
    %3803 = vmatpush1.bf16.msra.mxu0 %v3768
    %3804 = vmatprep.subr.bf16.mxu0 0
    %3805 = vmatpush1.bf16.msra.mxu0 %v3769
    %3806 = vmatprep.subr.bf16.mxu0 0
    %3807 = vmatpush1.bf16.msra.mxu0 %v3770
    %3808 = vmatprep.subr.bf16.mxu0 0
    %3809 = vmatpush1.bf16.msra.mxu0 %v3771
    %3810 = vmatprep.subr.bf16.mxu0 0
    %3811 = vmatpush1.bf16.msra.mxu0 %v3772
    %3812 = vmatprep.subr.bf16.mxu0 0
    %3813 = vmatpush1.bf16.msra.mxu0 %v3773
    %3814 = vmatprep.subr.bf16.mxu0 0
    %3815 = vmatpush1.bf16.msra.mxu0 %v3774
    %3816 = vmatprep.subr.bf16.mxu0 0
    %3817 = vmatpush1.bf16.msra.mxu0 %v3775
    %3818 = vmatprep.subr.bf16.mxu0 0
    %3819 = vmatpush1.bf16.msra.mxu0 %v3776
    %3820 = vmatprep.subr.bf16.mxu0 0
    %3821 = vmatpush1.bf16.msra.mxu0 %v3777
    %3822 = vmatprep.subr.bf16.mxu0 0
    %3823 = vmatpush1.bf16.msra.mxu0 %v3778
    %3824 = vmatprep.subr.bf16.mxu0 0
    %3825 = vmatpush1.bf16.msra.mxu0 %v3779
    %3826 = vmatprep.subr.bf16.mxu0 0
    %3827 = vmatpush1.bf16.msra.mxu0 %v3780
    %3828 = vmatprep.subr.bf16.mxu0 0
    %3829 = vmatpush1.bf16.msra.mxu0 %v3781
    %3830 = vmatprep.mubr.bf16.mxu0 %v3660
    %3831 = vmatmul.mubr.bf16.gmra.mrb[0].mxu0 %v3659
    %v3832 = vpop.f32.mrb[0].mxu0
    %v3833 = vadd.f32 %v3700, %v3832
    %v3834 = vpop.f32.mrb[0].mxu0
    %v3835 = vpop.f32.mrb[0].mxu0
    %v3836 = vadd.f32 %v3700, %v3835
    %v3837 = vpop.f32.mrb[0].mxu0
    %3838 = vdwg.mxu0
    %v3839 = vadd.f32 %v3499, %v3833
    %v3840 = vadd.f32 %v3500, %v3836
    %3841 = vadd.xlane.f32.xlu0 %v3839
    %v3842 = vpop.xlane.xlu0 %3841
    %3843 = vadd.xlane.f32.xlu0 %v3840
    %v3844 = vpop.xlane.xlu0 %3843
    %v3845 = vmul.f32 %v3842, %v2010
    %v3846 = vmul.f32 %v3844, %v2010
    %v3847 = vsub.f32 %v3839, %v3845
    %v3848 = vsub.f32 %v3840, %v3846
    %v3849 = vmul.f32 %v3847, %v3847
    %v3850 = vmul.f32 %v3848, %v3848
    %3851 = vadd.xlane.f32.xlu0 %v3849
    %v3852 = vpop.xlane.xlu0 %3851
    %3853 = vadd.xlane.f32.xlu0 %v3850
    %v3854 = vpop.xlane.xlu0 %3853
    %v3855 = vmul.f32 %v3852, %v2010
    %v3856 = vmul.f32 %v3854, %v2010
    %v3857 = vadd.f32 %v3855, 1e-05
    %v3858 = vadd.f32 %v3856, 1e-05
    %v3859 = vrsqrt.pop %v3857
    %v3860 = vrsqrt.pop %v3858
    %v3861 = vmul.f32 %v3847, %v3859
    %v3862 = vmul.f32 %v3848, %v3860
    %s3863 = scalar_lea.vmem [#allocation19], 1
    %v3864 = vld [vmem:[%s3863] sm:$0x1]
    %v3866 = vlaneseq
    %v3867 = vshrl.u32 %v3866, 7
    %v3868 = vsub.s32 0, %v3867
    %v3869 = vrot.slane %v3864, %v3868
    %v3871 = vmul.f32 %v3861, %v3869
    %v3872 = vmul.f32 %v3862, %v3869
    %s3873 = scalar_lea.vmem [#allocation20], 1
    %v3874 = vld [vmem:[%s3873] sm:$0x1]
    %v3876 = vlaneseq
    %v3877 = vshrl.u32 %v3876, 7
    %v3878 = vsub.s32 0, %v3877
    %v3879 = vrot.slane %v3874, %v3878
    %v3881 = vadd.f32 %v3871, %v3879
    %v3882 = vadd.f32 %v3872, %v3879
    %v3883 = vpack.c.bf16 %v3882, %v3881
    %s3884 = scalar_lea.vmem %s5, 384
    %v3885 = vld [vmem:[%s3884] sm:$0xff]
    %v3886 = vld [vmem:[%s3884 + $0x8] sm:$0xf]
    %v3887 = vld [vmem:[%s3884 + $0xc] sm:$0xff]
    %v3888 = vld [vmem:[%s3884 + $0x14] sm:$0xf]
    %v3889 = vld [vmem:[%s3884 + $0x18] sm:$0xff]
    %v3890 = vld [vmem:[%s3884 + $0x20] sm:$0xf]
    %v3891 = vld [vmem:[%s3884 + $0x24] sm:$0xff]
    %v3892 = vld [vmem:[%s3884 + $0x2c] sm:$0xf]
    %v3893 = vld [vmem:[%s3884 + $0x30] sm:$0xff]
    %v3894 = vld [vmem:[%s3884 + $0x38] sm:$0xf]
    %v3895 = vld [vmem:[%s3884 + $0x3c] sm:$0xff]
    %v3896 = vld [vmem:[%s3884 + $0x44] sm:$0xf]
    %v3897 = vld [vmem:[%s3884 + $0x48] sm:$0xff]
    %v3898 = vld [vmem:[%s3884 + $0x50] sm:$0xf]
    %v3899 = vld [vmem:[%s3884 + $0x54] sm:$0xff]
    %v3900 = vld [vmem:[%s3884 + $0x5c] sm:$0xf]
    %v3901 = vld [vmem:[%s3884 + $0x60] sm:$0xff]
    %v3902 = vld [vmem:[%s3884 + $0x68] sm:$0xf]
    %v3903 = vld [vmem:[%s3884 + $0x6c] sm:$0xff]
    %v3904 = vld [vmem:[%s3884 + $0x74] sm:$0xf]
    %v3905 = vld [vmem:[%s3884 + $0x78] sm:$0xff]
    %v3906 = vld [vmem:[%s3884 + $0x80] sm:$0xf]
    %v3907 = vld [vmem:[%s3884 + $0x84] sm:$0xff]
    %v3908 = vld [vmem:[%s3884 + $0x8c] sm:$0xf]
    %v3909 = vld [vmem:[%s3884 + $0x90] sm:$0xff]
    %v3910 = vld [vmem:[%s3884 + $0x98] sm:$0xf]
    %v3911 = vld [vmem:[%s3884 + $0x9c] sm:$0xff]
    %v3912 = vld [vmem:[%s3884 + $0xa4] sm:$0xf]
    %v3913 = vld [vmem:[%s3884 + $0xa8] sm:$0xff]
    %v3914 = vld [vmem:[%s3884 + $0xb0] sm:$0xf]
    %v3915 = vld [vmem:[%s3884 + $0xb4] sm:$0xff]
    %v3916 = vld [vmem:[%s3884 + $0xbc] sm:$0xf]
    %s3917 = scalar_lea.vmem [#allocation7], 6
    %v3918 = vld [vmem:[%s3917] sm:$0x7]
    %v3920 = vlaneseq
    %v3921 = vshrl.u32 %v3920, 7
    %v3922 = vsub.s32 0, %v3921
    %v3923 = vrot.slane %v3918, %v3922
    %v3924 = vlaneseq
    %v3925 = vshrl.u32 %v3924, 7
    %v3926 = vsub.s32 1, %v3925
    %v3927 = vrot.slane %v3918, %v3926
    %v3928 = vlaneseq
    %v3929 = vshrl.u32 %v3928, 7
    %v3930 = vsub.s32 2, %v3929
    %v3931 = vrot.slane %v3918, %v3930
    %v3967 = vunpack.c.l.b16 %v3885
    %v3968 = vunpack.c.h.b16 %v3885
    %v3969 = vunpack.c.l.b16 %v3886
    %v3970 = vunpack.c.l.b16 %v3887
    %v3971 = vunpack.c.h.b16 %v3887
    %v3972 = vunpack.c.l.b16 %v3888
    %v3973 = vunpack.c.l.b16 %v3889
    %v3974 = vunpack.c.h.b16 %v3889
    %v3975 = vunpack.c.l.b16 %v3890
    %v3976 = vunpack.c.l.b16 %v3891
    %v3977 = vunpack.c.h.b16 %v3891
    %v3978 = vunpack.c.l.b16 %v3892
    %v3979 = vunpack.c.l.b16 %v3893
    %v3980 = vunpack.c.h.b16 %v3893
    %v3981 = vunpack.c.l.b16 %v3894
    %v3982 = vunpack.c.l.b16 %v3895
    %v3983 = vunpack.c.h.b16 %v3895
    %v3984 = vunpack.c.l.b16 %v3896
    %v3985 = vunpack.c.l.b16 %v3897
    %v3986 = vunpack.c.h.b16 %v3897
    %v3987 = vunpack.c.l.b16 %v3898
    %v3988 = vunpack.c.l.b16 %v3899
    %v3989 = vunpack.c.h.b16 %v3899
    %v3990 = vunpack.c.l.b16 %v3900
    %v3991 = vunpack.c.l.b16 %v3901
    %v3992 = vunpack.c.h.b16 %v3901
    %v3993 = vunpack.c.l.b16 %v3902
    %v3994 = vunpack.c.l.b16 %v3903
    %v3995 = vunpack.c.h.b16 %v3903
    %v3996 = vunpack.c.l.b16 %v3904
    %v3997 = vunpack.c.l.b16 %v3905
    %v3998 = vunpack.c.h.b16 %v3905
    %v3999 = vunpack.c.l.b16 %v3906
    %v4000 = vunpack.c.l.b16 %v3907
    %v4001 = vunpack.c.h.b16 %v3907
    %v4002 = vunpack.c.l.b16 %v3908
    %v4003 = vunpack.c.l.b16 %v3909
    %v4004 = vunpack.c.h.b16 %v3909
    %v4005 = vunpack.c.l.b16 %v3910
    %v4006 = vunpack.c.l.b16 %v3911
    %v4007 = vunpack.c.h.b16 %v3911
    %v4008 = vunpack.c.l.b16 %v3912
    %v4009 = vunpack.c.l.b16 %v3913
    %v4010 = vunpack.c.h.b16 %v3913
    %v4011 = vunpack.c.l.b16 %v3914
    %v4012 = vunpack.c.l.b16 %v3915
    %v4013 = vunpack.c.h.b16 %v3915
    %v4014 = vunpack.c.l.b16 %v3916
    %v4015 = vpack.c.b16 %v3970, %v3967
    %v4016 = vpack.c.b16 %v3971, %v3968
    %v4017 = vpack.c.b16 %v3972, %v3969
    %v4018 = vpack.c.b16 %v3976, %v3973
    %v4019 = vpack.c.b16 %v3977, %v3974
    %v4020 = vpack.c.b16 %v3978, %v3975
    %v4021 = vpack.c.b16 %v3982, %v3979
    %v4022 = vpack.c.b16 %v3983, %v3980
    %v4023 = vpack.c.b16 %v3984, %v3981
    %v4024 = vpack.c.b16 %v3988, %v3985
    %v4025 = vpack.c.b16 %v3989, %v3986
    %v4026 = vpack.c.b16 %v3990, %v3987
    %v4027 = vpack.c.b16 %v3994, %v3991
    %v4028 = vpack.c.b16 %v3995, %v3992
    %v4029 = vpack.c.b16 %v3996, %v3993
    %v4030 = vpack.c.b16 %v4000, %v3997
    %v4031 = vpack.c.b16 %v4001, %v3998
    %v4032 = vpack.c.b16 %v4002, %v3999
    %v4033 = vpack.c.b16 %v4006, %v4003
    %v4034 = vpack.c.b16 %v4007, %v4004
    %v4035 = vpack.c.b16 %v4008, %v4005
    %v4036 = vpack.c.b16 %v4012, %v4009
    %v4037 = vpack.c.b16 %v4013, %v4010
    %v4038 = vpack.c.b16 %v4014, %v4011
    %4063 = vmatprep.subr.bf16.mxu0 %v4016
    %4064 = vmatpush1.bf16.msra.mxu0 %v4015
    %4065 = vmatprep.subr.bf16.mxu0 %v4019
    %4066 = vmatpush1.bf16.msra.mxu0 %v4018
    %4067 = vmatprep.subr.bf16.mxu0 %v4022
    %4068 = vmatpush1.bf16.msra.mxu0 %v4021
    %4069 = vmatprep.subr.bf16.mxu0 %v4025
    %4070 = vmatpush1.bf16.msra.mxu0 %v4024
    %4071 = vmatprep.subr.bf16.mxu0 %v4028
    %4072 = vmatpush1.bf16.msra.mxu0 %v4027
    %4073 = vmatprep.subr.bf16.mxu0 %v4031
    %4074 = vmatpush1.bf16.msra.mxu0 %v4030
    %4075 = vmatprep.subr.bf16.mxu0 %v4034
    %4076 = vmatpush1.bf16.msra.mxu0 %v4033
    %4077 = vmatprep.subr.bf16.mxu0 %v4037
    %4078 = vmatpush1.bf16.msra.mxu0 %v4036
    %4079 = vmatprep.subr.bf16.mxu0 0
    %4080 = vmatpush1.bf16.msra.mxu0 0
    %4081 = vmatprep.subr.bf16.mxu0 0
    %4082 = vmatpush1.bf16.msra.mxu0 0
    %4083 = vmatprep.subr.bf16.mxu0 0
    %4084 = vmatpush1.bf16.msra.mxu0 0
    %4085 = vmatprep.subr.bf16.mxu0 0
    %4086 = vmatpush1.bf16.msra.mxu0 0
    %4087 = vmatprep.subr.bf16.mxu0 0
    %4088 = vmatpush1.bf16.msra.mxu0 0
    %4089 = vmatprep.subr.bf16.mxu0 0
    %4090 = vmatpush1.bf16.msra.mxu0 0
    %4091 = vmatprep.subr.bf16.mxu0 0
    %4092 = vmatpush1.bf16.msra.mxu0 0
    %4093 = vmatprep.subr.bf16.mxu0 0
    %4094 = vmatpush1.bf16.msra.mxu0 0
    %4095 = vmatprep.mubr.bf16.mxu0 0
    %4096 = vmatmul.mubr.bf16.gmra.mrb[0].mxu0 %v3883
    %v4097 = vpop.f32.mrb[0].mxu0
    %v4098 = vadd.f32 %v3923, %v4097
    %v4099 = vpop.f32.mrb[0].mxu0
    %v4100 = vadd.f32 %v3927, %v4099
    %v4101 = vpop.f32.mrb[0].mxu0
    %v4102 = vadd.f32 %v3923, %v4101
    %v4103 = vpop.f32.mrb[0].mxu0
    %v4104 = vadd.f32 %v3927, %v4103
    %4105 = vdwg.mxu0
    %4106 = vmatprep.subr.bf16.mxu0 0
    %4107 = vmatpush1.bf16.msra.mxu0 %v4017
    %4108 = vmatprep.subr.bf16.mxu0 0
    %4109 = vmatpush1.bf16.msra.mxu0 %v4020
    %4110 = vmatprep.subr.bf16.mxu0 0
    %4111 = vmatpush1.bf16.msra.mxu0 %v4023
    %4112 = vmatprep.subr.bf16.mxu0 0
    %4113 = vmatpush1.bf16.msra.mxu0 %v4026
    %4114 = vmatprep.subr.bf16.mxu0 0
    %4115 = vmatpush1.bf16.msra.mxu0 %v4029
    %4116 = vmatprep.subr.bf16.mxu0 0
    %4117 = vmatpush1.bf16.msra.mxu0 %v4032
    %4118 = vmatprep.subr.bf16.mxu0 0
    %4119 = vmatpush1.bf16.msra.mxu0 %v4035
    %4120 = vmatprep.subr.bf16.mxu0 0
    %4121 = vmatpush1.bf16.msra.mxu0 %v4038
    %4122 = vmatprep.subr.bf16.mxu0 0
    %4123 = vmatpush1.bf16.msra.mxu0 0
    %4124 = vmatprep.subr.bf16.mxu0 0
    %4125 = vmatpush1.bf16.msra.mxu0 0
    %4126 = vmatprep.subr.bf16.mxu0 0
    %4127 = vmatpush1.bf16.msra.mxu0 0
    %4128 = vmatprep.subr.bf16.mxu0 0
    %4129 = vmatpush1.bf16.msra.mxu0 0
    %4130 = vmatprep.subr.bf16.mxu0 0
    %4131 = vmatpush1.bf16.msra.mxu0 0
    %4132 = vmatprep.subr.bf16.mxu0 0
    %4133 = vmatpush1.bf16.msra.mxu0 0
    %4134 = vmatprep.subr.bf16.mxu0 0
    %4135 = vmatpush1.bf16.msra.mxu0 0
    %4136 = vmatprep.subr.bf16.mxu0 0
    %4137 = vmatpush1.bf16.msra.mxu0 0
    %4138 = vmatprep.mubr.bf16.mxu0 0
    %4139 = vmatmul.mubr.bf16.gmra.mrb[0].mxu0 %v3883
    %v4140 = vpop.f32.mrb[0].mxu0
    %v4141 = vadd.f32 %v3931, %v4140
    %v4142 = vpop.f32.mrb[0].mxu0
    %v4143 = vpop.f32.mrb[0].mxu0
    %v4144 = vadd.f32 %v3931, %v4143
    %v4145 = vpop.f32.mrb[0].mxu0
    %4146 = vdwg.mxu0
    %v4147 = vmul.f32 %v4098, 0.17677669
    %v4148 = vmul.f32 %v4102, 0.17677669
    %v4149 = vpack.c.bf16 %v4148, %v4147
    %4150 = vxpose.xlu0.b32.start [1/16] %v4100, 128
    %4151 = vxpose.xlu0.b32.cont [2/16] %v4104, 128
    %4152 = vxpose.xlu0.b32.cont [3/16] 0.0, 128
    %4153 = vxpose.xlu0.b32.cont [4/16] 0.0, 128
    %4154 = vxpose.xlu0.b32.cont [5/16] 0.0, 128
    %4155 = vxpose.xlu0.b32.cont [6/16] 0.0, 128
    %4156 = vxpose.xlu0.b32.cont [7/16] 0.0, 128
    %4157 = vxpose.xlu0.b32.cont [8/16] 0.0, 128
    %4158 = vxpose.xlu0.b32.cont [9/16] 0.0, 128
    %4159 = vxpose.xlu0.b32.cont [10/16] 0.0, 128
    %4160 = vxpose.xlu0.b32.cont [11/16] 0.0, 128
    %4161 = vxpose.xlu0.b32.cont [12/16] 0.0, 128
    %4162 = vxpose.xlu0.b32.cont [13/16] 0.0, 128
    %4163 = vxpose.xlu0.b32.cont [14/16] 0.0, 128
    %4164 = vxpose.xlu0.b32.cont [15/16] 0.0, 128
    %4165 = vxpose.xlu0.b32.end [16/16] 0.0, 128
    %v4166 = vpop.trf.xlu0
    %v4167 = vpop.trf.xlu0
    %v4168 = vpop.trf.xlu0
    %v4169 = vpop.trf.xlu0
    %v4170 = vpop.trf.xlu0
    %v4171 = vpop.trf.xlu0
    %v4172 = vpop.trf.xlu0
    %v4173 = vpop.trf.xlu0
    %v4174 = vpop.trf.xlu0
    %v4175 = vpop.trf.xlu0
    %v4176 = vpop.trf.xlu0
    %v4177 = vpop.trf.xlu0
    %v4178 = vpop.trf.xlu0
    %v4179 = vpop.trf.xlu0
    %v4180 = vpop.trf.xlu0
    %v4181 = vpop.trf.xlu0
    %v4182 = vpack.c.bf16 %v4167, %v4166
    %v4183 = vpack.c.bf16 %v4169, %v4168
    %v4184 = vpack.c.bf16 %v4144, %v4141
    %v4186 = vsel %vm1269, %v4149, 0
    %4188 = vmatprep.subr.bf16.mxu0 0
    %4189 = vmatpush1.bf16.msra.mxu0 %v4182
    %4190 = vmatprep.subr.bf16.mxu0 0
    %4191 = vmatpush1.bf16.msra.mxu0 %v4183
    %4192 = vmatprep.subr.bf16.mxu0 0
    %4193 = vmatpush1.bf16.msra.mxu0 0
    %4194 = vmatprep.subr.bf16.mxu0 0
    %4195 = vmatpush1.bf16.msra.mxu0 0
    %4196 = vmatprep.subr.bf16.mxu0 0
    %4197 = vmatpush1.bf16.msra.mxu0 0
    %4198 = vmatprep.subr.bf16.mxu0 0
    %4199 = vmatpush1.bf16.msra.mxu0 0
    %4200 = vmatprep.subr.bf16.mxu0 0
    %4201 = vmatpush1.bf16.msra.mxu0 0
    %4202 = vmatprep.subr.bf16.mxu0 0
    %4203 = vmatpush1.bf16.msra.mxu0 0
    %4204 = vmatprep.subr.bf16.mxu0 0
    %4205 = vmatpush1.bf16.msra.mxu0 0
    %4206 = vmatprep.subr.bf16.mxu0 0
    %4207 = vmatpush1.bf16.msra.mxu0 0
    %4208 = vmatprep.subr.bf16.mxu0 0
    %4209 = vmatpush1.bf16.msra.mxu0 0
    %4210 = vmatprep.subr.bf16.mxu0 0
    %4211 = vmatpush1.bf16.msra.mxu0 0
    %4212 = vmatprep.subr.bf16.mxu0 0
    %4213 = vmatpush1.bf16.msra.mxu0 0
    %4214 = vmatprep.subr.bf16.mxu0 0
    %4215 = vmatpush1.bf16.msra.mxu0 0
    %4216 = vmatprep.subr.bf16.mxu0 0
    %4217 = vmatpush1.bf16.msra.mxu0 0
    %4218 = vmatprep.subr.bf16.mxu0 0
    %4219 = vmatpush1.bf16.msra.mxu0 0
    %4220 = vmatprep.mubr.bf16.mxu0 0
    %4221 = vmatmul.mubr.bf16.gmra.mrb[0].mxu0 %v4186
    %v4222 = vpop.f32.mrb[0].mxu0
    %v4223 = vadd.f32 %v967, %v4222
    %v4224 = vpop.f32.mrb[0].mxu0
    %v4225 = vpop.f32.mrb[0].mxu0
    %v4226 = vadd.f32 %v968, %v4225
    %v4227 = vpop.f32.mrb[0].mxu0
    %4228 = vdwg.mxu0
    %v4229 = vsel %vm1314, %v4223, -inf
    %4230 = vmax.xlane.f32.xlu0 %v4229
    %v4231 = vpop.xlane.xlu0 %4230
    %v4232 = vsel %vm1314, %v4226, -inf
    %4233 = vmax.xlane.f32.xlu0 %v4232
    %v4234 = vpop.xlane.xlu0 %4233
    %v4235 = vsub.f32 %v4223, %v4231
    %v4236 = vsub.f32 %v4226, %v4234
    %v4237 = vmul.f32 %v4235, 1.442695
    %v4238 = vpow.pop %v4237
    %v4239 = vmul.f32 %v4236, 1.442695
    %v4240 = vpow.pop %v4239
    %v4241 = vsel %vm1314, %v4238, 0.0
    %4242 = vadd.xlane.f32.xlu0 %v4241
    %v4243 = vpop.xlane.xlu0 %4242
    %v4244 = vsel %vm1314, %v4240, 0.0
    %4245 = vadd.xlane.f32.xlu0 %v4244
    %v4246 = vpop.xlane.xlu0 %4245
    %v4247 = vrcp.pop %v4243
    %v4248 = vrcp.pop %v4246
    %v4249 = vmul.f32 %v4238, %v4247
    %v4250 = vmul.f32 %v4240, %v4248
    %v4251 = vpack.c.bf16 %v4250, %v4249
    %v4253 = vsel %vm1314, %v4251, 0
    %4255 = vmatprep.subr.bf16.mxu0 0
    %4256 = vmatpush1.bf16.msra.mxu0 %v4184
    %4257 = vmatprep.subr.bf16.mxu0 0
    %4258 = vmatpush1.bf16.msra.mxu0 0
    %4259 = vmatprep.subr.bf16.mxu0 0
    %4260 = vmatpush1.bf16.msra.mxu0 0
    %4261 = vmatprep.subr.bf16.mxu0 0
    %4262 = vmatpush1.bf16.msra.mxu0 0
    %4263 = vmatprep.subr.bf16.mxu0 0
    %4264 = vmatpush1.bf16.msra.mxu0 0
    %4265 = vmatprep.subr.bf16.mxu0 0
    %4266 = vmatpush1.bf16.msra.mxu0 0
    %4267 = vmatprep.subr.bf16.mxu0 0
    %4268 = vmatpush1.bf16.msra.mxu0 0
    %4269 = vmatprep.subr.bf16.mxu0 0
    %4270 = vmatpush1.bf16.msra.mxu0 0
    %4271 = vmatprep.subr.bf16.mxu0 0
    %4272 = vmatpush1.bf16.msra.mxu0 0
    %4273 = vmatprep.subr.bf16.mxu0 0
    %4274 = vmatpush1.bf16.msra.mxu0 0
    %4275 = vmatprep.subr.bf16.mxu0 0
    %4276 = vmatpush1.bf16.msra.mxu0 0
    %4277 = vmatprep.subr.bf16.mxu0 0
    %4278 = vmatpush1.bf16.msra.mxu0 0
    %4279 = vmatprep.subr.bf16.mxu0 0
    %4280 = vmatpush1.bf16.msra.mxu0 0
    %4281 = vmatprep.subr.bf16.mxu0 0
    %4282 = vmatpush1.bf16.msra.mxu0 0
    %4283 = vmatprep.subr.bf16.mxu0 0
    %4284 = vmatpush1.bf16.msra.mxu0 0
    %4285 = vmatprep.subr.bf16.mxu0 0
    %4286 = vmatpush1.bf16.msra.mxu0 0
    %4287 = vmatprep.mubr.bf16.mxu0 0
    %4288 = vmatmul.mubr.bf16.gmra.mrb[0].mxu0 %v4253
    %v4289 = vpop.f32.mrb[0].mxu0
    %v4290 = vadd.f32 0.0, %v4289
    %v4291 = vpop.f32.mrb[0].mxu0
    %v4292 = vpop.f32.mrb[0].mxu0
    %v4293 = vadd.f32 0.0, %v4292
    %v4294 = vpop.f32.mrb[0].mxu0
    %4295 = vdwg.mxu0
    %4296 = vst.msk [vmem:[#allocation2] sm:$0xff] %vm1269, %v4290
    %4297 = vst.msk [vmem:[#allocation2 + $0x8] sm:$0xff] %vm1269, %v4293
    %4300 = vrot.lane.b32.xlu0 %v4100, 96
    %v4301 = vpop.permute.xlu0 %4300
    %4302 = vrot.lane.b32.xlu0 %v4104, 96
    %v4303 = vpop.permute.xlu0 %4302
    %4306 = vxpose.xlu0.b32.start [1/16] %v4301, 128
    %4307 = vxpose.xlu0.b32.cont [2/16] %v4303, 128
    %4308 = vxpose.xlu0.b32.cont [3/16] 0.0, 128
    %4309 = vxpose.xlu0.b32.cont [4/16] 0.0, 128
    %4310 = vxpose.xlu0.b32.cont [5/16] 0.0, 128
    %4311 = vxpose.xlu0.b32.cont [6/16] 0.0, 128
    %4312 = vxpose.xlu0.b32.cont [7/16] 0.0, 128
    %4313 = vxpose.xlu0.b32.cont [8/16] 0.0, 128
    %4314 = vxpose.xlu0.b32.cont [9/16] 0.0, 128
    %4315 = vxpose.xlu0.b32.cont [10/16] 0.0, 128
    %4316 = vxpose.xlu0.b32.cont [11/16] 0.0, 128
    %4317 = vxpose.xlu0.b32.cont [12/16] 0.0, 128
    %4318 = vxpose.xlu0.b32.cont [13/16] 0.0, 128
    %4319 = vxpose.xlu0.b32.cont [14/16] 0.0, 128
    %4320 = vxpose.xlu0.b32.cont [15/16] 0.0, 128
    %4321 = vxpose.xlu0.b32.end [16/16] 0.0, 128
    %v4322 = vpop.trf.xlu0
    %v4323 = vpop.trf.xlu0
    %v4324 = vpop.trf.xlu0
    %v4325 = vpop.trf.xlu0
    %v4326 = vpop.trf.xlu0
    %v4327 = vpop.trf.xlu0
    %v4328 = vpop.trf.xlu0
    %v4329 = vpop.trf.xlu0
    %v4330 = vpop.trf.xlu0
    %v4331 = vpop.trf.xlu0
    %v4332 = vpop.trf.xlu0
    %v4333 = vpop.trf.xlu0
    %v4334 = vpop.trf.xlu0
    %v4335 = vpop.trf.xlu0
    %v4336 = vpop.trf.xlu0
    %v4337 = vpop.trf.xlu0
    %v4338 = vpack.c.bf16 %v4323, %v4322
    %v4339 = vpack.c.bf16 %v4325, %v4324
    %4341 = vrot.lane.b32.xlu0 %v4149, 96
    %v4342 = vpop.permute.xlu0 %4341
    %v4344 = vsel %vm1269, %v4342, 0
    %4346 = vmatprep.subr.bf16.mxu0 0
    %4347 = vmatpush1.bf16.msra.mxu0 %v4338
    %4348 = vmatprep.subr.bf16.mxu0 0
    %4349 = vmatpush1.bf16.msra.mxu0 %v4339
    %4350 = vmatprep.subr.bf16.mxu0 0
    %4351 = vmatpush1.bf16.msra.mxu0 0
    %4352 = vmatprep.subr.bf16.mxu0 0
    %4353 = vmatpush1.bf16.msra.mxu0 0
    %4354 = vmatprep.subr.bf16.mxu0 0
    %4355 = vmatpush1.bf16.msra.mxu0 0
    %4356 = vmatprep.subr.bf16.mxu0 0
    %4357 = vmatpush1.bf16.msra.mxu0 0
    %4358 = vmatprep.subr.bf16.mxu0 0
    %4359 = vmatpush1.bf16.msra.mxu0 0
    %4360 = vmatprep.subr.bf16.mxu0 0
    %4361 = vmatpush1.bf16.msra.mxu0 0
    %4362 = vmatprep.subr.bf16.mxu0 0
    %4363 = vmatpush1.bf16.msra.mxu0 0
    %4364 = vmatprep.subr.bf16.mxu0 0
    %4365 = vmatpush1.bf16.msra.mxu0 0
    %4366 = vmatprep.subr.bf16.mxu0 0
    %4367 = vmatpush1.bf16.msra.mxu0 0
    %4368 = vmatprep.subr.bf16.mxu0 0
    %4369 = vmatpush1.bf16.msra.mxu0 0
    %4370 = vmatprep.subr.bf16.mxu0 0
    %4371 = vmatpush1.bf16.msra.mxu0 0
    %4372 = vmatprep.subr.bf16.mxu0 0
    %4373 = vmatpush1.bf16.msra.mxu0 0
    %4374 = vmatprep.subr.bf16.mxu0 0
    %4375 = vmatpush1.bf16.msra.mxu0 0
    %4376 = vmatprep.subr.bf16.mxu0 0
    %4377 = vmatpush1.bf16.msra.mxu0 0
    %4378 = vmatprep.mubr.bf16.mxu0 0
    %4379 = vmatmul.mubr.bf16.gmra.mrb[0].mxu0 %v4344
    %v4380 = vpop.f32.mrb[0].mxu0
    %v4381 = vadd.f32 %v967, %v4380
    %v4382 = vpop.f32.mrb[0].mxu0
    %v4383 = vpop.f32.mrb[0].mxu0
    %v4384 = vadd.f32 %v968, %v4383
    %v4385 = vpop.f32.mrb[0].mxu0
    %4386 = vdwg.mxu0
    %v4387 = vsel %vm1314, %v4381, -inf
    %4388 = vmax.xlane.f32.xlu0 %v4387
    %v4389 = vpop.xlane.xlu0 %4388
    %v4390 = vsel %vm1314, %v4384, -inf
    %4391 = vmax.xlane.f32.xlu0 %v4390
    %v4392 = vpop.xlane.xlu0 %4391
    %v4393 = vsub.f32 %v4381, %v4389
    %v4394 = vsub.f32 %v4384, %v4392
    %v4395 = vmul.f32 %v4393, 1.442695
    %v4396 = vpow.pop %v4395
    %v4397 = vmul.f32 %v4394, 1.442695
    %v4398 = vpow.pop %v4397
    %v4399 = vsel %vm1314, %v4396, 0.0
    %4400 = vadd.xlane.f32.xlu0 %v4399
    %v4401 = vpop.xlane.xlu0 %4400
    %v4402 = vsel %vm1314, %v4398, 0.0
    %4403 = vadd.xlane.f32.xlu0 %v4402
    %v4404 = vpop.xlane.xlu0 %4403
    %v4405 = vrcp.pop %v4401
    %v4406 = vrcp.pop %v4404
    %v4407 = vmul.f32 %v4396, %v4405
    %v4408 = vmul.f32 %v4398, %v4406
    %v4409 = vpack.c.bf16 %v4408, %v4407
    %4411 = vrot.lane.b32.xlu0 %v4184, 96
    %v4412 = vpop.permute.xlu0 %4411
    %v4415 = vsel %vm1314, %v4409, 0
    %4417 = vmatprep.subr.bf16.mxu0 0
    %4418 = vmatpush1.bf16.msra.mxu0 %v4412
    %4419 = vmatprep.subr.bf16.mxu0 0
    %4420 = vmatpush1.bf16.msra.mxu0 0
    %4421 = vmatprep.subr.bf16.mxu0 0
    %4422 = vmatpush1.bf16.msra.mxu0 0
    %4423 = vmatprep.subr.bf16.mxu0 0
    %4424 = vmatpush1.bf16.msra.mxu0 0
    %4425 = vmatprep.subr.bf16.mxu0 0
    %4426 = vmatpush1.bf16.msra.mxu0 0
    %4427 = vmatprep.subr.bf16.mxu0 0
    %4428 = vmatpush1.bf16.msra.mxu0 0
    %4429 = vmatprep.subr.bf16.mxu0 0
    %4430 = vmatpush1.bf16.msra.mxu0 0
    %4431 = vmatprep.subr.bf16.mxu0 0
    %4432 = vmatpush1.bf16.msra.mxu0 0
    %4433 = vmatprep.subr.bf16.mxu0 0
    %4434 = vmatpush1.bf16.msra.mxu0 0
    %4435 = vmatprep.subr.bf16.mxu0 0
    %4436 = vmatpush1.bf16.msra.mxu0 0
    %4437 = vmatprep.subr.bf16.mxu0 0
    %4438 = vmatpush1.bf16.msra.mxu0 0
    %4439 = vmatprep.subr.bf16.mxu0 0
    %4440 = vmatpush1.bf16.msra.mxu0 0
    %4441 = vmatprep.subr.bf16.mxu0 0
    %4442 = vmatpush1.bf16.msra.mxu0 0
    %4443 = vmatprep.subr.bf16.mxu0 0
    %4444 = vmatpush1.bf16.msra.mxu0 0
    %4445 = vmatprep.subr.bf16.mxu0 0
    %4446 = vmatpush1.bf16.msra.mxu0 0
    %4447 = vmatprep.subr.bf16.mxu0 0
    %4448 = vmatpush1.bf16.msra.mxu0 0
    %4449 = vmatprep.mubr.bf16.mxu0 0
    %4450 = vmatmul.mubr.bf16.gmra.mrb[0].mxu0 %v4415
    %v4451 = vpop.f32.mrb[0].mxu0
    %v4452 = vadd.f32 0.0, %v4451
    %v4453 = vpop.f32.mrb[0].mxu0
    %v4454 = vpop.f32.mrb[0].mxu0
    %v4455 = vadd.f32 0.0, %v4454
    %v4456 = vpop.f32.mrb[0].mxu0
    %4457 = vdwg.mxu0
    %4460 = vrot.lane.b32.xlu0 %v4452, 32
    %v4461 = vpop.permute.xlu0 %4460
    %4462 = vrot.lane.b32.xlu0 %v4455, 32
    %v4463 = vpop.permute.xlu0 %4462
    %4466 = vst.msk [vmem:[#allocation2] sm:$0xff] %vm1552, %v4461
    %4467 = vst.msk [vmem:[#allocation2 + $0x8] sm:$0xff] %vm1552, %v4463
    %4468 = vrot.lane.b32.xlu0 %v4100, 64
    %v4469 = vpop.permute.xlu0 %4468
    %4470 = vrot.lane.b32.xlu0 %v4104, 64
    %v4471 = vpop.permute.xlu0 %4470
    %4474 = vxpose.xlu0.b32.start [1/16] %v4469, 128
    %4475 = vxpose.xlu0.b32.cont [2/16] %v4471, 128
    %4476 = vxpose.xlu0.b32.cont [3/16] 0.0, 128
    %4477 = vxpose.xlu0.b32.cont [4/16] 0.0, 128
    %4478 = vxpose.xlu0.b32.cont [5/16] 0.0, 128
    %4479 = vxpose.xlu0.b32.cont [6/16] 0.0, 128
    %4480 = vxpose.xlu0.b32.cont [7/16] 0.0, 128
    %4481 = vxpose.xlu0.b32.cont [8/16] 0.0, 128
    %4482 = vxpose.xlu0.b32.cont [9/16] 0.0, 128
    %4483 = vxpose.xlu0.b32.cont [10/16] 0.0, 128
    %4484 = vxpose.xlu0.b32.cont [11/16] 0.0, 128
    %4485 = vxpose.xlu0.b32.cont [12/16] 0.0, 128
    %4486 = vxpose.xlu0.b32.cont [13/16] 0.0, 128
    %4487 = vxpose.xlu0.b32.cont [14/16] 0.0, 128
    %4488 = vxpose.xlu0.b32.cont [15/16] 0.0, 128
    %4489 = vxpose.xlu0.b32.end [16/16] 0.0, 128
    %v4490 = vpop.trf.xlu0
    %v4491 = vpop.trf.xlu0
    %v4492 = vpop.trf.xlu0
    %v4493 = vpop.trf.xlu0
    %v4494 = vpop.trf.xlu0
    %v4495 = vpop.trf.xlu0
    %v4496 = vpop.trf.xlu0
    %v4497 = vpop.trf.xlu0
    %v4498 = vpop.trf.xlu0
    %v4499 = vpop.trf.xlu0
    %v4500 = vpop.trf.xlu0
    %v4501 = vpop.trf.xlu0
    %v4502 = vpop.trf.xlu0
    %v4503 = vpop.trf.xlu0
    %v4504 = vpop.trf.xlu0
    %v4505 = vpop.trf.xlu0
    %v4506 = vpack.c.bf16 %v4491, %v4490
    %v4507 = vpack.c.bf16 %v4493, %v4492
    %4508 = vrot.lane.b32.xlu0 %v4149, 64
    %v4509 = vpop.permute.xlu0 %4508
    %v4511 = vsel %vm1269, %v4509, 0
    %4513 = vmatprep.subr.bf16.mxu0 0
    %4514 = vmatpush1.bf16.msra.mxu0 %v4506
    %4515 = vmatprep.subr.bf16.mxu0 0
    %4516 = vmatpush1.bf16.msra.mxu0 %v4507
    %4517 = vmatprep.subr.bf16.mxu0 0
    %4518 = vmatpush1.bf16.msra.mxu0 0
    %4519 = vmatprep.subr.bf16.mxu0 0
    %4520 = vmatpush1.bf16.msra.mxu0 0
    %4521 = vmatprep.subr.bf16.mxu0 0
    %4522 = vmatpush1.bf16.msra.mxu0 0
    %4523 = vmatprep.subr.bf16.mxu0 0
    %4524 = vmatpush1.bf16.msra.mxu0 0
    %4525 = vmatprep.subr.bf16.mxu0 0
    %4526 = vmatpush1.bf16.msra.mxu0 0
    %4527 = vmatprep.subr.bf16.mxu0 0
    %4528 = vmatpush1.bf16.msra.mxu0 0
    %4529 = vmatprep.subr.bf16.mxu0 0
    %4530 = vmatpush1.bf16.msra.mxu0 0
    %4531 = vmatprep.subr.bf16.mxu0 0
    %4532 = vmatpush1.bf16.msra.mxu0 0
    %4533 = vmatprep.subr.bf16.mxu0 0
    %4534 = vmatpush1.bf16.msra.mxu0 0
    %4535 = vmatprep.subr.bf16.mxu0 0
    %4536 = vmatpush1.bf16.msra.mxu0 0
    %4537 = vmatprep.subr.bf16.mxu0 0
    %4538 = vmatpush1.bf16.msra.mxu0 0
    %4539 = vmatprep.subr.bf16.mxu0 0
    %4540 = vmatpush1.bf16.msra.mxu0 0
    %4541 = vmatprep.subr.bf16.mxu0 0
    %4542 = vmatpush1.bf16.msra.mxu0 0
    %4543 = vmatprep.subr.bf16.mxu0 0
    %4544 = vmatpush1.bf16.msra.mxu0 0
    %4545 = vmatprep.mubr.bf16.mxu0 0
    %4546 = vmatmul.mubr.bf16.gmra.mrb[0].mxu0 %v4511
    %v4547 = vpop.f32.mrb[0].mxu0
    %v4548 = vadd.f32 %v967, %v4547
    %v4549 = vpop.f32.mrb[0].mxu0
    %v4550 = vpop.f32.mrb[0].mxu0
    %v4551 = vadd.f32 %v968, %v4550
    %v4552 = vpop.f32.mrb[0].mxu0
    %4553 = vdwg.mxu0
    %v4554 = vsel %vm1314, %v4548, -inf
    %4555 = vmax.xlane.f32.xlu0 %v4554
    %v4556 = vpop.xlane.xlu0 %4555
    %v4557 = vsel %vm1314, %v4551, -inf
    %4558 = vmax.xlane.f32.xlu0 %v4557
    %v4559 = vpop.xlane.xlu0 %4558
    %v4560 = vsub.f32 %v4548, %v4556
    %v4561 = vsub.f32 %v4551, %v4559
    %v4562 = vmul.f32 %v4560, 1.442695
    %v4563 = vpow.pop %v4562
    %v4564 = vmul.f32 %v4561, 1.442695
    %v4565 = vpow.pop %v4564
    %v4566 = vsel %vm1314, %v4563, 0.0
    %4567 = vadd.xlane.f32.xlu0 %v4566
    %v4568 = vpop.xlane.xlu0 %4567
    %v4569 = vsel %vm1314, %v4565, 0.0
    %4570 = vadd.xlane.f32.xlu0 %v4569
    %v4571 = vpop.xlane.xlu0 %4570
    %v4572 = vrcp.pop %v4568
    %v4573 = vrcp.pop %v4571
    %v4574 = vmul.f32 %v4563, %v4572
    %v4575 = vmul.f32 %v4565, %v4573
    %v4576 = vpack.c.bf16 %v4575, %v4574
    %4577 = vrot.lane.b32.xlu0 %v4184, 64
    %v4578 = vpop.permute.xlu0 %4577
    %v4581 = vsel %vm1314, %v4576, 0
    %4583 = vmatprep.subr.bf16.mxu0 0
    %4584 = vmatpush1.bf16.msra.mxu0 %v4578
    %4585 = vmatprep.subr.bf16.mxu0 0
    %4586 = vmatpush1.bf16.msra.mxu0 0
    %4587 = vmatprep.subr.bf16.mxu0 0
    %4588 = vmatpush1.bf16.msra.mxu0 0
    %4589 = vmatprep.subr.bf16.mxu0 0
    %4590 = vmatpush1.bf16.msra.mxu0 0
    %4591 = vmatprep.subr.bf16.mxu0 0
    %4592 = vmatpush1.bf16.msra.mxu0 0
    %4593 = vmatprep.subr.bf16.mxu0 0
    %4594 = vmatpush1.bf16.msra.mxu0 0
    %4595 = vmatprep.subr.bf16.mxu0 0
    %4596 = vmatpush1.bf16.msra.mxu0 0
    %4597 = vmatprep.subr.bf16.mxu0 0
    %4598 = vmatpush1.bf16.msra.mxu0 0
    %4599 = vmatprep.subr.bf16.mxu0 0
    %4600 = vmatpush1.bf16.msra.mxu0 0
    %4601 = vmatprep.subr.bf16.mxu0 0
    %4602 = vmatpush1.bf16.msra.mxu0 0
    %4603 = vmatprep.subr.bf16.mxu0 0
    %4604 = vmatpush1.bf16.msra.mxu0 0
    %4605 = vmatprep.subr.bf16.mxu0 0
    %4606 = vmatpush1.bf16.msra.mxu0 0
    %4607 = vmatprep.subr.bf16.mxu0 0
    %4608 = vmatpush1.bf16.msra.mxu0 0
    %4609 = vmatprep.subr.bf16.mxu0 0
    %4610 = vmatpush1.bf16.msra.mxu0 0
    %4611 = vmatprep.subr.bf16.mxu0 0
    %4612 = vmatpush1.bf16.msra.mxu0 0
    %4613 = vmatprep.subr.bf16.mxu0 0
    %4614 = vmatpush1.bf16.msra.mxu0 0
    %4615 = vmatprep.mubr.bf16.mxu0 0
    %4616 = vmatmul.mubr.bf16.gmra.mrb[0].mxu0 %v4581
    %v4617 = vpop.f32.mrb[0].mxu0
    %v4618 = vadd.f32 0.0, %v4617
    %v4619 = vpop.f32.mrb[0].mxu0
    %v4620 = vpop.f32.mrb[0].mxu0
    %v4621 = vadd.f32 0.0, %v4620
    %v4622 = vpop.f32.mrb[0].mxu0
    %4623 = vdwg.mxu0
    %4626 = vrot.lane.b32.xlu0 %v4618, 64
    %v4627 = vpop.permute.xlu0 %4626
    %4628 = vrot.lane.b32.xlu0 %v4621, 64
    %v4629 = vpop.permute.xlu0 %4628
    %4632 = vst.msk [vmem:[#allocation2] sm:$0xff] %vm1719, %v4627
    %4633 = vst.msk [vmem:[#allocation2 + $0x8] sm:$0xff] %vm1719, %v4629
    %4634 = vrot.lane.b32.xlu0 %v4100, 32
    %v4635 = vpop.permute.xlu0 %4634
    %4636 = vrot.lane.b32.xlu0 %v4104, 32
    %v4637 = vpop.permute.xlu0 %4636
    %4640 = vxpose.xlu0.b32.start [1/16] %v4635, 128
    %4641 = vxpose.xlu0.b32.cont [2/16] %v4637, 128
    %4642 = vxpose.xlu0.b32.cont [3/16] 0.0, 128
    %4643 = vxpose.xlu0.b32.cont [4/16] 0.0, 128
    %4644 = vxpose.xlu0.b32.cont [5/16] 0.0, 128
    %4645 = vxpose.xlu0.b32.cont [6/16] 0.0, 128
    %4646 = vxpose.xlu0.b32.cont [7/16] 0.0, 128
    %4647 = vxpose.xlu0.b32.cont [8/16] 0.0, 128
    %4648 = vxpose.xlu0.b32.cont [9/16] 0.0, 128
    %4649 = vxpose.xlu0.b32.cont [10/16] 0.0, 128
    %4650 = vxpose.xlu0.b32.cont [11/16] 0.0, 128
    %4651 = vxpose.xlu0.b32.cont [12/16] 0.0, 128
    %4652 = vxpose.xlu0.b32.cont [13/16] 0.0, 128
    %4653 = vxpose.xlu0.b32.cont [14/16] 0.0, 128
    %4654 = vxpose.xlu0.b32.cont [15/16] 0.0, 128
    %4655 = vxpose.xlu0.b32.end [16/16] 0.0, 128
    %v4656 = vpop.trf.xlu0
    %v4657 = vpop.trf.xlu0
    %v4658 = vpop.trf.xlu0
    %v4659 = vpop.trf.xlu0
    %v4660 = vpop.trf.xlu0
    %v4661 = vpop.trf.xlu0
    %v4662 = vpop.trf.xlu0
    %v4663 = vpop.trf.xlu0
    %v4664 = vpop.trf.xlu0
    %v4665 = vpop.trf.xlu0
    %v4666 = vpop.trf.xlu0
    %v4667 = vpop.trf.xlu0
    %v4668 = vpop.trf.xlu0
    %v4669 = vpop.trf.xlu0
    %v4670 = vpop.trf.xlu0
    %v4671 = vpop.trf.xlu0
    %v4672 = vpack.c.bf16 %v4657, %v4656
    %v4673 = vpack.c.bf16 %v4659, %v4658
    %4674 = vrot.lane.b32.xlu0 %v4149, 32
    %v4675 = vpop.permute.xlu0 %4674
    %v4677 = vsel %vm1269, %v4675, 0
    %4679 = vmatprep.subr.bf16.mxu0 0
    %4680 = vmatpush1.bf16.msra.mxu0 %v4672
    %4681 = vmatprep.subr.bf16.mxu0 0
    %4682 = vmatpush1.bf16.msra.mxu0 %v4673
    %4683 = vmatprep.subr.bf16.mxu0 0
    %4684 = vmatpush1.bf16.msra.mxu0 0
    %4685 = vmatprep.subr.bf16.mxu0 0
    %4686 = vmatpush1.bf16.msra.mxu0 0
    %4687 = vmatprep.subr.bf16.mxu0 0
    %4688 = vmatpush1.bf16.msra.mxu0 0
    %4689 = vmatprep.subr.bf16.mxu0 0
    %4690 = vmatpush1.bf16.msra.mxu0 0
    %4691 = vmatprep.subr.bf16.mxu0 0
    %4692 = vmatpush1.bf16.msra.mxu0 0
    %4693 = vmatprep.subr.bf16.mxu0 0
    %4694 = vmatpush1.bf16.msra.mxu0 0
    %4695 = vmatprep.subr.bf16.mxu0 0
    %4696 = vmatpush1.bf16.msra.mxu0 0
    %4697 = vmatprep.subr.bf16.mxu0 0
    %4698 = vmatpush1.bf16.msra.mxu0 0
    %4699 = vmatprep.subr.bf16.mxu0 0
    %4700 = vmatpush1.bf16.msra.mxu0 0
    %4701 = vmatprep.subr.bf16.mxu0 0
    %4702 = vmatpush1.bf16.msra.mxu0 0
    %4703 = vmatprep.subr.bf16.mxu0 0
    %4704 = vmatpush1.bf16.msra.mxu0 0
    %4705 = vmatprep.subr.bf16.mxu0 0
    %4706 = vmatpush1.bf16.msra.mxu0 0
    %4707 = vmatprep.subr.bf16.mxu0 0
    %4708 = vmatpush1.bf16.msra.mxu0 0
    %4709 = vmatprep.subr.bf16.mxu0 0
    %4710 = vmatpush1.bf16.msra.mxu0 0
    %4711 = vmatprep.mubr.bf16.mxu0 0
    %4712 = vmatmul.mubr.bf16.gmra.mrb[0].mxu0 %v4677
    %v4713 = vpop.f32.mrb[0].mxu0
    %v4714 = vadd.f32 %v967, %v4713
    %v4715 = vpop.f32.mrb[0].mxu0
    %v4716 = vpop.f32.mrb[0].mxu0
    %v4717 = vadd.f32 %v968, %v4716
    %v4718 = vpop.f32.mrb[0].mxu0
    %4719 = vdwg.mxu0
    %v4720 = vsel %vm1314, %v4714, -inf
    %4721 = vmax.xlane.f32.xlu0 %v4720
    %v4722 = vpop.xlane.xlu0 %4721
    %v4723 = vsel %vm1314, %v4717, -inf
    %4724 = vmax.xlane.f32.xlu0 %v4723
    %v4725 = vpop.xlane.xlu0 %4724
    %v4726 = vsub.f32 %v4714, %v4722
    %v4727 = vsub.f32 %v4717, %v4725
    %v4728 = vmul.f32 %v4726, 1.442695
    %v4729 = vpow.pop %v4728
    %v4730 = vmul.f32 %v4727, 1.442695
    %v4731 = vpow.pop %v4730
    %v4732 = vsel %vm1314, %v4729, 0.0
    %4733 = vadd.xlane.f32.xlu0 %v4732
    %v4734 = vpop.xlane.xlu0 %4733
    %v4735 = vsel %vm1314, %v4731, 0.0
    %4736 = vadd.xlane.f32.xlu0 %v4735
    %v4737 = vpop.xlane.xlu0 %4736
    %v4738 = vrcp.pop %v4734
    %v4739 = vrcp.pop %v4737
    %v4740 = vmul.f32 %v4729, %v4738
    %v4741 = vmul.f32 %v4731, %v4739
    %v4742 = vpack.c.bf16 %v4741, %v4740
    %4743 = vrot.lane.b32.xlu0 %v4184, 32
    %v4744 = vpop.permute.xlu0 %4743
    %v4747 = vsel %vm1314, %v4742, 0
    %4749 = vmatprep.subr.bf16.mxu0 0
    %4750 = vmatpush1.bf16.msra.mxu0 %v4744
    %4751 = vmatprep.subr.bf16.mxu0 0
    %4752 = vmatpush1.bf16.msra.mxu0 0
    %4753 = vmatprep.subr.bf16.mxu0 0
    %4754 = vmatpush1.bf16.msra.mxu0 0
    %4755 = vmatprep.subr.bf16.mxu0 0
    %4756 = vmatpush1.bf16.msra.mxu0 0
    %4757 = vmatprep.subr.bf16.mxu0 0
    %4758 = vmatpush1.bf16.msra.mxu0 0
    %4759 = vmatprep.subr.bf16.mxu0 0
    %4760 = vmatpush1.bf16.msra.mxu0 0
    %4761 = vmatprep.subr.bf16.mxu0 0
    %4762 = vmatpush1.bf16.msra.mxu0 0
    %4763 = vmatprep.subr.bf16.mxu0 0
    %4764 = vmatpush1.bf16.msra.mxu0 0
    %4765 = vmatprep.subr.bf16.mxu0 0
    %4766 = vmatpush1.bf16.msra.mxu0 0
    %4767 = vmatprep.subr.bf16.mxu0 0
    %4768 = vmatpush1.bf16.msra.mxu0 0
    %4769 = vmatprep.subr.bf16.mxu0 0
    %4770 = vmatpush1.bf16.msra.mxu0 0
    %4771 = vmatprep.subr.bf16.mxu0 0
    %4772 = vmatpush1.bf16.msra.mxu0 0
    %4773 = vmatprep.subr.bf16.mxu0 0
    %4774 = vmatpush1.bf16.msra.mxu0 0
    %4775 = vmatprep.subr.bf16.mxu0 0
    %4776 = vmatpush1.bf16.msra.mxu0 0
    %4777 = vmatprep.subr.bf16.mxu0 0
    %4778 = vmatpush1.bf16.msra.mxu0 0
    %4779 = vmatprep.subr.bf16.mxu0 0
    %4780 = vmatpush1.bf16.msra.mxu0 0
    %4781 = vmatprep.mubr.bf16.mxu0 0
    %4782 = vmatmul.mubr.bf16.gmra.mrb[0].mxu0 %v4747
    %v4783 = vpop.f32.mrb[0].mxu0
    %v4784 = vadd.f32 0.0, %v4783
    %v4785 = vpop.f32.mrb[0].mxu0
    %v4786 = vpop.f32.mrb[0].mxu0
    %v4787 = vadd.f32 0.0, %v4786
    %v4788 = vpop.f32.mrb[0].mxu0
    %4789 = vdwg.mxu0
    %4792 = vrot.lane.b32.xlu0 %v4784, 96
    %v4793 = vpop.permute.xlu0 %4792
    %4794 = vrot.lane.b32.xlu0 %v4787, 96
    %v4795 = vpop.permute.xlu0 %4794
    %4798 = vst.msk [vmem:[#allocation2] sm:$0xff] %vm1886, %v4793
    %4799 = vst.msk [vmem:[#allocation2 + $0x8] sm:$0xff] %vm1886, %v4795
    %v4800 = vld [vmem:[#allocation2] sm:$0xff]
    %v4801 = vld [vmem:[#allocation2 + $0x8] sm:$0xff]
    %v4802 = vpack.c.bf16 %v4801, %v4800
    %s4803 = scalar_lea.vmem [#allocation8], 128
    %v4804 = vld [vmem:[%s4803] sm:$0xf]
    %v4805 = vld [vmem:[%s4803 + $0x4] sm:$0xf]
    %v4806 = vld [vmem:[%s4803 + $0x8] sm:$0xf]
    %v4807 = vld [vmem:[%s4803 + $0xc] sm:$0xf]
    %v4808 = vld [vmem:[%s4803 + $0x10] sm:$0xf]
    %v4809 = vld [vmem:[%s4803 + $0x14] sm:$0xf]
    %v4810 = vld [vmem:[%s4803 + $0x18] sm:$0xf]
    %v4811 = vld [vmem:[%s4803 + $0x1c] sm:$0xf]
    %v4812 = vld [vmem:[%s4803 + $0x20] sm:$0xf]
    %v4813 = vld [vmem:[%s4803 + $0x24] sm:$0xf]
    %v4814 = vld [vmem:[%s4803 + $0x28] sm:$0xf]
    %v4815 = vld [vmem:[%s4803 + $0x2c] sm:$0xf]
    %v4816 = vld [vmem:[%s4803 + $0x30] sm:$0xf]
    %v4817 = vld [vmem:[%s4803 + $0x34] sm:$0xf]
    %v4818 = vld [vmem:[%s4803 + $0x38] sm:$0xf]
    %v4819 = vld [vmem:[%s4803 + $0x3c] sm:$0xf]
    %s4820 = scalar_lea.vmem %s8, 2
    %v4821 = vld [vmem:[%s4820] sm:$0x1]
    %v4823 = vlaneseq
    %v4824 = vshrl.u32 %v4823, 7
    %v4825 = vsub.s32 0, %v4824
    %v4826 = vrot.slane %v4821, %v4825
    %v4844 = vunpack.c.l.b16 %v4804
    %v4845 = vunpack.c.l.b16 %v4805
    %v4846 = vunpack.c.l.b16 %v4806
    %v4847 = vunpack.c.l.b16 %v4807
    %v4848 = vunpack.c.l.b16 %v4808
    %v4849 = vunpack.c.l.b16 %v4809
    %v4850 = vunpack.c.l.b16 %v4810
    %v4851 = vunpack.c.l.b16 %v4811
    %v4852 = vunpack.c.l.b16 %v4812
    %v4853 = vunpack.c.l.b16 %v4813
    %v4854 = vunpack.c.l.b16 %v4814
    %v4855 = vunpack.c.l.b16 %v4815
    %v4856 = vunpack.c.l.b16 %v4816
    %v4857 = vunpack.c.l.b16 %v4817
    %v4858 = vunpack.c.l.b16 %v4818
    %v4859 = vunpack.c.l.b16 %v4819
    %v4860 = vpack.c.b16 %v4845, %v4844
    %v4861 = vpack.c.b16 %v4847, %v4846
    %v4862 = vpack.c.b16 %v4849, %v4848
    %v4863 = vpack.c.b16 %v4851, %v4850
    %v4864 = vpack.c.b16 %v4853, %v4852
    %v4865 = vpack.c.b16 %v4855, %v4854
    %v4866 = vpack.c.b16 %v4857, %v4856
    %v4867 = vpack.c.b16 %v4859, %v4858
    %4876 = vmatprep.subr.bf16.mxu0 0
    %4877 = vmatpush1.bf16.msra.mxu0 %v4860
    %4878 = vmatprep.subr.bf16.mxu0 0
    %4879 = vmatpush1.bf16.msra.mxu0 %v4861
    %4880 = vmatprep.subr.bf16.mxu0 0
    %4881 = vmatpush1.bf16.msra.mxu0 %v4862
    %4882 = vmatprep.subr.bf16.mxu0 0
    %4883 = vmatpush1.bf16.msra.mxu0 %v4863
    %4884 = vmatprep.subr.bf16.mxu0 0
    %4885 = vmatpush1.bf16.msra.mxu0 %v4864
    %4886 = vmatprep.subr.bf16.mxu0 0
    %4887 = vmatpush1.bf16.msra.mxu0 %v4865
    %4888 = vmatprep.subr.bf16.mxu0 0
    %4889 = vmatpush1.bf16.msra.mxu0 %v4866
    %4890 = vmatprep.subr.bf16.mxu0 0
    %4891 = vmatpush1.bf16.msra.mxu0 %v4867
    %4892 = vmatprep.subr.bf16.mxu0 0
    %4893 = vmatpush1.bf16.msra.mxu0 0
    %4894 = vmatprep.subr.bf16.mxu0 0
    %4895 = vmatpush1.bf16.msra.mxu0 0
    %4896 = vmatprep.subr.bf16.mxu0 0
    %4897 = vmatpush1.bf16.msra.mxu0 0
    %4898 = vmatprep.subr.bf16.mxu0 0
    %4899 = vmatpush1.bf16.msra.mxu0 0
    %4900 = vmatprep.subr.bf16.mxu0 0
    %4901 = vmatpush1.bf16.msra.mxu0 0
    %4902 = vmatprep.subr.bf16.mxu0 0
    %4903 = vmatpush1.bf16.msra.mxu0 0
    %4904 = vmatprep.subr.bf16.mxu0 0
    %4905 = vmatpush1.bf16.msra.mxu0 0
    %4906 = vmatprep.subr.bf16.mxu0 0
    %4907 = vmatpush1.bf16.msra.mxu0 0
    %4908 = vmatprep.mubr.bf16.mxu0 0
    %4909 = vmatmul.mubr.bf16.gmra.mrb[0].mxu0 %v4802
    %v4910 = vpop.f32.mrb[0].mxu0
    %v4911 = vadd.f32 %v4826, %v4910
    %v4912 = vpop.f32.mrb[0].mxu0
    %v4913 = vpop.f32.mrb[0].mxu0
    %v4914 = vadd.f32 %v4826, %v4913
    %v4915 = vpop.f32.mrb[0].mxu0
    %4916 = vdwg.mxu0
    %v4917 = vadd.f32 %v3881, %v4911
    %v4918 = vadd.f32 %v3882, %v4914
    %4919 = vadd.xlane.f32.xlu0 %v4917
    %v4920 = vpop.xlane.xlu0 %4919
    %4921 = vadd.xlane.f32.xlu0 %v4918
    %v4922 = vpop.xlane.xlu0 %4921
    %v4923 = vmul.f32 %v4920, %v2010
    %v4924 = vmul.f32 %v4922, %v2010
    %v4925 = vsub.f32 %v4917, %v4923
    %v4926 = vsub.f32 %v4918, %v4924
    %v4927 = vmul.f32 %v4925, %v4925
    %v4928 = vmul.f32 %v4926, %v4926
    %4929 = vadd.xlane.f32.xlu0 %v4927
    %v4930 = vpop.xlane.xlu0 %4929
    %4931 = vadd.xlane.f32.xlu0 %v4928
    %v4932 = vpop.xlane.xlu0 %4931
    %v4933 = vmul.f32 %v4930, %v2010
    %v4934 = vmul.f32 %v4932, %v2010
    %v4935 = vadd.f32 %v4933, 1e-05
    %v4936 = vadd.f32 %v4934, 1e-05
    %v4937 = vrsqrt.pop %v4935
    %v4938 = vrsqrt.pop %v4936
    %v4939 = vmul.f32 %v4925, %v4937
    %v4940 = vmul.f32 %v4926, %v4938
    %s4941 = scalar_lea.vmem [#allocation10], 2
    %v4942 = vld [vmem:[%s4941] sm:$0x1]
    %v4944 = vlaneseq
    %v4945 = vshrl.u32 %v4944, 7
    %v4946 = vsub.s32 0, %v4945
    %v4947 = vrot.slane %v4942, %v4946
    %v4949 = vmul.f32 %v4939, %v4947
    %v4950 = vmul.f32 %v4940, %v4947
    %s4951 = scalar_lea.vmem [#allocation11], 2
    %v4952 = vld [vmem:[%s4951] sm:$0x1]
    %v4954 = vlaneseq
    %v4955 = vshrl.u32 %v4954, 7
    %v4956 = vsub.s32 0, %v4955
    %v4957 = vrot.slane %v4952, %v4956
    %v4959 = vadd.f32 %v4949, %v4957
    %v4960 = vadd.f32 %v4950, %v4957
    %v4961 = vpack.c.bf16 %v4960, %v4959
    %s4962 = scalar_lea.vmem [#allocation13], 256
    %v4963 = vld [vmem:[%s4962] sm:$0xff]
    %v4964 = vld [vmem:[%s4962 + $0x8] sm:$0xff]
    %v4965 = vld [vmem:[%s4962 + $0x10] sm:$0xff]
    %v4966 = vld [vmem:[%s4962 + $0x18] sm:$0xff]
    %v4967 = vld [vmem:[%s4962 + $0x20] sm:$0xff]
    %v4968 = vld [vmem:[%s4962 + $0x28] sm:$0xff]
    %v4969 = vld [vmem:[%s4962 + $0x30] sm:$0xff]
    %v4970 = vld [vmem:[%s4962 + $0x38] sm:$0xff]
    %v4971 = vld [vmem:[%s4962 + $0x40] sm:$0xff]
    %v4972 = vld [vmem:[%s4962 + $0x48] sm:$0xff]
    %v4973 = vld [vmem:[%s4962 + $0x50] sm:$0xff]
    %v4974 = vld [vmem:[%s4962 + $0x58] sm:$0xff]
    %v4975 = vld [vmem:[%s4962 + $0x60] sm:$0xff]
    %v4976 = vld [vmem:[%s4962 + $0x68] sm:$0xff]
    %v4977 = vld [vmem:[%s4962 + $0x70] sm:$0xff]
    %v4978 = vld [vmem:[%s4962 + $0x78] sm:$0xff]
    %s4979 = scalar_lea.vmem [#allocation14], 4
    %v4980 = vld [vmem:[%s4979] sm:$0x3]
    %v4982 = vlaneseq
    %v4983 = vshrl.u32 %v4982, 7
    %v4984 = vsub.s32 0, %v4983
    %v4985 = vrot.slane %v4980, %v4984
    %v4986 = vlaneseq
    %v4987 = vshrl.u32 %v4986, 7
    %v4988 = vsub.s32 1, %v4987
    %v4989 = vrot.slane %v4980, %v4988
    %v5008 = vunpack.c.l.b16 %v4963
    %v5009 = vunpack.c.h.b16 %v4963
    %v5010 = vunpack.c.l.b16 %v4964
    %v5011 = vunpack.c.h.b16 %v4964
    %v5012 = vunpack.c.l.b16 %v4965
    %v5013 = vunpack.c.h.b16 %v4965
    %v5014 = vunpack.c.l.b16 %v4966
    %v5015 = vunpack.c.h.b16 %v4966
    %v5016 = vunpack.c.l.b16 %v4967
    %v5017 = vunpack.c.h.b16 %v4967
    %v5018 = vunpack.c.l.b16 %v4968
    %v5019 = vunpack.c.h.b16 %v4968
    %v5020 = vunpack.c.l.b16 %v4969
    %v5021 = vunpack.c.h.b16 %v4969
    %v5022 = vunpack.c.l.b16 %v4970
    %v5023 = vunpack.c.h.b16 %v4970
    %v5024 = vunpack.c.l.b16 %v4971
    %v5025 = vunpack.c.h.b16 %v4971
    %v5026 = vunpack.c.l.b16 %v4972
    %v5027 = vunpack.c.h.b16 %v4972
    %v5028 = vunpack.c.l.b16 %v4973
    %v5029 = vunpack.c.h.b16 %v4973
    %v5030 = vunpack.c.l.b16 %v4974
    %v5031 = vunpack.c.h.b16 %v4974
    %v5032 = vunpack.c.l.b16 %v4975
    %v5033 = vunpack.c.h.b16 %v4975
    %v5034 = vunpack.c.l.b16 %v4976
    %v5035 = vunpack.c.h.b16 %v4976
    %v5036 = vunpack.c.l.b16 %v4977
    %v5037 = vunpack.c.h.b16 %v4977
    %v5038 = vunpack.c.l.b16 %v4978
    %v5039 = vunpack.c.h.b16 %v4978
    %v5040 = vpack.c.b16 %v5010, %v5008
    %v5041 = vpack.c.b16 %v5011, %v5009
    %v5042 = vpack.c.b16 %v5014, %v5012
    %v5043 = vpack.c.b16 %v5015, %v5013
    %v5044 = vpack.c.b16 %v5018, %v5016
    %v5045 = vpack.c.b16 %v5019, %v5017
    %v5046 = vpack.c.b16 %v5022, %v5020
    %v5047 = vpack.c.b16 %v5023, %v5021
    %v5048 = vpack.c.b16 %v5026, %v5024
    %v5049 = vpack.c.b16 %v5027, %v5025
    %v5050 = vpack.c.b16 %v5030, %v5028
    %v5051 = vpack.c.b16 %v5031, %v5029
    %v5052 = vpack.c.b16 %v5034, %v5032
    %v5053 = vpack.c.b16 %v5035, %v5033
    %v5054 = vpack.c.b16 %v5038, %v5036
    %v5055 = vpack.c.b16 %v5039, %v5037
    %5072 = vmatprep.subr.bf16.mxu0 %v5041
    %5073 = vmatpush1.bf16.msra.mxu0 %v5040
    %5074 = vmatprep.subr.bf16.mxu0 %v5043
    %5075 = vmatpush1.bf16.msra.mxu0 %v5042
    %5076 = vmatprep.subr.bf16.mxu0 %v5045
    %5077 = vmatpush1.bf16.msra.mxu0 %v5044
    %5078 = vmatprep.subr.bf16.mxu0 %v5047
    %5079 = vmatpush1.bf16.msra.mxu0 %v5046
    %5080 = vmatprep.subr.bf16.mxu0 %v5049
    %5081 = vmatpush1.bf16.msra.mxu0 %v5048
    %5082 = vmatprep.subr.bf16.mxu0 %v5051
    %5083 = vmatpush1.bf16.msra.mxu0 %v5050
    %5084 = vmatprep.subr.bf16.mxu0 %v5053
    %5085 = vmatpush1.bf16.msra.mxu0 %v5052
    %5086 = vmatprep.subr.bf16.mxu0 %v5055
    %5087 = vmatpush1.bf16.msra.mxu0 %v5054
    %5088 = vmatprep.subr.bf16.mxu0 0
    %5089 = vmatpush1.bf16.msra.mxu0 0
    %5090 = vmatprep.subr.bf16.mxu0 0
    %5091 = vmatpush1.bf16.msra.mxu0 0
    %5092 = vmatprep.subr.bf16.mxu0 0
    %5093 = vmatpush1.bf16.msra.mxu0 0
    %5094 = vmatprep.subr.bf16.mxu0 0
    %5095 = vmatpush1.bf16.msra.mxu0 0
    %5096 = vmatprep.subr.bf16.mxu0 0
    %5097 = vmatpush1.bf16.msra.mxu0 0
    %5098 = vmatprep.subr.bf16.mxu0 0
    %5099 = vmatpush1.bf16.msra.mxu0 0
    %5100 = vmatprep.subr.bf16.mxu0 0
    %5101 = vmatpush1.bf16.msra.mxu0 0
    %5102 = vmatprep.subr.bf16.mxu0 0
    %5103 = vmatpush1.bf16.msra.mxu0 0
    %5104 = vmatprep.mubr.bf16.mxu0 0
    %5105 = vmatmul.mubr.bf16.gmra.mrb[0].mxu0 %v4961
    %v5106 = vpop.f32.mrb[0].mxu0
    %v5107 = vadd.f32 %v4985, %v5106
    %v5108 = vpop.f32.mrb[0].mxu0
    %v5109 = vadd.f32 %v4989, %v5108
    %v5110 = vpop.f32.mrb[0].mxu0
    %v5111 = vadd.f32 %v4985, %v5110
    %v5112 = vpop.f32.mrb[0].mxu0
    %v5113 = vadd.f32 %v4989, %v5112
    %5114 = vdwg.mxu0
    %v5115 = vmax.f32 %v5107, 0.0
    %v5116 = vmax.f32 %v5109, 0.0
    %v5117 = vmax.f32 %v5111, 0.0
    %v5118 = vmax.f32 %v5113, 0.0
    %v5119 = vpack.c.bf16 %v5117, %v5115
    %v5120 = vpack.c.bf16 %v5118, %v5116
    %s5121 = scalar_lea.vmem [#allocation16], 256
    %v5122 = vld [vmem:[%s5121] sm:$0xf]
    %v5123 = vld [vmem:[%s5121 + $0x4] sm:$0xf]
    %v5124 = vld [vmem:[%s5121 + $0x8] sm:$0xf]
    %v5125 = vld [vmem:[%s5121 + $0xc] sm:$0xf]
    %v5126 = vld [vmem:[%s5121 + $0x10] sm:$0xf]
    %v5127 = vld [vmem:[%s5121 + $0x14] sm:$0xf]
    %v5128 = vld [vmem:[%s5121 + $0x18] sm:$0xf]
    %v5129 = vld [vmem:[%s5121 + $0x1c] sm:$0xf]
    %v5130 = vld [vmem:[%s5121 + $0x20] sm:$0xf]
    %v5131 = vld [vmem:[%s5121 + $0x24] sm:$0xf]
    %v5132 = vld [vmem:[%s5121 + $0x28] sm:$0xf]
    %v5133 = vld [vmem:[%s5121 + $0x2c] sm:$0xf]
    %v5134 = vld [vmem:[%s5121 + $0x30] sm:$0xf]
    %v5135 = vld [vmem:[%s5121 + $0x34] sm:$0xf]
    %v5136 = vld [vmem:[%s5121 + $0x38] sm:$0xf]
    %v5137 = vld [vmem:[%s5121 + $0x3c] sm:$0xf]
    %v5138 = vld [vmem:[%s5121 + $0x40] sm:$0xf]
    %v5139 = vld [vmem:[%s5121 + $0x44] sm:$0xf]
    %v5140 = vld [vmem:[%s5121 + $0x48] sm:$0xf]
    %v5141 = vld [vmem:[%s5121 + $0x4c] sm:$0xf]
    %v5142 = vld [vmem:[%s5121 + $0x50] sm:$0xf]
    %v5143 = vld [vmem:[%s5121 + $0x54] sm:$0xf]
    %v5144 = vld [vmem:[%s5121 + $0x58] sm:$0xf]
    %v5145 = vld [vmem:[%s5121 + $0x5c] sm:$0xf]
    %v5146 = vld [vmem:[%s5121 + $0x60] sm:$0xf]
    %v5147 = vld [vmem:[%s5121 + $0x64] sm:$0xf]
    %v5148 = vld [vmem:[%s5121 + $0x68] sm:$0xf]
    %v5149 = vld [vmem:[%s5121 + $0x6c] sm:$0xf]
    %v5150 = vld [vmem:[%s5121 + $0x70] sm:$0xf]
    %v5151 = vld [vmem:[%s5121 + $0x74] sm:$0xf]
    %v5152 = vld [vmem:[%s5121 + $0x78] sm:$0xf]
    %v5153 = vld [vmem:[%s5121 + $0x7c] sm:$0xf]
    %s5154 = scalar_lea.vmem [#allocation17], 2
    %v5155 = vld [vmem:[%s5154] sm:$0x1]
    %v5157 = vlaneseq
    %v5158 = vshrl.u32 %v5157, 7
    %v5159 = vsub.s32 0, %v5158
    %v5160 = vrot.slane %v5155, %v5159
    %v5194 = vunpack.c.l.b16 %v5122
    %v5195 = vunpack.c.l.b16 %v5123
    %v5196 = vunpack.c.l.b16 %v5124
    %v5197 = vunpack.c.l.b16 %v5125
    %v5198 = vunpack.c.l.b16 %v5126
    %v5199 = vunpack.c.l.b16 %v5127
    %v5200 = vunpack.c.l.b16 %v5128
    %v5201 = vunpack.c.l.b16 %v5129
    %v5202 = vunpack.c.l.b16 %v5130
    %v5203 = vunpack.c.l.b16 %v5131
    %v5204 = vunpack.c.l.b16 %v5132
    %v5205 = vunpack.c.l.b16 %v5133
    %v5206 = vunpack.c.l.b16 %v5134
    %v5207 = vunpack.c.l.b16 %v5135
    %v5208 = vunpack.c.l.b16 %v5136
    %v5209 = vunpack.c.l.b16 %v5137
    %v5210 = vunpack.c.l.b16 %v5138
    %v5211 = vunpack.c.l.b16 %v5139
    %v5212 = vunpack.c.l.b16 %v5140
    %v5213 = vunpack.c.l.b16 %v5141
    %v5214 = vunpack.c.l.b16 %v5142
    %v5215 = vunpack.c.l.b16 %v5143
    %v5216 = vunpack.c.l.b16 %v5144
    %v5217 = vunpack.c.l.b16 %v5145
    %v5218 = vunpack.c.l.b16 %v5146
    %v5219 = vunpack.c.l.b16 %v5147
    %v5220 = vunpack.c.l.b16 %v5148
    %v5221 = vunpack.c.l.b16 %v5149
    %v5222 = vunpack.c.l.b16 %v5150
    %v5223 = vunpack.c.l.b16 %v5151
    %v5224 = vunpack.c.l.b16 %v5152
    %v5225 = vunpack.c.l.b16 %v5153
    %v5226 = vpack.c.b16 %v5195, %v5194
    %v5227 = vpack.c.b16 %v5197, %v5196
    %v5228 = vpack.c.b16 %v5199, %v5198
    %v5229 = vpack.c.b16 %v5201, %v5200
    %v5230 = vpack.c.b16 %v5203, %v5202
    %v5231 = vpack.c.b16 %v5205, %v5204
    %v5232 = vpack.c.b16 %v5207, %v5206
    %v5233 = vpack.c.b16 %v5209, %v5208
    %v5234 = vpack.c.b16 %v5211, %v5210
    %v5235 = vpack.c.b16 %v5213, %v5212
    %v5236 = vpack.c.b16 %v5215, %v5214
    %v5237 = vpack.c.b16 %v5217, %v5216
    %v5238 = vpack.c.b16 %v5219, %v5218
    %v5239 = vpack.c.b16 %v5221, %v5220
    %v5240 = vpack.c.b16 %v5223, %v5222
    %v5241 = vpack.c.b16 %v5225, %v5224
    %5258 = vmatprep.subr.bf16.mxu0 0
    %5259 = vmatpush1.bf16.msra.mxu0 %v5226
    %5260 = vmatprep.subr.bf16.mxu0 0
    %5261 = vmatpush1.bf16.msra.mxu0 %v5227
    %5262 = vmatprep.subr.bf16.mxu0 0
    %5263 = vmatpush1.bf16.msra.mxu0 %v5228
    %5264 = vmatprep.subr.bf16.mxu0 0
    %5265 = vmatpush1.bf16.msra.mxu0 %v5229
    %5266 = vmatprep.subr.bf16.mxu0 0
    %5267 = vmatpush1.bf16.msra.mxu0 %v5230
    %5268 = vmatprep.subr.bf16.mxu0 0
    %5269 = vmatpush1.bf16.msra.mxu0 %v5231
    %5270 = vmatprep.subr.bf16.mxu0 0
    %5271 = vmatpush1.bf16.msra.mxu0 %v5232
    %5272 = vmatprep.subr.bf16.mxu0 0
    %5273 = vmatpush1.bf16.msra.mxu0 %v5233
    %5274 = vmatprep.subr.bf16.mxu0 0
    %5275 = vmatpush1.bf16.msra.mxu0 %v5234
    %5276 = vmatprep.subr.bf16.mxu0 0
    %5277 = vmatpush1.bf16.msra.mxu0 %v5235
    %5278 = vmatprep.subr.bf16.mxu0 0
    %5279 = vmatpush1.bf16.msra.mxu0 %v5236
    %5280 = vmatprep.subr.bf16.mxu0 0
    %5281 = vmatpush1.bf16.msra.mxu0 %v5237
    %5282 = vmatprep.subr.bf16.mxu0 0
    %5283 = vmatpush1.bf16.msra.mxu0 %v5238
    %5284 = vmatprep.subr.bf16.mxu0 0
    %5285 = vmatpush1.bf16.msra.mxu0 %v5239
    %5286 = vmatprep.subr.bf16.mxu0 0
    %5287 = vmatpush1.bf16.msra.mxu0 %v5240
    %5288 = vmatprep.subr.bf16.mxu0 0
    %5289 = vmatpush1.bf16.msra.mxu0 %v5241
    %5290 = vmatprep.mubr.bf16.mxu0 %v5120
    %5291 = vmatmul.mubr.bf16.gmra.mrb[0].mxu0 %v5119
    %v5292 = vpop.f32.mrb[0].mxu0
    %v5293 = vadd.f32 %v5160, %v5292
    %v5294 = vpop.f32.mrb[0].mxu0
    %v5295 = vpop.f32.mrb[0].mxu0
    %v5296 = vadd.f32 %v5160, %v5295
    %v5297 = vpop.f32.mrb[0].mxu0
    %5298 = vdwg.mxu0
    %v5299 = vadd.f32 %v4959, %v5293
    %v5300 = vadd.f32 %v4960, %v5296
    %5301 = vadd.xlane.f32.xlu0 %v5299
    %v5302 = vpop.xlane.xlu0 %5301
    %5303 = vadd.xlane.f32.xlu0 %v5300
    %v5304 = vpop.xlane.xlu0 %5303
    %v5305 = vmul.f32 %v5302, %v2010
    %v5306 = vmul.f32 %v5304, %v2010
    %v5307 = vsub.f32 %v5299, %v5305
    %v5308 = vsub.f32 %v5300, %v5306
    %v5309 = vmul.f32 %v5307, %v5307
    %v5310 = vmul.f32 %v5308, %v5308
    %5311 = vadd.xlane.f32.xlu0 %v5309
    %v5312 = vpop.xlane.xlu0 %5311
    %5313 = vadd.xlane.f32.xlu0 %v5310
    %v5314 = vpop.xlane.xlu0 %5313
    %v5315 = vmul.f32 %v5312, %v2010
    %v5316 = vmul.f32 %v5314, %v2010
    %v5317 = vadd.f32 %v5315, 1e-05
    %v5318 = vadd.f32 %v5316, 1e-05
    %v5319 = vrsqrt.pop %v5317
    %v5320 = vrsqrt.pop %v5318
    %v5321 = vmul.f32 %v5307, %v5319
    %v5322 = vmul.f32 %v5308, %v5320
    %s5323 = scalar_lea.vmem [#allocation19], 2
    %v5324 = vld [vmem:[%s5323] sm:$0x1]
    %v5326 = vlaneseq
    %v5327 = vshrl.u32 %v5326, 7
    %v5328 = vsub.s32 0, %v5327
    %v5329 = vrot.slane %v5324, %v5328
    %v5331 = vmul.f32 %v5321, %v5329
    %v5332 = vmul.f32 %v5322, %v5329
    %s5333 = scalar_lea.vmem [#allocation20], 2
    %v5334 = vld [vmem:[%s5333] sm:$0x1]
    %v5336 = vlaneseq
    %v5337 = vshrl.u32 %v5336, 7
    %v5338 = vsub.s32 0, %v5337
    %v5339 = vrot.slane %v5334, %v5338
    %v5341 = vadd.f32 %v5331, %v5339
    %v5342 = vadd.f32 %v5332, %v5339
    %v5343 = vld [vmem:[%s17] sm:$0x3]
    %v5344 = vpack.c.bf16 %v5343, %v5343
    %v5345 = vld [vmem:[#allocation22] sm:$0xf]
    %v5346 = vld [vmem:[#allocation22 + $0x4] sm:$0xf]
    %v5347 = vld [vmem:[#allocation23] sm:$0x1]
    %v5349 = vlaneseq
    %v5350 = vshrl.u32 %v5349, 7
    %v5351 = vsub.s32 0, %v5350
    %v5352 = vrot.slane %v5347, %v5351
    %v5356 = vunpack.c.l.b16 %v5345
    %v5357 = vunpack.c.l.b16 %v5346
    %v5358 = vpack.c.b16 %v5357, %v5356
    %v5361 = vsel %vm1314, %v5344, 0
    %5363 = vmatprep.subr.bf16.mxu0 0
    %5364 = vmatpush1.bf16.msra.mxu0 %v5358
    %5365 = vmatprep.subr.bf16.mxu0 0
    %5366 = vmatpush1.bf16.msra.mxu0 0
    %5367 = vmatprep.subr.bf16.mxu0 0
    %5368 = vmatpush1.bf16.msra.mxu0 0
    %5369 = vmatprep.subr.bf16.mxu0 0
    %5370 = vmatpush1.bf16.msra.mxu0 0
    %5371 = vmatprep.subr.bf16.mxu0 0
    %5372 = vmatpush1.bf16.msra.mxu0 0
    %5373 = vmatprep.subr.bf16.mxu0 0
    %5374 = vmatpush1.bf16.msra.mxu0 0
    %5375 = vmatprep.subr.bf16.mxu0 0
    %5376 = vmatpush1.bf16.msra.mxu0 0
    %5377 = vmatprep.subr.bf16.mxu0 0
    %5378 = vmatpush1.bf16.msra.mxu0 0
    %5379 = vmatprep.subr.bf16.mxu0 0
    %5380 = vmatpush1.bf16.msra.mxu0 0
    %5381 = vmatprep.subr.bf16.mxu0 0
    %5382 = vmatpush1.bf16.msra.mxu0 0
    %5383 = vmatprep.subr.bf16.mxu0 0
    %5384 = vmatpush1.bf16.msra.mxu0 0
    %5385 = vmatprep.subr.bf16.mxu0 0
    %5386 = vmatpush1.bf16.msra.mxu0 0
    %5387 = vmatprep.subr.bf16.mxu0 0
    %5388 = vmatpush1.bf16.msra.mxu0 0
    %5389 = vmatprep.subr.bf16.mxu0 0
    %5390 = vmatpush1.bf16.msra.mxu0 0
    %5391 = vmatprep.subr.bf16.mxu0 0
    %5392 = vmatpush1.bf16.msra.mxu0 0
    %5393 = vmatprep.subr.bf16.mxu0 0
    %5394 = vmatpush1.bf16.msra.mxu0 0
    %5395 = vmatprep.mubr.bf16.mxu0 0
    %5396 = vmatmul.mubr.bf16.gmra.mrb[0].mxu0 %v5361
    %v5397 = vpop.f32.mrb[0].mxu0
    %v5398 = vadd.f32 %v5352, %v5397
    %v5399 = vpop.f32.mrb[0].mxu0
    %v5400 = vpop.f32.mrb[0].mxu0
    %v5401 = vpop.f32.mrb[0].mxu0
    %5402 = vdwg.mxu0
    %v5403 = vmax.f32 %v5398, 0.0
    %v5404 = vld [vmem:[%s20] sm:$0xf]
    %v5405 = vld [vmem:[%s20 + $0x4] sm:$0xf]
    %v5406 = vld [vmem:[%s20 + $0x8] sm:$0xf]
    %v5407 = vld [vmem:[%s20 + $0xc] sm:$0xf]
    %v5408 = vld [vmem:[%s20 + $0x10] sm:$0xf]
    %v5409 = vld [vmem:[%s20 + $0x14] sm:$0xf]
    %v5410 = vld [vmem:[%s20 + $0x18] sm:$0xf]
    %v5411 = vld [vmem:[%s20 + $0x1c] sm:$0xf]
    %v5412 = vld [vmem:[%s20 + $0x20] sm:$0xf]
    %v5413 = vld [vmem:[%s20 + $0x24] sm:$0xf]
    %v5414 = vld [vmem:[%s20 + $0x28] sm:$0xf]
    %v5415 = vld [vmem:[%s20 + $0x2c] sm:$0xf]
    %v5416 = vld [vmem:[%s20 + $0x30] sm:$0xf]
    %v5417 = vld [vmem:[%s20 + $0x34] sm:$0xf]
    %v5418 = vld [vmem:[%s20 + $0x38] sm:$0xf]
    %v5419 = vld [vmem:[%s20 + $0x3c] sm:$0xf]
    %v5420 = vld [vmem:[%s20 + $0x40] sm:$0xf]
    %v5421 = vld [vmem:[%s20 + $0x44] sm:$0xf]
    %v5422 = vld [vmem:[%s20 + $0x48] sm:$0xf]
    %v5423 = vld [vmem:[%s20 + $0x4c] sm:$0xf]
    %v5424 = vld [vmem:[%s20 + $0x50] sm:$0xf]
    %v5425 = vld [vmem:[%s20 + $0x54] sm:$0xf]
    %v5426 = vld [vmem:[%s20 + $0x58] sm:$0xf]
    %v5427 = vld [vmem:[%s20 + $0x5c] sm:$0xf]
    %v5428 = vpack.c.bf16 %v5341, %v5341
    %v5429 = vpack.c.bf16 %v5342, %v5342
    %v5430 = vpack.c.bf16 %v5403, %v5403
    %v5439 = vunpack.c.l.b16 %v5420
    %v5440 = vunpack.c.l.b16 %v5421
    %v5441 = vunpack.c.l.b16 %v5422
    %v5442 = vunpack.c.l.b16 %v5423
    %v5443 = vunpack.c.l.b16 %v5424
    %v5444 = vunpack.c.l.b16 %v5425
    %v5445 = vunpack.c.l.b16 %v5426
    %v5446 = vunpack.c.l.b16 %v5427
    %v5447 = vpack.c.b16 %v5440, %v5439
    %v5448 = vpack.c.b16 %v5442, %v5441
    %v5449 = vpack.c.b16 %v5444, %v5443
    %v5450 = vpack.c.b16 %v5446, %v5445
    %vm5455 = vcmask 523264
    %v5457 = vsel %vm5455, %v5430, 0
    %5459 = vmatprep.subr.bf16.mxu0 0
    %5460 = vmatpush1.bf16.msra.mxu0 %v5447
    %5461 = vmatprep.subr.bf16.mxu0 0
    %5462 = vmatpush1.bf16.msra.mxu0 %v5448
    %5463 = vmatprep.subr.bf16.mxu0 0
    %5464 = vmatpush1.bf16.msra.mxu0 %v5449
    %5465 = vmatprep.subr.bf16.mxu0 0
    %5466 = vmatpush1.bf16.msra.mxu0 %v5450
    %5467 = vmatprep.subr.bf16.mxu0 0
    %5468 = vmatpush1.bf16.msra.mxu0 0
    %5469 = vmatprep.subr.bf16.mxu0 0
    %5470 = vmatpush1.bf16.msra.mxu0 0
    %5471 = vmatprep.subr.bf16.mxu0 0
    %5472 = vmatpush1.bf16.msra.mxu0 0
    %5473 = vmatprep.subr.bf16.mxu0 0
    %5474 = vmatpush1.bf16.msra.mxu0 0
    %5475 = vmatprep.subr.bf16.mxu0 0
    %5476 = vmatpush1.bf16.msra.mxu0 0
    %5477 = vmatprep.subr.bf16.mxu0 0
    %5478 = vmatpush1.bf16.msra.mxu0 0
    %5479 = vmatprep.subr.bf16.mxu0 0
    %5480 = vmatpush1.bf16.msra.mxu0 0
    %5481 = vmatprep.subr.bf16.mxu0 0
    %5482 = vmatpush1.bf16.msra.mxu0 0
    %5483 = vmatprep.subr.bf16.mxu0 0
    %5484 = vmatpush1.bf16.msra.mxu0 0
    %5485 = vmatprep.subr.bf16.mxu0 0
    %5486 = vmatpush1.bf16.msra.mxu0 0
    %5487 = vmatprep.subr.bf16.mxu0 0
    %5488 = vmatpush1.bf16.msra.mxu0 0
    %5489 = vmatprep.subr.bf16.mxu0 0
    %5490 = vmatpush1.bf16.msra.mxu0 0
    %5491 = vmatprep.mubr.bf16.mxu0 0
    %5492 = vmatmul.mubr.bf16.gmra.mrb[0].mxu0 %v5457
    %v5493 = vpop.f32.mrb[0].mxu0
    %v5494 = vadd.f32 0.0, %v5493
    %v5495 = vpop.f32.mrb[0].mxu0
    %v5496 = vpop.f32.mrb[0].mxu0
    %v5497 = vpop.f32.mrb[0].mxu0
    %5498 = vdwg.mxu0
    %v5501 = vunpack.c.l.b16 %v5428
    %v5502 = vunpack.c.l.b16 %v5429
    %v5503 = vrot.slane %v5501, 7
    %v5504 = vrot.slane %v5502, 6
    %vm5505 = vcmask 1041409
    %v5506 = vsel %vm5505, %v5504, %v5503
    %v5507 = vpack.c.b16 %v5506, %v5506
    %v5525 = vunpack.c.l.b16 %v5404
    %v5526 = vunpack.c.l.b16 %v5405
    %v5527 = vunpack.c.l.b16 %v5406
    %v5528 = vunpack.c.l.b16 %v5407
    %v5529 = vunpack.c.l.b16 %v5408
    %v5530 = vunpack.c.l.b16 %v5409
    %v5531 = vunpack.c.l.b16 %v5410
    %v5532 = vunpack.c.l.b16 %v5411
    %v5533 = vunpack.c.l.b16 %v5412
    %v5534 = vunpack.c.l.b16 %v5413
    %v5535 = vunpack.c.l.b16 %v5414
    %v5536 = vunpack.c.l.b16 %v5415
    %v5537 = vunpack.c.l.b16 %v5416
    %v5538 = vunpack.c.l.b16 %v5417
    %v5539 = vunpack.c.l.b16 %v5418
    %v5540 = vunpack.c.l.b16 %v5419
    %v5541 = vpack.c.b16 %v5526, %v5525
    %v5542 = vpack.c.b16 %v5528, %v5527
    %v5543 = vpack.c.b16 %v5530, %v5529
    %v5544 = vpack.c.b16 %v5532, %v5531
    %v5545 = vpack.c.b16 %v5534, %v5533
    %v5546 = vpack.c.b16 %v5536, %v5535
    %v5547 = vpack.c.b16 %v5538, %v5537
    %v5548 = vpack.c.b16 %v5540, %v5539
    %5557 = vmatprep.subr.bf16.mxu0 0
    %5558 = vmatpush1.bf16.msra.mxu0 %v5541
    %5559 = vmatprep.subr.bf16.mxu0 0
    %5560 = vmatpush1.bf16.msra.mxu0 %v5542
    %5561 = vmatprep.subr.bf16.mxu0 0
    %5562 = vmatpush1.bf16.msra.mxu0 %v5543
    %5563 = vmatprep.subr.bf16.mxu0 0
    %5564 = vmatpush1.bf16.msra.mxu0 %v5544
    %5565 = vmatprep.subr.bf16.mxu0 0
    %5566 = vmatpush1.bf16.msra.mxu0 %v5545
    %5567 = vmatprep.subr.bf16.mxu0 0
    %5568 = vmatpush1.bf16.msra.mxu0 %v5546
    %5569 = vmatprep.subr.bf16.mxu0 0
    %5570 = vmatpush1.bf16.msra.mxu0 %v5547
    %5571 = vmatprep.subr.bf16.mxu0 0
    %5572 = vmatpush1.bf16.msra.mxu0 %v5548
    %5573 = vmatprep.subr.bf16.mxu0 0
    %5574 = vmatpush1.bf16.msra.mxu0 0
    %5575 = vmatprep.subr.bf16.mxu0 0
    %5576 = vmatpush1.bf16.msra.mxu0 0
    %5577 = vmatprep.subr.bf16.mxu0 0
    %5578 = vmatpush1.bf16.msra.mxu0 0
    %5579 = vmatprep.subr.bf16.mxu0 0
    %5580 = vmatpush1.bf16.msra.mxu0 0
    %5581 = vmatprep.subr.bf16.mxu0 0
    %5582 = vmatpush1.bf16.msra.mxu0 0
    %5583 = vmatprep.subr.bf16.mxu0 0
    %5584 = vmatpush1.bf16.msra.mxu0 0
    %5585 = vmatprep.subr.bf16.mxu0 0
    %5586 = vmatpush1.bf16.msra.mxu0 0
    %5587 = vmatprep.subr.bf16.mxu0 0
    %5588 = vmatpush1.bf16.msra.mxu0 0
    %5589 = vmatprep.mubr.bf16.mxu0 0
    %5590 = vmatmul.mubr.bf16.gmra.mrb[0].mxu0 %v5507
    %v5591 = vpop.f32.mrb[0].mxu0
    %v5592 = vadd.f32 %v5494, %v5591
    %v5593 = vpop.f32.mrb[0].mxu0
    %v5594 = vpop.f32.mrb[0].mxu0
    %v5595 = vpop.f32.mrb[0].mxu0
    %5596 = vdwg.mxu0
    %v5597 = vld [vmem:[#allocation25] sm:$0x1]
    %v5599 = vlaneseq
    %v5600 = vshrl.u32 %v5599, 7
    %v5601 = vsub.s32 0, %v5600
    %v5602 = vrot.slane %v5597, %v5601
    %v5604 = vadd.f32 %v5592, %v5602
    %v5605 = vmax.f32 %v5604, 0.0
    %v5606 = vpack.c.bf16 %v5605, %v5605
    %v5607 = vld [vmem:[#allocation26] sm:$0xf]
    %v5608 = vld [vmem:[#allocation26 + $0x4] sm:$0xf]
    %v5609 = vld [vmem:[#allocation26 + $0x8] sm:$0xf]
    %v5610 = vld [vmem:[#allocation26 + $0xc] sm:$0xf]
    %v5611 = vld [vmem:[#allocation26 + $0x10] sm:$0xf]
    %v5612 = vld [vmem:[#allocation26 + $0x14] sm:$0xf]
    %v5613 = vld [vmem:[#allocation26 + $0x18] sm:$0xf]
    %v5614 = vld [vmem:[#allocation26 + $0x1c] sm:$0xf]
    %v5615 = vld [vmem:[#allocation28] sm:$0x1]
    %v5617 = vlaneseq
    %v5618 = vshrl.u32 %v5617, 7
    %v5619 = vsub.s32 0, %v5618
    %v5620 = vrot.slane %v5615, %v5619
    %v5630 = vunpack.c.l.b16 %v5607
    %v5631 = vunpack.c.l.b16 %v5608
    %v5632 = vunpack.c.l.b16 %v5609
    %v5633 = vunpack.c.l.b16 %v5610
    %v5634 = vunpack.c.l.b16 %v5611
    %v5635 = vunpack.c.l.b16 %v5612
    %v5636 = vunpack.c.l.b16 %v5613
    %v5637 = vunpack.c.l.b16 %v5614
    %v5638 = vpack.c.b16 %v5631, %v5630
    %v5639 = vpack.c.b16 %v5633, %v5632
    %v5640 = vpack.c.b16 %v5635, %v5634
    %v5641 = vpack.c.b16 %v5637, %v5636
    %v5647 = vsel %vm5455, %v5606, 0
    %5649 = vmatprep.subr.bf16.mxu0 0
    %5650 = vmatpush1.bf16.msra.mxu0 %v5638
    %5651 = vmatprep.subr.bf16.mxu0 0
    %5652 = vmatpush1.bf16.msra.mxu0 %v5639
    %5653 = vmatprep.subr.bf16.mxu0 0
    %5654 = vmatpush1.bf16.msra.mxu0 %v5640
    %5655 = vmatprep.subr.bf16.mxu0 0
    %5656 = vmatpush1.bf16.msra.mxu0 %v5641
    %5657 = vmatprep.subr.bf16.mxu0 0
    %5658 = vmatpush1.bf16.msra.mxu0 0
    %5659 = vmatprep.subr.bf16.mxu0 0
    %5660 = vmatpush1.bf16.msra.mxu0 0
    %5661 = vmatprep.subr.bf16.mxu0 0
    %5662 = vmatpush1.bf16.msra.mxu0 0
    %5663 = vmatprep.subr.bf16.mxu0 0
    %5664 = vmatpush1.bf16.msra.mxu0 0
    %5665 = vmatprep.subr.bf16.mxu0 0
    %5666 = vmatpush1.bf16.msra.mxu0 0
    %5667 = vmatprep.subr.bf16.mxu0 0
    %5668 = vmatpush1.bf16.msra.mxu0 0
    %5669 = vmatprep.subr.bf16.mxu0 0
    %5670 = vmatpush1.bf16.msra.mxu0 0
    %5671 = vmatprep.subr.bf16.mxu0 0
    %5672 = vmatpush1.bf16.msra.mxu0 0
    %5673 = vmatprep.subr.bf16.mxu0 0
    %5674 = vmatpush1.bf16.msra.mxu0 0
    %5675 = vmatprep.subr.bf16.mxu0 0
    %5676 = vmatpush1.bf16.msra.mxu0 0
    %5677 = vmatprep.subr.bf16.mxu0 0
    %5678 = vmatpush1.bf16.msra.mxu0 0
    %5679 = vmatprep.subr.bf16.mxu0 0
    %5680 = vmatpush1.bf16.msra.mxu0 0
    %5681 = vmatprep.mubr.bf16.mxu0 0
    %5682 = vmatmul.mubr.bf16.gmra.mrb[0].mxu0 %v5647
    %v5683 = vpop.f32.mrb[0].mxu0
    %v5684 = vadd.f32 %v5620, %v5683
    %v5685 = vpop.f32.mrb[0].mxu0
    %v5686 = vpop.f32.mrb[0].mxu0
    %v5687 = vpop.f32.mrb[0].mxu0
    %5688 = vdwg.mxu0
    %v5689 = vxor.u32 %v5684, 2147483648
    %v5690 = vmul.f32 %v5689, 1.442695
    %v5691 = vpow.pop %v5690
    %v5692 = vadd.f32 %v5691, 1.0
    %v5693 = vrcp.pop %v5692
    %v5694 = vmul.f32 1.0, %v5693
    %5695 = vst [vmem:[%s24] sm:$0x3] %v5694
    // Predicated region
    $region166: #{event_transformer_forward.1} parent=1 // pred_check
      _
    $region167: #{event_transformer_forward.1} parent=1 // pred_check_branch
      %5697 = sbr.rel (0) target = $region169
    $region168: #{event_transformer_forward.1} parent=1 // pred_region
      _
    $region169: #{event_transformer_forward.1} parent=1 // pred_fallthru
      _
    // Predicated region
    $region170: #{event_transformer_forward.1} parent=1 // pred_check
      _
    $region171: #{event_transformer_forward.1} parent=1 // pred_check_branch
      %5699 = sbr.rel (0) target = $region173
    $region172: #{event_transformer_forward.1} parent=1 // pred_region
      _
    $region173: #{event_transformer_forward.1} parent=1 // pred_fallthru
      _
    %5700 = vsyncpa [#allocation4], 1
    %5701 = vsyncpa [#allocation6], 1
    %5702 = vsyncpa [#allocation9], 1
    %5703 = vsyncpa [#allocation12], 1
    %5704 = vsyncpa [#allocation15], 1
    %5705 = vsyncpa [#allocation18], 1
    %5706 = vsyncpa [#allocation21], 1
    %5707 = vsyncpa [#allocation24], 1
    %5708 = vsyncpa [#allocation27], 1

</llo_original>
